<compile_context>
chip_gen: v6e
topology: v6e:2x2x1
jax: 0.10.0
libtpu: 0.0.40
codegen_flags: <defaults>
</compile_context>

<pallas_src>
import functools

import jax
import jax.numpy as jnp
from jax import lax
from jax.experimental import pallas as pl
from jax.experimental.pallas import tpu as pltpu

_EPS = 1e-5                      # PyTorch BatchNorm2d / InstanceNorm2d default
_LANE = 128                      # channel alignment (lane-dense)

# Tile caps.  On v5e (4x128x128 MXU) 128 is already matched; 256/512 feeds the
# 2x256x256 MXU on v6e/v7x.  Narrow layers automatically fall back to 128.
_TK_CAP = 256                    # reduction-channel tile cap
_TN_CAP_1X1 = 512                # out-channel tile cap for the 1x1 convs
_TN_CAP_3X3 = 256                # out-channel tile cap for the 3x3 conv
_TM_CAP = 1024                   # HW (M) tile cap for 1x1 convs / epilogue


def _round_up(c, m=_LANE):
    return ((c + m - 1) // m) * m


def _pad_to(a, shape):
    return jnp.pad(a, [(0, t - s) for s, t in zip(a.shape, shape)])


def _pick_tile(total, cap, align):
    """Largest divisor of `total` that is <= cap and a multiple of `align`
    (falls back to `total` when nothing suitable exists)."""
    if total <= cap:
        return total
    for t in range(cap, 0, -1):
        if total % t == 0 and t % align == 0:
            return t
    return total


@functools.lru_cache(maxsize=1)
def _vmem_limit_bytes():
    """Generation-aware scoped-VMEM budget (64 MiB/TC on v7x, 128 MiB on v5e/v6e)."""
    try:
        cap = int(pltpu.get_tpu_info().vmem_capacity_bytes)
    except Exception:  # pragma: no cover - conservative fallback
        cap = 64 * 1024 * 1024
    return max(32 * 1024 * 1024, min(3 * cap // 4, 100 * 1024 * 1024))


# -----------------------------------------------------------------------------
# 1x1 conv (tiled MXU matmul) fused with:
#   * optional on-the-fly DSON-normalize + ReLU of the *input* (previous stage)
#   * per-(sample, channel) sum / sum-of-squares of the raw output (DSON stats)
# Grid: (sample n, out-channel tile j, HW tile m, in-channel tile k).
# K accumulates into an f32 VMEM scratch; the stats outputs stay resident across
# (m, k) and are accumulated at the last K step of every M tile.
# -----------------------------------------------------------------------------
def _conv1x1_dson_kernel(*refs, pre_norm):
    if pre_norm:
        x_ref, sc_ref, sh_ref, w_ref, o_ref, s_ref, q_ref, acc_ref = refs
    else:
        x_ref, w_ref, o_ref, s_ref, q_ref, acc_ref = refs

    m = pl.program_id(2)
    k = pl.program_id(3)

    @pl.when((m == 0) & (k == 0))
    def _init_stats():
        s_ref[...] = jnp.zeros_like(s_ref)
        q_ref[...] = jnp.zeros_like(q_ref)

    @pl.when(k == 0)
    def _init_acc():
        acc_ref[...] = jnp.zeros_like(acc_ref)

    if pre_norm:
        xb = x_ref[0].astype(jnp.float32)                       # (tm, tk)
        xb = jnp.maximum(xb * sc_ref[0] + sh_ref[0], 0.0)       # DSON + ReLU (prev stage)
        xb = xb.astype(jnp.bfloat16)
    else:
        xb = x_ref[0]                                           # already bf16

    acc_ref[...] += jnp.dot(xb, w_ref[...], preferred_element_type=jnp.float32)

    @pl.when(k == pl.num_programs(3) - 1)
    def _finalize():
        a = acc_ref[...]                                        # (tm, tn) f32
        o_ref[0] = a.astype(o_ref.dtype)
        s_ref[0] += jnp.sum(a, axis=0, keepdims=True)
        q_ref[0] += jnp.sum(a * a, axis=0, keepdims=True)


def conv1x1_dson(x, w, scale=None, shift=None):
    """x: (N, HW, Cin_p) bf16; w: (Cin_p, Cout_p) bf16 -> (out bf16, sum f32, sumsq f32)."""
    n, hw, cin = x.shape
    cout = w.shape[1]
    pre_norm = scale is not None

    tk = _pick_tile(cin, _TK_CAP, _LANE)
    tn = _pick_tile(cout, _TN_CAP_1X1, _LANE)
    tm = _pick_tile(hw, _TM_CAP, 8)

    x_spec = pl.BlockSpec((1, tm, tk), lambda n_, j, m, k: (n_, m, k))
    ss_spec = pl.BlockSpec((1, 1, tk), lambda n_, j, m, k: (n_, 0, k))
    w_spec = pl.BlockSpec((tk, tn), lambda n_, j, m, k: (k, j))
    out_spec = pl.BlockSpec((1, tm, tn), lambda n_, j, m, k: (n_, m, j))
    st_spec = pl.BlockSpec((1, 1, tn), lambda n_, j, m, k: (n_, 0, j))

    if pre_norm:
        in_specs = [x_spec, ss_spec, ss_spec, w_spec]
        args = (x, scale, shift, w)
    else:
        in_specs = [x_spec, w_spec]
        args = (x, w)

    return pl.pallas_call(
        functools.partial(_conv1x1_dson_kernel, pre_norm=pre_norm),
        grid=(n, cout // tn, hw // tm, cin // tk),
        in_specs=in_specs,
        out_specs=(out_spec, st_spec, st_spec),
        out_shape=(jax.ShapeDtypeStruct((n, hw, cout), jnp.bfloat16),
                   jax.ShapeDtypeStruct((n, 1, cout), jnp.float32),
                   jax.ShapeDtypeStruct((n, 1, cout), jnp.float32)),
        scratch_shapes=[pltpu.VMEM((tm, tn), jnp.float32)],
        compiler_params=pltpu.CompilerParams(
            dimension_semantics=("parallel", "parallel", "arbitrary", "arbitrary"),
            vmem_limit_bytes=_vmem_limit_bytes()),
    )(*args)


# -----------------------------------------------------------------------------
# 3x3 conv (stride 1, pad 1) as 9 accumulating MXU dots (no im2col patch), fused
# with the previous stage's DSON-normalize + ReLU and this stage's DSON stats.
# The zero halo lives in a VMEM scratch (no HBM padded copy of the activation).
# -----------------------------------------------------------------------------
def _conv3x3_dson_kernel(x_ref, sc_ref, sh_ref, w_ref, o_ref, s_ref, q_ref,
                         xpad_ref, acc_ref, *, h, w):
    k = pl.program_id(2)
    tk = x_ref.shape[-1]

    @pl.when(k == 0)
    def _init():
        # Zero the padded scratch: this is the conv's zero halo.  Doing it at
        # k == 0 of every (n, j) loop is cheap (once per k-loop) and is correct
        # under megacore sharding of the parallel grid axes.
        xpad_ref[...] = jnp.zeros_like(xpad_ref)
        acc_ref[...] = jnp.zeros_like(acc_ref)

    # Previous stage's DSON normalize + ReLU, fused into the input path and
    # written into the interior of the zero-padded VMEM scratch.
    xn = jnp.maximum(x_ref[0].astype(jnp.float32) * sc_ref[0] + sh_ref[0], 0.0)
    xpad_ref[1:h + 1, 1:w + 1, :] = xn.astype(jnp.bfloat16)

    # 9 accumulating dots (MXU FLOPs identical to a single K=9*tk dot, but no
    # (hw, 9*tk) scratch and no extra vector-store traffic).
    for t in range(9):
        dy, dx = divmod(t, 3)
        tap = xpad_ref[dy:dy + h, dx:dx + w, :].reshape(h * w, tk)
        acc_ref[...] += jnp.dot(tap, w_ref[t], preferred_element_type=jnp.float32)

    @pl.when(k == pl.num_programs(2) - 1)
    def _finalize():
        a = acc_ref[...]                                        # (HW, tn) f32
        o_ref[0] = a.astype(o_ref.dtype)
        s_ref[0] = jnp.sum(a, axis=0, keepdims=True)
        q_ref[0] = jnp.sum(a * a, axis=0, keepdims=True)


def conv3x3_dson(x_img, scale, shift, w9):
    """x_img: (N, H, W, Cin_p) bf16 raw previous-conv output (unpadded);
    scale/shift: (N, 1, Cin_p) f32; w9: (9, Cin_p, Cout_p) bf16."""
    n, h, w, cin = x_img.shape
    cout = w9.shape[-1]
    hw = h * w
    tk = _pick_tile(cin, _TK_CAP, _LANE)
    tn = _pick_tile(cout, _TN_CAP_3X3, _LANE)

    # TODO(synk): for very large feature maps (hw >> 4096) add an H-tile axis so the
    #             f32 accumulator + padded scratch stay inside v7x's 64 MiB VMEM.
    return pl.pallas_call(
        functools.partial(_conv3x3_dson_kernel, h=h, w=w),
        grid=(n, cout // tn, cin // tk),
        in_specs=[pl.BlockSpec((1, h, w, tk), lambda n_, j, k: (n_, 0, 0, k)),
                  pl.BlockSpec((1, 1, tk), lambda n_, j, k: (n_, 0, k)),
                  pl.BlockSpec((1, 1, tk), lambda n_, j, k: (n_, 0, k)),
                  pl.BlockSpec((9, tk, tn), lambda n_, j, k: (0, k, j))],
        out_specs=(pl.BlockSpec((1, hw, tn), lambda n_, j, k: (n_, 0, j)),
                   pl.BlockSpec((1, 1, tn), lambda n_, j, k: (n_, 0, j)),
                   pl.BlockSpec((1, 1, tn), lambda n_, j, k: (n_, 0, j))),
        out_shape=(jax.ShapeDtypeStruct((n, hw, cout), jnp.bfloat16),
                   jax.ShapeDtypeStruct((n, 1, cout), jnp.float32),
                   jax.ShapeDtypeStruct((n, 1, cout), jnp.float32)),
        scratch_shapes=[pltpu.VMEM((h + 2, w + 2, tk), jnp.bfloat16),
                        pltpu.VMEM((hw, tn), jnp.float32)],
        compiler_params=pltpu.CompilerParams(
            dimension_semantics=("parallel", "parallel", "arbitrary"),
            vmem_limit_bytes=_vmem_limit_bytes()),
    )(x_img, scale, shift, w9)


# -----------------------------------------------------------------------------
# Final fused elementwise kernel: bn3 apply + residual add + ReLU.
# bf16 in / bf16 out (add in f32) -> purely HBM-bound kernel at ~55% of the
# previous byte count.
# -----------------------------------------------------------------------------
def _dson_apply_kernel(x_ref, sc_ref, sh_ref, r_ref, o_ref):
    y = (x_ref[0].astype(jnp.float32) * sc_ref[0] + sh_ref[0]
         + r_ref[0].astype(jnp.float32))
    o_ref[0] = jnp.maximum(y, 0.0).astype(o_ref.dtype)


def dson_apply_residual_relu(x, scale, shift, residual):
    n, hw, c = x.shape
    tn = _pick_tile(c, _TN_CAP_3X3, _LANE)
    tm = _pick_tile(hw, 2 * _TM_CAP, 8)
    blk = pl.BlockSpec((1, tm, tn), lambda n_, m, j: (n_, m, j))
    ss = pl.BlockSpec((1, 1, tn), lambda n_, m, j: (n_, 0, j))
    return pl.pallas_call(
        _dson_apply_kernel,
        grid=(n, hw // tm, c // tn),
        in_specs=[blk, ss, ss, blk],
        out_specs=blk,
        out_shape=jax.ShapeDtypeStruct((n, hw, c), jnp.bfloat16),
        compiler_params=pltpu.CompilerParams(
            dimension_semantics=("parallel", "parallel", "parallel"),
            vmem_limit_bytes=_vmem_limit_bytes()),
    )(x, scale, shift, residual)


# -----------------------------------------------------------------------------
# DSON scale/shift from the in-kernel statistics (tiny (N, C) math, hoisted to JAX;
# includes the 2-way softmax over the IN/BN mixture weights).
# -----------------------------------------------------------------------------
def _dson_scale_shift(s, q, hw, bn, domain_label, eps=_EPS):
    cp = s.shape[-1]
    gamma = _pad_to(bn["gamma"][domain_label], (cp,))
    beta = _pad_to(bn["beta"][domain_label], (cp,))
    mw = jax.nn.softmax(bn["mean_weight"][domain_label])        # (2,)
    vw = jax.nn.softmax(bn["var_weight"][domain_label])         # (2,)

    mean_in = s / hw                                            # (N, 1, Cp)
    msq_in = q / hw
    var_in = jnp.maximum(msq_in - mean_in * mean_in, 0.0)       # clamp: cancellation guard
    mean_bn = jnp.mean(mean_in, axis=0, keepdims=True)          # (1, 1, Cp)
    msq_bn = jnp.mean(msq_in, axis=0, keepdims=True)
    var_bn = jnp.maximum(msq_bn - mean_bn * mean_bn, 0.0)

    mean = mw[0] * mean_in + mw[1] * mean_bn
    var = vw[0] * var_in + vw[1] * var_bn
    inv = lax.rsqrt(var + eps)
    scale = gamma[None, None, :] * inv                          # (N, 1, Cp)
    shift = beta[None, None, :] - mean * scale
    return scale.astype(jnp.float32), shift.astype(jnp.float32)


# -----------------------------------------------------------------------------
# Bottleneck forward (matches the PyTorch module's op order).
# -----------------------------------------------------------------------------
@functools.partial(jax.jit, static_argnums=(2, 3))
def bottleneck_forward(params, x_nchw, domain_label, stride=1):
    # TODO(synk): stride > 1 and the `downsample` branch are not instantiated.
    assert stride == 1
    n, c_in, h, w = x_nchw.shape
    hw = h * w
    planes = params["conv1_w"].shape[0]
    c_out = planes * 4
    assert c_in == c_out, "identity shortcut requires inplanes == planes * expansion"

    cp_in = _round_up(c_in)
    cp_mid = _round_up(planes)
    cp_out = _round_up(c_out)                 # == cp_in

    # Single preprocessing pass: NCHW -> NHWC, channel zero-pad to lane multiple,
    # bf16 cast (one fused HBM pass; no separate f32 copy kept alive).
    x_bf16 = _pad_to(jnp.transpose(x_nchw, (0, 2, 3, 1)),
                     (n, h, w, cp_in)).astype(jnp.bfloat16).reshape(n, hw, cp_in)
    residual = x_bf16                         # bf16 identity shortcut

    # ---- conv1 (1x1) + bn1 stats -------------------------------------------------
    w1 = _pad_to(jnp.transpose(params["conv1_w"][:, :, 0, 0], (1, 0)),
                 (cp_in, cp_mid)).astype(jnp.bfloat16)
    out1, s1, q1 = conv1x1_dson(x_bf16, w1)
    scale1, shift1 = _dson_scale_shift(s1, q1, hw, params["bn1"], domain_label)

    # ---- conv2 (3x3) with bn1-normalize + ReLU fused into its input path ----------
    w2 = _pad_to(jnp.transpose(params["conv2_w"], (2, 3, 1, 0)).reshape(9, planes, planes),
                 (9, cp_mid, cp_mid)).astype(jnp.bfloat16)
    out2, s2, q2 = conv3x3_dson(out1.reshape(n, h, w, cp_mid), scale1, shift1, w2)
    scale2, shift2 = _dson_scale_shift(s2, q2, hw, params["bn2"], domain_label)

    # ---- conv3 (1x1) with bn2-normalize + ReLU fused into its input load ----------
    w3 = _pad_to(jnp.transpose(params["conv3_w"][:, :, 0, 0], (1, 0)),
                 (cp_mid, cp_out)).astype(jnp.bfloat16)
    out3, s3, q3 = conv1x1_dson(out2, w3, scale2, shift2)
    scale3, shift3 = _dson_scale_shift(s3, q3, hw, params["bn3"], domain_label)

    # ---- bn3 apply + residual add + ReLU (single fused bf16 kernel) ----------------
    y = dson_apply_residual_relu(out3, scale3, shift3, residual)

    y = y[:, :, :c_out].reshape(n, h, w, c_out)
    return jnp.transpose(y, (0, 3, 1, 2)).astype(jnp.float32)   # NHWC -> NCHW


# -----------------------------------------------------------------------------
# Deterministic parameter init (shapes follow Bottleneck.__init__).
# -----------------------------------------------------------------------------
def init_bottleneck_params(key, inplanes, planes, num_domains=3):
    expansion = 4
    k1, k2, k3, k4 = jax.random.split(key, 4)

    def conv_init(k, cout, cin, kh, kw):
        fan = cin * kh * kw
        return jax.random.normal(k, (cout, cin, kh, kw), jnp.float32) * (2.0 / fan) ** 0.5

    def dson_init(kg, kb, c):
        return dict(
            gamma=1.0 + 0.1 * jax.random.normal(kg, (num_domains, c), jnp.float32),
            beta=0.1 * jax.random.normal(kb, (num_domains, c), jnp.float32),
            mean_weight=jnp.ones((num_domains, 2), jnp.float32),
            var_weight=jnp.ones((num_domains, 2), jnp.float32),
        )

    kg1, kg2, kg3, kb1, kb2, kb3 = jax.random.split(k4, 6)
    return dict(
        conv1_w=conv_init(k1, planes, inplanes, 1, 1),
        conv2_w=conv_init(k2, planes, planes, 3, 3),
        conv3_w=conv_init(k3, planes * expansion, planes, 1, 1),
        bn1=dson_init(kg1, kb1, planes),
        bn2=dson_init(kg2, kb2, planes),
        bn3=dson_init(kg3, kb3, planes * expansion),
    )


if __name__ == "__main__":
    key = jax.random.PRNGKey(0)
    kx, kp = jax.random.split(key)

    # NOTE: at these demo sizes nearly all work is lane padding (planes=4 -> 128);
    # benchmark/tune with realistic ResNet widths (planes >= 64) before drawing
    # performance conclusions.
    N, H, W = 2, 16, 16
    planes = 4
    inplanes = planes * 4          # identity shortcut -> downsample is None
    num_domains = 3
    domain_label = 1               # which domain's DSON params / mixture weights

    x = jax.random.normal(kx, (N, inplanes, H, W), jnp.float32)   # NCHW, like PyTorch
    params = init_bottleneck_params(kp, inplanes, planes, num_domains=num_domains)

    out = bottleneck_forward(params, x, domain_label, 1)
    out = jax.block_until_ready(out)

    assert out.shape == (N, planes * 4, H, W), out.shape
    assert bool(jnp.all(jnp.isfinite(out)))
    assert bool(jnp.all(out >= 0.0))   # final ReLU
    print("KERNEL_OK")
</pallas_src>

<mosaic_0001>
module attributes {stable_mosaic.version = 11 : i64} {
  func.func @_conv1x1_dson_kernel(%arg0: i32, %arg1: i32, %arg2: i32, %arg3: i32, %arg4: memref<1x256x128xbf16, #tpu.memory_space<vmem>>, %arg5: memref<128x128xbf16, #tpu.memory_space<vmem>>, %arg6: memref<1x256x128xbf16, #tpu.memory_space<vmem>>, %arg7: memref<1x1x128xf32, #tpu.memory_space<vmem>>, %arg8: memref<1x1x128xf32, #tpu.memory_space<vmem>>, %arg9: memref<256x128xf32, #tpu.memory_space<vmem>>) attributes {dimension_semantics = [#tpu.dimension_semantics<parallel>, #tpu.dimension_semantics<parallel>, #tpu.dimension_semantics<arbitrary>, #tpu.dimension_semantics<arbitrary>], iteration_bounds = array<i64: 2, 1, 1, 1>, scalar_prefetch = 0 : i64, scratch_operands = 1 : i64, tpu.core_type = #tpu.core_type<tc>, window_params = [{transform_indices = @transform_0, window_bounds = array<i64: 1, 256, 128>}, {transform_indices = @transform_1, window_bounds = array<i64: 128, 128>}, {transform_indices = @transform_2, window_bounds = array<i64: 1, 256, 128>}, {transform_indices = @transform_3, window_bounds = array<i64: 1, 1, 128>}, {transform_indices = @transform_4, window_bounds = array<i64: 1, 1, 128>}]} {
    %c0_i32 = arith.constant 0 : i32
    %0 = arith.cmpi eq, %arg2, %c0_i32 : i32
    %c0_i32_0 = arith.constant 0 : i32
    %1 = arith.cmpi eq, %arg3, %c0_i32_0 : i32
    %2 = arith.andi %0, %1 : i1
    %3 = arith.extui %2 : i1 to i32
    %c0_i32_1 = arith.constant 0 : i32
    %4 = arith.cmpi ne, %3, %c0_i32_1 : i32
    scf.if %4 {
      %cst_14 = arith.constant 0.000000e+00 : f32
      %18 = vector.broadcast %cst_14 : f32 to vector<1x1x128xf32>
      %c0_15 = arith.constant 0 : index
      %c0_16 = arith.constant 0 : index
      %c0_17 = arith.constant 0 : index
      %19 = vector.load %arg7[%c0_15, %c0_16, %c0_17] : memref<1x1x128xf32, #tpu.memory_space<vmem>>, vector<1x1x128xf32>
      tpu.vector_store %arg7[%c0_15, %c0_16, %c0_17], %18 {strides = array<i32>} : memref<1x1x128xf32, #tpu.memory_space<vmem>>, vector<1x1x128xf32>,
      %cst_18 = arith.constant 0.000000e+00 : f32
      %20 = vector.broadcast %cst_18 : f32 to vector<1x1x128xf32>
      %c0_19 = arith.constant 0 : index
      %c0_20 = arith.constant 0 : index
      %c0_21 = arith.constant 0 : index
      %21 = vector.load %arg8[%c0_19, %c0_20, %c0_21] : memref<1x1x128xf32, #tpu.memory_space<vmem>>, vector<1x1x128xf32>
      tpu.vector_store %arg8[%c0_19, %c0_20, %c0_21], %20 {strides = array<i32>} : memref<1x1x128xf32, #tpu.memory_space<vmem>>, vector<1x1x128xf32>,
    } else {
    }
    %c0_i32_2 = arith.constant 0 : i32
    %5 = arith.cmpi eq, %arg3, %c0_i32_2 : i32
    %6 = arith.extui %5 : i1 to i32
    %c0_i32_3 = arith.constant 0 : i32
    %7 = arith.cmpi ne, %6, %c0_i32_3 : i32
    scf.if %7 {
      %cst_14 = arith.constant 0.000000e+00 : f32
      %18 = vector.broadcast %cst_14 : f32 to vector<256x128xf32>
      %c0_15 = arith.constant 0 : index
      %c0_16 = arith.constant 0 : index
      %19 = vector.load %arg9[%c0_15, %c0_16] : memref<256x128xf32, #tpu.memory_space<vmem>>, vector<256x128xf32>
      tpu.vector_store %arg9[%c0_15, %c0_16], %18 {strides = array<i32>} : memref<256x128xf32, #tpu.memory_space<vmem>>, vector<256x128xf32>,
    } else {
    }
    %c0 = arith.constant 0 : index
    %c0_4 = arith.constant 0 : index
    %c0_5 = arith.constant 0 : index
    %8 = vector.load %arg4[%c0, %c0_4, %c0_5] : memref<1x256x128xbf16, #tpu.memory_space<vmem>>, vector<1x256x128xbf16>
    %9 = vector.shape_cast %8 : vector<1x256x128xbf16> to vector<256x128xbf16>
    %c0_6 = arith.constant 0 : index
    %c0_7 = arith.constant 0 : index
    %10 = vector.load %arg9[%c0_6, %c0_7] : memref<256x128xf32, #tpu.memory_space<vmem>>, vector<256x128xf32>
    %c0_8 = arith.constant 0 : index
    %c0_9 = arith.constant 0 : index
    %11 = vector.load %arg5[%c0_8, %c0_9] : memref<128x128xbf16, #tpu.memory_space<vmem>>, vector<128x128xbf16>
    %cst = arith.constant dense<0.000000e+00> : vector<256x128xf32>
    %12 = tpu.matmul %9, %11, %cst {dimension_numbers = #tpu.dot_dimension_numbers<[1], [0], [0], [1], [0, 0, 1, 1], [], []>} : vector<256x128xbf16>, vector<128x128xbf16>, vector<256x128xf32> -> vector<256x128xf32>
    %13 = arith.addf %10, %12 : vector<256x128xf32>
    %c0_10 = arith.constant 0 : index
    %c0_11 = arith.constant 0 : index
    %14 = vector.load %arg9[%c0_10, %c0_11] : memref<256x128xf32, #tpu.memory_space<vmem>>, vector<256x128xf32>
    tpu.vector_store %arg9[%c0_10, %c0_11], %13 {strides = array<i32>} : memref<256x128xf32, #tpu.memory_space<vmem>>, vector<256x128xf32>,
    %c0_i32_12 = arith.constant 0 : i32
    %15 = arith.cmpi eq, %arg3, %c0_i32_12 : i32
    %16 = arith.extui %15 : i1 to i32
    %c0_i32_13 = arith.constant 0 : i32
    %17 = arith.cmpi ne, %16, %c0_i32_13 : i32
    scf.if %17 {
      %c0_14 = arith.constant 0 : index
      %c0_15 = arith.constant 0 : index
      %18 = vector.load %arg9[%c0_14, %c0_15] : memref<256x128xf32, #tpu.memory_space<vmem>>, vector<256x128xf32>
      %19 = arith.truncf %18 : vector<256x128xf32> to vector<256x128xbf16>
      %c0_16 = arith.constant 0 : index
      %c0_17 = arith.constant 0 : index
      %c0_18 = arith.constant 0 : index
      %20 = vector.load %arg6[%c0_16, %c0_17, %c0_18] : memref<1x256x128xbf16, #tpu.memory_space<vmem>>, vector<1x256x128xbf16>
      %21 = vector.shape_cast %20 : vector<1x256x128xbf16> to vector<256x128xbf16>
      %22 = vector.shape_cast %19 : vector<256x128xbf16> to vector<1x256x128xbf16>
      tpu.vector_store %arg6[%c0_16, %c0_17, %c0_18], %22 {strides = array<i32>} : memref<1x256x128xbf16, #tpu.memory_space<vmem>>, vector<1x256x128xbf16>,
      %c0_19 = arith.constant 0 : index
      %c0_20 = arith.constant 0 : index
      %c0_21 = arith.constant 0 : index
      %23 = vector.load %arg7[%c0_19, %c0_20, %c0_21] : memref<1x1x128xf32, #tpu.memory_space<vmem>>, vector<1x1x128xf32>
      %24 = vector.shape_cast %23 : vector<1x1x128xf32> to vector<1x128xf32>
      %cst_22 = arith.constant dense<0.000000e+00> : vector<128xf32>
      %25 = vector.multi_reduction <add>, %18, %cst_22 [0] : vector<256x128xf32> to vector<128xf32>
      %26 = vector.shape_cast %25 : vector<128xf32> to vector<1x128xf32>
      %27 = arith.addf %24, %26 : vector<1x128xf32>
      %c0_23 = arith.constant 0 : index
      %c0_24 = arith.constant 0 : index
      %c0_25 = arith.constant 0 : index
      %28 = vector.load %arg7[%c0_23, %c0_24, %c0_25] : memref<1x1x128xf32, #tpu.memory_space<vmem>>, vector<1x1x128xf32>
      %29 = vector.shape_cast %28 : vector<1x1x128xf32> to vector<1x128xf32>
      %30 = vector.shape_cast %27 : vector<1x128xf32> to vector<1x1x128xf32>
      tpu.vector_store %arg7[%c0_23, %c0_24, %c0_25], %30 {strides = array<i32>} : memref<1x1x128xf32, #tpu.memory_space<vmem>>, vector<1x1x128xf32>,
      %c0_26 = arith.constant 0 : index
      %c0_27 = arith.constant 0 : index
      %c0_28 = arith.constant 0 : index
      %31 = vector.load %arg8[%c0_26, %c0_27, %c0_28] : memref<1x1x128xf32, #tpu.memory_space<vmem>>, vector<1x1x128xf32>
      %32 = vector.shape_cast %31 : vector<1x1x128xf32> to vector<1x128xf32>
      %33 = arith.mulf %18, %18 : vector<256x128xf32>
      %cst_29 = arith.constant dense<0.000000e+00> : vector<128xf32>
      %34 = vector.multi_reduction <add>, %33, %cst_29 [0] : vector<256x128xf32> to vector<128xf32>
      %35 = vector.shape_cast %34 : vector<128xf32> to vector<1x128xf32>
      %36 = arith.addf %32, %35 : vector<1x128xf32>
      %c0_30 = arith.constant 0 : index
      %c0_31 = arith.constant 0 : index
      %c0_32 = arith.constant 0 : index
      %37 = vector.load %arg8[%c0_30, %c0_31, %c0_32] : memref<1x1x128xf32, #tpu.memory_space<vmem>>, vector<1x1x128xf32>
      %38 = vector.shape_cast %37 : vector<1x1x128xf32> to vector<1x128xf32>
      %39 = vector.shape_cast %36 : vector<1x128xf32> to vector<1x1x128xf32>
      tpu.vector_store %arg8[%c0_30, %c0_31, %c0_32], %39 {strides = array<i32>} : memref<1x1x128xf32, #tpu.memory_space<vmem>>, vector<1x1x128xf32>,
    } else {
    }
    return
  }
  func.func @transform_0(%arg0: i32, %arg1: i32, %arg2: i32, %arg3: i32) -> (i32, i32, i32) {
    %c0_i32 = arith.constant 0 : i32
    return %arg0, %arg2, %arg3 : i32, i32, i32
  }
  func.func @transform_1(%arg0: i32, %arg1: i32, %arg2: i32, %arg3: i32) -> (i32, i32) {
    %c0_i32 = arith.constant 0 : i32
    return %arg3, %arg1 : i32, i32
  }
  func.func @transform_2(%arg0: i32, %arg1: i32, %arg2: i32, %arg3: i32) -> (i32, i32, i32) {
    %c0_i32 = arith.constant 0 : i32
    return %arg0, %arg2, %arg1 : i32, i32, i32
  }
  func.func @transform_3(%arg0: i32, %arg1: i32, %arg2: i32, %arg3: i32) -> (i32, i32, i32) {
    %c0_i32 = arith.constant 0 : i32
    %c0_i32_0 = arith.constant 0 : i32
    return %arg0, %c0_i32, %arg1 : i32, i32, i32
  }
  func.func @transform_4(%arg0: i32, %arg1: i32, %arg2: i32, %arg3: i32) -> (i32, i32, i32) {
    %c0_i32 = arith.constant 0 : i32
    %c0_i32_0 = arith.constant 0 : i32
    return %arg0, %c0_i32, %arg1 : i32, i32, i32
  }
}

module attributes {stable_mosaic.version = 11 : i64} {
  func.func @_conv3x3_dson_kernel(%arg0: i32, %arg1: i32, %arg2: i32, %arg3: memref<1x16x16x128xbf16, #tpu.memory_space<vmem>>, %arg4: memref<1x1x128xf32, #tpu.memory_space<vmem>>, %arg5: memref<1x1x128xf32, #tpu.memory_space<vmem>>, %arg6: memref<9x128x128xbf16, #tpu.memory_space<vmem>>, %arg7: memref<1x256x128xbf16, #tpu.memory_space<vmem>>, %arg8: memref<1x1x128xf32, #tpu.memory_space<vmem>>, %arg9: memref<1x1x128xf32, #tpu.memory_space<vmem>>, %arg10: memref<18x18x128xbf16, #tpu.memory_space<vmem>>, %arg11: memref<256x128xf32, #tpu.memory_space<vmem>>) attributes {dimension_semantics = [#tpu.dimension_semantics<parallel>, #tpu.dimension_semantics<parallel>, #tpu.dimension_semantics<arbitrary>], iteration_bounds = array<i64: 2, 1, 1>, scalar_prefetch = 0 : i64, scratch_operands = 2 : i64, tpu.core_type = #tpu.core_type<tc>, window_params = [{transform_indices = @transform_0, window_bounds = array<i64: 1, 16, 16, 128>}, {transform_indices = @transform_1, window_bounds = array<i64: 1, 1, 128>}, {transform_indices = @transform_2, window_bounds = array<i64: 1, 1, 128>}, {transform_indices = @transform_3, window_bounds = array<i64: 9, 128, 128>}, {transform_indices = @transform_4, window_bounds = array<i64: 1, 256, 128>}, {transform_indices = @transform_5, window_bounds = array<i64: 1, 1, 128>}, {transform_indices = @transform_6, window_bounds = array<i64: 1, 1, 128>}]} {
    %c0_i32 = arith.constant 0 : i32
    %0 = arith.cmpi eq, %arg2, %c0_i32 : i32
    %1 = arith.extui %0 : i1 to i32
    %c0_i32_0 = arith.constant 0 : i32
    %2 = arith.cmpi ne, %1, %c0_i32_0 : i32
    scf.if %2 {
      %cst_106 = arith.constant 0.000000e+00 : bf16
      %95 = vector.broadcast %cst_106 : bf16 to vector<18x18x128xbf16>
      %c0_107 = arith.constant 0 : index
      %c0_108 = arith.constant 0 : index
      %c0_109 = arith.constant 0 : index
      %96 = vector.load %arg10[%c0_107, %c0_108, %c0_109] : memref<18x18x128xbf16, #tpu.memory_space<vmem>>, vector<18x18x128xbf16>
      tpu.vector_store %arg10[%c0_107, %c0_108, %c0_109], %95 {strides = array<i32>} : memref<18x18x128xbf16, #tpu.memory_space<vmem>>, vector<18x18x128xbf16>,
      %cst_110 = arith.constant 0.000000e+00 : f32
      %97 = vector.broadcast %cst_110 : f32 to vector<256x128xf32>
      %c0_111 = arith.constant 0 : index
      %c0_112 = arith.constant 0 : index
      %98 = vector.load %arg11[%c0_111, %c0_112] : memref<256x128xf32, #tpu.memory_space<vmem>>, vector<256x128xf32>
      tpu.vector_store %arg11[%c0_111, %c0_112], %97 {strides = array<i32>} : memref<256x128xf32, #tpu.memory_space<vmem>>, vector<256x128xf32>,
    } else {
    }
    %c0 = arith.constant 0 : index
    %c0_1 = arith.constant 0 : index
    %c0_2 = arith.constant 0 : index
    %c0_3 = arith.constant 0 : index
    %3 = vector.load %arg3[%c0, %c0_1, %c0_2, %c0_3] : memref<1x16x16x128xbf16, #tpu.memory_space<vmem>>, vector<1x16x16x128xbf16>
    %4 = vector.shape_cast %3 : vector<1x16x16x128xbf16> to vector<16x16x128xbf16>
    %5 = arith.extf %4 : vector<16x16x128xbf16> to vector<16x16x128xf32>
    %c0_4 = arith.constant 0 : index
    %c0_5 = arith.constant 0 : index
    %c0_6 = arith.constant 0 : index
    %6 = vector.load %arg4[%c0_4, %c0_5, %c0_6] : memref<1x1x128xf32, #tpu.memory_space<vmem>>, vector<1x1x128xf32>
    %7 = vector.shape_cast %6 : vector<1x1x128xf32> to vector<1x128xf32>
    %8 = vector.shape_cast %7 : vector<1x128xf32> to vector<1x1x128xf32>
    %9 = vector.broadcast %8 : vector<1x1x128xf32> to vector<16x16x128xf32>
    %10 = arith.mulf %5, %9 : vector<16x16x128xf32>
    %c0_7 = arith.constant 0 : index
    %c0_8 = arith.constant 0 : index
    %c0_9 = arith.constant 0 : index
    %11 = vector.load %arg5[%c0_7, %c0_8, %c0_9] : memref<1x1x128xf32, #tpu.memory_space<vmem>>, vector<1x1x128xf32>
    %12 = vector.shape_cast %11 : vector<1x1x128xf32> to vector<1x128xf32>
    %13 = vector.shape_cast %12 : vector<1x128xf32> to vector<1x1x128xf32>
    %14 = vector.broadcast %13 : vector<1x1x128xf32> to vector<16x16x128xf32>
    %15 = arith.addf %10, %14 : vector<16x16x128xf32>
    %cst = arith.constant 0.000000e+00 : f32
    %16 = vector.broadcast %cst : f32 to vector<16x16x128xf32>
    %17 = arith.maximumf %15, %16 : vector<16x16x128xf32>
    %18 = arith.truncf %17 : vector<16x16x128xf32> to vector<16x16x128xbf16>
    %c1 = arith.constant 1 : index
    %c1_10 = arith.constant 1 : index
    %c0_11 = arith.constant 0 : index
    %19 = vector.load %arg10[%c1, %c1_10, %c0_11] : memref<18x18x128xbf16, #tpu.memory_space<vmem>>, vector<16x16x128xbf16>
    tpu.vector_store %arg10[%c1, %c1_10, %c0_11], %18 {strides = array<i32>} : memref<18x18x128xbf16, #tpu.memory_space<vmem>>, vector<16x16x128xbf16>,
    %c0_12 = arith.constant 0 : index
    %c0_13 = arith.constant 0 : index
    %c0_14 = arith.constant 0 : index
    %20 = vector.load %arg10[%c0_12, %c0_13, %c0_14] : memref<18x18x128xbf16, #tpu.memory_space<vmem>>, vector<16x16x128xbf16>
    %21 = vector.shape_cast %20 : vector<16x16x128xbf16> to vector<256x128xbf16>
    %c0_15 = arith.constant 0 : index
    %c0_16 = arith.constant 0 : index
    %22 = vector.load %arg11[%c0_15, %c0_16] : memref<256x128xf32, #tpu.memory_space<vmem>>, vector<256x128xf32>
    %c0_17 = arith.constant 0 : index
    %c0_18 = arith.constant 0 : index
    %c0_19 = arith.constant 0 : index
    %23 = vector.load %arg6[%c0_17, %c0_18, %c0_19] : memref<9x128x128xbf16, #tpu.memory_space<vmem>>, vector<1x128x128xbf16>
    %24 = vector.shape_cast %23 : vector<1x128x128xbf16> to vector<128x128xbf16>
    %cst_20 = arith.constant dense<0.000000e+00> : vector<256x128xf32>
    %25 = tpu.matmul %21, %24, %cst_20 {dimension_numbers = #tpu.dot_dimension_numbers<[1], [0], [0], [1], [0, 0, 1, 1], [], []>} : vector<256x128xbf16>, vector<128x128xbf16>, vector<256x128xf32> -> vector<256x128xf32>
    %26 = arith.addf %22, %25 : vector<256x128xf32>
    %c0_21 = arith.constant 0 : index
    %c0_22 = arith.constant 0 : index
    %27 = vector.load %arg11[%c0_21, %c0_22] : memref<256x128xf32, #tpu.memory_space<vmem>>, vector<256x128xf32>
    tpu.vector_store %arg11[%c0_21, %c0_22], %26 {strides = array<i32>} : memref<256x128xf32, #tpu.memory_space<vmem>>, vector<256x128xf32>,
    %c0_23 = arith.constant 0 : index
    %c1_24 = arith.constant 1 : index
    %c0_25 = arith.constant 0 : index
    %28 = vector.load %arg10[%c0_23, %c1_24, %c0_25] : memref<18x18x128xbf16, #tpu.memory_space<vmem>>, vector<16x16x128xbf16>
    %29 = vector.shape_cast %28 : vector<16x16x128xbf16> to vector<256x128xbf16>
    %c0_26 = arith.constant 0 : index
    %c0_27 = arith.constant 0 : index
    %30 = vector.load %arg11[%c0_26, %c0_27] : memref<256x128xf32, #tpu.memory_space<vmem>>, vector<256x128xf32>
    %c1_28 = arith.constant 1 : index
    %c0_29 = arith.constant 0 : index
    %c0_30 = arith.constant 0 : index
    %31 = vector.load %arg6[%c1_28, %c0_29, %c0_30] : memref<9x128x128xbf16, #tpu.memory_space<vmem>>, vector<1x128x128xbf16>
    %32 = vector.shape_cast %31 : vector<1x128x128xbf16> to vector<128x128xbf16>
    %cst_31 = arith.constant dense<0.000000e+00> : vector<256x128xf32>
    %33 = tpu.matmul %29, %32, %cst_31 {dimension_numbers = #tpu.dot_dimension_numbers<[1], [0], [0], [1], [0, 0, 1, 1], [], []>} : vector<256x128xbf16>, vector<128x128xbf16>, vector<256x128xf32> -> vector<256x128xf32>
    %34 = arith.addf %30, %33 : vector<256x128xf32>
    %c0_32 = arith.constant 0 : index
    %c0_33 = arith.constant 0 : index
    %35 = vector.load %arg11[%c0_32, %c0_33] : memref<256x128xf32, #tpu.memory_space<vmem>>, vector<256x128xf32>
    tpu.vector_store %arg11[%c0_32, %c0_33], %34 {strides = array<i32>} : memref<256x128xf32, #tpu.memory_space<vmem>>, vector<256x128xf32>,
    %c0_34 = arith.constant 0 : index
    %c2 = arith.constant 2 : index
    %c0_35 = arith.constant 0 : index
    %36 = vector.load %arg10[%c0_34, %c2, %c0_35] : memref<18x18x128xbf16, #tpu.memory_space<vmem>>, vector<16x16x128xbf16>
    %37 = vector.shape_cast %36 : vector<16x16x128xbf16> to vector<256x128xbf16>
    %c0_36 = arith.constant 0 : index
    %c0_37 = arith.constant 0 : index
    %38 = vector.load %arg11[%c0_36, %c0_37] : memref<256x128xf32, #tpu.memory_space<vmem>>, vector<256x128xf32>
    %c2_38 = arith.constant 2 : index
    %c0_39 = arith.constant 0 : index
    %c0_40 = arith.constant 0 : index
    %39 = vector.load %arg6[%c2_38, %c0_39, %c0_40] : memref<9x128x128xbf16, #tpu.memory_space<vmem>>, vector<1x128x128xbf16>
    %40 = vector.shape_cast %39 : vector<1x128x128xbf16> to vector<128x128xbf16>
    %cst_41 = arith.constant dense<0.000000e+00> : vector<256x128xf32>
    %41 = tpu.matmul %37, %40, %cst_41 {dimension_numbers = #tpu.dot_dimension_numbers<[1], [0], [0], [1], [0, 0, 1, 1], [], []>} : vector<256x128xbf16>, vector<128x128xbf16>, vector<256x128xf32> -> vector<256x128xf32>
    %42 = arith.addf %38, %41 : vector<256x128xf32>
    %c0_42 = arith.constant 0 : index
    %c0_43 = arith.constant 0 : index
    %43 = vector.load %arg11[%c0_42, %c0_43] : memref<256x128xf32, #tpu.memory_space<vmem>>, vector<256x128xf32>
    tpu.vector_store %arg11[%c0_42, %c0_43], %42 {strides = array<i32>} : memref<256x128xf32, #tpu.memory_space<vmem>>, vector<256x128xf32>,
    %c1_44 = arith.constant 1 : index
    %c0_45 = arith.constant 0 : index
    %c0_46 = arith.constant 0 : index
    %44 = vector.load %arg10[%c1_44, %c0_45, %c0_46] : memref<18x18x128xbf16, #tpu.memory_space<vmem>>, vector<16x16x128xbf16>
    %45 = vector.shape_cast %44 : vector<16x16x128xbf16> to vector<256x128xbf16>
    %c0_47 = arith.constant 0 : index
    %c0_48 = arith.constant 0 : index
    %46 = vector.load %arg11[%c0_47, %c0_48] : memref<256x128xf32, #tpu.memory_space<vmem>>, vector<256x128xf32>
    %c3 = arith.constant 3 : index
    %c0_49 = arith.constant 0 : index
    %c0_50 = arith.constant 0 : index
    %47 = vector.load %arg6[%c3, %c0_49, %c0_50] : memref<9x128x128xbf16, #tpu.memory_space<vmem>>, vector<1x128x128xbf16>
    %48 = vector.shape_cast %47 : vector<1x128x128xbf16> to vector<128x128xbf16>
    %cst_51 = arith.constant dense<0.000000e+00> : vector<256x128xf32>
    %49 = tpu.matmul %45, %48, %cst_51 {dimension_numbers = #tpu.dot_dimension_numbers<[1], [0], [0], [1], [0, 0, 1, 1], [], []>} : vector<256x128xbf16>, vector<128x128xbf16>, vector<256x128xf32> -> vector<256x128xf32>
    %50 = arith.addf %46, %49 : vector<256x128xf32>
    %c0_52 = arith.constant 0 : index
    %c0_53 = arith.constant 0 : index
    %51 = vector.load %arg11[%c0_52, %c0_53] : memref<256x128xf32, #tpu.memory_space<vmem>>, vector<256x128xf32>
    tpu.vector_store %arg11[%c0_52, %c0_53], %50 {strides = array<i32>} : memref<256x128xf32, #tpu.memory_space<vmem>>, vector<256x128xf32>,
    %c1_54 = arith.constant 1 : index
    %c1_55 = arith.constant 1 : index
    %c0_56 = arith.constant 0 : index
    %52 = vector.load %arg10[%c1_54, %c1_55, %c0_56] : memref<18x18x128xbf16, #tpu.memory_space<vmem>>, vector<16x16x128xbf16>
    %53 = vector.shape_cast %52 : vector<16x16x128xbf16> to vector<256x128xbf16>
    %c0_57 = arith.constant 0 : index
    %c0_58 = arith.constant 0 : index
    %54 = vector.load %arg11[%c0_57, %c0_58] : memref<256x128xf32, #tpu.memory_space<vmem>>, vector<256x128xf32>
    %c4 = arith.constant 4 : index
    %c0_59 = arith.constant 0 : index
    %c0_60 = arith.constant 0 : index
    %55 = vector.load %arg6[%c4, %c0_59, %c0_60] : memref<9x128x128xbf16, #tpu.memory_space<vmem>>, vector<1x128x128xbf16>
    %56 = vector.shape_cast %55 : vector<1x128x128xbf16> to vector<128x128xbf16>
    %cst_61 = arith.constant dense<0.000000e+00> : vector<256x128xf32>
    %57 = tpu.matmul %53, %56, %cst_61 {dimension_numbers = #tpu.dot_dimension_numbers<[1], [0], [0], [1], [0, 0, 1, 1], [], []>} : vector<256x128xbf16>, vector<128x128xbf16>, vector<256x128xf32> -> vector<256x128xf32>
    %58 = arith.addf %54, %57 : vector<256x128xf32>
    %c0_62 = arith.constant 0 : index
    %c0_63 = arith.constant 0 : index
    %59 = vector.load %arg11[%c0_62, %c0_63] : memref<256x128xf32, #tpu.memory_space<vmem>>, vector<256x128xf32>
    tpu.vector_store %arg11[%c0_62, %c0_63], %58 {strides = array<i32>} : memref<256x128xf32, #tpu.memory_space<vmem>>, vector<256x128xf32>,
    %c1_64 = arith.constant 1 : index
    %c2_65 = arith.constant 2 : index
    %c0_66 = arith.constant 0 : index
    %60 = vector.load %arg10[%c1_64, %c2_65, %c0_66] : memref<18x18x128xbf16, #tpu.memory_space<vmem>>, vector<16x16x128xbf16>
    %61 = vector.shape_cast %60 : vector<16x16x128xbf16> to vector<256x128xbf16>
    %c0_67 = arith.constant 0 : index
    %c0_68 = arith.constant 0 : index
    %62 = vector.load %arg11[%c0_67, %c0_68] : memref<256x128xf32, #tpu.memory_space<vmem>>, vector<256x128xf32>
    %c5 = arith.constant 5 : index
    %c0_69 = arith.constant 0 : index
    %c0_70 = arith.constant 0 : index
    %63 = vector.load %arg6[%c5, %c0_69, %c0_70] : memref<9x128x128xbf16, #tpu.memory_space<vmem>>, vector<1x128x128xbf16>
    %64 = vector.shape_cast %63 : vector<1x128x128xbf16> to vector<128x128xbf16>
    %cst_71 = arith.constant dense<0.000000e+00> : vector<256x128xf32>
    %65 = tpu.matmul %61, %64, %cst_71 {dimension_numbers = #tpu.dot_dimension_numbers<[1], [0], [0], [1], [0, 0, 1, 1], [], []>} : vector<256x128xbf16>, vector<128x128xbf16>, vector<256x128xf32> -> vector<256x128xf32>
    %66 = arith.addf %62, %65 : vector<256x128xf32>
    %c0_72 = arith.constant 0 : index
    %c0_73 = arith.constant 0 : index
    %67 = vector.load %arg11[%c0_72, %c0_73] : memref<256x128xf32, #tpu.memory_space<vmem>>, vector<256x128xf32>
    tpu.vector_store %arg11[%c0_72, %c0_73], %66 {strides = array<i32>} : memref<256x128xf32, #tpu.memory_space<vmem>>, vector<256x128xf32>,
    %c2_74 = arith.constant 2 : index
    %c0_75 = arith.constant 0 : index
    %c0_76 = arith.constant 0 : index
    %68 = vector.load %arg10[%c2_74, %c0_75, %c0_76] : memref<18x18x128xbf16, #tpu.memory_space<vmem>>, vector<16x16x128xbf16>
    %69 = vector.shape_cast %68 : vector<16x16x128xbf16> to vector<256x128xbf16>
    %c0_77 = arith.constant 0 : index
    %c0_78 = arith.constant 0 : index
    %70 = vector.load %arg11[%c0_77, %c0_78] : memref<256x128xf32, #tpu.memory_space<vmem>>, vector<256x128xf32>
    %c6 = arith.constant 6 : index
    %c0_79 = arith.constant 0 : index
    %c0_80 = arith.constant 0 : index
    %71 = vector.load %arg6[%c6, %c0_79, %c0_80] : memref<9x128x128xbf16, #tpu.memory_space<vmem>>, vector<1x128x128xbf16>
    %72 = vector.shape_cast %71 : vector<1x128x128xbf16> to vector<128x128xbf16>
    %cst_81 = arith.constant dense<0.000000e+00> : vector<256x128xf32>
    %73 = tpu.matmul %69, %72, %cst_81 {dimension_numbers = #tpu.dot_dimension_numbers<[1], [0], [0], [1], [0, 0, 1, 1], [], []>} : vector<256x128xbf16>, vector<128x128xbf16>, vector<256x128xf32> -> vector<256x128xf32>
    %74 = arith.addf %70, %73 : vector<256x128xf32>
    %c0_82 = arith.constant 0 : index
    %c0_83 = arith.constant 0 : index
    %75 = vector.load %arg11[%c0_82, %c0_83] : memref<256x128xf32, #tpu.memory_space<vmem>>, vector<256x128xf32>
    tpu.vector_store %arg11[%c0_82, %c0_83], %74 {strides = array<i32>} : memref<256x128xf32, #tpu.memory_space<vmem>>, vector<256x128xf32>,
    %c2_84 = arith.constant 2 : index
    %c1_85 = arith.constant 1 : index
    %c0_86 = arith.constant 0 : index
    %76 = vector.load %arg10[%c2_84, %c1_85, %c0_86] : memref<18x18x128xbf16, #tpu.memory_space<vmem>>, vector<16x16x128xbf16>
    %77 = vector.shape_cast %76 : vector<16x16x128xbf16> to vector<256x128xbf16>
    %c0_87 = arith.constant 0 : index
    %c0_88 = arith.constant 0 : index
    %78 = vector.load %arg11[%c0_87, %c0_88] : memref<256x128xf32, #tpu.memory_space<vmem>>, vector<256x128xf32>
    %c7 = arith.constant 7 : index
    %c0_89 = arith.constant 0 : index
    %c0_90 = arith.constant 0 : index
    %79 = vector.load %arg6[%c7, %c0_89, %c0_90] : memref<9x128x128xbf16, #tpu.memory_space<vmem>>, vector<1x128x128xbf16>
    %80 = vector.shape_cast %79 : vector<1x128x128xbf16> to vector<128x128xbf16>
    %cst_91 = arith.constant dense<0.000000e+00> : vector<256x128xf32>
    %81 = tpu.matmul %77, %80, %cst_91 {dimension_numbers = #tpu.dot_dimension_numbers<[1], [0], [0], [1], [0, 0, 1, 1], [], []>} : vector<256x128xbf16>, vector<128x128xbf16>, vector<256x128xf32> -> vector<256x128xf32>
    %82 = arith.addf %78, %81 : vector<256x128xf32>
    %c0_92 = arith.constant 0 : index
    %c0_93 = arith.constant 0 : index
    %83 = vector.load %arg11[%c0_92, %c0_93] : memref<256x128xf32, #tpu.memory_space<vmem>>, vector<256x128xf32>
    tpu.vector_store %arg11[%c0_92, %c0_93], %82 {strides = array<i32>} : memref<256x128xf32, #tpu.memory_space<vmem>>, vector<256x128xf32>,
    %c2_94 = arith.constant 2 : index
    %c2_95 = arith.constant 2 : index
    %c0_96 = arith.constant 0 : index
    %84 = vector.load %arg10[%c2_94, %c2_95, %c0_96] : memref<18x18x128xbf16, #tpu.memory_space<vmem>>, vector<16x16x128xbf16>
    %85 = vector.shape_cast %84 : vector<16x16x128xbf16> to vector<256x128xbf16>
    %c0_97 = arith.constant 0 : index
    %c0_98 = arith.constant 0 : index
    %86 = vector.load %arg11[%c0_97, %c0_98] : memref<256x128xf32, #tpu.memory_space<vmem>>, vector<256x128xf32>
    %c8 = arith.constant 8 : index
    %c0_99 = arith.constant 0 : index
    %c0_100 = arith.constant 0 : index
    %87 = vector.load %arg6[%c8, %c0_99, %c0_100] : memref<9x128x128xbf16, #tpu.memory_space<vmem>>, vector<1x128x128xbf16>
    %88 = vector.shape_cast %87 : vector<1x128x128xbf16> to vector<128x128xbf16>
    %cst_101 = arith.constant dense<0.000000e+00> : vector<256x128xf32>
    %89 = tpu.matmul %85, %88, %cst_101 {dimension_numbers = #tpu.dot_dimension_numbers<[1], [0], [0], [1], [0, 0, 1, 1], [], []>} : vector<256x128xbf16>, vector<128x128xbf16>, vector<256x128xf32> -> vector<256x128xf32>
    %90 = arith.addf %86, %89 : vector<256x128xf32>
    %c0_102 = arith.constant 0 : index
    %c0_103 = arith.constant 0 : index
    %91 = vector.load %arg11[%c0_102, %c0_103] : memref<256x128xf32, #tpu.memory_space<vmem>>, vector<256x128xf32>
    tpu.vector_store %arg11[%c0_102, %c0_103], %90 {strides = array<i32>} : memref<256x128xf32, #tpu.memory_space<vmem>>, vector<256x128xf32>,
    %c0_i32_104 = arith.constant 0 : i32
    %92 = arith.cmpi eq, %arg2, %c0_i32_104 : i32
    %93 = arith.extui %92 : i1 to i32
    %c0_i32_105 = arith.constant 0 : i32
    %94 = arith.cmpi ne, %93, %c0_i32_105 : i32
    scf.if %94 {
      %c0_106 = arith.constant 0 : index
      %c0_107 = arith.constant 0 : index
      %95 = vector.load %arg11[%c0_106, %c0_107] : memref<256x128xf32, #tpu.memory_space<vmem>>, vector<256x128xf32>
      %96 = arith.truncf %95 : vector<256x128xf32> to vector<256x128xbf16>
      %c0_108 = arith.constant 0 : index
      %c0_109 = arith.constant 0 : index
      %c0_110 = arith.constant 0 : index
      %97 = vector.load %arg7[%c0_108, %c0_109, %c0_110] : memref<1x256x128xbf16, #tpu.memory_space<vmem>>, vector<1x256x128xbf16>
      %98 = vector.shape_cast %97 : vector<1x256x128xbf16> to vector<256x128xbf16>
      %99 = vector.shape_cast %96 : vector<256x128xbf16> to vector<1x256x128xbf16>
      tpu.vector_store %arg7[%c0_108, %c0_109, %c0_110], %99 {strides = array<i32>} : memref<1x256x128xbf16, #tpu.memory_space<vmem>>, vector<1x256x128xbf16>,
      %cst_111 = arith.constant dense<0.000000e+00> : vector<128xf32>
      %100 = vector.multi_reduction <add>, %95, %cst_111 [0] : vector<256x128xf32> to vector<128xf32>
      %101 = vector.shape_cast %100 : vector<128xf32> to vector<1x128xf32>
      %c0_112 = arith.constant 0 : index
      %c0_113 = arith.constant 0 : index
      %c0_114 = arith.constant 0 : index
      %102 = vector.load %arg8[%c0_112, %c0_113, %c0_114] : memref<1x1x128xf32, #tpu.memory_space<vmem>>, vector<1x1x128xf32>
      %103 = vector.shape_cast %102 : vector<1x1x128xf32> to vector<1x128xf32>
      %104 = vector.shape_cast %101 : vector<1x128xf32> to vector<1x1x128xf32>
      tpu.vector_store %arg8[%c0_112, %c0_113, %c0_114], %104 {strides = array<i32>} : memref<1x1x128xf32, #tpu.memory_space<vmem>>, vector<1x1x128xf32>,
      %105 = arith.mulf %95, %95 : vector<256x128xf32>
      %cst_115 = arith.constant dense<0.000000e+00> : vector<128xf32>
      %106 = vector.multi_reduction <add>, %105, %cst_115 [0] : vector<256x128xf32> to vector<128xf32>
      %107 = vector.shape_cast %106 : vector<128xf32> to vector<1x128xf32>
      %c0_116 = arith.constant 0 : index
      %c0_117 = arith.constant 0 : index
      %c0_118 = arith.constant 0 : index
      %108 = vector.load %arg9[%c0_116, %c0_117, %c0_118] : memref<1x1x128xf32, #tpu.memory_space<vmem>>, vector<1x1x128xf32>
      %109 = vector.shape_cast %108 : vector<1x1x128xf32> to vector<1x128xf32>
      %110 = vector.shape_cast %107 : vector<1x128xf32> to vector<1x1x128xf32>
      tpu.vector_store %arg9[%c0_116, %c0_117, %c0_118], %110 {strides = array<i32>} : memref<1x1x128xf32, #tpu.memory_space<vmem>>, vector<1x1x128xf32>,
    } else {
    }
    return
  }
  func.func @transform_0(%arg0: i32, %arg1: i32, %arg2: i32) -> (i32, i32, i32, i32) {
    %c0_i32 = arith.constant 0 : i32
    %c0_i32_0 = arith.constant 0 : i32
    %c0_i32_1 = arith.constant 0 : i32
    return %arg0, %c0_i32, %c0_i32_0, %arg2 : i32, i32, i32, i32
  }
  func.func @transform_1(%arg0: i32, %arg1: i32, %arg2: i32) -> (i32, i32, i32) {
    %c0_i32 = arith.constant 0 : i32
    %c0_i32_0 = arith.constant 0 : i32
    return %arg0, %c0_i32, %arg2 : i32, i32, i32
  }
  func.func @transform_2(%arg0: i32, %arg1: i32, %arg2: i32) -> (i32, i32, i32) {
    %c0_i32 = arith.constant 0 : i32
    %c0_i32_0 = arith.constant 0 : i32
    return %arg0, %c0_i32, %arg2 : i32, i32, i32
  }
  func.func @transform_3(%arg0: i32, %arg1: i32, %arg2: i32) -> (i32, i32, i32) {
    %c0_i32 = arith.constant 0 : i32
    %c0_i32_0 = arith.constant 0 : i32
    return %c0_i32, %arg2, %arg1 : i32, i32, i32
  }
  func.func @transform_4(%arg0: i32, %arg1: i32, %arg2: i32) -> (i32, i32, i32) {
    %c0_i32 = arith.constant 0 : i32
    %c0_i32_0 = arith.constant 0 : i32
    return %arg0, %c0_i32, %arg1 : i32, i32, i32
  }
  func.func @transform_5(%arg0: i32, %arg1: i32, %arg2: i32) -> (i32, i32, i32) {
    %c0_i32 = arith.constant 0 : i32
    %c0_i32_0 = arith.constant 0 : i32
    return %arg0, %c0_i32, %arg1 : i32, i32, i32
  }
  func.func @transform_6(%arg0: i32, %arg1: i32, %arg2: i32) -> (i32, i32, i32) {
    %c0_i32 = arith.constant 0 : i32
    %c0_i32_0 = arith.constant 0 : i32
    return %arg0, %c0_i32, %arg1 : i32, i32, i32
  }
}

module attributes {stable_mosaic.version = 11 : i64} {
  func.func @_conv1x1_dson_kernel(%arg0: i32, %arg1: i32, %arg2: i32, %arg3: i32, %arg4: memref<1x256x128xbf16, #tpu.memory_space<vmem>>, %arg5: memref<1x1x128xf32, #tpu.memory_space<vmem>>, %arg6: memref<1x1x128xf32, #tpu.memory_space<vmem>>, %arg7: memref<128x128xbf16, #tpu.memory_space<vmem>>, %arg8: memref<1x256x128xbf16, #tpu.memory_space<vmem>>, %arg9: memref<1x1x128xf32, #tpu.memory_space<vmem>>, %arg10: memref<1x1x128xf32, #tpu.memory_space<vmem>>, %arg11: memref<256x128xf32, #tpu.memory_space<vmem>>) attributes {dimension_semantics = [#tpu.dimension_semantics<parallel>, #tpu.dimension_semantics<parallel>, #tpu.dimension_semantics<arbitrary>, #tpu.dimension_semantics<arbitrary>], iteration_bounds = array<i64: 2, 1, 1, 1>, scalar_prefetch = 0 : i64, scratch_operands = 1 : i64, tpu.core_type = #tpu.core_type<tc>, window_params = [{transform_indices = @transform_0, window_bounds = array<i64: 1, 256, 128>}, {transform_indices = @transform_1, window_bounds = array<i64: 1, 1, 128>}, {transform_indices = @transform_2, window_bounds = array<i64: 1, 1, 128>}, {transform_indices = @transform_3, window_bounds = array<i64: 128, 128>}, {transform_indices = @transform_4, window_bounds = array<i64: 1, 256, 128>}, {transform_indices = @transform_5, window_bounds = array<i64: 1, 1, 128>}, {transform_indices = @transform_6, window_bounds = array<i64: 1, 1, 128>}]} {
    %c0_i32 = arith.constant 0 : i32
    %0 = arith.cmpi eq, %arg2, %c0_i32 : i32
    %c0_i32_0 = arith.constant 0 : i32
    %1 = arith.cmpi eq, %arg3, %c0_i32_0 : i32
    %2 = arith.andi %0, %1 : i1
    %3 = arith.extui %2 : i1 to i32
    %c0_i32_1 = arith.constant 0 : i32
    %4 = arith.cmpi ne, %3, %c0_i32_1 : i32
    scf.if %4 {
      %cst_21 = arith.constant 0.000000e+00 : f32
      %30 = vector.broadcast %cst_21 : f32 to vector<1x1x128xf32>
      %c0_22 = arith.constant 0 : index
      %c0_23 = arith.constant 0 : index
      %c0_24 = arith.constant 0 : index
      %31 = vector.load %arg9[%c0_22, %c0_23, %c0_24] : memref<1x1x128xf32, #tpu.memory_space<vmem>>, vector<1x1x128xf32>
      tpu.vector_store %arg9[%c0_22, %c0_23, %c0_24], %30 {strides = array<i32>} : memref<1x1x128xf32, #tpu.memory_space<vmem>>, vector<1x1x128xf32>,
      %cst_25 = arith.constant 0.000000e+00 : f32
      %32 = vector.broadcast %cst_25 : f32 to vector<1x1x128xf32>
      %c0_26 = arith.constant 0 : index
      %c0_27 = arith.constant 0 : index
      %c0_28 = arith.constant 0 : index
      %33 = vector.load %arg10[%c0_26, %c0_27, %c0_28] : memref<1x1x128xf32, #tpu.memory_space<vmem>>, vector<1x1x128xf32>
      tpu.vector_store %arg10[%c0_26, %c0_27, %c0_28], %32 {strides = array<i32>} : memref<1x1x128xf32, #tpu.memory_space<vmem>>, vector<1x1x128xf32>,
    } else {
    }
    %c0_i32_2 = arith.constant 0 : i32
    %5 = arith.cmpi eq, %arg3, %c0_i32_2 : i32
    %6 = arith.extui %5 : i1 to i32
    %c0_i32_3 = arith.constant 0 : i32
    %7 = arith.cmpi ne, %6, %c0_i32_3 : i32
    scf.if %7 {
      %cst_21 = arith.constant 0.000000e+00 : f32
      %30 = vector.broadcast %cst_21 : f32 to vector<256x128xf32>
      %c0_22 = arith.constant 0 : index
      %c0_23 = arith.constant 0 : index
      %31 = vector.load %arg11[%c0_22, %c0_23] : memref<256x128xf32, #tpu.memory_space<vmem>>, vector<256x128xf32>
      tpu.vector_store %arg11[%c0_22, %c0_23], %30 {strides = array<i32>} : memref<256x128xf32, #tpu.memory_space<vmem>>, vector<256x128xf32>,
    } else {
    }
    %c0 = arith.constant 0 : index
    %c0_4 = arith.constant 0 : index
    %c0_5 = arith.constant 0 : index
    %8 = vector.load %arg4[%c0, %c0_4, %c0_5] : memref<1x256x128xbf16, #tpu.memory_space<vmem>>, vector<1x256x128xbf16>
    %9 = vector.shape_cast %8 : vector<1x256x128xbf16> to vector<256x128xbf16>
    %10 = arith.extf %9 : vector<256x128xbf16> to vector<256x128xf32>
    %c0_6 = arith.constant 0 : index
    %c0_7 = arith.constant 0 : index
    %c0_8 = arith.constant 0 : index
    %11 = vector.load %arg5[%c0_6, %c0_7, %c0_8] : memref<1x1x128xf32, #tpu.memory_space<vmem>>, vector<1x1x128xf32>
    %12 = vector.shape_cast %11 : vector<1x1x128xf32> to vector<1x128xf32>
    %13 = vector.broadcast %12 : vector<1x128xf32> to vector<256x128xf32>
    %14 = arith.mulf %10, %13 : vector<256x128xf32>
    %c0_9 = arith.constant 0 : index
    %c0_10 = arith.constant 0 : index
    %c0_11 = arith.constant 0 : index
    %15 = vector.load %arg6[%c0_9, %c0_10, %c0_11] : memref<1x1x128xf32, #tpu.memory_space<vmem>>, vector<1x1x128xf32>
    %16 = vector.shape_cast %15 : vector<1x1x128xf32> to vector<1x128xf32>
    %17 = vector.broadcast %16 : vector<1x128xf32> to vector<256x128xf32>
    %18 = arith.addf %14, %17 : vector<256x128xf32>
    %cst = arith.constant 0.000000e+00 : f32
    %19 = vector.broadcast %cst : f32 to vector<256x128xf32>
    %20 = arith.maximumf %18, %19 : vector<256x128xf32>
    %21 = arith.truncf %20 : vector<256x128xf32> to vector<256x128xbf16>
    %c0_12 = arith.constant 0 : index
    %c0_13 = arith.constant 0 : index
    %22 = vector.load %arg11[%c0_12, %c0_13] : memref<256x128xf32, #tpu.memory_space<vmem>>, vector<256x128xf32>
    %c0_14 = arith.constant 0 : index
    %c0_15 = arith.constant 0 : index
    %23 = vector.load %arg7[%c0_14, %c0_15] : memref<128x128xbf16, #tpu.memory_space<vmem>>, vector<128x128xbf16>
    %cst_16 = arith.constant dense<0.000000e+00> : vector<256x128xf32>
    %24 = tpu.matmul %21, %23, %cst_16 {dimension_numbers = #tpu.dot_dimension_numbers<[1], [0], [0], [1], [0, 0, 1, 1], [], []>} : vector<256x128xbf16>, vector<128x128xbf16>, vector<256x128xf32> -> vector<256x128xf32>
    %25 = arith.addf %22, %24 : vector<256x128xf32>
    %c0_17 = arith.constant 0 : index
    %c0_18 = arith.constant 0 : index
    %26 = vector.load %arg11[%c0_17, %c0_18] : memref<256x128xf32, #tpu.memory_space<vmem>>, vector<256x128xf32>
    tpu.vector_store %arg11[%c0_17, %c0_18], %25 {strides = array<i32>} : memref<256x128xf32, #tpu.memory_space<vmem>>, vector<256x128xf32>,
    %c0_i32_19 = arith.constant 0 : i32
    %27 = arith.cmpi eq, %arg3, %c0_i32_19 : i32
    %28 = arith.extui %27 : i1 to i32
    %c0_i32_20 = arith.constant 0 : i32
    %29 = arith.cmpi ne, %28, %c0_i32_20 : i32
    scf.if %29 {
      %c0_21 = arith.constant 0 : index
      %c0_22 = arith.constant 0 : index
      %30 = vector.load %arg11[%c0_21, %c0_22] : memref<256x128xf32, #tpu.memory_space<vmem>>, vector<256x128xf32>
      %31 = arith.truncf %30 : vector<256x128xf32> to vector<256x128xbf16>
      %c0_23 = arith.constant 0 : index
      %c0_24 = arith.constant 0 : index
      %c0_25 = arith.constant 0 : index
      %32 = vector.load %arg8[%c0_23, %c0_24, %c0_25] : memref<1x256x128xbf16, #tpu.memory_space<vmem>>, vector<1x256x128xbf16>
      %33 = vector.shape_cast %32 : vector<1x256x128xbf16> to vector<256x128xbf16>
      %34 = vector.shape_cast %31 : vector<256x128xbf16> to vector<1x256x128xbf16>
      tpu.vector_store %arg8[%c0_23, %c0_24, %c0_25], %34 {strides = array<i32>} : memref<1x256x128xbf16, #tpu.memory_space<vmem>>, vector<1x256x128xbf16>,
      %c0_26 = arith.constant 0 : index
      %c0_27 = arith.constant 0 : index
      %c0_28 = arith.constant 0 : index
      %35 = vector.load %arg9[%c0_26, %c0_27, %c0_28] : memref<1x1x128xf32, #tpu.memory_space<vmem>>, vector<1x1x128xf32>
      %36 = vector.shape_cast %35 : vector<1x1x128xf32> to vector<1x128xf32>
      %cst_29 = arith.constant dense<0.000000e+00> : vector<128xf32>
      %37 = vector.multi_reduction <add>, %30, %cst_29 [0] : vector<256x128xf32> to vector<128xf32>
      %38 = vector.shape_cast %37 : vector<128xf32> to vector<1x128xf32>
      %39 = arith.addf %36, %38 : vector<1x128xf32>
      %c0_30 = arith.constant 0 : index
      %c0_31 = arith.constant 0 : index
      %c0_32 = arith.constant 0 : index
      %40 = vector.load %arg9[%c0_30, %c0_31, %c0_32] : memref<1x1x128xf32, #tpu.memory_space<vmem>>, vector<1x1x128xf32>
      %41 = vector.shape_cast %40 : vector<1x1x128xf32> to vector<1x128xf32>
      %42 = vector.shape_cast %39 : vector<1x128xf32> to vector<1x1x128xf32>
      tpu.vector_store %arg9[%c0_30, %c0_31, %c0_32], %42 {strides = array<i32>} : memref<1x1x128xf32, #tpu.memory_space<vmem>>, vector<1x1x128xf32>,
      %c0_33 = arith.constant 0 : index
      %c0_34 = arith.constant 0 : index
      %c0_35 = arith.constant 0 : index
      %43 = vector.load %arg10[%c0_33, %c0_34, %c0_35] : memref<1x1x128xf32, #tpu.memory_space<vmem>>, vector<1x1x128xf32>
      %44 = vector.shape_cast %43 : vector<1x1x128xf32> to vector<1x128xf32>
      %45 = arith.mulf %30, %30 : vector<256x128xf32>
      %cst_36 = arith.constant dense<0.000000e+00> : vector<128xf32>
      %46 = vector.multi_reduction <add>, %45, %cst_36 [0] : vector<256x128xf32> to vector<128xf32>
      %47 = vector.shape_cast %46 : vector<128xf32> to vector<1x128xf32>
      %48 = arith.addf %44, %47 : vector<1x128xf32>
      %c0_37 = arith.constant 0 : index
      %c0_38 = arith.constant 0 : index
      %c0_39 = arith.constant 0 : index
      %49 = vector.load %arg10[%c0_37, %c0_38, %c0_39] : memref<1x1x128xf32, #tpu.memory_space<vmem>>, vector<1x1x128xf32>
      %50 = vector.shape_cast %49 : vector<1x1x128xf32> to vector<1x128xf32>
      %51 = vector.shape_cast %48 : vector<1x128xf32> to vector<1x1x128xf32>
      tpu.vector_store %arg10[%c0_37, %c0_38, %c0_39], %51 {strides = array<i32>} : memref<1x1x128xf32, #tpu.memory_space<vmem>>, vector<1x1x128xf32>,
    } else {
    }
    return
  }
  func.func @transform_0(%arg0: i32, %arg1: i32, %arg2: i32, %arg3: i32) -> (i32, i32, i32) {
    %c0_i32 = arith.constant 0 : i32
    return %arg0, %arg2, %arg3 : i32, i32, i32
  }
  func.func @transform_1(%arg0: i32, %arg1: i32, %arg2: i32, %arg3: i32) -> (i32, i32, i32) {
    %c0_i32 = arith.constant 0 : i32
    %c0_i32_0 = arith.constant 0 : i32
    return %arg0, %c0_i32, %arg3 : i32, i32, i32
  }
  func.func @transform_2(%arg0: i32, %arg1: i32, %arg2: i32, %arg3: i32) -> (i32, i32, i32) {
    %c0_i32 = arith.constant 0 : i32
    %c0_i32_0 = arith.constant 0 : i32
    return %arg0, %c0_i32, %arg3 : i32, i32, i32
  }
  func.func @transform_3(%arg0: i32, %arg1: i32, %arg2: i32, %arg3: i32) -> (i32, i32) {
    %c0_i32 = arith.constant 0 : i32
    return %arg3, %arg1 : i32, i32
  }
  func.func @transform_4(%arg0: i32, %arg1: i32, %arg2: i32, %arg3: i32) -> (i32, i32, i32) {
    %c0_i32 = arith.constant 0 : i32
    return %arg0, %arg2, %arg1 : i32, i32, i32
  }
  func.func @transform_5(%arg0: i32, %arg1: i32, %arg2: i32, %arg3: i32) -> (i32, i32, i32) {
    %c0_i32 = arith.constant 0 : i32
    %c0_i32_0 = arith.constant 0 : i32
    return %arg0, %c0_i32, %arg1 : i32, i32, i32
  }
  func.func @transform_6(%arg0: i32, %arg1: i32, %arg2: i32, %arg3: i32) -> (i32, i32, i32) {
    %c0_i32 = arith.constant 0 : i32
    %c0_i32_0 = arith.constant 0 : i32
    return %arg0, %c0_i32, %arg1 : i32, i32, i32
  }
}

module attributes {stable_mosaic.version = 11 : i64} {
  func.func @_dson_apply_kernel(%arg0: i32, %arg1: i32, %arg2: i32, %arg3: memref<1x256x128xbf16, #tpu.memory_space<vmem>>, %arg4: memref<1x1x128xf32, #tpu.memory_space<vmem>>, %arg5: memref<1x1x128xf32, #tpu.memory_space<vmem>>, %arg6: memref<1x256x128xbf16, #tpu.memory_space<vmem>>, %arg7: memref<1x256x128xbf16, #tpu.memory_space<vmem>>) attributes {dimension_semantics = [#tpu.dimension_semantics<parallel>, #tpu.dimension_semantics<parallel>, #tpu.dimension_semantics<parallel>], iteration_bounds = array<i64: 2, 1, 1>, scalar_prefetch = 0 : i64, scratch_operands = 0 : i64, tpu.core_type = #tpu.core_type<tc>, window_params = [{transform_indices = @transform_0, window_bounds = array<i64: 1, 256, 128>}, {transform_indices = @transform_1, window_bounds = array<i64: 1, 1, 128>}, {transform_indices = @transform_2, window_bounds = array<i64: 1, 1, 128>}, {transform_indices = @transform_3, window_bounds = array<i64: 1, 256, 128>}, {transform_indices = @transform_4, window_bounds = array<i64: 1, 256, 128>}]} {
    %c0 = arith.constant 0 : index
    %c0_0 = arith.constant 0 : index
    %c0_1 = arith.constant 0 : index
    %0 = vector.load %arg3[%c0, %c0_0, %c0_1] : memref<1x256x128xbf16, #tpu.memory_space<vmem>>, vector<1x256x128xbf16>
    %1 = vector.shape_cast %0 : vector<1x256x128xbf16> to vector<256x128xbf16>
    %2 = arith.extf %1 : vector<256x128xbf16> to vector<256x128xf32>
    %c0_2 = arith.constant 0 : index
    %c0_3 = arith.constant 0 : index
    %c0_4 = arith.constant 0 : index
    %3 = vector.load %arg4[%c0_2, %c0_3, %c0_4] : memref<1x1x128xf32, #tpu.memory_space<vmem>>, vector<1x1x128xf32>
    %4 = vector.shape_cast %3 : vector<1x1x128xf32> to vector<1x128xf32>
    %5 = vector.broadcast %4 : vector<1x128xf32> to vector<256x128xf32>
    %6 = arith.mulf %2, %5 : vector<256x128xf32>
    %c0_5 = arith.constant 0 : index
    %c0_6 = arith.constant 0 : index
    %c0_7 = arith.constant 0 : index
    %7 = vector.load %arg5[%c0_5, %c0_6, %c0_7] : memref<1x1x128xf32, #tpu.memory_space<vmem>>, vector<1x1x128xf32>
    %8 = vector.shape_cast %7 : vector<1x1x128xf32> to vector<1x128xf32>
    %9 = vector.broadcast %8 : vector<1x128xf32> to vector<256x128xf32>
    %10 = arith.addf %6, %9 : vector<256x128xf32>
    %c0_8 = arith.constant 0 : index
    %c0_9 = arith.constant 0 : index
    %c0_10 = arith.constant 0 : index
    %11 = vector.load %arg6[%c0_8, %c0_9, %c0_10] : memref<1x256x128xbf16, #tpu.memory_space<vmem>>, vector<1x256x128xbf16>
    %12 = vector.shape_cast %11 : vector<1x256x128xbf16> to vector<256x128xbf16>
    %13 = arith.extf %12 : vector<256x128xbf16> to vector<256x128xf32>
    %14 = arith.addf %10, %13 : vector<256x128xf32>
    %cst = arith.constant 0.000000e+00 : f32
    %15 = vector.broadcast %cst : f32 to vector<256x128xf32>
    %16 = arith.maximumf %14, %15 : vector<256x128xf32>
    %17 = arith.truncf %16 : vector<256x128xf32> to vector<256x128xbf16>
    %c0_11 = arith.constant 0 : index
    %c0_12 = arith.constant 0 : index
    %c0_13 = arith.constant 0 : index
    %18 = vector.load %arg7[%c0_11, %c0_12, %c0_13] : memref<1x256x128xbf16, #tpu.memory_space<vmem>>, vector<1x256x128xbf16>
    %19 = vector.shape_cast %18 : vector<1x256x128xbf16> to vector<256x128xbf16>
    %20 = vector.shape_cast %17 : vector<256x128xbf16> to vector<1x256x128xbf16>
    tpu.vector_store %arg7[%c0_11, %c0_12, %c0_13], %20 {strides = array<i32>} : memref<1x256x128xbf16, #tpu.memory_space<vmem>>, vector<1x256x128xbf16>,
    return
  }
  func.func @transform_0(%arg0: i32, %arg1: i32, %arg2: i32) -> (i32, i32, i32) {
    %c0_i32 = arith.constant 0 : i32
    return %arg0, %arg1, %arg2 : i32, i32, i32
  }
  func.func @transform_1(%arg0: i32, %arg1: i32, %arg2: i32) -> (i32, i32, i32) {
    %c0_i32 = arith.constant 0 : i32
    %c0_i32_0 = arith.constant 0 : i32
    return %arg0, %c0_i32, %arg2 : i32, i32, i32
  }
  func.func @transform_2(%arg0: i32, %arg1: i32, %arg2: i32) -> (i32, i32, i32) {
    %c0_i32 = arith.constant 0 : i32
    %c0_i32_0 = arith.constant 0 : i32
    return %arg0, %c0_i32, %arg2 : i32, i32, i32
  }
  func.func @transform_3(%arg0: i32, %arg1: i32, %arg2: i32) -> (i32, i32, i32) {
    %c0_i32 = arith.constant 0 : i32
    return %arg0, %arg1, %arg2 : i32, i32, i32
  }
  func.func @transform_4(%arg0: i32, %arg1: i32, %arg2: i32) -> (i32, i32, i32) {
    %c0_i32 = arith.constant 0 : i32
    return %arg0, %arg1, %arg2 : i32, i32, i32
  }
}

</mosaic_0001>

<llo_original>
// kernel: bottleneck_forward.4
$region0: #{bottleneck_forward.4}
  #allocation0 [shape = 'u32[]', space=smem, size = 0x4, offset = 0x4, fixed_abs, tag = 'smem constant byte address 0x4 - core index']
  #allocation1 [shape = 'u32[144,128]{1,0:T(1,128)}', space=vmem, size = 0x12000, scoped, tag = 'internal scratch']
  #allocation2 [shape = 'f32[256,128]{1,0:T(8,128)}', space=vmem, size = 0x20000, scoped, tag = 'scratch operand']
  %s0 = inlined_call_operand.vmem [shape: bf16[2,256,128], index: 0, kind: input, shape index: {}]
  %s1 = inlined_call_operand.vmem [shape: bf16[128,128], index: 1, kind: input, shape index: {}]
  %s2 = inlined_call_operand.vmem [shape: bf16[2,256,128], index: 2, kind: output, shape index: {0}]
  %s3 = inlined_call_operand.vmem [shape: f32[2,1,128], index: 3, kind: output, shape index: {1}]
  %s4 = inlined_call_operand.vmem [shape: f32[2,1,128], index: 4, kind: output, shape index: {2}]
  %5 = xla_tuple %s2, %s3, %s4
  %s6 = sld [smem:[#allocation0]]
  $region69: #{bottleneck_forward.4} parent=0
    _
  %s8 = ssub.s32 1, %s6
  %s9 = scalar_select 0, %s8, %s6
  loop: start=0, step=1, limit=4
  $region2: #{bottleneck_forward.4} parent=0 // loop_pre_header
    _
  $region3: #{bottleneck_forward.4} parent=0 // loop_header
    %s11 = sphi 0, %s15
    %p12 = scmp.ge.s32.totalorder %s11, 4
    %s18 = sphi 0, %s44
    %s19 = sphi 0, %s40
    %s20 = sphi 0, %s36
    %s21 = sphi 0, %s32
    %s22 = sphi 0, %s18
    %s23 = sphi 0, %s19
    %s24 = sphi 0, %s20
    %s25 = sphi 0, %s21
    %s26 = sphi 0, %s22
    %s27 = sphi 0, %s23
    %s28 = sphi 0, %s24
    %s29 = sphi 0, %s25
    %s51 = sphi 0, %s53
    %s54 = sphi 0, %s51
    %s55 = sphi 0, %s54
    %s71 = sphi 0, %s55
    %s79 = sphi 0, %s81
    %s82 = sphi 0, %s79
    %s83 = sphi 0, %s82
    %s99 = sphi 0, %s83
    %s109 = sphi 0, %s111
    %s112 = sphi 0, %s109
    %s113 = sphi 0, %s112
    %s129 = sphi 0, %s113
    %s137 = sphi 0, %s139
    %s140 = sphi 0, %s137
    %s141 = sphi 0, %s140
    %s157 = sphi 0, %s141
    %s165 = sphi 0, %s167
    %s168 = sphi 0, %s165
    %s169 = sphi 0, %s168
    %s185 = sphi 0, %s169
  $region4: #{bottleneck_forward.4} parent=0 // loop_header_branch
    %14 = sbr.rel (%p12) target = $region8
  $region5: #{bottleneck_forward.4} parent=0 // loop_body
    %s16 = ssub.s32 %s11, 1
    %s17 = ssub.s32 %s11, 2
    %s30 = sadd.s32 1, %s21
    %p31 = scmp.ge.s32.totalorder %s30, 1
    %s32 = scalar_select %p31, 0, %s30
    %s33 = sadd.s32 1, %s20
    %s34 = scalar_select %p31, %s33, %s20
    %p35 = scmp.ge.s32.totalorder %s34, 1
    %s36 = scalar_select %p35, 0, %s34
    %s37 = sadd.s32 1, %s19
    %s38 = scalar_select %p35, %s37, %s19
    %p39 = scmp.ge.s32.totalorder %s38, 1
    %s40 = scalar_select %p39, 0, %s38
    %s41 = sadd.s32 1, %s18
    %s42 = scalar_select %p39, %s41, %s18
    %p43 = scmp.ge.s32.totalorder %s42, 2
    %s44 = scalar_select %p43, 0, %s42
    %s45 = ssub.s32 %s18, %s44
    %s46 = ssub.s32 %s20, %s36
    %s47 = sor.u32 %s45, %s46
    %s48 = ssub.s32 %s21, %s32
    %s49 = sor.u32 %s47, %s48
    %p50 = scmp.eq.s32.totalorder %s49, 0
    %s52 = sadd.s32 %s51, 1
    %s53 = scalar_select %p50, %s51, %s52
    %p56 = pneg %p50
    %p57 = scmp.eq.s32.totalorder %s11, 1
    %p58 = por %p56, %p57
    %p59 = scmp.ne.s32.totalorder %s51, %s54
    %p60 = scmp.eq.s32.totalorder %s11, 0
    %p61 = por %p59, %p60
    %p62 = scmp.ne.s32.totalorder %s51, %s54
    %p63 = scmp.eq.s32.totalorder %s16, 1
    %p64 = por %p62, %p63
    %p65 = scmp.ne.s32.totalorder %s54, %s55
    %p66 = scmp.eq.s32.totalorder %s16, 0
    %p67 = por %p65, %p66
    %p68 = scmp.ne.s32.totalorder %s54, %s55
    %p69 = scmp.eq.s32.totalorder %s17, 1
    %p70 = por %p68, %p69
    %p72 = scmp.ne.s32.totalorder %s55, %s71
    %p73 = scmp.eq.s32.totalorder %s17, 0
    %p74 = por %p72, %p73
    %s75 = ssub.s32 %s21, %s32
    %s76 = ssub.s32 %s19, %s40
    %s77 = sor.u32 %s75, %s76
    %p78 = scmp.eq.s32.totalorder %s77, 0
    %s80 = sadd.s32 %s79, 1
    %s81 = scalar_select %p78, %s79, %s80
    %p84 = pneg %p78
    %p85 = scmp.eq.s32.totalorder %s11, 1
    %p86 = por %p84, %p85
    %p87 = scmp.ne.s32.totalorder %s79, %s82
    %p88 = scmp.eq.s32.totalorder %s11, 0
    %p89 = por %p87, %p88
    %p90 = scmp.ne.s32.totalorder %s79, %s82
    %p91 = scmp.eq.s32.totalorder %s16, 1
    %p92 = por %p90, %p91
    %p93 = scmp.ne.s32.totalorder %s82, %s83
    %p94 = scmp.eq.s32.totalorder %s16, 0
    %p95 = por %p93, %p94
    %p96 = scmp.ne.s32.totalorder %s82, %s83
    %p97 = scmp.eq.s32.totalorder %s17, 1
    %p98 = por %p96, %p97
    %p100 = scmp.ne.s32.totalorder %s83, %s99
    %p101 = scmp.eq.s32.totalorder %s17, 0
    %p102 = por %p100, %p101
    %s103 = ssub.s32 %s18, %s44
    %s104 = ssub.s32 %s20, %s36
    %s105 = sor.u32 %s103, %s104
    %s106 = ssub.s32 %s19, %s40
    %s107 = sor.u32 %s105, %s106
    %p108 = scmp.eq.s32.totalorder %s107, 0
    %s110 = sadd.s32 %s109, 1
    %s111 = scalar_select %p108, %s109, %s110
    %p114 = pneg %p108
    %p115 = scmp.eq.s32.totalorder %s11, 1
    %p116 = por %p114, %p115
    %p117 = scmp.ne.s32.totalorder %s109, %s112
    %p118 = scmp.eq.s32.totalorder %s11, 0
    %p119 = por %p117, %p118
    %p120 = scmp.ne.s32.totalorder %s109, %s112
    %p121 = scmp.eq.s32.totalorder %s16, 1
    %p122 = por %p120, %p121
    %p123 = scmp.ne.s32.totalorder %s112, %s113
    %p124 = scmp.eq.s32.totalorder %s16, 0
    %p125 = por %p123, %p124
    %p126 = scmp.ne.s32.totalorder %s112, %s113
    %p127 = scmp.eq.s32.totalorder %s17, 1
    %p128 = por %p126, %p127
    %p130 = scmp.ne.s32.totalorder %s113, %s129
    %p131 = scmp.eq.s32.totalorder %s17, 0
    %p132 = por %p130, %p131
    %s133 = ssub.s32 %s18, %s44
    %s134 = ssub.s32 %s19, %s40
    %s135 = sor.u32 %s133, %s134
    %p136 = scmp.eq.s32.totalorder %s135, 0
    %s138 = sadd.s32 %s137, 1
    %s139 = scalar_select %p136, %s137, %s138
    %p142 = pneg %p136
    %p143 = scmp.eq.s32.totalorder %s11, 1
    %p144 = por %p142, %p143
    %p145 = scmp.ne.s32.totalorder %s137, %s140
    %p146 = scmp.eq.s32.totalorder %s11, 0
    %p147 = por %p145, %p146
    %p148 = scmp.ne.s32.totalorder %s137, %s140
    %p149 = scmp.eq.s32.totalorder %s16, 1
    %p150 = por %p148, %p149
    %p151 = scmp.ne.s32.totalorder %s140, %s141
    %p152 = scmp.eq.s32.totalorder %s16, 0
    %p153 = por %p151, %p152
    %p154 = scmp.ne.s32.totalorder %s140, %s141
    %p155 = scmp.eq.s32.totalorder %s17, 1
    %p156 = por %p154, %p155
    %p158 = scmp.ne.s32.totalorder %s141, %s157
    %p159 = scmp.eq.s32.totalorder %s17, 0
    %p160 = por %p158, %p159
    %s161 = ssub.s32 %s18, %s44
    %s162 = ssub.s32 %s19, %s40
    %s163 = sor.u32 %s161, %s162
    %p164 = scmp.eq.s32.totalorder %s163, 0
    %s166 = sadd.s32 %s165, 1
    %s167 = scalar_select %p164, %s165, %s166
    %p170 = pneg %p164
    %p171 = scmp.eq.s32.totalorder %s11, 1
    %p172 = por %p170, %p171
    %p173 = scmp.ne.s32.totalorder %s165, %s168
    %p174 = scmp.eq.s32.totalorder %s11, 0
    %p175 = por %p173, %p174
    %p176 = scmp.ne.s32.totalorder %s165, %s168
    %p177 = scmp.eq.s32.totalorder %s16, 1
    %p178 = por %p176, %p177
    %p179 = scmp.ne.s32.totalorder %s168, %s169
    %p180 = scmp.eq.s32.totalorder %s16, 0
    %p181 = por %p179, %p180
    %p182 = scmp.ne.s32.totalorder %s168, %s169
    %p183 = scmp.eq.s32.totalorder %s17, 1
    %p184 = por %p182, %p183
    %p186 = scmp.ne.s32.totalorder %s169, %s185
    %p187 = scmp.eq.s32.totalorder %s17, 0
    %p188 = por %p186, %p187
    %p189 = scmp.le.s32.totalorder 1, %s11
    %p190 = scmp.lt.s32.totalorder %s11, 3
    %p191 = pnand %p189, %p190
    %p192 = pneg %p191
    // Predicated region
    $region9: #{bottleneck_forward.4} parent=5 // pred_check
      _
    $region10: #{bottleneck_forward.4} parent=5 // pred_check_branch
      %194 = sbr.rel (%p191) target = $region12
    $region11: #{bottleneck_forward.4} parent=5 // pred_region
      %s195 = ssub.s32 %s11, 1
      // Predicated region
      $region13: #{bottleneck_forward.4} parent=11 // pred_check
        %p196 = pneg %p95
      $region14: #{bottleneck_forward.4} parent=11 // pred_check_branch
        %198 = sbr.rel (%p196) target = $region16
      $region15: #{bottleneck_forward.4} parent=11 // pred_region
        %s199 = smul.u32 16, %s25
        %p200 = scmp.lt.s32.totalorder %s199, 15
        %s201 = scalar_select %p200, %s199, 15
        %p202 = scmp.lt.s32.totalorder %s23, 0
        %s203 = scalar_select %p202, %s23, 0
        %s204 = sadd.s32 %s203, %s201
        %s205 = smul.addr %s204, 4
        %s206 = scalar_lea.vmem %s1, %s205
        %s207 = smul.u32 16, %s25
      $region16: #{bottleneck_forward.4} parent=11 // pred_fallthru
        _
    $region12: #{bottleneck_forward.4} parent=5 // pred_fallthru
      _
    %p208 = scmp.lt.s32.totalorder %s11, 2
    // Predicated region
    $region17: #{bottleneck_forward.4} parent=5 // pred_check
      %p209 = pneg %p208
    $region18: #{bottleneck_forward.4} parent=5 // pred_check_branch
      %211 = sbr.rel (%p209) target = $region20
    $region19: #{bottleneck_forward.4} parent=5 // pred_region
      // Predicated region
      $region21: #{bottleneck_forward.4} parent=19 // pred_check
        %p212 = pneg %p61
      $region22: #{bottleneck_forward.4} parent=19 // pred_check_branch
        %214 = sbr.rel (%p212) target = $region24
      $region23: #{bottleneck_forward.4} parent=19 // pred_region
        %s215 = smul.u32 32, %s20
        %p216 = scmp.lt.s32.totalorder %s18, 1
        %s217 = scalar_select %p216, %s18, 1
        %p218 = scmp.lt.s32.totalorder %s215, 31
        %s219 = scalar_select %p218, %s215, 31
        %p220 = scmp.lt.s32.totalorder %s21, 0
        %s221 = scalar_select %p220, %s21, 0
        %s222 = sadd.s32 %s221, %s219
        %s223 = smul.addr %s217, 32
        %s224 = sadd.s32 %s222, %s223
        %s225 = smul.addr %s224, 4
        %s226 = scalar_lea.vmem %s0, %s225
        %s227 = smul.u32 32, %s20
      $region24: #{bottleneck_forward.4} parent=19 // pred_fallthru
        _
    $region20: #{bottleneck_forward.4} parent=5 // pred_fallthru
      _
    %p228 = scmp.le.s32.totalorder 1, %s11
    %p229 = scmp.lt.s32.totalorder %s11, 3
    %p230 = pnand %p228, %p229
    %p231 = pneg %p230
    // Predicated region
    $region25: #{bottleneck_forward.4} parent=5 // pred_check
      _
    $region26: #{bottleneck_forward.4} parent=5 // pred_check_branch
      %233 = sbr.rel (%p230) target = $region28
    $region27: #{bottleneck_forward.4} parent=5 // pred_region
      %s234 = ssub.s32 %s11, 1
      %s235 = smul.u32 32, %s24
      %p236 = scmp.lt.s32.totalorder %s22, 1
      %s237 = scalar_select %p236, %s22, 1
      %p238 = scmp.lt.s32.totalorder %s235, 31
      %s239 = scalar_select %p238, %s235, 31
      %p240 = scmp.lt.s32.totalorder %s25, 0
      %s241 = scalar_select %p240, %s25, 0
      %s242 = sadd.s32 %s241, %s239
      %s243 = smul.addr %s237, 32
      %s244 = sadd.s32 %s242, %s243
      %s245 = smul.addr %s244, 4
      %s246 = scalar_lea.vmem %s0, %s245
      %p247 = pneg %p67
      %p248 = pneg %p64
      %s249 = smul.u32 16, %s25
      %p250 = scmp.lt.s32.totalorder %s249, 15
      %s251 = scalar_select %p250, %s249, 15
      %p252 = scmp.lt.s32.totalorder %s23, 0
      %s253 = scalar_select %p252, %s23, 0
      %s254 = sadd.s32 %s253, %s251
      %s255 = smul.addr %s254, 4
      %s256 = scalar_lea.vmem %s1, %s255
      %p257 = pneg %p95
      %p258 = pneg %p92
      %p259 = pneg %p125
      %p260 = pneg %p122
      %s261 = smul.u32 32, %s24
      %p262 = scmp.lt.s32.totalorder %s22, 1
      %s263 = scalar_select %p262, %s22, 1
      %p264 = scmp.lt.s32.totalorder %s261, 31
      %s265 = scalar_select %p264, %s261, 31
      %p266 = scmp.lt.s32.totalorder %s23, 0
      %s267 = scalar_select %p266, %s23, 0
      %s268 = sadd.s32 %s267, %s265
      %s269 = smul.addr %s263, 32
      %s270 = sadd.s32 %s268, %s269
      %s271 = smul.addr %s270, 4
      %s272 = scalar_lea.vmem %s2, %s271
      %p273 = pneg %p153
      %p274 = pneg %p150
      %p275 = scmp.lt.s32.totalorder %s22, 1
      %s276 = scalar_select %p275, %s22, 1
      %p277 = scmp.lt.s32.totalorder %s23, 0
      %s278 = scalar_select %p277, %s23, 0
      %s279 = sadd.s32 %s278, %s276
      %s280 = scalar_lea.vmem %s3, %s279
      %p281 = pneg %p181
      %p282 = pneg %p178
      %p283 = scmp.lt.s32.totalorder %s22, 1
      %s284 = scalar_select %p283, %s22, 1
      %p285 = scmp.lt.s32.totalorder %s23, 0
      %s286 = scalar_select %p285, %s23, 0
      %s287 = sadd.s32 %s286, %s284
      %s288 = scalar_lea.vmem %s4, %s287
      %s289 = smul.u32 32, %s24
      %p290 = scmp.lt.s32.totalorder %s22, 1
      %s291 = scalar_select %p290, %s22, 1
      %p292 = scmp.lt.s32.totalorder %s289, 31
      %s293 = scalar_select %p292, %s289, 31
      %p294 = scmp.lt.s32.totalorder %s25, 0
      %s295 = scalar_select %p294, %s25, 0
      %s296 = sadd.s32 %s295, %s293
      %s297 = smul.addr %s291, 32
      %s298 = sadd.s32 %s296, %s297
      %s299 = smul.addr %s298, 4
      %s300 = scalar_lea.vmem %s0, %s299
      %s301 = smul.u32 32, %s24
      %s302 = smul.u32 16, %s25
      %p303 = scmp.lt.s32.totalorder %s302, 15
      %s304 = scalar_select %p303, %s302, 15
      %p305 = scmp.lt.s32.totalorder %s23, 0
      %s306 = scalar_select %p305, %s23, 0
      %s307 = sadd.s32 %s306, %s304
      %s308 = smul.addr %s307, 4
      %s309 = scalar_lea.vmem %s1, %s308
      %s310 = smul.u32 16, %s25
      %s311 = smul.u32 32, %s24
      %p312 = scmp.lt.s32.totalorder %s22, 1
      %s313 = scalar_select %p312, %s22, 1
      %p314 = scmp.lt.s32.totalorder %s311, 31
      %s315 = scalar_select %p314, %s311, 31
      %p316 = scmp.lt.s32.totalorder %s23, 0
      %s317 = scalar_select %p316, %s23, 0
      %s318 = sadd.s32 %s317, %s315
      %s319 = smul.addr %s313, 32
      %s320 = sadd.s32 %s318, %s319
      %s321 = smul.addr %s320, 4
      %s322 = scalar_lea.vmem %s2, %s321
      %s323 = smul.u32 32, %s24
      %p324 = scmp.lt.s32.totalorder %s22, 1
      %s325 = scalar_select %p324, %s22, 1
      %p326 = scmp.lt.s32.totalorder %s23, 0
      %s327 = scalar_select %p326, %s23, 0
      %s328 = sadd.s32 %s327, %s325
      %s329 = scalar_lea.vmem %s3, %s328
      %p330 = scmp.lt.s32.totalorder %s22, 1
      %s331 = scalar_select %p330, %s22, 1
      %p332 = scmp.lt.s32.totalorder %s23, 0
      %s333 = scalar_select %p332, %s23, 0
      %s334 = sadd.s32 %s333, %s331
      %s335 = scalar_lea.vmem %s4, %s334
      %p337 = scmp.eq.s32.totalorder %s24, 0
      %p338 = scmp.eq.s32.totalorder %s25, 0
      %p339 = pnand %p337, %p338
      %p340 = pneg %p339
      // Predicated region
      $region29: #{bottleneck_forward.4} parent=27 // pred_check
        _
      $region30: #{bottleneck_forward.4} parent=27 // pred_check_branch
        %342 = sbr.rel (%p339) target = $region32
      $region31: #{bottleneck_forward.4} parent=27 // pred_region
        %343 = vst [vmem:[%s329] sm:$0x1] 0.0
        %344 = vst [vmem:[%s335] sm:$0x1] 0.0
      $region32: #{bottleneck_forward.4} parent=27 // pred_fallthru
        _
      // Predicated region
      $region33: #{bottleneck_forward.4} parent=27 // pred_check
        %p345 = pneg %p338
      $region34: #{bottleneck_forward.4} parent=27 // pred_check_branch
        %347 = sbr.rel (%p345) target = $region36
      $region35: #{bottleneck_forward.4} parent=27 // pred_region
        %348 = vst [vmem:[#allocation2] sm:$0xff] 0.0
        %349 = vst [vmem:[#allocation2 + $0x8] sm:$0xff] 0.0
        %350 = vst [vmem:[#allocation2 + $0x10] sm:$0xff] 0.0
        %351 = vst [vmem:[#allocation2 + $0x18] sm:$0xff] 0.0
        %352 = vst [vmem:[#allocation2 + $0x20] sm:$0xff] 0.0
        %353 = vst [vmem:[#allocation2 + $0x28] sm:$0xff] 0.0
        %354 = vst [vmem:[#allocation2 + $0x30] sm:$0xff] 0.0
        %355 = vst [vmem:[#allocation2 + $0x38] sm:$0xff] 0.0
        %356 = vst [vmem:[#allocation2 + $0x40] sm:$0xff] 0.0
        %357 = vst [vmem:[#allocation2 + $0x48] sm:$0xff] 0.0
        %358 = vst [vmem:[#allocation2 + $0x50] sm:$0xff] 0.0
        %359 = vst [vmem:[#allocation2 + $0x58] sm:$0xff] 0.0
        %360 = vst [vmem:[#allocation2 + $0x60] sm:$0xff] 0.0
        %361 = vst [vmem:[#allocation2 + $0x68] sm:$0xff] 0.0
        %362 = vst [vmem:[#allocation2 + $0x70] sm:$0xff] 0.0
        %363 = vst [vmem:[#allocation2 + $0x78] sm:$0xff] 0.0
        %364 = vst [vmem:[#allocation2 + $0x80] sm:$0xff] 0.0
        %365 = vst [vmem:[#allocation2 + $0x88] sm:$0xff] 0.0
        %366 = vst [vmem:[#allocation2 + $0x90] sm:$0xff] 0.0
        %367 = vst [vmem:[#allocation2 + $0x98] sm:$0xff] 0.0
        %368 = vst [vmem:[#allocation2 + $0xa0] sm:$0xff] 0.0
        %369 = vst [vmem:[#allocation2 + $0xa8] sm:$0xff] 0.0
        %370 = vst [vmem:[#allocation2 + $0xb0] sm:$0xff] 0.0
        %371 = vst [vmem:[#allocation2 + $0xb8] sm:$0xff] 0.0
        %372 = vst [vmem:[#allocation2 + $0xc0] sm:$0xff] 0.0
        %373 = vst [vmem:[#allocation2 + $0xc8] sm:$0xff] 0.0
        %374 = vst [vmem:[#allocation2 + $0xd0] sm:$0xff] 0.0
        %375 = vst [vmem:[#allocation2 + $0xd8] sm:$0xff] 0.0
        %376 = vst [vmem:[#allocation2 + $0xe0] sm:$0xff] 0.0
        %377 = vst [vmem:[#allocation2 + $0xe8] sm:$0xff] 0.0
        %378 = vst [vmem:[#allocation2 + $0xf0] sm:$0xff] 0.0
        %379 = vst [vmem:[#allocation2 + $0xf8] sm:$0xff] 0.0
      $region36: #{bottleneck_forward.4} parent=27 // pred_fallthru
        _
      %v380 = vld [vmem:[%s300] sm:$0xf]
      %v381 = vld [vmem:[%s300 + $0x4] sm:$0xf]
      %v382 = vld [vmem:[%s300 + $0x8] sm:$0xf]
      %v383 = vld [vmem:[%s300 + $0xc] sm:$0xf]
      %v384 = vld [vmem:[%s300 + $0x10] sm:$0xf]
      %v385 = vld [vmem:[%s300 + $0x14] sm:$0xf]
      %v386 = vld [vmem:[%s300 + $0x18] sm:$0xf]
      %v387 = vld [vmem:[%s300 + $0x1c] sm:$0xf]
      %v388 = vld [vmem:[%s300 + $0x20] sm:$0xf]
      %v389 = vld [vmem:[%s300 + $0x24] sm:$0xf]
      %v390 = vld [vmem:[%s300 + $0x28] sm:$0xf]
      %v391 = vld [vmem:[%s300 + $0x2c] sm:$0xf]
      %v392 = vld [vmem:[%s300 + $0x30] sm:$0xf]
      %v393 = vld [vmem:[%s300 + $0x34] sm:$0xf]
      %v394 = vld [vmem:[%s300 + $0x38] sm:$0xf]
      %v395 = vld [vmem:[%s300 + $0x3c] sm:$0xf]
      %v396 = vld [vmem:[%s300 + $0x40] sm:$0xf]
      %v397 = vld [vmem:[%s300 + $0x44] sm:$0xf]
      %v398 = vld [vmem:[%s300 + $0x48] sm:$0xf]
      %v399 = vld [vmem:[%s300 + $0x4c] sm:$0xf]
      %v400 = vld [vmem:[%s300 + $0x50] sm:$0xf]
      %v401 = vld [vmem:[%s300 + $0x54] sm:$0xf]
      %v402 = vld [vmem:[%s300 + $0x58] sm:$0xf]
      %v403 = vld [vmem:[%s300 + $0x5c] sm:$0xf]
      %v404 = vld [vmem:[%s300 + $0x60] sm:$0xf]
      %v405 = vld [vmem:[%s300 + $0x64] sm:$0xf]
      %v406 = vld [vmem:[%s300 + $0x68] sm:$0xf]
      %v407 = vld [vmem:[%s300 + $0x6c] sm:$0xf]
      %v408 = vld [vmem:[%s300 + $0x70] sm:$0xf]
      %v409 = vld [vmem:[%s300 + $0x74] sm:$0xf]
      %v410 = vld [vmem:[%s300 + $0x78] sm:$0xf]
      %v411 = vld [vmem:[%s300 + $0x7c] sm:$0xf]
      %v412 = vld [vmem:[#allocation2] sm:$0xff]
      %v413 = vld [vmem:[#allocation2 + $0x8] sm:$0xff]
      %v414 = vld [vmem:[#allocation2 + $0x10] sm:$0xff]
      %v415 = vld [vmem:[#allocation2 + $0x18] sm:$0xff]
      %v416 = vld [vmem:[#allocation2 + $0x20] sm:$0xff]
      %v417 = vld [vmem:[#allocation2 + $0x28] sm:$0xff]
      %v418 = vld [vmem:[#allocation2 + $0x30] sm:$0xff]
      %v419 = vld [vmem:[#allocation2 + $0x38] sm:$0xff]
      %v420 = vld [vmem:[#allocation2 + $0x40] sm:$0xff]
      %v421 = vld [vmem:[#allocation2 + $0x48] sm:$0xff]
      %v422 = vld [vmem:[#allocation2 + $0x50] sm:$0xff]
      %v423 = vld [vmem:[#allocation2 + $0x58] sm:$0xff]
      %v424 = vld [vmem:[#allocation2 + $0x60] sm:$0xff]
      %v425 = vld [vmem:[#allocation2 + $0x68] sm:$0xff]
      %v426 = vld [vmem:[#allocation2 + $0x70] sm:$0xff]
      %v427 = vld [vmem:[#allocation2 + $0x78] sm:$0xff]
      %v428 = vld [vmem:[#allocation2 + $0x80] sm:$0xff]
      %v429 = vld [vmem:[#allocation2 + $0x88] sm:$0xff]
      %v430 = vld [vmem:[#allocation2 + $0x90] sm:$0xff]
      %v431 = vld [vmem:[#allocation2 + $0x98] sm:$0xff]
      %v432 = vld [vmem:[#allocation2 + $0xa0] sm:$0xff]
      %v433 = vld [vmem:[#allocation2 + $0xa8] sm:$0xff]
      %v434 = vld [vmem:[#allocation2 + $0xb0] sm:$0xff]
      %v435 = vld [vmem:[#allocation2 + $0xb8] sm:$0xff]
      %v436 = vld [vmem:[#allocation2 + $0xc0] sm:$0xff]
      %v437 = vld [vmem:[#allocation2 + $0xc8] sm:$0xff]
      %v438 = vld [vmem:[#allocation2 + $0xd0] sm:$0xff]
      %v439 = vld [vmem:[#allocation2 + $0xd8] sm:$0xff]
      %v440 = vld [vmem:[#allocation2 + $0xe0] sm:$0xff]
      %v441 = vld [vmem:[#allocation2 + $0xe8] sm:$0xff]
      %v442 = vld [vmem:[#allocation2 + $0xf0] sm:$0xff]
      %v443 = vld [vmem:[#allocation2 + $0xf8] sm:$0xff]
      %v444 = vld [vmem:[%s309] sm:$0xf]
      %v445 = vld [vmem:[%s309 + $0x4] sm:$0xf]
      %v446 = vld [vmem:[%s309 + $0x8] sm:$0xf]
      %v447 = vld [vmem:[%s309 + $0xc] sm:$0xf]
      %v448 = vld [vmem:[%s309 + $0x10] sm:$0xf]
      %v449 = vld [vmem:[%s309 + $0x14] sm:$0xf]
      %v450 = vld [vmem:[%s309 + $0x18] sm:$0xf]
      %v451 = vld [vmem:[%s309 + $0x1c] sm:$0xf]
      %v452 = vld [vmem:[%s309 + $0x20] sm:$0xf]
      %v453 = vld [vmem:[%s309 + $0x24] sm:$0xf]
      %v454 = vld [vmem:[%s309 + $0x28] sm:$0xf]
      %v455 = vld [vmem:[%s309 + $0x2c] sm:$0xf]
      %v456 = vld [vmem:[%s309 + $0x30] sm:$0xf]
      %v457 = vld [vmem:[%s309 + $0x34] sm:$0xf]
      %v458 = vld [vmem:[%s309 + $0x38] sm:$0xf]
      %v459 = vld [vmem:[%s309 + $0x3c] sm:$0xf]
      %v492 = vunpack.c.l.b16 %v380
      %v493 = vunpack.c.l.b16 %v381
      %v494 = vunpack.c.l.b16 %v382
      %v495 = vunpack.c.l.b16 %v383
      %v496 = vunpack.c.l.b16 %v384
      %v497 = vunpack.c.l.b16 %v385
      %v498 = vunpack.c.l.b16 %v386
      %v499 = vunpack.c.l.b16 %v387
      %v500 = vunpack.c.l.b16 %v388
      %v501 = vunpack.c.l.b16 %v389
      %v502 = vunpack.c.l.b16 %v390
      %v503 = vunpack.c.l.b16 %v391
      %v504 = vunpack.c.l.b16 %v392
      %v505 = vunpack.c.l.b16 %v393
      %v506 = vunpack.c.l.b16 %v394
      %v507 = vunpack.c.l.b16 %v395
      %v508 = vunpack.c.l.b16 %v396
      %v509 = vunpack.c.l.b16 %v397
      %v510 = vunpack.c.l.b16 %v398
      %v511 = vunpack.c.l.b16 %v399
      %v512 = vunpack.c.l.b16 %v400
      %v513 = vunpack.c.l.b16 %v401
      %v514 = vunpack.c.l.b16 %v402
      %v515 = vunpack.c.l.b16 %v403
      %v516 = vunpack.c.l.b16 %v404
      %v517 = vunpack.c.l.b16 %v405
      %v518 = vunpack.c.l.b16 %v406
      %v519 = vunpack.c.l.b16 %v407
      %v520 = vunpack.c.l.b16 %v408
      %v521 = vunpack.c.l.b16 %v409
      %v522 = vunpack.c.l.b16 %v410
      %v523 = vunpack.c.l.b16 %v411
      %v524 = vpack.c.b16 %v493, %v492
      %v525 = vpack.c.b16 %v495, %v494
      %v526 = vpack.c.b16 %v497, %v496
      %v527 = vpack.c.b16 %v499, %v498
      %v528 = vpack.c.b16 %v501, %v500
      %v529 = vpack.c.b16 %v503, %v502
      %v530 = vpack.c.b16 %v505, %v504
      %v531 = vpack.c.b16 %v507, %v506
      %v532 = vpack.c.b16 %v509, %v508
      %v533 = vpack.c.b16 %v511, %v510
      %v534 = vpack.c.b16 %v513, %v512
      %v535 = vpack.c.b16 %v515, %v514
      %v536 = vpack.c.b16 %v517, %v516
      %v537 = vpack.c.b16 %v519, %v518
      %v538 = vpack.c.b16 %v521, %v520
      %v539 = vpack.c.b16 %v523, %v522
      %v572 = vunpack.c.l.b16 %v444
      %v573 = vunpack.c.l.b16 %v445
      %v574 = vunpack.c.l.b16 %v446
      %v575 = vunpack.c.l.b16 %v447
      %v576 = vunpack.c.l.b16 %v448
      %v577 = vunpack.c.l.b16 %v449
      %v578 = vunpack.c.l.b16 %v450
      %v579 = vunpack.c.l.b16 %v451
      %v580 = vunpack.c.l.b16 %v452
      %v581 = vunpack.c.l.b16 %v453
      %v582 = vunpack.c.l.b16 %v454
      %v583 = vunpack.c.l.b16 %v455
      %v584 = vunpack.c.l.b16 %v456
      %v585 = vunpack.c.l.b16 %v457
      %v586 = vunpack.c.l.b16 %v458
      %v587 = vunpack.c.l.b16 %v459
      %v588 = vpack.c.b16 %v573, %v572
      %v589 = vpack.c.b16 %v575, %v574
      %v590 = vpack.c.b16 %v577, %v576
      %v591 = vpack.c.b16 %v579, %v578
      %v592 = vpack.c.b16 %v581, %v580
      %v593 = vpack.c.b16 %v583, %v582
      %v594 = vpack.c.b16 %v585, %v584
      %v595 = vpack.c.b16 %v587, %v586
      %604 = vmatprep.subr.bf16.mxu0 0
      %605 = vmatpush1.bf16.msra.mxu0 %v595
      %606 = vmatprep.subr.bf16.mxu0 0
      %607 = vmatpush1.bf16.msra.mxu0 %v594
      %608 = vmatprep.subr.bf16.mxu0 0
      %609 = vmatpush1.bf16.msra.mxu0 %v593
      %610 = vmatprep.subr.bf16.mxu0 0
      %611 = vmatpush1.bf16.msra.mxu0 %v592
      %612 = vmatprep.subr.bf16.mxu0 0
      %613 = vmatpush1.bf16.msra.mxu0 %v591
      %614 = vmatprep.subr.bf16.mxu0 0
      %615 = vmatpush1.bf16.msra.mxu0 %v590
      %616 = vmatprep.subr.bf16.mxu0 0
      %617 = vmatpush1.bf16.msra.mxu0 %v589
      %618 = vmatprep.subr.bf16.mxu0 0
      %619 = vmatpush1.bf16.msra.mxu0 %v588
      %620 = vmatprep.subr.bf16.mxu0 0
      %621 = vmatpush2.bf16.msra.mxu0 0
      %622 = vmatprep.subr.bf16.mxu0 0
      %623 = vmatpush2.bf16.msra.mxu0 0
      %624 = vmatprep.subr.bf16.mxu0 0
      %625 = vmatpush2.bf16.msra.mxu0 0
      %626 = vmatprep.subr.bf16.mxu0 0
      %627 = vmatpush2.bf16.msra.mxu0 0
      %628 = vmatprep.subr.bf16.mxu0 0
      %629 = vmatpush2.bf16.msra.mxu0 0
      %630 = vmatprep.subr.bf16.mxu0 0
      %631 = vmatpush2.bf16.msra.mxu0 0
      %632 = vmatprep.subr.bf16.mxu0 0
      %633 = vmatpush2.bf16.msra.mxu0 0
      %634 = vmatprep.subr.bf16.mxu0 0
      %635 = vmatpush2.bf16.msra.mxu0 0
      %636 = vmatprep.mubr.bf16.mxu0 0
      %637 = vmatmul.mubr.bf16.gmra.mxu0 %v524
      %v638 = vpop.f32.mrf.mxu0
      %v639 = vadd.f32 0.0, %v638
      %v640 = vpop.f32.mrf.mxu0
      %v641 = vpop.f32.mrf.mxu0
      %v642 = vadd.f32 0.0, %v641
      %v643 = vpop.f32.mrf.mxu0
      %644 = vmatprep.mubr.bf16.mxu0 0
      %645 = vmatmul.mubr.bf16.gmra.mxu0 %v525
      %v646 = vpop.f32.mrf.mxu0
      %v647 = vadd.f32 0.0, %v646
      %v648 = vpop.f32.mrf.mxu0
      %v649 = vpop.f32.mrf.mxu0
      %v650 = vadd.f32 0.0, %v649
      %v651 = vpop.f32.mrf.mxu0
      %652 = vmatprep.mubr.bf16.mxu0 0
      %653 = vmatmul.mubr.bf16.gmra.mxu0 %v526
      %v654 = vpop.f32.mrf.mxu0
      %v655 = vadd.f32 0.0, %v654
      %v656 = vpop.f32.mrf.mxu0
      %v657 = vpop.f32.mrf.mxu0
      %v658 = vadd.f32 0.0, %v657
      %v659 = vpop.f32.mrf.mxu0
      %660 = vmatprep.mubr.bf16.mxu0 0
      %661 = vmatmul.mubr.bf16.gmra.mxu0 %v527
      %v662 = vpop.f32.mrf.mxu0
      %v663 = vadd.f32 0.0, %v662
      %v664 = vpop.f32.mrf.mxu0
      %v665 = vpop.f32.mrf.mxu0
      %v666 = vadd.f32 0.0, %v665
      %v667 = vpop.f32.mrf.mxu0
      %668 = vmatprep.mubr.bf16.mxu0 0
      %669 = vmatmul.mubr.bf16.gmra.mxu0 %v528
      %v670 = vpop.f32.mrf.mxu0
      %v671 = vadd.f32 0.0, %v670
      %v672 = vpop.f32.mrf.mxu0
      %v673 = vpop.f32.mrf.mxu0
      %v674 = vadd.f32 0.0, %v673
      %v675 = vpop.f32.mrf.mxu0
      %676 = vmatprep.mubr.bf16.mxu0 0
      %677 = vmatmul.mubr.bf16.gmra.mxu0 %v529
      %v678 = vpop.f32.mrf.mxu0
      %v679 = vadd.f32 0.0, %v678
      %v680 = vpop.f32.mrf.mxu0
      %v681 = vpop.f32.mrf.mxu0
      %v682 = vadd.f32 0.0, %v681
      %v683 = vpop.f32.mrf.mxu0
      %684 = vmatprep.mubr.bf16.mxu0 0
      %685 = vmatmul.mubr.bf16.gmra.mxu0 %v530
      %v686 = vpop.f32.mrf.mxu0
      %v687 = vadd.f32 0.0, %v686
      %v688 = vpop.f32.mrf.mxu0
      %v689 = vpop.f32.mrf.mxu0
      %v690 = vadd.f32 0.0, %v689
      %v691 = vpop.f32.mrf.mxu0
      %692 = vmatprep.mubr.bf16.mxu0 0
      %693 = vmatmul.mubr.bf16.gmra.mxu0 %v531
      %v694 = vpop.f32.mrf.mxu0
      %v695 = vadd.f32 0.0, %v694
      %v696 = vpop.f32.mrf.mxu0
      %v697 = vpop.f32.mrf.mxu0
      %v698 = vadd.f32 0.0, %v697
      %v699 = vpop.f32.mrf.mxu0
      %700 = vmatprep.mubr.bf16.mxu0 0
      %701 = vmatmul.mubr.bf16.gmra.mxu0 %v532
      %v702 = vpop.f32.mrf.mxu0
      %v703 = vadd.f32 0.0, %v702
      %v704 = vpop.f32.mrf.mxu0
      %v705 = vpop.f32.mrf.mxu0
      %v706 = vadd.f32 0.0, %v705
      %v707 = vpop.f32.mrf.mxu0
      %708 = vmatprep.mubr.bf16.mxu0 0
      %709 = vmatmul.mubr.bf16.gmra.mxu0 %v533
      %v710 = vpop.f32.mrf.mxu0
      %v711 = vadd.f32 0.0, %v710
      %v712 = vpop.f32.mrf.mxu0
      %v713 = vpop.f32.mrf.mxu0
      %v714 = vadd.f32 0.0, %v713
      %v715 = vpop.f32.mrf.mxu0
      %716 = vmatprep.mubr.bf16.mxu0 0
      %717 = vmatmul.mubr.bf16.gmra.mxu0 %v534
      %v718 = vpop.f32.mrf.mxu0
      %v719 = vadd.f32 0.0, %v718
      %v720 = vpop.f32.mrf.mxu0
      %v721 = vpop.f32.mrf.mxu0
      %v722 = vadd.f32 0.0, %v721
      %v723 = vpop.f32.mrf.mxu0
      %724 = vmatprep.mubr.bf16.mxu0 0
      %725 = vmatmul.mubr.bf16.gmra.mxu0 %v535
      %v726 = vpop.f32.mrf.mxu0
      %v727 = vadd.f32 0.0, %v726
      %v728 = vpop.f32.mrf.mxu0
      %v729 = vpop.f32.mrf.mxu0
      %v730 = vadd.f32 0.0, %v729
      %v731 = vpop.f32.mrf.mxu0
      %732 = vmatprep.mubr.bf16.mxu0 0
      %733 = vmatmul.mubr.bf16.gmra.mxu0 %v536
      %v734 = vpop.f32.mrf.mxu0
      %v735 = vadd.f32 0.0, %v734
      %v736 = vpop.f32.mrf.mxu0
      %v737 = vpop.f32.mrf.mxu0
      %v738 = vadd.f32 0.0, %v737
      %v739 = vpop.f32.mrf.mxu0
      %740 = vmatprep.mubr.bf16.mxu0 0
      %741 = vmatmul.mubr.bf16.gmra.mxu0 %v537
      %v742 = vpop.f32.mrf.mxu0
      %v743 = vadd.f32 0.0, %v742
      %v744 = vpop.f32.mrf.mxu0
      %v745 = vpop.f32.mrf.mxu0
      %v746 = vadd.f32 0.0, %v745
      %v747 = vpop.f32.mrf.mxu0
      %748 = vmatprep.mubr.bf16.mxu0 0
      %749 = vmatmul.mubr.bf16.gmra.mxu0 %v538
      %v750 = vpop.f32.mrf.mxu0
      %v751 = vadd.f32 0.0, %v750
      %v752 = vpop.f32.mrf.mxu0
      %v753 = vpop.f32.mrf.mxu0
      %v754 = vadd.f32 0.0, %v753
      %v755 = vpop.f32.mrf.mxu0
      %756 = vmatprep.mubr.bf16.mxu0 0
      %757 = vmatmul.mubr.bf16.gmra.mxu0 %v539
      %v758 = vpop.f32.mrf.mxu0
      %v759 = vadd.f32 0.0, %v758
      %v760 = vpop.f32.mrf.mxu0
      %v761 = vpop.f32.mrf.mxu0
      %v762 = vadd.f32 0.0, %v761
      %v763 = vpop.f32.mrf.mxu0
      %764 = vdwg.mxu0
      %v765 = vadd.f32 %v412, %v639
      %v766 = vadd.f32 %v413, %v642
      %v767 = vadd.f32 %v414, %v647
      %v768 = vadd.f32 %v415, %v650
      %v769 = vadd.f32 %v416, %v655
      %v770 = vadd.f32 %v417, %v658
      %v771 = vadd.f32 %v418, %v663
      %v772 = vadd.f32 %v419, %v666
      %v773 = vadd.f32 %v420, %v671
      %v774 = vadd.f32 %v421, %v674
      %v775 = vadd.f32 %v422, %v679
      %v776 = vadd.f32 %v423, %v682
      %v777 = vadd.f32 %v424, %v687
      %v778 = vadd.f32 %v425, %v690
      %v779 = vadd.f32 %v426, %v695
      %v780 = vadd.f32 %v427, %v698
      %v781 = vadd.f32 %v428, %v703
      %v782 = vadd.f32 %v429, %v706
      %v783 = vadd.f32 %v430, %v711
      %v784 = vadd.f32 %v431, %v714
      %v785 = vadd.f32 %v432, %v719
      %v786 = vadd.f32 %v433, %v722
      %v787 = vadd.f32 %v434, %v727
      %v788 = vadd.f32 %v435, %v730
      %v789 = vadd.f32 %v436, %v735
      %v790 = vadd.f32 %v437, %v738
      %v791 = vadd.f32 %v438, %v743
      %v792 = vadd.f32 %v439, %v746
      %v793 = vadd.f32 %v440, %v751
      %v794 = vadd.f32 %v441, %v754
      %v795 = vadd.f32 %v442, %v759
      %v796 = vadd.f32 %v443, %v762
      %797 = vst [vmem:[#allocation2] sm:$0xff] %v765
      %798 = vst [vmem:[#allocation2 + $0x8] sm:$0xff] %v766
      %799 = vst [vmem:[#allocation2 + $0x10] sm:$0xff] %v767
      %800 = vst [vmem:[#allocation2 + $0x18] sm:$0xff] %v768
      %801 = vst [vmem:[#allocation2 + $0x20] sm:$0xff] %v769
      %802 = vst [vmem:[#allocation2 + $0x28] sm:$0xff] %v770
      %803 = vst [vmem:[#allocation2 + $0x30] sm:$0xff] %v771
      %804 = vst [vmem:[#allocation2 + $0x38] sm:$0xff] %v772
      %805 = vst [vmem:[#allocation2 + $0x40] sm:$0xff] %v773
      %806 = vst [vmem:[#allocation2 + $0x48] sm:$0xff] %v774
      %807 = vst [vmem:[#allocation2 + $0x50] sm:$0xff] %v775
      %808 = vst [vmem:[#allocation2 + $0x58] sm:$0xff] %v776
      %809 = vst [vmem:[#allocation2 + $0x60] sm:$0xff] %v777
      %810 = vst [vmem:[#allocation2 + $0x68] sm:$0xff] %v778
      %811 = vst [vmem:[#allocation2 + $0x70] sm:$0xff] %v779
      %812 = vst [vmem:[#allocation2 + $0x78] sm:$0xff] %v780
      %813 = vst [vmem:[#allocation2 + $0x80] sm:$0xff] %v781
      %814 = vst [vmem:[#allocation2 + $0x88] sm:$0xff] %v782
      %815 = vst [vmem:[#allocation2 + $0x90] sm:$0xff] %v783
      %816 = vst [vmem:[#allocation2 + $0x98] sm:$0xff] %v784
      %817 = vst [vmem:[#allocation2 + $0xa0] sm:$0xff] %v785
      %818 = vst [vmem:[#allocation2 + $0xa8] sm:$0xff] %v786
      %819 = vst [vmem:[#allocation2 + $0xb0] sm:$0xff] %v787
      %820 = vst [vmem:[#allocation2 + $0xb8] sm:$0xff] %v788
      %821 = vst [vmem:[#allocation2 + $0xc0] sm:$0xff] %v789
      %822 = vst [vmem:[#allocation2 + $0xc8] sm:$0xff] %v790
      %823 = vst [vmem:[#allocation2 + $0xd0] sm:$0xff] %v791
      %824 = vst [vmem:[#allocation2 + $0xd8] sm:$0xff] %v792
      %825 = vst [vmem:[#allocation2 + $0xe0] sm:$0xff] %v793
      %826 = vst [vmem:[#allocation2 + $0xe8] sm:$0xff] %v794
      %827 = vst [vmem:[#allocation2 + $0xf0] sm:$0xff] %v795
      %828 = vst [vmem:[#allocation2 + $0xf8] sm:$0xff] %v796
      // Predicated region
      $region37: #{bottleneck_forward.4} parent=27 // pred_check
        %p829 = pneg %p338
      $region38: #{bottleneck_forward.4} parent=27 // pred_check_branch
        %831 = sbr.rel (%p829) target = $region40
      $region39: #{bottleneck_forward.4} parent=27 // pred_region
        %v832 = vld [vmem:[#allocation2] sm:$0xff]
        %v833 = vld [vmem:[#allocation2 + $0x8] sm:$0xff]
        %v834 = vld [vmem:[#allocation2 + $0x10] sm:$0xff]
        %v835 = vld [vmem:[#allocation2 + $0x18] sm:$0xff]
        %v836 = vld [vmem:[#allocation2 + $0x20] sm:$0xff]
        %v837 = vld [vmem:[#allocation2 + $0x28] sm:$0xff]
        %v838 = vld [vmem:[#allocation2 + $0x30] sm:$0xff]
        %v839 = vld [vmem:[#allocation2 + $0x38] sm:$0xff]
        %v840 = vld [vmem:[#allocation2 + $0x40] sm:$0xff]
        %v841 = vld [vmem:[#allocation2 + $0x48] sm:$0xff]
        %v842 = vld [vmem:[#allocation2 + $0x50] sm:$0xff]
        %v843 = vld [vmem:[#allocation2 + $0x58] sm:$0xff]
        %v844 = vld [vmem:[#allocation2 + $0x60] sm:$0xff]
        %v845 = vld [vmem:[#allocation2 + $0x68] sm:$0xff]
        %v846 = vld [vmem:[#allocation2 + $0x70] sm:$0xff]
        %v847 = vld [vmem:[#allocation2 + $0x78] sm:$0xff]
        %v848 = vld [vmem:[#allocation2 + $0x80] sm:$0xff]
        %v849 = vld [vmem:[#allocation2 + $0x88] sm:$0xff]
        %v850 = vld [vmem:[#allocation2 + $0x90] sm:$0xff]
        %v851 = vld [vmem:[#allocation2 + $0x98] sm:$0xff]
        %v852 = vld [vmem:[#allocation2 + $0xa0] sm:$0xff]
        %v853 = vld [vmem:[#allocation2 + $0xa8] sm:$0xff]
        %v854 = vld [vmem:[#allocation2 + $0xb0] sm:$0xff]
        %v855 = vld [vmem:[#allocation2 + $0xb8] sm:$0xff]
        %v856 = vld [vmem:[#allocation2 + $0xc0] sm:$0xff]
        %v857 = vld [vmem:[#allocation2 + $0xc8] sm:$0xff]
        %v858 = vld [vmem:[#allocation2 + $0xd0] sm:$0xff]
        %v859 = vld [vmem:[#allocation2 + $0xd8] sm:$0xff]
        %v860 = vld [vmem:[#allocation2 + $0xe0] sm:$0xff]
        %v861 = vld [vmem:[#allocation2 + $0xe8] sm:$0xff]
        %v862 = vld [vmem:[#allocation2 + $0xf0] sm:$0xff]
        %v863 = vld [vmem:[#allocation2 + $0xf8] sm:$0xff]
        %v864 = vpack.c.bf16 %v833, %v832
        %v865 = vpack.c.bf16 %v835, %v834
        %v866 = vpack.c.bf16 %v837, %v836
        %v867 = vpack.c.bf16 %v839, %v838
        %v868 = vpack.c.bf16 %v841, %v840
        %v869 = vpack.c.bf16 %v843, %v842
        %v870 = vpack.c.bf16 %v845, %v844
        %v871 = vpack.c.bf16 %v847, %v846
        %v872 = vpack.c.bf16 %v849, %v848
        %v873 = vpack.c.bf16 %v851, %v850
        %v874 = vpack.c.bf16 %v853, %v852
        %v875 = vpack.c.bf16 %v855, %v854
        %v876 = vpack.c.bf16 %v857, %v856
        %v877 = vpack.c.bf16 %v859, %v858
        %v878 = vpack.c.bf16 %v861, %v860
        %v879 = vpack.c.bf16 %v863, %v862
        %v896 = vunpack.c.l.b16 %v864
        %v897 = vunpack.c.h.b16 %v864
        %v898 = vunpack.c.l.b16 %v865
        %v899 = vunpack.c.h.b16 %v865
        %v900 = vunpack.c.l.b16 %v866
        %v901 = vunpack.c.h.b16 %v866
        %v902 = vunpack.c.l.b16 %v867
        %v903 = vunpack.c.h.b16 %v867
        %v904 = vunpack.c.l.b16 %v868
        %v905 = vunpack.c.h.b16 %v868
        %v906 = vunpack.c.l.b16 %v869
        %v907 = vunpack.c.h.b16 %v869
        %v908 = vunpack.c.l.b16 %v870
        %v909 = vunpack.c.h.b16 %v870
        %v910 = vunpack.c.l.b16 %v871
        %v911 = vunpack.c.h.b16 %v871
        %v912 = vunpack.c.l.b16 %v872
        %v913 = vunpack.c.h.b16 %v872
        %v914 = vunpack.c.l.b16 %v873
        %v915 = vunpack.c.h.b16 %v873
        %v916 = vunpack.c.l.b16 %v874
        %v917 = vunpack.c.h.b16 %v874
        %v918 = vunpack.c.l.b16 %v875
        %v919 = vunpack.c.h.b16 %v875
        %v920 = vunpack.c.l.b16 %v876
        %v921 = vunpack.c.h.b16 %v876
        %v922 = vunpack.c.l.b16 %v877
        %v923 = vunpack.c.h.b16 %v877
        %v924 = vunpack.c.l.b16 %v878
        %v925 = vunpack.c.h.b16 %v878
        %v926 = vunpack.c.l.b16 %v879
        %v927 = vunpack.c.h.b16 %v879
        %v928 = vpack.c.b16 %v896, %v896
        %v929 = vpack.c.b16 %v897, %v897
        %v930 = vpack.c.b16 %v898, %v898
        %v931 = vpack.c.b16 %v899, %v899
        %v932 = vpack.c.b16 %v900, %v900
        %v933 = vpack.c.b16 %v901, %v901
        %v934 = vpack.c.b16 %v902, %v902
        %v935 = vpack.c.b16 %v903, %v903
        %v936 = vpack.c.b16 %v904, %v904
        %v937 = vpack.c.b16 %v905, %v905
        %v938 = vpack.c.b16 %v906, %v906
        %v939 = vpack.c.b16 %v907, %v907
        %v940 = vpack.c.b16 %v908, %v908
        %v941 = vpack.c.b16 %v909, %v909
        %v942 = vpack.c.b16 %v910, %v910
        %v943 = vpack.c.b16 %v911, %v911
        %v944 = vpack.c.b16 %v912, %v912
        %v945 = vpack.c.b16 %v913, %v913
        %v946 = vpack.c.b16 %v914, %v914
        %v947 = vpack.c.b16 %v915, %v915
        %v948 = vpack.c.b16 %v916, %v916
        %v949 = vpack.c.b16 %v917, %v917
        %v950 = vpack.c.b16 %v918, %v918
        %v951 = vpack.c.b16 %v919, %v919
        %v952 = vpack.c.b16 %v920, %v920
        %v953 = vpack.c.b16 %v921, %v921
        %v954 = vpack.c.b16 %v922, %v922
        %v955 = vpack.c.b16 %v923, %v923
        %v956 = vpack.c.b16 %v924, %v924
        %v957 = vpack.c.b16 %v925, %v925
        %v958 = vpack.c.b16 %v926, %v926
        %v959 = vpack.c.b16 %v927, %v927
        %992 = vst [vmem:[%s322] sm:$0xf] %v928
        %993 = vst [vmem:[%s322 + $0x4] sm:$0xf] %v929
        %994 = vst [vmem:[%s322 + $0x8] sm:$0xf] %v930
        %995 = vst [vmem:[%s322 + $0xc] sm:$0xf] %v931
        %996 = vst [vmem:[%s322 + $0x10] sm:$0xf] %v932
        %997 = vst [vmem:[%s322 + $0x14] sm:$0xf] %v933
        %998 = vst [vmem:[%s322 + $0x18] sm:$0xf] %v934
        %999 = vst [vmem:[%s322 + $0x1c] sm:$0xf] %v935
        %1000 = vst [vmem:[%s322 + $0x20] sm:$0xf] %v936
        %1001 = vst [vmem:[%s322 + $0x24] sm:$0xf] %v937
        %1002 = vst [vmem:[%s322 + $0x28] sm:$0xf] %v938
        %1003 = vst [vmem:[%s322 + $0x2c] sm:$0xf] %v939
        %1004 = vst [vmem:[%s322 + $0x30] sm:$0xf] %v940
        %1005 = vst [vmem:[%s322 + $0x34] sm:$0xf] %v941
        %1006 = vst [vmem:[%s322 + $0x38] sm:$0xf] %v942
        %1007 = vst [vmem:[%s322 + $0x3c] sm:$0xf] %v943
        %1008 = vst [vmem:[%s322 + $0x40] sm:$0xf] %v944
        %1009 = vst [vmem:[%s322 + $0x44] sm:$0xf] %v945
        %1010 = vst [vmem:[%s322 + $0x48] sm:$0xf] %v946
        %1011 = vst [vmem:[%s322 + $0x4c] sm:$0xf] %v947
        %1012 = vst [vmem:[%s322 + $0x50] sm:$0xf] %v948
        %1013 = vst [vmem:[%s322 + $0x54] sm:$0xf] %v949
        %1014 = vst [vmem:[%s322 + $0x58] sm:$0xf] %v950
        %1015 = vst [vmem:[%s322 + $0x5c] sm:$0xf] %v951
        %1016 = vst [vmem:[%s322 + $0x60] sm:$0xf] %v952
        %1017 = vst [vmem:[%s322 + $0x64] sm:$0xf] %v953
        %1018 = vst [vmem:[%s322 + $0x68] sm:$0xf] %v954
        %1019 = vst [vmem:[%s322 + $0x6c] sm:$0xf] %v955
        %1020 = vst [vmem:[%s322 + $0x70] sm:$0xf] %v956
        %1021 = vst [vmem:[%s322 + $0x74] sm:$0xf] %v957
        %1022 = vst [vmem:[%s322 + $0x78] sm:$0xf] %v958
        %1023 = vst [vmem:[%s322 + $0x7c] sm:$0xf] %v959
        %v1024 = vld [vmem:[%s329] sm:$0x1]
        %v1025 = vadd.f32 %v832, %v833
        %v1026 = vadd.f32 %v1025, %v834
        %v1027 = vadd.f32 %v1026, %v835
        %v1028 = vadd.f32 %v1027, %v836
        %v1029 = vadd.f32 %v1028, %v837
        %v1030 = vadd.f32 %v1029, %v838
        %v1031 = vadd.f32 %v1030, %v839
        %v1032 = vadd.f32 %v1031, %v840
        %v1033 = vadd.f32 %v1032, %v841
        %v1034 = vadd.f32 %v1033, %v842
        %v1035 = vadd.f32 %v1034, %v843
        %v1036 = vadd.f32 %v1035, %v844
        %v1037 = vadd.f32 %v1036, %v845
        %v1038 = vadd.f32 %v1037, %v846
        %v1039 = vadd.f32 %v1038, %v847
        %v1040 = vadd.f32 %v1039, %v848
        %v1041 = vadd.f32 %v1040, %v849
        %v1042 = vadd.f32 %v1041, %v850
        %v1043 = vadd.f32 %v1042, %v851
        %v1044 = vadd.f32 %v1043, %v852
        %v1045 = vadd.f32 %v1044, %v853
        %v1046 = vadd.f32 %v1045, %v854
        %v1047 = vadd.f32 %v1046, %v855
        %v1048 = vadd.f32 %v1047, %v856
        %v1049 = vadd.f32 %v1048, %v857
        %v1050 = vadd.f32 %v1049, %v858
        %v1051 = vadd.f32 %v1050, %v859
        %v1052 = vadd.f32 %v1051, %v860
        %v1053 = vadd.f32 %v1052, %v861
        %v1054 = vadd.f32 %v1053, %v862
        %v1055 = vadd.f32 %v1054, %v863
        %v1056 = vrot.slane %v1055, 4
        %v1057 = vadd.f32 %v1055, %v1056
        %v1058 = vrot.slane %v1057, 2
        %v1059 = vadd.f32 %v1057, %v1058
        %v1060 = vrot.slane %v1059, 1
        %v1061 = vadd.f32 %v1059, %v1060
        %v1062 = vadd.f32 %v1024, %v1061
        %1063 = vst [vmem:[%s329] sm:$0x1] %v1062
        %v1064 = vld [vmem:[%s335] sm:$0x1]
        %v1065 = vmul.f32 %v832, %v832
        %v1066 = vmul.f32 %v833, %v833
        %v1067 = vmul.f32 %v834, %v834
        %v1068 = vmul.f32 %v835, %v835
        %v1069 = vmul.f32 %v836, %v836
        %v1070 = vmul.f32 %v837, %v837
        %v1071 = vmul.f32 %v838, %v838
        %v1072 = vmul.f32 %v839, %v839
        %v1073 = vmul.f32 %v840, %v840
        %v1074 = vmul.f32 %v841, %v841
        %v1075 = vmul.f32 %v842, %v842
        %v1076 = vmul.f32 %v843, %v843
        %v1077 = vmul.f32 %v844, %v844
        %v1078 = vmul.f32 %v845, %v845
        %v1079 = vmul.f32 %v846, %v846
        %v1080 = vmul.f32 %v847, %v847
        %v1081 = vmul.f32 %v848, %v848
        %v1082 = vmul.f32 %v849, %v849
        %v1083 = vmul.f32 %v850, %v850
        %v1084 = vmul.f32 %v851, %v851
        %v1085 = vmul.f32 %v852, %v852
        %v1086 = vmul.f32 %v853, %v853
        %v1087 = vmul.f32 %v854, %v854
        %v1088 = vmul.f32 %v855, %v855
        %v1089 = vmul.f32 %v856, %v856
        %v1090 = vmul.f32 %v857, %v857
        %v1091 = vmul.f32 %v858, %v858
        %v1092 = vmul.f32 %v859, %v859
        %v1093 = vmul.f32 %v860, %v860
        %v1094 = vmul.f32 %v861, %v861
        %v1095 = vmul.f32 %v862, %v862
        %v1096 = vmul.f32 %v863, %v863
        %v1097 = vadd.f32 %v1065, %v1066
        %v1098 = vadd.f32 %v1097, %v1067
        %v1099 = vadd.f32 %v1098, %v1068
        %v1100 = vadd.f32 %v1099, %v1069
        %v1101 = vadd.f32 %v1100, %v1070
        %v1102 = vadd.f32 %v1101, %v1071
        %v1103 = vadd.f32 %v1102, %v1072
        %v1104 = vadd.f32 %v1103, %v1073
        %v1105 = vadd.f32 %v1104, %v1074
        %v1106 = vadd.f32 %v1105, %v1075
        %v1107 = vadd.f32 %v1106, %v1076
        %v1108 = vadd.f32 %v1107, %v1077
        %v1109 = vadd.f32 %v1108, %v1078
        %v1110 = vadd.f32 %v1109, %v1079
        %v1111 = vadd.f32 %v1110, %v1080
        %v1112 = vadd.f32 %v1111, %v1081
        %v1113 = vadd.f32 %v1112, %v1082
        %v1114 = vadd.f32 %v1113, %v1083
        %v1115 = vadd.f32 %v1114, %v1084
        %v1116 = vadd.f32 %v1115, %v1085
        %v1117 = vadd.f32 %v1116, %v1086
        %v1118 = vadd.f32 %v1117, %v1087
        %v1119 = vadd.f32 %v1118, %v1088
        %v1120 = vadd.f32 %v1119, %v1089
        %v1121 = vadd.f32 %v1120, %v1090
        %v1122 = vadd.f32 %v1121, %v1091
        %v1123 = vadd.f32 %v1122, %v1092
        %v1124 = vadd.f32 %v1123, %v1093
        %v1125 = vadd.f32 %v1124, %v1094
        %v1126 = vadd.f32 %v1125, %v1095
        %v1127 = vadd.f32 %v1126, %v1096
        %v1128 = vrot.slane %v1127, 4
        %v1129 = vadd.f32 %v1127, %v1128
        %v1130 = vrot.slane %v1129, 2
        %v1131 = vadd.f32 %v1129, %v1130
        %v1132 = vrot.slane %v1131, 1
        %v1133 = vadd.f32 %v1131, %v1132
        %v1134 = vadd.f32 %v1064, %v1133
        %1135 = vst [vmem:[%s335] sm:$0x1] %v1134
      $region40: #{bottleneck_forward.4} parent=27 // pred_fallthru
        _
      %s1136 = smul.u32 32, %s24
      %p1137 = scmp.lt.s32.totalorder %s22, 1
      %s1138 = scalar_select %p1137, %s22, 1
      %p1139 = scmp.lt.s32.totalorder %s1136, 31
      %s1140 = scalar_select %p1139, %s1136, 31
      %p1141 = scmp.lt.s32.totalorder %s23, 0
      %s1142 = scalar_select %p1141, %s23, 0
      %s1143 = sadd.s32 %s1142, %s1140
      %s1144 = smul.addr %s1138, 32
      %s1145 = sadd.s32 %s1143, %s1144
      %s1146 = smul.addr %s1145, 4
      %s1147 = scalar_lea.vmem %s2, %s1146
      %p1148 = scmp.lt.s32.totalorder %s22, 1
      %s1149 = scalar_select %p1148, %s22, 1
      %p1150 = scmp.lt.s32.totalorder %s23, 0
      %s1151 = scalar_select %p1150, %s23, 0
      %s1152 = sadd.s32 %s1151, %s1149
      %s1153 = scalar_lea.vmem %s3, %s1152
      %p1154 = scmp.lt.s32.totalorder %s22, 1
      %s1155 = scalar_select %p1154, %s22, 1
      %p1156 = scmp.lt.s32.totalorder %s23, 0
      %s1157 = scalar_select %p1156, %s23, 0
      %s1158 = sadd.s32 %s1157, %s1155
      %s1159 = scalar_lea.vmem %s4, %s1158
      // Predicated region
      $region41: #{bottleneck_forward.4} parent=27 // pred_check
        %p1160 = pneg %p122
      $region42: #{bottleneck_forward.4} parent=27 // pred_check_branch
        %1162 = sbr.rel (%p1160) target = $region44
      $region43: #{bottleneck_forward.4} parent=27 // pred_region
        %s1163 = smul.u32 32, %s24
      $region44: #{bottleneck_forward.4} parent=27 // pred_fallthru
        _
      // Predicated region
      $region45: #{bottleneck_forward.4} parent=27 // pred_check
        %p1164 = pneg %p150
      $region46: #{bottleneck_forward.4} parent=27 // pred_check_branch
        %1166 = sbr.rel (%p1164) target = $region48
      $region47: #{bottleneck_forward.4} parent=27 // pred_region
        _
      $region48: #{bottleneck_forward.4} parent=27 // pred_fallthru
        _
      // Predicated region
      $region49: #{bottleneck_forward.4} parent=27 // pred_check
        %p1167 = pneg %p178
      $region50: #{bottleneck_forward.4} parent=27 // pred_check_branch
        %1169 = sbr.rel (%p1167) target = $region52
      $region51: #{bottleneck_forward.4} parent=27 // pred_region
        _
      $region52: #{bottleneck_forward.4} parent=27 // pred_fallthru
        _
    $region28: #{bottleneck_forward.4} parent=5 // pred_fallthru
      _
    %p1170 = scmp.le.s32.totalorder 2, %s11
    // Predicated region
    $region53: #{bottleneck_forward.4} parent=5 // pred_check
      %p1171 = pneg %p1170
    $region54: #{bottleneck_forward.4} parent=5 // pred_check_branch
      %1173 = sbr.rel (%p1171) target = $region56
    $region55: #{bottleneck_forward.4} parent=5 // pred_region
      %s1174 = ssub.s32 %s11, 2
      // Predicated region
      $region57: #{bottleneck_forward.4} parent=55 // pred_check
        %p1175 = pneg %p128
      $region58: #{bottleneck_forward.4} parent=55 // pred_check_branch
        %1177 = sbr.rel (%p1175) target = $region60
      $region59: #{bottleneck_forward.4} parent=55 // pred_region
        %s1178 = smul.u32 32, %s28
        %p1179 = scmp.lt.s32.totalorder %s26, 1
        %s1180 = scalar_select %p1179, %s26, 1
        %p1181 = scmp.lt.s32.totalorder %s1178, 31
        %s1182 = scalar_select %p1181, %s1178, 31
        %p1183 = scmp.lt.s32.totalorder %s27, 0
        %s1184 = scalar_select %p1183, %s27, 0
        %s1185 = sadd.s32 %s1184, %s1182
        %s1186 = smul.addr %s1180, 32
        %s1187 = sadd.s32 %s1185, %s1186
        %s1188 = smul.addr %s1187, 4
        %s1189 = scalar_lea.vmem %s2, %s1188
      $region60: #{bottleneck_forward.4} parent=55 // pred_fallthru
        _
      // Predicated region
      $region61: #{bottleneck_forward.4} parent=55 // pred_check
        %p1190 = pneg %p156
      $region62: #{bottleneck_forward.4} parent=55 // pred_check_branch
        %1192 = sbr.rel (%p1190) target = $region64
      $region63: #{bottleneck_forward.4} parent=55 // pred_region
        %p1193 = scmp.lt.s32.totalorder %s26, 1
        %s1194 = scalar_select %p1193, %s26, 1
        %p1195 = scmp.lt.s32.totalorder %s27, 0
        %s1196 = scalar_select %p1195, %s27, 0
        %s1197 = sadd.s32 %s1196, %s1194
        %s1198 = scalar_lea.vmem %s3, %s1197
      $region64: #{bottleneck_forward.4} parent=55 // pred_fallthru
        _
      // Predicated region
      $region65: #{bottleneck_forward.4} parent=55 // pred_check
        %p1199 = pneg %p184
      $region66: #{bottleneck_forward.4} parent=55 // pred_check_branch
        %1201 = sbr.rel (%p1199) target = $region68
      $region67: #{bottleneck_forward.4} parent=55 // pred_region
        %p1202 = scmp.lt.s32.totalorder %s26, 1
        %s1203 = scalar_select %p1202, %s26, 1
        %p1204 = scmp.lt.s32.totalorder %s27, 0
        %s1205 = scalar_select %p1204, %s27, 0
        %s1206 = sadd.s32 %s1205, %s1203
        %s1207 = scalar_lea.vmem %s4, %s1206
      $region68: #{bottleneck_forward.4} parent=55 // pred_fallthru
        _
    $region56: #{bottleneck_forward.4} parent=5 // pred_fallthru
      _
  $region6: #{bottleneck_forward.4} parent=0 // loop_footer
    %s15 = sadd.s32 1, %s11
  $region7: #{bottleneck_forward.4} parent=0 // loop_footer_branch
    %10 = sbr.rel target = $region3
  $region8: #{bottleneck_forward.4} parent=0 // loop_exit
    _

// kernel: bottleneck_forward.7
$region0: #{bottleneck_forward.7}
  #allocation0 [shape = 'u32[]', space=smem, size = 0x4, offset = 0x4, fixed_abs, tag = 'smem constant byte address 0x4 - core index']
  #allocation1 [shape = 'u32[144,128]{1,0:T(1,128)}', space=vmem, size = 0x12000, scoped, tag = 'internal scratch']
  %s0 = inlined_call_operand.vmem [shape: bf16[2,256,128], index: 0, kind: input, shape index: {}]
  %s1 = inlined_call_operand.vmem [shape: f32[2,1,128], index: 1, kind: input, shape index: {}]
  %s2 = inlined_call_operand.vmem [shape: f32[2,1,128], index: 2, kind: input, shape index: {}]
  %s3 = inlined_call_operand.vmem [shape: bf16[2,256,128], index: 3, kind: input, shape index: {}]
  %s4 = inlined_call_operand.vmem [shape: bf16[2,256,128], index: 4, kind: output, shape index: {}]
  %s5 = sld [smem:[#allocation0]]
  $region49: #{bottleneck_forward.7} parent=0
    _
  %s7 = ssub.s32 1, %s5
  %s8 = scalar_select 0, %s7, %s5
  loop: start=0, step=1, limit=4
  $region2: #{bottleneck_forward.7} parent=0 // loop_pre_header
    _
  $region3: #{bottleneck_forward.7} parent=0 // loop_header
    %s10 = sphi 0, %s14
    %p11 = scmp.ge.s32.totalorder %s10, 4
    %s17 = sphi 0, %s36
    %s18 = sphi 0, %s32
    %s19 = sphi 0, %s28
    %s20 = sphi 0, %s17
    %s21 = sphi 0, %s18
    %s22 = sphi 0, %s19
    %s23 = sphi 0, %s20
    %s24 = sphi 0, %s21
    %s25 = sphi 0, %s22
    %s43 = sphi 0, %s45
    %s46 = sphi 0, %s43
    %s47 = sphi 0, %s46
    %s63 = sphi 0, %s47
    %s71 = sphi 0, %s73
    %s74 = sphi 0, %s71
    %s75 = sphi 0, %s74
    %s91 = sphi 0, %s75
    %s99 = sphi 0, %s101
    %s102 = sphi 0, %s99
    %s103 = sphi 0, %s102
    %s119 = sphi 0, %s103
    %s129 = sphi 0, %s131
    %s132 = sphi 0, %s129
    %s133 = sphi 0, %s132
    %s149 = sphi 0, %s133
    %s159 = sphi 0, %s161
    %s162 = sphi 0, %s159
    %s163 = sphi 0, %s162
    %s179 = sphi 0, %s163
  $region4: #{bottleneck_forward.7} parent=0 // loop_header_branch
    %13 = sbr.rel (%p11) target = $region8
  $region5: #{bottleneck_forward.7} parent=0 // loop_body
    %s15 = ssub.s32 %s10, 1
    %s16 = ssub.s32 %s10, 2
    %s26 = sadd.s32 1, %s19
    %p27 = scmp.ge.s32.totalorder %s26, 1
    %s28 = scalar_select %p27, 0, %s26
    %s29 = sadd.s32 1, %s18
    %s30 = scalar_select %p27, %s29, %s18
    %p31 = scmp.ge.s32.totalorder %s30, 1
    %s32 = scalar_select %p31, 0, %s30
    %s33 = sadd.s32 1, %s17
    %s34 = scalar_select %p31, %s33, %s17
    %p35 = scmp.ge.s32.totalorder %s34, 2
    %s36 = scalar_select %p35, 0, %s34
    %s37 = ssub.s32 %s17, %s36
    %s38 = ssub.s32 %s18, %s32
    %s39 = sor.u32 %s37, %s38
    %s40 = ssub.s32 %s19, %s28
    %s41 = sor.u32 %s39, %s40
    %p42 = scmp.eq.s32.totalorder %s41, 0
    %s44 = sadd.s32 %s43, 1
    %s45 = scalar_select %p42, %s43, %s44
    %p48 = pneg %p42
    %p49 = scmp.eq.s32.totalorder %s10, 1
    %p50 = por %p48, %p49
    %p51 = scmp.ne.s32.totalorder %s43, %s46
    %p52 = scmp.eq.s32.totalorder %s10, 0
    %p53 = por %p51, %p52
    %p54 = scmp.ne.s32.totalorder %s43, %s46
    %p55 = scmp.eq.s32.totalorder %s15, 1
    %p56 = por %p54, %p55
    %p57 = scmp.ne.s32.totalorder %s46, %s47
    %p58 = scmp.eq.s32.totalorder %s15, 0
    %p59 = por %p57, %p58
    %p60 = scmp.ne.s32.totalorder %s46, %s47
    %p61 = scmp.eq.s32.totalorder %s16, 1
    %p62 = por %p60, %p61
    %p64 = scmp.ne.s32.totalorder %s47, %s63
    %p65 = scmp.eq.s32.totalorder %s16, 0
    %p66 = por %p64, %p65
    %s67 = ssub.s32 %s17, %s36
    %s68 = ssub.s32 %s19, %s28
    %s69 = sor.u32 %s67, %s68
    %p70 = scmp.eq.s32.totalorder %s69, 0
    %s72 = sadd.s32 %s71, 1
    %s73 = scalar_select %p70, %s71, %s72
    %p76 = pneg %p70
    %p77 = scmp.eq.s32.totalorder %s10, 1
    %p78 = por %p76, %p77
    %p79 = scmp.ne.s32.totalorder %s71, %s74
    %p80 = scmp.eq.s32.totalorder %s10, 0
    %p81 = por %p79, %p80
    %p82 = scmp.ne.s32.totalorder %s71, %s74
    %p83 = scmp.eq.s32.totalorder %s15, 1
    %p84 = por %p82, %p83
    %p85 = scmp.ne.s32.totalorder %s74, %s75
    %p86 = scmp.eq.s32.totalorder %s15, 0
    %p87 = por %p85, %p86
    %p88 = scmp.ne.s32.totalorder %s74, %s75
    %p89 = scmp.eq.s32.totalorder %s16, 1
    %p90 = por %p88, %p89
    %p92 = scmp.ne.s32.totalorder %s75, %s91
    %p93 = scmp.eq.s32.totalorder %s16, 0
    %p94 = por %p92, %p93
    %s95 = ssub.s32 %s17, %s36
    %s96 = ssub.s32 %s19, %s28
    %s97 = sor.u32 %s95, %s96
    %p98 = scmp.eq.s32.totalorder %s97, 0
    %s100 = sadd.s32 %s99, 1
    %s101 = scalar_select %p98, %s99, %s100
    %p104 = pneg %p98
    %p105 = scmp.eq.s32.totalorder %s10, 1
    %p106 = por %p104, %p105
    %p107 = scmp.ne.s32.totalorder %s99, %s102
    %p108 = scmp.eq.s32.totalorder %s10, 0
    %p109 = por %p107, %p108
    %p110 = scmp.ne.s32.totalorder %s99, %s102
    %p111 = scmp.eq.s32.totalorder %s15, 1
    %p112 = por %p110, %p111
    %p113 = scmp.ne.s32.totalorder %s102, %s103
    %p114 = scmp.eq.s32.totalorder %s15, 0
    %p115 = por %p113, %p114
    %p116 = scmp.ne.s32.totalorder %s102, %s103
    %p117 = scmp.eq.s32.totalorder %s16, 1
    %p118 = por %p116, %p117
    %p120 = scmp.ne.s32.totalorder %s103, %s119
    %p121 = scmp.eq.s32.totalorder %s16, 0
    %p122 = por %p120, %p121
    %s123 = ssub.s32 %s17, %s36
    %s124 = ssub.s32 %s18, %s32
    %s125 = sor.u32 %s123, %s124
    %s126 = ssub.s32 %s19, %s28
    %s127 = sor.u32 %s125, %s126
    %p128 = scmp.eq.s32.totalorder %s127, 0
    %s130 = sadd.s32 %s129, 1
    %s131 = scalar_select %p128, %s129, %s130
    %p134 = pneg %p128
    %p135 = scmp.eq.s32.totalorder %s10, 1
    %p136 = por %p134, %p135
    %p137 = scmp.ne.s32.totalorder %s129, %s132
    %p138 = scmp.eq.s32.totalorder %s10, 0
    %p139 = por %p137, %p138
    %p140 = scmp.ne.s32.totalorder %s129, %s132
    %p141 = scmp.eq.s32.totalorder %s15, 1
    %p142 = por %p140, %p141
    %p143 = scmp.ne.s32.totalorder %s132, %s133
    %p144 = scmp.eq.s32.totalorder %s15, 0
    %p145 = por %p143, %p144
    %p146 = scmp.ne.s32.totalorder %s132, %s133
    %p147 = scmp.eq.s32.totalorder %s16, 1
    %p148 = por %p146, %p147
    %p150 = scmp.ne.s32.totalorder %s133, %s149
    %p151 = scmp.eq.s32.totalorder %s16, 0
    %p152 = por %p150, %p151
    %s153 = ssub.s32 %s17, %s36
    %s154 = ssub.s32 %s18, %s32
    %s155 = sor.u32 %s153, %s154
    %s156 = ssub.s32 %s19, %s28
    %s157 = sor.u32 %s155, %s156
    %p158 = scmp.eq.s32.totalorder %s157, 0
    %s160 = sadd.s32 %s159, 1
    %s161 = scalar_select %p158, %s159, %s160
    %p164 = pneg %p158
    %p165 = scmp.eq.s32.totalorder %s10, 1
    %p166 = por %p164, %p165
    %p167 = scmp.ne.s32.totalorder %s159, %s162
    %p168 = scmp.eq.s32.totalorder %s10, 0
    %p169 = por %p167, %p168
    %p170 = scmp.ne.s32.totalorder %s159, %s162
    %p171 = scmp.eq.s32.totalorder %s15, 1
    %p172 = por %p170, %p171
    %p173 = scmp.ne.s32.totalorder %s162, %s163
    %p174 = scmp.eq.s32.totalorder %s15, 0
    %p175 = por %p173, %p174
    %p176 = scmp.ne.s32.totalorder %s162, %s163
    %p177 = scmp.eq.s32.totalorder %s16, 1
    %p178 = por %p176, %p177
    %p180 = scmp.ne.s32.totalorder %s163, %s179
    %p181 = scmp.eq.s32.totalorder %s16, 0
    %p182 = por %p180, %p181
    %p183 = scmp.le.s32.totalorder 1, %s10
    %p184 = scmp.lt.s32.totalorder %s10, 3
    %p185 = pnand %p183, %p184
    %p186 = pneg %p185
    // Predicated region
    $region9: #{bottleneck_forward.7} parent=5 // pred_check
      _
    $region10: #{bottleneck_forward.7} parent=5 // pred_check_branch
      %188 = sbr.rel (%p185) target = $region12
    $region11: #{bottleneck_forward.7} parent=5 // pred_region
      %s189 = ssub.s32 %s10, 1
    $region12: #{bottleneck_forward.7} parent=5 // pred_fallthru
      _
    %p190 = scmp.lt.s32.totalorder %s10, 2
    // Predicated region
    $region13: #{bottleneck_forward.7} parent=5 // pred_check
      %p191 = pneg %p190
    $region14: #{bottleneck_forward.7} parent=5 // pred_check_branch
      %193 = sbr.rel (%p191) target = $region16
    $region15: #{bottleneck_forward.7} parent=5 // pred_region
      // Predicated region
      $region17: #{bottleneck_forward.7} parent=15 // pred_check
        %p194 = pneg %p53
      $region18: #{bottleneck_forward.7} parent=15 // pred_check_branch
        %196 = sbr.rel (%p194) target = $region20
      $region19: #{bottleneck_forward.7} parent=15 // pred_region
        %s197 = smul.u32 32, %s18
        %p198 = scmp.lt.s32.totalorder %s17, 1
        %s199 = scalar_select %p198, %s17, 1
        %p200 = scmp.lt.s32.totalorder %s197, 31
        %s201 = scalar_select %p200, %s197, 31
        %p202 = scmp.lt.s32.totalorder %s19, 0
        %s203 = scalar_select %p202, %s19, 0
        %s204 = sadd.s32 %s203, %s201
        %s205 = smul.addr %s199, 32
        %s206 = sadd.s32 %s204, %s205
        %s207 = smul.addr %s206, 4
        %s208 = scalar_lea.vmem %s0, %s207
        %s209 = smul.u32 32, %s18
      $region20: #{bottleneck_forward.7} parent=15 // pred_fallthru
        _
      // Predicated region
      $region21: #{bottleneck_forward.7} parent=15 // pred_check
        %p210 = pneg %p81
      $region22: #{bottleneck_forward.7} parent=15 // pred_check_branch
        %212 = sbr.rel (%p210) target = $region24
      $region23: #{bottleneck_forward.7} parent=15 // pred_region
        %p213 = scmp.lt.s32.totalorder %s17, 1
        %s214 = scalar_select %p213, %s17, 1
        %p215 = scmp.lt.s32.totalorder %s19, 0
        %s216 = scalar_select %p215, %s19, 0
        %s217 = sadd.s32 %s216, %s214
        %s218 = scalar_lea.vmem %s1, %s217
      $region24: #{bottleneck_forward.7} parent=15 // pred_fallthru
        _
      // Predicated region
      $region25: #{bottleneck_forward.7} parent=15 // pred_check
        %p219 = pneg %p109
      $region26: #{bottleneck_forward.7} parent=15 // pred_check_branch
        %221 = sbr.rel (%p219) target = $region28
      $region27: #{bottleneck_forward.7} parent=15 // pred_region
        %p222 = scmp.lt.s32.totalorder %s17, 1
        %s223 = scalar_select %p222, %s17, 1
        %p224 = scmp.lt.s32.totalorder %s19, 0
        %s225 = scalar_select %p224, %s19, 0
        %s226 = sadd.s32 %s225, %s223
        %s227 = scalar_lea.vmem %s2, %s226
      $region28: #{bottleneck_forward.7} parent=15 // pred_fallthru
        _
      // Predicated region
      $region29: #{bottleneck_forward.7} parent=15 // pred_check
        %p228 = pneg %p139
      $region30: #{bottleneck_forward.7} parent=15 // pred_check_branch
        %230 = sbr.rel (%p228) target = $region32
      $region31: #{bottleneck_forward.7} parent=15 // pred_region
        %s231 = smul.u32 32, %s18
        %p232 = scmp.lt.s32.totalorder %s17, 1
        %s233 = scalar_select %p232, %s17, 1
        %p234 = scmp.lt.s32.totalorder %s231, 31
        %s235 = scalar_select %p234, %s231, 31
        %p236 = scmp.lt.s32.totalorder %s19, 0
        %s237 = scalar_select %p236, %s19, 0
        %s238 = sadd.s32 %s237, %s235
        %s239 = smul.addr %s233, 32
        %s240 = sadd.s32 %s238, %s239
        %s241 = smul.addr %s240, 4
        %s242 = scalar_lea.vmem %s3, %s241
        %s243 = smul.u32 32, %s18
      $region32: #{bottleneck_forward.7} parent=15 // pred_fallthru
        _
    $region16: #{bottleneck_forward.7} parent=5 // pred_fallthru
      _
    %p244 = scmp.le.s32.totalorder 1, %s10
    %p245 = scmp.lt.s32.totalorder %s10, 3
    %p246 = pnand %p244, %p245
    %p247 = pneg %p246
    // Predicated region
    $region33: #{bottleneck_forward.7} parent=5 // pred_check
      _
    $region34: #{bottleneck_forward.7} parent=5 // pred_check_branch
      %249 = sbr.rel (%p246) target = $region36
    $region35: #{bottleneck_forward.7} parent=5 // pred_region
      %s250 = ssub.s32 %s10, 1
      %s251 = smul.u32 32, %s21
      %p252 = scmp.lt.s32.totalorder %s20, 1
      %s253 = scalar_select %p252, %s20, 1
      %p254 = scmp.lt.s32.totalorder %s251, 31
      %s255 = scalar_select %p254, %s251, 31
      %p256 = scmp.lt.s32.totalorder %s22, 0
      %s257 = scalar_select %p256, %s22, 0
      %s258 = sadd.s32 %s257, %s255
      %s259 = smul.addr %s253, 32
      %s260 = sadd.s32 %s258, %s259
      %s261 = smul.addr %s260, 4
      %s262 = scalar_lea.vmem %s0, %s261
      %p263 = pneg %p59
      %p264 = pneg %p56
      %p265 = scmp.lt.s32.totalorder %s20, 1
      %s266 = scalar_select %p265, %s20, 1
      %p267 = scmp.lt.s32.totalorder %s22, 0
      %s268 = scalar_select %p267, %s22, 0
      %s269 = sadd.s32 %s268, %s266
      %s270 = scalar_lea.vmem %s1, %s269
      %p271 = pneg %p87
      %p272 = pneg %p84
      %p273 = scmp.lt.s32.totalorder %s20, 1
      %s274 = scalar_select %p273, %s20, 1
      %p275 = scmp.lt.s32.totalorder %s22, 0
      %s276 = scalar_select %p275, %s22, 0
      %s277 = sadd.s32 %s276, %s274
      %s278 = scalar_lea.vmem %s2, %s277
      %p279 = pneg %p115
      %p280 = pneg %p112
      %s281 = smul.u32 32, %s21
      %p282 = scmp.lt.s32.totalorder %s20, 1
      %s283 = scalar_select %p282, %s20, 1
      %p284 = scmp.lt.s32.totalorder %s281, 31
      %s285 = scalar_select %p284, %s281, 31
      %p286 = scmp.lt.s32.totalorder %s22, 0
      %s287 = scalar_select %p286, %s22, 0
      %s288 = sadd.s32 %s287, %s285
      %s289 = smul.addr %s283, 32
      %s290 = sadd.s32 %s288, %s289
      %s291 = smul.addr %s290, 4
      %s292 = scalar_lea.vmem %s3, %s291
      %p293 = pneg %p145
      %p294 = pneg %p142
      %p295 = pneg %p175
      %p296 = pneg %p172
      %s297 = smul.u32 32, %s21
      %p298 = scmp.lt.s32.totalorder %s20, 1
      %s299 = scalar_select %p298, %s20, 1
      %p300 = scmp.lt.s32.totalorder %s297, 31
      %s301 = scalar_select %p300, %s297, 31
      %p302 = scmp.lt.s32.totalorder %s22, 0
      %s303 = scalar_select %p302, %s22, 0
      %s304 = sadd.s32 %s303, %s301
      %s305 = smul.addr %s299, 32
      %s306 = sadd.s32 %s304, %s305
      %s307 = smul.addr %s306, 4
      %s308 = scalar_lea.vmem %s4, %s307
      %s309 = smul.u32 32, %s21
      %p310 = scmp.lt.s32.totalorder %s20, 1
      %s311 = scalar_select %p310, %s20, 1
      %p312 = scmp.lt.s32.totalorder %s309, 31
      %s313 = scalar_select %p312, %s309, 31
      %p314 = scmp.lt.s32.totalorder %s22, 0
      %s315 = scalar_select %p314, %s22, 0
      %s316 = sadd.s32 %s315, %s313
      %s317 = smul.addr %s311, 32
      %s318 = sadd.s32 %s316, %s317
      %s319 = smul.addr %s318, 4
      %s320 = scalar_lea.vmem %s0, %s319
      %s321 = smul.u32 32, %s21
      %p322 = scmp.lt.s32.totalorder %s20, 1
      %s323 = scalar_select %p322, %s20, 1
      %p324 = scmp.lt.s32.totalorder %s22, 0
      %s325 = scalar_select %p324, %s22, 0
      %s326 = sadd.s32 %s325, %s323
      %s327 = scalar_lea.vmem %s1, %s326
      %p328 = scmp.lt.s32.totalorder %s20, 1
      %s329 = scalar_select %p328, %s20, 1
      %p330 = scmp.lt.s32.totalorder %s22, 0
      %s331 = scalar_select %p330, %s22, 0
      %s332 = sadd.s32 %s331, %s329
      %s333 = scalar_lea.vmem %s2, %s332
      %s334 = smul.u32 32, %s21
      %p335 = scmp.lt.s32.totalorder %s20, 1
      %s336 = scalar_select %p335, %s20, 1
      %p337 = scmp.lt.s32.totalorder %s334, 31
      %s338 = scalar_select %p337, %s334, 31
      %p339 = scmp.lt.s32.totalorder %s22, 0
      %s340 = scalar_select %p339, %s22, 0
      %s341 = sadd.s32 %s340, %s338
      %s342 = smul.addr %s336, 32
      %s343 = sadd.s32 %s341, %s342
      %s344 = smul.addr %s343, 4
      %s345 = scalar_lea.vmem %s3, %s344
      %s346 = smul.u32 32, %s21
      %s347 = smul.u32 32, %s21
      %p348 = scmp.lt.s32.totalorder %s20, 1
      %s349 = scalar_select %p348, %s20, 1
      %p350 = scmp.lt.s32.totalorder %s347, 31
      %s351 = scalar_select %p350, %s347, 31
      %p352 = scmp.lt.s32.totalorder %s22, 0
      %s353 = scalar_select %p352, %s22, 0
      %s354 = sadd.s32 %s353, %s351
      %s355 = smul.addr %s349, 32
      %s356 = sadd.s32 %s354, %s355
      %s357 = smul.addr %s356, 4
      %s358 = scalar_lea.vmem %s4, %s357
      %s359 = smul.u32 32, %s21
      %v360 = vld [vmem:[%s320] sm:$0xf]
      %v361 = vld [vmem:[%s320 + $0x4] sm:$0xf]
      %v362 = vld [vmem:[%s320 + $0x8] sm:$0xf]
      %v363 = vld [vmem:[%s320 + $0xc] sm:$0xf]
      %v364 = vld [vmem:[%s320 + $0x10] sm:$0xf]
      %v365 = vld [vmem:[%s320 + $0x14] sm:$0xf]
      %v366 = vld [vmem:[%s320 + $0x18] sm:$0xf]
      %v367 = vld [vmem:[%s320 + $0x1c] sm:$0xf]
      %v368 = vld [vmem:[%s320 + $0x20] sm:$0xf]
      %v369 = vld [vmem:[%s320 + $0x24] sm:$0xf]
      %v370 = vld [vmem:[%s320 + $0x28] sm:$0xf]
      %v371 = vld [vmem:[%s320 + $0x2c] sm:$0xf]
      %v372 = vld [vmem:[%s320 + $0x30] sm:$0xf]
      %v373 = vld [vmem:[%s320 + $0x34] sm:$0xf]
      %v374 = vld [vmem:[%s320 + $0x38] sm:$0xf]
      %v375 = vld [vmem:[%s320 + $0x3c] sm:$0xf]
      %v376 = vld [vmem:[%s320 + $0x40] sm:$0xf]
      %v377 = vld [vmem:[%s320 + $0x44] sm:$0xf]
      %v378 = vld [vmem:[%s320 + $0x48] sm:$0xf]
      %v379 = vld [vmem:[%s320 + $0x4c] sm:$0xf]
      %v380 = vld [vmem:[%s320 + $0x50] sm:$0xf]
      %v381 = vld [vmem:[%s320 + $0x54] sm:$0xf]
      %v382 = vld [vmem:[%s320 + $0x58] sm:$0xf]
      %v383 = vld [vmem:[%s320 + $0x5c] sm:$0xf]
      %v384 = vld [vmem:[%s320 + $0x60] sm:$0xf]
      %v385 = vld [vmem:[%s320 + $0x64] sm:$0xf]
      %v386 = vld [vmem:[%s320 + $0x68] sm:$0xf]
      %v387 = vld [vmem:[%s320 + $0x6c] sm:$0xf]
      %v388 = vld [vmem:[%s320 + $0x70] sm:$0xf]
      %v389 = vld [vmem:[%s320 + $0x74] sm:$0xf]
      %v390 = vld [vmem:[%s320 + $0x78] sm:$0xf]
      %v391 = vld [vmem:[%s320 + $0x7c] sm:$0xf]
      %v392 = vunpack.c.l.bf16 %v360
      %v393 = vunpack.c.l.bf16 %v361
      %v394 = vunpack.c.l.bf16 %v362
      %v395 = vunpack.c.l.bf16 %v363
      %v396 = vunpack.c.l.bf16 %v364
      %v397 = vunpack.c.l.bf16 %v365
      %v398 = vunpack.c.l.bf16 %v366
      %v399 = vunpack.c.l.bf16 %v367
      %v400 = vunpack.c.l.bf16 %v368
      %v401 = vunpack.c.l.bf16 %v369
      %v402 = vunpack.c.l.bf16 %v370
      %v403 = vunpack.c.l.bf16 %v371
      %v404 = vunpack.c.l.bf16 %v372
      %v405 = vunpack.c.l.bf16 %v373
      %v406 = vunpack.c.l.bf16 %v374
      %v407 = vunpack.c.l.bf16 %v375
      %v408 = vunpack.c.l.bf16 %v376
      %v409 = vunpack.c.l.bf16 %v377
      %v410 = vunpack.c.l.bf16 %v378
      %v411 = vunpack.c.l.bf16 %v379
      %v412 = vunpack.c.l.bf16 %v380
      %v413 = vunpack.c.l.bf16 %v381
      %v414 = vunpack.c.l.bf16 %v382
      %v415 = vunpack.c.l.bf16 %v383
      %v416 = vunpack.c.l.bf16 %v384
      %v417 = vunpack.c.l.bf16 %v385
      %v418 = vunpack.c.l.bf16 %v386
      %v419 = vunpack.c.l.bf16 %v387
      %v420 = vunpack.c.l.bf16 %v388
      %v421 = vunpack.c.l.bf16 %v389
      %v422 = vunpack.c.l.bf16 %v390
      %v423 = vunpack.c.l.bf16 %v391
      %v424 = vld [vmem:[%s327] sm:$0x1]
      %v426 = vlaneseq
      %v427 = vshrl.u32 %v426, 7
      %v428 = vsub.s32 0, %v427
      %v429 = vrot.slane %v424, %v428
      %v431 = vmul.f32 %v392, %v429
      %v432 = vmul.f32 %v393, %v429
      %v433 = vmul.f32 %v394, %v429
      %v434 = vmul.f32 %v395, %v429
      %v435 = vmul.f32 %v396, %v429
      %v436 = vmul.f32 %v397, %v429
      %v437 = vmul.f32 %v398, %v429
      %v438 = vmul.f32 %v399, %v429
      %v439 = vmul.f32 %v400, %v429
      %v440 = vmul.f32 %v401, %v429
      %v441 = vmul.f32 %v402, %v429
      %v442 = vmul.f32 %v403, %v429
      %v443 = vmul.f32 %v404, %v429
      %v444 = vmul.f32 %v405, %v429
      %v445 = vmul.f32 %v406, %v429
      %v446 = vmul.f32 %v407, %v429
      %v447 = vmul.f32 %v408, %v429
      %v448 = vmul.f32 %v409, %v429
      %v449 = vmul.f32 %v410, %v429
      %v450 = vmul.f32 %v411, %v429
      %v451 = vmul.f32 %v412, %v429
      %v452 = vmul.f32 %v413, %v429
      %v453 = vmul.f32 %v414, %v429
      %v454 = vmul.f32 %v415, %v429
      %v455 = vmul.f32 %v416, %v429
      %v456 = vmul.f32 %v417, %v429
      %v457 = vmul.f32 %v418, %v429
      %v458 = vmul.f32 %v419, %v429
      %v459 = vmul.f32 %v420, %v429
      %v460 = vmul.f32 %v421, %v429
      %v461 = vmul.f32 %v422, %v429
      %v462 = vmul.f32 %v423, %v429
      %v463 = vld [vmem:[%s333] sm:$0x1]
      %v465 = vlaneseq
      %v466 = vshrl.u32 %v465, 7
      %v467 = vsub.s32 0, %v466
      %v468 = vrot.slane %v463, %v467
      %v470 = vadd.f32 %v431, %v468
      %v471 = vadd.f32 %v432, %v468
      %v472 = vadd.f32 %v433, %v468
      %v473 = vadd.f32 %v434, %v468
      %v474 = vadd.f32 %v435, %v468
      %v475 = vadd.f32 %v436, %v468
      %v476 = vadd.f32 %v437, %v468
      %v477 = vadd.f32 %v438, %v468
      %v478 = vadd.f32 %v439, %v468
      %v479 = vadd.f32 %v440, %v468
      %v480 = vadd.f32 %v441, %v468
      %v481 = vadd.f32 %v442, %v468
      %v482 = vadd.f32 %v443, %v468
      %v483 = vadd.f32 %v444, %v468
      %v484 = vadd.f32 %v445, %v468
      %v485 = vadd.f32 %v446, %v468
      %v486 = vadd.f32 %v447, %v468
      %v487 = vadd.f32 %v448, %v468
      %v488 = vadd.f32 %v449, %v468
      %v489 = vadd.f32 %v450, %v468
      %v490 = vadd.f32 %v451, %v468
      %v491 = vadd.f32 %v452, %v468
      %v492 = vadd.f32 %v453, %v468
      %v493 = vadd.f32 %v454, %v468
      %v494 = vadd.f32 %v455, %v468
      %v495 = vadd.f32 %v456, %v468
      %v496 = vadd.f32 %v457, %v468
      %v497 = vadd.f32 %v458, %v468
      %v498 = vadd.f32 %v459, %v468
      %v499 = vadd.f32 %v460, %v468
      %v500 = vadd.f32 %v461, %v468
      %v501 = vadd.f32 %v462, %v468
      %v502 = vld [vmem:[%s345] sm:$0xf]
      %v503 = vld [vmem:[%s345 + $0x4] sm:$0xf]
      %v504 = vld [vmem:[%s345 + $0x8] sm:$0xf]
      %v505 = vld [vmem:[%s345 + $0xc] sm:$0xf]
      %v506 = vld [vmem:[%s345 + $0x10] sm:$0xf]
      %v507 = vld [vmem:[%s345 + $0x14] sm:$0xf]
      %v508 = vld [vmem:[%s345 + $0x18] sm:$0xf]
      %v509 = vld [vmem:[%s345 + $0x1c] sm:$0xf]
      %v510 = vld [vmem:[%s345 + $0x20] sm:$0xf]
      %v511 = vld [vmem:[%s345 + $0x24] sm:$0xf]
      %v512 = vld [vmem:[%s345 + $0x28] sm:$0xf]
      %v513 = vld [vmem:[%s345 + $0x2c] sm:$0xf]
      %v514 = vld [vmem:[%s345 + $0x30] sm:$0xf]
      %v515 = vld [vmem:[%s345 + $0x34] sm:$0xf]
      %v516 = vld [vmem:[%s345 + $0x38] sm:$0xf]
      %v517 = vld [vmem:[%s345 + $0x3c] sm:$0xf]
      %v518 = vld [vmem:[%s345 + $0x40] sm:$0xf]
      %v519 = vld [vmem:[%s345 + $0x44] sm:$0xf]
      %v520 = vld [vmem:[%s345 + $0x48] sm:$0xf]
      %v521 = vld [vmem:[%s345 + $0x4c] sm:$0xf]
      %v522 = vld [vmem:[%s345 + $0x50] sm:$0xf]
      %v523 = vld [vmem:[%s345 + $0x54] sm:$0xf]
      %v524 = vld [vmem:[%s345 + $0x58] sm:$0xf]
      %v525 = vld [vmem:[%s345 + $0x5c] sm:$0xf]
      %v526 = vld [vmem:[%s345 + $0x60] sm:$0xf]
      %v527 = vld [vmem:[%s345 + $0x64] sm:$0xf]
      %v528 = vld [vmem:[%s345 + $0x68] sm:$0xf]
      %v529 = vld [vmem:[%s345 + $0x6c] sm:$0xf]
      %v530 = vld [vmem:[%s345 + $0x70] sm:$0xf]
      %v531 = vld [vmem:[%s345 + $0x74] sm:$0xf]
      %v532 = vld [vmem:[%s345 + $0x78] sm:$0xf]
      %v533 = vld [vmem:[%s345 + $0x7c] sm:$0xf]
      %v534 = vunpack.c.l.bf16 %v502
      %v535 = vunpack.c.l.bf16 %v503
      %v536 = vunpack.c.l.bf16 %v504
      %v537 = vunpack.c.l.bf16 %v505
      %v538 = vunpack.c.l.bf16 %v506
      %v539 = vunpack.c.l.bf16 %v507
      %v540 = vunpack.c.l.bf16 %v508
      %v541 = vunpack.c.l.bf16 %v509
      %v542 = vunpack.c.l.bf16 %v510
      %v543 = vunpack.c.l.bf16 %v511
      %v544 = vunpack.c.l.bf16 %v512
      %v545 = vunpack.c.l.bf16 %v513
      %v546 = vunpack.c.l.bf16 %v514
      %v547 = vunpack.c.l.bf16 %v515
      %v548 = vunpack.c.l.bf16 %v516
      %v549 = vunpack.c.l.bf16 %v517
      %v550 = vunpack.c.l.bf16 %v518
      %v551 = vunpack.c.l.bf16 %v519
      %v552 = vunpack.c.l.bf16 %v520
      %v553 = vunpack.c.l.bf16 %v521
      %v554 = vunpack.c.l.bf16 %v522
      %v555 = vunpack.c.l.bf16 %v523
      %v556 = vunpack.c.l.bf16 %v524
      %v557 = vunpack.c.l.bf16 %v525
      %v558 = vunpack.c.l.bf16 %v526
      %v559 = vunpack.c.l.bf16 %v527
      %v560 = vunpack.c.l.bf16 %v528
      %v561 = vunpack.c.l.bf16 %v529
      %v562 = vunpack.c.l.bf16 %v530
      %v563 = vunpack.c.l.bf16 %v531
      %v564 = vunpack.c.l.bf16 %v532
      %v565 = vunpack.c.l.bf16 %v533
      %v566 = vadd.f32 %v470, %v534
      %v567 = vadd.f32 %v471, %v535
      %v568 = vadd.f32 %v472, %v536
      %v569 = vadd.f32 %v473, %v537
      %v570 = vadd.f32 %v474, %v538
      %v571 = vadd.f32 %v475, %v539
      %v572 = vadd.f32 %v476, %v540
      %v573 = vadd.f32 %v477, %v541
      %v574 = vadd.f32 %v478, %v542
      %v575 = vadd.f32 %v479, %v543
      %v576 = vadd.f32 %v480, %v544
      %v577 = vadd.f32 %v481, %v545
      %v578 = vadd.f32 %v482, %v546
      %v579 = vadd.f32 %v483, %v547
      %v580 = vadd.f32 %v484, %v548
      %v581 = vadd.f32 %v485, %v549
      %v582 = vadd.f32 %v486, %v550
      %v583 = vadd.f32 %v487, %v551
      %v584 = vadd.f32 %v488, %v552
      %v585 = vadd.f32 %v489, %v553
      %v586 = vadd.f32 %v490, %v554
      %v587 = vadd.f32 %v491, %v555
      %v588 = vadd.f32 %v492, %v556
      %v589 = vadd.f32 %v493, %v557
      %v590 = vadd.f32 %v494, %v558
      %v591 = vadd.f32 %v495, %v559
      %v592 = vadd.f32 %v496, %v560
      %v593 = vadd.f32 %v497, %v561
      %v594 = vadd.f32 %v498, %v562
      %v595 = vadd.f32 %v499, %v563
      %v596 = vadd.f32 %v500, %v564
      %v597 = vadd.f32 %v501, %v565
      %v598 = vmax.f32 %v566, 0.0
      %v599 = vmax.f32 %v567, 0.0
      %v600 = vmax.f32 %v568, 0.0
      %v601 = vmax.f32 %v569, 0.0
      %v602 = vmax.f32 %v570, 0.0
      %v603 = vmax.f32 %v571, 0.0
      %v604 = vmax.f32 %v572, 0.0
      %v605 = vmax.f32 %v573, 0.0
      %v606 = vmax.f32 %v574, 0.0
      %v607 = vmax.f32 %v575, 0.0
      %v608 = vmax.f32 %v576, 0.0
      %v609 = vmax.f32 %v577, 0.0
      %v610 = vmax.f32 %v578, 0.0
      %v611 = vmax.f32 %v579, 0.0
      %v612 = vmax.f32 %v580, 0.0
      %v613 = vmax.f32 %v581, 0.0
      %v614 = vmax.f32 %v582, 0.0
      %v615 = vmax.f32 %v583, 0.0
      %v616 = vmax.f32 %v584, 0.0
      %v617 = vmax.f32 %v585, 0.0
      %v618 = vmax.f32 %v586, 0.0
      %v619 = vmax.f32 %v587, 0.0
      %v620 = vmax.f32 %v588, 0.0
      %v621 = vmax.f32 %v589, 0.0
      %v622 = vmax.f32 %v590, 0.0
      %v623 = vmax.f32 %v591, 0.0
      %v624 = vmax.f32 %v592, 0.0
      %v625 = vmax.f32 %v593, 0.0
      %v626 = vmax.f32 %v594, 0.0
      %v627 = vmax.f32 %v595, 0.0
      %v628 = vmax.f32 %v596, 0.0
      %v629 = vmax.f32 %v597, 0.0
      %v630 = vpack.c.bf16 %v599, %v598
      %v631 = vpack.c.bf16 %v601, %v600
      %v632 = vpack.c.bf16 %v603, %v602
      %v633 = vpack.c.bf16 %v605, %v604
      %v634 = vpack.c.bf16 %v607, %v606
      %v635 = vpack.c.bf16 %v609, %v608
      %v636 = vpack.c.bf16 %v611, %v610
      %v637 = vpack.c.bf16 %v613, %v612
      %v638 = vpack.c.bf16 %v615, %v614
      %v639 = vpack.c.bf16 %v617, %v616
      %v640 = vpack.c.bf16 %v619, %v618
      %v641 = vpack.c.bf16 %v621, %v620
      %v642 = vpack.c.bf16 %v623, %v622
      %v643 = vpack.c.bf16 %v625, %v624
      %v644 = vpack.c.bf16 %v627, %v626
      %v645 = vpack.c.bf16 %v629, %v628
      %v662 = vunpack.c.l.b16 %v630
      %v663 = vunpack.c.h.b16 %v630
      %v664 = vunpack.c.l.b16 %v631
      %v665 = vunpack.c.h.b16 %v631
      %v666 = vunpack.c.l.b16 %v632
      %v667 = vunpack.c.h.b16 %v632
      %v668 = vunpack.c.l.b16 %v633
      %v669 = vunpack.c.h.b16 %v633
      %v670 = vunpack.c.l.b16 %v634
      %v671 = vunpack.c.h.b16 %v634
      %v672 = vunpack.c.l.b16 %v635
      %v673 = vunpack.c.h.b16 %v635
      %v674 = vunpack.c.l.b16 %v636
      %v675 = vunpack.c.h.b16 %v636
      %v676 = vunpack.c.l.b16 %v637
      %v677 = vunpack.c.h.b16 %v637
      %v678 = vunpack.c.l.b16 %v638
      %v679 = vunpack.c.h.b16 %v638
      %v680 = vunpack.c.l.b16 %v639
      %v681 = vunpack.c.h.b16 %v639
      %v682 = vunpack.c.l.b16 %v640
      %v683 = vunpack.c.h.b16 %v640
      %v684 = vunpack.c.l.b16 %v641
      %v685 = vunpack.c.h.b16 %v641
      %v686 = vunpack.c.l.b16 %v642
      %v687 = vunpack.c.h.b16 %v642
      %v688 = vunpack.c.l.b16 %v643
      %v689 = vunpack.c.h.b16 %v643
      %v690 = vunpack.c.l.b16 %v644
      %v691 = vunpack.c.h.b16 %v644
      %v692 = vunpack.c.l.b16 %v645
      %v693 = vunpack.c.h.b16 %v645
      %v694 = vpack.c.b16 %v662, %v662
      %v695 = vpack.c.b16 %v663, %v663
      %v696 = vpack.c.b16 %v664, %v664
      %v697 = vpack.c.b16 %v665, %v665
      %v698 = vpack.c.b16 %v666, %v666
      %v699 = vpack.c.b16 %v667, %v667
      %v700 = vpack.c.b16 %v668, %v668
      %v701 = vpack.c.b16 %v669, %v669
      %v702 = vpack.c.b16 %v670, %v670
      %v703 = vpack.c.b16 %v671, %v671
      %v704 = vpack.c.b16 %v672, %v672
      %v705 = vpack.c.b16 %v673, %v673
      %v706 = vpack.c.b16 %v674, %v674
      %v707 = vpack.c.b16 %v675, %v675
      %v708 = vpack.c.b16 %v676, %v676
      %v709 = vpack.c.b16 %v677, %v677
      %v710 = vpack.c.b16 %v678, %v678
      %v711 = vpack.c.b16 %v679, %v679
      %v712 = vpack.c.b16 %v680, %v680
      %v713 = vpack.c.b16 %v681, %v681
      %v714 = vpack.c.b16 %v682, %v682
      %v715 = vpack.c.b16 %v683, %v683
      %v716 = vpack.c.b16 %v684, %v684
      %v717 = vpack.c.b16 %v685, %v685
      %v718 = vpack.c.b16 %v686, %v686
      %v719 = vpack.c.b16 %v687, %v687
      %v720 = vpack.c.b16 %v688, %v688
      %v721 = vpack.c.b16 %v689, %v689
      %v722 = vpack.c.b16 %v690, %v690
      %v723 = vpack.c.b16 %v691, %v691
      %v724 = vpack.c.b16 %v692, %v692
      %v725 = vpack.c.b16 %v693, %v693
      %758 = vst [vmem:[%s358] sm:$0xf] %v694
      %759 = vst [vmem:[%s358 + $0x4] sm:$0xf] %v695
      %760 = vst [vmem:[%s358 + $0x8] sm:$0xf] %v696
      %761 = vst [vmem:[%s358 + $0xc] sm:$0xf] %v697
      %762 = vst [vmem:[%s358 + $0x10] sm:$0xf] %v698
      %763 = vst [vmem:[%s358 + $0x14] sm:$0xf] %v699
      %764 = vst [vmem:[%s358 + $0x18] sm:$0xf] %v700
      %765 = vst [vmem:[%s358 + $0x1c] sm:$0xf] %v701
      %766 = vst [vmem:[%s358 + $0x20] sm:$0xf] %v702
      %767 = vst [vmem:[%s358 + $0x24] sm:$0xf] %v703
      %768 = vst [vmem:[%s358 + $0x28] sm:$0xf] %v704
      %769 = vst [vmem:[%s358 + $0x2c] sm:$0xf] %v705
      %770 = vst [vmem:[%s358 + $0x30] sm:$0xf] %v706
      %771 = vst [vmem:[%s358 + $0x34] sm:$0xf] %v707
      %772 = vst [vmem:[%s358 + $0x38] sm:$0xf] %v708
      %773 = vst [vmem:[%s358 + $0x3c] sm:$0xf] %v709
      %774 = vst [vmem:[%s358 + $0x40] sm:$0xf] %v710
      %775 = vst [vmem:[%s358 + $0x44] sm:$0xf] %v711
      %776 = vst [vmem:[%s358 + $0x48] sm:$0xf] %v712
      %777 = vst [vmem:[%s358 + $0x4c] sm:$0xf] %v713
      %778 = vst [vmem:[%s358 + $0x50] sm:$0xf] %v714
      %779 = vst [vmem:[%s358 + $0x54] sm:$0xf] %v715
      %780 = vst [vmem:[%s358 + $0x58] sm:$0xf] %v716
      %781 = vst [vmem:[%s358 + $0x5c] sm:$0xf] %v717
      %782 = vst [vmem:[%s358 + $0x60] sm:$0xf] %v718
      %783 = vst [vmem:[%s358 + $0x64] sm:$0xf] %v719
      %784 = vst [vmem:[%s358 + $0x68] sm:$0xf] %v720
      %785 = vst [vmem:[%s358 + $0x6c] sm:$0xf] %v721
      %786 = vst [vmem:[%s358 + $0x70] sm:$0xf] %v722
      %787 = vst [vmem:[%s358 + $0x74] sm:$0xf] %v723
      %788 = vst [vmem:[%s358 + $0x78] sm:$0xf] %v724
      %789 = vst [vmem:[%s358 + $0x7c] sm:$0xf] %v725
      %s790 = smul.u32 32, %s21
      %p791 = scmp.lt.s32.totalorder %s20, 1
      %s792 = scalar_select %p791, %s20, 1
      %p793 = scmp.lt.s32.totalorder %s790, 31
      %s794 = scalar_select %p793, %s790, 31
      %p795 = scmp.lt.s32.totalorder %s22, 0
      %s796 = scalar_select %p795, %s22, 0
      %s797 = sadd.s32 %s796, %s794
      %s798 = smul.addr %s792, 32
      %s799 = sadd.s32 %s797, %s798
      %s800 = smul.addr %s799, 4
      %s801 = scalar_lea.vmem %s4, %s800
      // Predicated region
      $region37: #{bottleneck_forward.7} parent=35 // pred_check
        %p802 = pneg %p172
      $region38: #{bottleneck_forward.7} parent=35 // pred_check_branch
        %804 = sbr.rel (%p802) target = $region40
      $region39: #{bottleneck_forward.7} parent=35 // pred_region
        %s805 = smul.u32 32, %s21
      $region40: #{bottleneck_forward.7} parent=35 // pred_fallthru
        _
    $region36: #{bottleneck_forward.7} parent=5 // pred_fallthru
      _
    %p806 = scmp.le.s32.totalorder 2, %s10
    // Predicated region
    $region41: #{bottleneck_forward.7} parent=5 // pred_check
      %p807 = pneg %p806
    $region42: #{bottleneck_forward.7} parent=5 // pred_check_branch
      %809 = sbr.rel (%p807) target = $region44
    $region43: #{bottleneck_forward.7} parent=5 // pred_region
      %s810 = ssub.s32 %s10, 2
      // Predicated region
      $region45: #{bottleneck_forward.7} parent=43 // pred_check
        %p811 = pneg %p178
      $region46: #{bottleneck_forward.7} parent=43 // pred_check_branch
        %813 = sbr.rel (%p811) target = $region48
      $region47: #{bottleneck_forward.7} parent=43 // pred_region
        %s814 = smul.u32 32, %s24
        %p815 = scmp.lt.s32.totalorder %s23, 1
        %s816 = scalar_select %p815, %s23, 1
        %p817 = scmp.lt.s32.totalorder %s814, 31
        %s818 = scalar_select %p817, %s814, 31
        %p819 = scmp.lt.s32.totalorder %s25, 0
        %s820 = scalar_select %p819, %s25, 0
        %s821 = sadd.s32 %s820, %s818
        %s822 = smul.addr %s816, 32
        %s823 = sadd.s32 %s821, %s822
        %s824 = smul.addr %s823, 4
        %s825 = scalar_lea.vmem %s4, %s824
      $region48: #{bottleneck_forward.7} parent=43 // pred_fallthru
        _
    $region44: #{bottleneck_forward.7} parent=5 // pred_fallthru
      _
  $region6: #{bottleneck_forward.7} parent=0 // loop_footer
    %s14 = sadd.s32 1, %s10
  $region7: #{bottleneck_forward.7} parent=0 // loop_footer_branch
    %9 = sbr.rel target = $region3
  $region8: #{bottleneck_forward.7} parent=0 // loop_exit
    _

// kernel: bottleneck_forward.6
$region0: #{bottleneck_forward.6}
  #allocation0 [shape = 'u32[]', space=smem, size = 0x4, offset = 0x4, fixed_abs, tag = 'smem constant byte address 0x4 - core index']
  #allocation1 [shape = 'u32[144,128]{1,0:T(1,128)}', space=vmem, size = 0x12000, scoped, tag = 'internal scratch']
  #allocation2 [shape = 'f32[256,128]{1,0:T(8,128)}', space=vmem, size = 0x20000, scoped, tag = 'scratch operand']
  %s0 = inlined_call_operand.vmem [shape: bf16[2,256,128], index: 0, kind: input, shape index: {}]
  %s1 = inlined_call_operand.vmem [shape: f32[2,1,128], index: 1, kind: input, shape index: {}]
  %s2 = inlined_call_operand.vmem [shape: f32[2,1,128], index: 2, kind: input, shape index: {}]
  %s3 = inlined_call_operand.vmem [shape: bf16[128,128], index: 3, kind: input, shape index: {}]
  %s4 = inlined_call_operand.vmem [shape: bf16[2,256,128], index: 4, kind: output, shape index: {0}]
  %s5 = inlined_call_operand.vmem [shape: f32[2,1,128], index: 5, kind: output, shape index: {1}]
  %s6 = inlined_call_operand.vmem [shape: f32[2,1,128], index: 6, kind: output, shape index: {2}]
  %7 = xla_tuple %s4, %s5, %s6
  %s8 = sld [smem:[#allocation0]]
  $region77: #{bottleneck_forward.6} parent=0
    _
  %s10 = ssub.s32 1, %s8
  %s11 = scalar_select 0, %s10, %s8
  loop: start=0, step=1, limit=4
  $region2: #{bottleneck_forward.6} parent=0 // loop_pre_header
    _
  $region3: #{bottleneck_forward.6} parent=0 // loop_header
    %s13 = sphi 0, %s17
    %p14 = scmp.ge.s32.totalorder %s13, 4
    %s20 = sphi 0, %s46
    %s21 = sphi 0, %s42
    %s22 = sphi 0, %s38
    %s23 = sphi 0, %s34
    %s24 = sphi 0, %s20
    %s25 = sphi 0, %s21
    %s26 = sphi 0, %s22
    %s27 = sphi 0, %s23
    %s28 = sphi 0, %s24
    %s29 = sphi 0, %s25
    %s30 = sphi 0, %s26
    %s31 = sphi 0, %s27
    %s53 = sphi 0, %s55
    %s56 = sphi 0, %s53
    %s57 = sphi 0, %s56
    %s73 = sphi 0, %s57
    %s81 = sphi 0, %s83
    %s84 = sphi 0, %s81
    %s85 = sphi 0, %s84
    %s101 = sphi 0, %s85
    %s109 = sphi 0, %s111
    %s112 = sphi 0, %s109
    %s113 = sphi 0, %s112
    %s129 = sphi 0, %s113
    %s137 = sphi 0, %s139
    %s140 = sphi 0, %s137
    %s141 = sphi 0, %s140
    %s157 = sphi 0, %s141
    %s167 = sphi 0, %s169
    %s170 = sphi 0, %s167
    %s171 = sphi 0, %s170
    %s187 = sphi 0, %s171
    %s195 = sphi 0, %s197
    %s198 = sphi 0, %s195
    %s199 = sphi 0, %s198
    %s215 = sphi 0, %s199
    %s223 = sphi 0, %s225
    %s226 = sphi 0, %s223
    %s227 = sphi 0, %s226
    %s243 = sphi 0, %s227
  $region4: #{bottleneck_forward.6} parent=0 // loop_header_branch
    %16 = sbr.rel (%p14) target = $region8
  $region5: #{bottleneck_forward.6} parent=0 // loop_body
    %s18 = ssub.s32 %s13, 1
    %s19 = ssub.s32 %s13, 2
    %s32 = sadd.s32 1, %s23
    %p33 = scmp.ge.s32.totalorder %s32, 1
    %s34 = scalar_select %p33, 0, %s32
    %s35 = sadd.s32 1, %s22
    %s36 = scalar_select %p33, %s35, %s22
    %p37 = scmp.ge.s32.totalorder %s36, 1
    %s38 = scalar_select %p37, 0, %s36
    %s39 = sadd.s32 1, %s21
    %s40 = scalar_select %p37, %s39, %s21
    %p41 = scmp.ge.s32.totalorder %s40, 1
    %s42 = scalar_select %p41, 0, %s40
    %s43 = sadd.s32 1, %s20
    %s44 = scalar_select %p41, %s43, %s20
    %p45 = scmp.ge.s32.totalorder %s44, 2
    %s46 = scalar_select %p45, 0, %s44
    %s47 = ssub.s32 %s20, %s46
    %s48 = ssub.s32 %s22, %s38
    %s49 = sor.u32 %s47, %s48
    %s50 = ssub.s32 %s23, %s34
    %s51 = sor.u32 %s49, %s50
    %p52 = scmp.eq.s32.totalorder %s51, 0
    %s54 = sadd.s32 %s53, 1
    %s55 = scalar_select %p52, %s53, %s54
    %p58 = pneg %p52
    %p59 = scmp.eq.s32.totalorder %s13, 1
    %p60 = por %p58, %p59
    %p61 = scmp.ne.s32.totalorder %s53, %s56
    %p62 = scmp.eq.s32.totalorder %s13, 0
    %p63 = por %p61, %p62
    %p64 = scmp.ne.s32.totalorder %s53, %s56
    %p65 = scmp.eq.s32.totalorder %s18, 1
    %p66 = por %p64, %p65
    %p67 = scmp.ne.s32.totalorder %s56, %s57
    %p68 = scmp.eq.s32.totalorder %s18, 0
    %p69 = por %p67, %p68
    %p70 = scmp.ne.s32.totalorder %s56, %s57
    %p71 = scmp.eq.s32.totalorder %s19, 1
    %p72 = por %p70, %p71
    %p74 = scmp.ne.s32.totalorder %s57, %s73
    %p75 = scmp.eq.s32.totalorder %s19, 0
    %p76 = por %p74, %p75
    %s77 = ssub.s32 %s20, %s46
    %s78 = ssub.s32 %s23, %s34
    %s79 = sor.u32 %s77, %s78
    %p80 = scmp.eq.s32.totalorder %s79, 0
    %s82 = sadd.s32 %s81, 1
    %s83 = scalar_select %p80, %s81, %s82
    %p86 = pneg %p80
    %p87 = scmp.eq.s32.totalorder %s13, 1
    %p88 = por %p86, %p87
    %p89 = scmp.ne.s32.totalorder %s81, %s84
    %p90 = scmp.eq.s32.totalorder %s13, 0
    %p91 = por %p89, %p90
    %p92 = scmp.ne.s32.totalorder %s81, %s84
    %p93 = scmp.eq.s32.totalorder %s18, 1
    %p94 = por %p92, %p93
    %p95 = scmp.ne.s32.totalorder %s84, %s85
    %p96 = scmp.eq.s32.totalorder %s18, 0
    %p97 = por %p95, %p96
    %p98 = scmp.ne.s32.totalorder %s84, %s85
    %p99 = scmp.eq.s32.totalorder %s19, 1
    %p100 = por %p98, %p99
    %p102 = scmp.ne.s32.totalorder %s85, %s101
    %p103 = scmp.eq.s32.totalorder %s19, 0
    %p104 = por %p102, %p103
    %s105 = ssub.s32 %s20, %s46
    %s106 = ssub.s32 %s23, %s34
    %s107 = sor.u32 %s105, %s106
    %p108 = scmp.eq.s32.totalorder %s107, 0
    %s110 = sadd.s32 %s109, 1
    %s111 = scalar_select %p108, %s109, %s110
    %p114 = pneg %p108
    %p115 = scmp.eq.s32.totalorder %s13, 1
    %p116 = por %p114, %p115
    %p117 = scmp.ne.s32.totalorder %s109, %s112
    %p118 = scmp.eq.s32.totalorder %s13, 0
    %p119 = por %p117, %p118
    %p120 = scmp.ne.s32.totalorder %s109, %s112
    %p121 = scmp.eq.s32.totalorder %s18, 1
    %p122 = por %p120, %p121
    %p123 = scmp.ne.s32.totalorder %s112, %s113
    %p124 = scmp.eq.s32.totalorder %s18, 0
    %p125 = por %p123, %p124
    %p126 = scmp.ne.s32.totalorder %s112, %s113
    %p127 = scmp.eq.s32.totalorder %s19, 1
    %p128 = por %p126, %p127
    %p130 = scmp.ne.s32.totalorder %s113, %s129
    %p131 = scmp.eq.s32.totalorder %s19, 0
    %p132 = por %p130, %p131
    %s133 = ssub.s32 %s23, %s34
    %s134 = ssub.s32 %s21, %s42
    %s135 = sor.u32 %s133, %s134
    %p136 = scmp.eq.s32.totalorder %s135, 0
    %s138 = sadd.s32 %s137, 1
    %s139 = scalar_select %p136, %s137, %s138
    %p142 = pneg %p136
    %p143 = scmp.eq.s32.totalorder %s13, 1
    %p144 = por %p142, %p143
    %p145 = scmp.ne.s32.totalorder %s137, %s140
    %p146 = scmp.eq.s32.totalorder %s13, 0
    %p147 = por %p145, %p146
    %p148 = scmp.ne.s32.totalorder %s137, %s140
    %p149 = scmp.eq.s32.totalorder %s18, 1
    %p150 = por %p148, %p149
    %p151 = scmp.ne.s32.totalorder %s140, %s141
    %p152 = scmp.eq.s32.totalorder %s18, 0
    %p153 = por %p151, %p152
    %p154 = scmp.ne.s32.totalorder %s140, %s141
    %p155 = scmp.eq.s32.totalorder %s19, 1
    %p156 = por %p154, %p155
    %p158 = scmp.ne.s32.totalorder %s141, %s157
    %p159 = scmp.eq.s32.totalorder %s19, 0
    %p160 = por %p158, %p159
    %s161 = ssub.s32 %s20, %s46
    %s162 = ssub.s32 %s22, %s38
    %s163 = sor.u32 %s161, %s162
    %s164 = ssub.s32 %s21, %s42
    %s165 = sor.u32 %s163, %s164
    %p166 = scmp.eq.s32.totalorder %s165, 0
    %s168 = sadd.s32 %s167, 1
    %s169 = scalar_select %p166, %s167, %s168
    %p172 = pneg %p166
    %p173 = scmp.eq.s32.totalorder %s13, 1
    %p174 = por %p172, %p173
    %p175 = scmp.ne.s32.totalorder %s167, %s170
    %p176 = scmp.eq.s32.totalorder %s13, 0
    %p177 = por %p175, %p176
    %p178 = scmp.ne.s32.totalorder %s167, %s170
    %p179 = scmp.eq.s32.totalorder %s18, 1
    %p180 = por %p178, %p179
    %p181 = scmp.ne.s32.totalorder %s170, %s171
    %p182 = scmp.eq.s32.totalorder %s18, 0
    %p183 = por %p181, %p182
    %p184 = scmp.ne.s32.totalorder %s170, %s171
    %p185 = scmp.eq.s32.totalorder %s19, 1
    %p186 = por %p184, %p185
    %p188 = scmp.ne.s32.totalorder %s171, %s187
    %p189 = scmp.eq.s32.totalorder %s19, 0
    %p190 = por %p188, %p189
    %s191 = ssub.s32 %s20, %s46
    %s192 = ssub.s32 %s21, %s42
    %s193 = sor.u32 %s191, %s192
    %p194 = scmp.eq.s32.totalorder %s193, 0
    %s196 = sadd.s32 %s195, 1
    %s197 = scalar_select %p194, %s195, %s196
    %p200 = pneg %p194
    %p201 = scmp.eq.s32.totalorder %s13, 1
    %p202 = por %p200, %p201
    %p203 = scmp.ne.s32.totalorder %s195, %s198
    %p204 = scmp.eq.s32.totalorder %s13, 0
    %p205 = por %p203, %p204
    %p206 = scmp.ne.s32.totalorder %s195, %s198
    %p207 = scmp.eq.s32.totalorder %s18, 1
    %p208 = por %p206, %p207
    %p209 = scmp.ne.s32.totalorder %s198, %s199
    %p210 = scmp.eq.s32.totalorder %s18, 0
    %p211 = por %p209, %p210
    %p212 = scmp.ne.s32.totalorder %s198, %s199
    %p213 = scmp.eq.s32.totalorder %s19, 1
    %p214 = por %p212, %p213
    %p216 = scmp.ne.s32.totalorder %s199, %s215
    %p217 = scmp.eq.s32.totalorder %s19, 0
    %p218 = por %p216, %p217
    %s219 = ssub.s32 %s20, %s46
    %s220 = ssub.s32 %s21, %s42
    %s221 = sor.u32 %s219, %s220
    %p222 = scmp.eq.s32.totalorder %s221, 0
    %s224 = sadd.s32 %s223, 1
    %s225 = scalar_select %p222, %s223, %s224
    %p228 = pneg %p222
    %p229 = scmp.eq.s32.totalorder %s13, 1
    %p230 = por %p228, %p229
    %p231 = scmp.ne.s32.totalorder %s223, %s226
    %p232 = scmp.eq.s32.totalorder %s13, 0
    %p233 = por %p231, %p232
    %p234 = scmp.ne.s32.totalorder %s223, %s226
    %p235 = scmp.eq.s32.totalorder %s18, 1
    %p236 = por %p234, %p235
    %p237 = scmp.ne.s32.totalorder %s226, %s227
    %p238 = scmp.eq.s32.totalorder %s18, 0
    %p239 = por %p237, %p238
    %p240 = scmp.ne.s32.totalorder %s226, %s227
    %p241 = scmp.eq.s32.totalorder %s19, 1
    %p242 = por %p240, %p241
    %p244 = scmp.ne.s32.totalorder %s227, %s243
    %p245 = scmp.eq.s32.totalorder %s19, 0
    %p246 = por %p244, %p245
    %p247 = scmp.le.s32.totalorder 1, %s13
    %p248 = scmp.lt.s32.totalorder %s13, 3
    %p249 = pnand %p247, %p248
    %p250 = pneg %p249
    // Predicated region
    $region9: #{bottleneck_forward.6} parent=5 // pred_check
      _
    $region10: #{bottleneck_forward.6} parent=5 // pred_check_branch
      %252 = sbr.rel (%p249) target = $region12
    $region11: #{bottleneck_forward.6} parent=5 // pred_region
      %s253 = ssub.s32 %s13, 1
      // Predicated region
      $region13: #{bottleneck_forward.6} parent=11 // pred_check
        %p254 = pneg %p153
      $region14: #{bottleneck_forward.6} parent=11 // pred_check_branch
        %256 = sbr.rel (%p254) target = $region16
      $region15: #{bottleneck_forward.6} parent=11 // pred_region
        %s257 = smul.u32 16, %s27
        %p258 = scmp.lt.s32.totalorder %s257, 15
        %s259 = scalar_select %p258, %s257, 15
        %p260 = scmp.lt.s32.totalorder %s25, 0
        %s261 = scalar_select %p260, %s25, 0
        %s262 = sadd.s32 %s261, %s259
        %s263 = smul.addr %s262, 4
        %s264 = scalar_lea.vmem %s3, %s263
        %s265 = smul.u32 16, %s27
      $region16: #{bottleneck_forward.6} parent=11 // pred_fallthru
        _
    $region12: #{bottleneck_forward.6} parent=5 // pred_fallthru
      _
    %p266 = scmp.lt.s32.totalorder %s13, 2
    // Predicated region
    $region17: #{bottleneck_forward.6} parent=5 // pred_check
      %p267 = pneg %p266
    $region18: #{bottleneck_forward.6} parent=5 // pred_check_branch
      %269 = sbr.rel (%p267) target = $region20
    $region19: #{bottleneck_forward.6} parent=5 // pred_region
      // Predicated region
      $region21: #{bottleneck_forward.6} parent=19 // pred_check
        %p270 = pneg %p63
      $region22: #{bottleneck_forward.6} parent=19 // pred_check_branch
        %272 = sbr.rel (%p270) target = $region24
      $region23: #{bottleneck_forward.6} parent=19 // pred_region
        %s273 = smul.u32 32, %s22
        %p274 = scmp.lt.s32.totalorder %s20, 1
        %s275 = scalar_select %p274, %s20, 1
        %p276 = scmp.lt.s32.totalorder %s273, 31
        %s277 = scalar_select %p276, %s273, 31
        %p278 = scmp.lt.s32.totalorder %s23, 0
        %s279 = scalar_select %p278, %s23, 0
        %s280 = sadd.s32 %s279, %s277
        %s281 = smul.addr %s275, 32
        %s282 = sadd.s32 %s280, %s281
        %s283 = smul.addr %s282, 4
        %s284 = scalar_lea.vmem %s0, %s283
        %s285 = smul.u32 32, %s22
      $region24: #{bottleneck_forward.6} parent=19 // pred_fallthru
        _
      // Predicated region
      $region25: #{bottleneck_forward.6} parent=19 // pred_check
        %p286 = pneg %p91
      $region26: #{bottleneck_forward.6} parent=19 // pred_check_branch
        %288 = sbr.rel (%p286) target = $region28
      $region27: #{bottleneck_forward.6} parent=19 // pred_region
        %p289 = scmp.lt.s32.totalorder %s20, 1
        %s290 = scalar_select %p289, %s20, 1
        %p291 = scmp.lt.s32.totalorder %s23, 0
        %s292 = scalar_select %p291, %s23, 0
        %s293 = sadd.s32 %s292, %s290
        %s294 = scalar_lea.vmem %s1, %s293
      $region28: #{bottleneck_forward.6} parent=19 // pred_fallthru
        _
      // Predicated region
      $region29: #{bottleneck_forward.6} parent=19 // pred_check
        %p295 = pneg %p119
      $region30: #{bottleneck_forward.6} parent=19 // pred_check_branch
        %297 = sbr.rel (%p295) target = $region32
      $region31: #{bottleneck_forward.6} parent=19 // pred_region
        %p298 = scmp.lt.s32.totalorder %s20, 1
        %s299 = scalar_select %p298, %s20, 1
        %p300 = scmp.lt.s32.totalorder %s23, 0
        %s301 = scalar_select %p300, %s23, 0
        %s302 = sadd.s32 %s301, %s299
        %s303 = scalar_lea.vmem %s2, %s302
      $region32: #{bottleneck_forward.6} parent=19 // pred_fallthru
        _
    $region20: #{bottleneck_forward.6} parent=5 // pred_fallthru
      _
    %p304 = scmp.le.s32.totalorder 1, %s13
    %p305 = scmp.lt.s32.totalorder %s13, 3
    %p306 = pnand %p304, %p305
    %p307 = pneg %p306
    // Predicated region
    $region33: #{bottleneck_forward.6} parent=5 // pred_check
      _
    $region34: #{bottleneck_forward.6} parent=5 // pred_check_branch
      %309 = sbr.rel (%p306) target = $region36
    $region35: #{bottleneck_forward.6} parent=5 // pred_region
      %s310 = ssub.s32 %s13, 1
      %s311 = smul.u32 32, %s26
      %p312 = scmp.lt.s32.totalorder %s24, 1
      %s313 = scalar_select %p312, %s24, 1
      %p314 = scmp.lt.s32.totalorder %s311, 31
      %s315 = scalar_select %p314, %s311, 31
      %p316 = scmp.lt.s32.totalorder %s27, 0
      %s317 = scalar_select %p316, %s27, 0
      %s318 = sadd.s32 %s317, %s315
      %s319 = smul.addr %s313, 32
      %s320 = sadd.s32 %s318, %s319
      %s321 = smul.addr %s320, 4
      %s322 = scalar_lea.vmem %s0, %s321
      %p323 = pneg %p69
      %p324 = pneg %p66
      %p325 = scmp.lt.s32.totalorder %s24, 1
      %s326 = scalar_select %p325, %s24, 1
      %p327 = scmp.lt.s32.totalorder %s27, 0
      %s328 = scalar_select %p327, %s27, 0
      %s329 = sadd.s32 %s328, %s326
      %s330 = scalar_lea.vmem %s1, %s329
      %p331 = pneg %p97
      %p332 = pneg %p94
      %p333 = scmp.lt.s32.totalorder %s24, 1
      %s334 = scalar_select %p333, %s24, 1
      %p335 = scmp.lt.s32.totalorder %s27, 0
      %s336 = scalar_select %p335, %s27, 0
      %s337 = sadd.s32 %s336, %s334
      %s338 = scalar_lea.vmem %s2, %s337
      %p339 = pneg %p125
      %p340 = pneg %p122
      %s341 = smul.u32 16, %s27
      %p342 = scmp.lt.s32.totalorder %s341, 15
      %s343 = scalar_select %p342, %s341, 15
      %p344 = scmp.lt.s32.totalorder %s25, 0
      %s345 = scalar_select %p344, %s25, 0
      %s346 = sadd.s32 %s345, %s343
      %s347 = smul.addr %s346, 4
      %s348 = scalar_lea.vmem %s3, %s347
      %p349 = pneg %p153
      %p350 = pneg %p150
      %p351 = pneg %p183
      %p352 = pneg %p180
      %s353 = smul.u32 32, %s26
      %p354 = scmp.lt.s32.totalorder %s24, 1
      %s355 = scalar_select %p354, %s24, 1
      %p356 = scmp.lt.s32.totalorder %s353, 31
      %s357 = scalar_select %p356, %s353, 31
      %p358 = scmp.lt.s32.totalorder %s25, 0
      %s359 = scalar_select %p358, %s25, 0
      %s360 = sadd.s32 %s359, %s357
      %s361 = smul.addr %s355, 32
      %s362 = sadd.s32 %s360, %s361
      %s363 = smul.addr %s362, 4
      %s364 = scalar_lea.vmem %s4, %s363
      %p365 = pneg %p211
      %p366 = pneg %p208
      %p367 = scmp.lt.s32.totalorder %s24, 1
      %s368 = scalar_select %p367, %s24, 1
      %p369 = scmp.lt.s32.totalorder %s25, 0
      %s370 = scalar_select %p369, %s25, 0
      %s371 = sadd.s32 %s370, %s368
      %s372 = scalar_lea.vmem %s5, %s371
      %p373 = pneg %p239
      %p374 = pneg %p236
      %p375 = scmp.lt.s32.totalorder %s24, 1
      %s376 = scalar_select %p375, %s24, 1
      %p377 = scmp.lt.s32.totalorder %s25, 0
      %s378 = scalar_select %p377, %s25, 0
      %s379 = sadd.s32 %s378, %s376
      %s380 = scalar_lea.vmem %s6, %s379
      %s381 = smul.u32 32, %s26
      %p382 = scmp.lt.s32.totalorder %s24, 1
      %s383 = scalar_select %p382, %s24, 1
      %p384 = scmp.lt.s32.totalorder %s381, 31
      %s385 = scalar_select %p384, %s381, 31
      %p386 = scmp.lt.s32.totalorder %s27, 0
      %s387 = scalar_select %p386, %s27, 0
      %s388 = sadd.s32 %s387, %s385
      %s389 = smul.addr %s383, 32
      %s390 = sadd.s32 %s388, %s389
      %s391 = smul.addr %s390, 4
      %s392 = scalar_lea.vmem %s0, %s391
      %s393 = smul.u32 32, %s26
      %p394 = scmp.lt.s32.totalorder %s24, 1
      %s395 = scalar_select %p394, %s24, 1
      %p396 = scmp.lt.s32.totalorder %s27, 0
      %s397 = scalar_select %p396, %s27, 0
      %s398 = sadd.s32 %s397, %s395
      %s399 = scalar_lea.vmem %s1, %s398
      %p400 = scmp.lt.s32.totalorder %s24, 1
      %s401 = scalar_select %p400, %s24, 1
      %p402 = scmp.lt.s32.totalorder %s27, 0
      %s403 = scalar_select %p402, %s27, 0
      %s404 = sadd.s32 %s403, %s401
      %s405 = scalar_lea.vmem %s2, %s404
      %s406 = smul.u32 16, %s27
      %p407 = scmp.lt.s32.totalorder %s406, 15
      %s408 = scalar_select %p407, %s406, 15
      %p409 = scmp.lt.s32.totalorder %s25, 0
      %s410 = scalar_select %p409, %s25, 0
      %s411 = sadd.s32 %s410, %s408
      %s412 = smul.addr %s411, 4
      %s413 = scalar_lea.vmem %s3, %s412
      %s414 = smul.u32 16, %s27
      %s415 = smul.u32 32, %s26
      %p416 = scmp.lt.s32.totalorder %s24, 1
      %s417 = scalar_select %p416, %s24, 1
      %p418 = scmp.lt.s32.totalorder %s415, 31
      %s419 = scalar_select %p418, %s415, 31
      %p420 = scmp.lt.s32.totalorder %s25, 0
      %s421 = scalar_select %p420, %s25, 0
      %s422 = sadd.s32 %s421, %s419
      %s423 = smul.addr %s417, 32
      %s424 = sadd.s32 %s422, %s423
      %s425 = smul.addr %s424, 4
      %s426 = scalar_lea.vmem %s4, %s425
      %s427 = smul.u32 32, %s26
      %p428 = scmp.lt.s32.totalorder %s24, 1
      %s429 = scalar_select %p428, %s24, 1
      %p430 = scmp.lt.s32.totalorder %s25, 0
      %s431 = scalar_select %p430, %s25, 0
      %s432 = sadd.s32 %s431, %s429
      %s433 = scalar_lea.vmem %s5, %s432
      %p434 = scmp.lt.s32.totalorder %s24, 1
      %s435 = scalar_select %p434, %s24, 1
      %p436 = scmp.lt.s32.totalorder %s25, 0
      %s437 = scalar_select %p436, %s25, 0
      %s438 = sadd.s32 %s437, %s435
      %s439 = scalar_lea.vmem %s6, %s438
      %p441 = scmp.eq.s32.totalorder %s26, 0
      %p442 = scmp.eq.s32.totalorder %s27, 0
      %p443 = pnand %p441, %p442
      %p444 = pneg %p443
      // Predicated region
      $region37: #{bottleneck_forward.6} parent=35 // pred_check
        _
      $region38: #{bottleneck_forward.6} parent=35 // pred_check_branch
        %446 = sbr.rel (%p443) target = $region40
      $region39: #{bottleneck_forward.6} parent=35 // pred_region
        %447 = vst [vmem:[%s433] sm:$0x1] 0.0
        %448 = vst [vmem:[%s439] sm:$0x1] 0.0
      $region40: #{bottleneck_forward.6} parent=35 // pred_fallthru
        _
      // Predicated region
      $region41: #{bottleneck_forward.6} parent=35 // pred_check
        %p449 = pneg %p442
      $region42: #{bottleneck_forward.6} parent=35 // pred_check_branch
        %451 = sbr.rel (%p449) target = $region44
      $region43: #{bottleneck_forward.6} parent=35 // pred_region
        %452 = vst [vmem:[#allocation2] sm:$0xff] 0.0
        %453 = vst [vmem:[#allocation2 + $0x8] sm:$0xff] 0.0
        %454 = vst [vmem:[#allocation2 + $0x10] sm:$0xff] 0.0
        %455 = vst [vmem:[#allocation2 + $0x18] sm:$0xff] 0.0
        %456 = vst [vmem:[#allocation2 + $0x20] sm:$0xff] 0.0
        %457 = vst [vmem:[#allocation2 + $0x28] sm:$0xff] 0.0
        %458 = vst [vmem:[#allocation2 + $0x30] sm:$0xff] 0.0
        %459 = vst [vmem:[#allocation2 + $0x38] sm:$0xff] 0.0
        %460 = vst [vmem:[#allocation2 + $0x40] sm:$0xff] 0.0
        %461 = vst [vmem:[#allocation2 + $0x48] sm:$0xff] 0.0
        %462 = vst [vmem:[#allocation2 + $0x50] sm:$0xff] 0.0
        %463 = vst [vmem:[#allocation2 + $0x58] sm:$0xff] 0.0
        %464 = vst [vmem:[#allocation2 + $0x60] sm:$0xff] 0.0
        %465 = vst [vmem:[#allocation2 + $0x68] sm:$0xff] 0.0
        %466 = vst [vmem:[#allocation2 + $0x70] sm:$0xff] 0.0
        %467 = vst [vmem:[#allocation2 + $0x78] sm:$0xff] 0.0
        %468 = vst [vmem:[#allocation2 + $0x80] sm:$0xff] 0.0
        %469 = vst [vmem:[#allocation2 + $0x88] sm:$0xff] 0.0
        %470 = vst [vmem:[#allocation2 + $0x90] sm:$0xff] 0.0
        %471 = vst [vmem:[#allocation2 + $0x98] sm:$0xff] 0.0
        %472 = vst [vmem:[#allocation2 + $0xa0] sm:$0xff] 0.0
        %473 = vst [vmem:[#allocation2 + $0xa8] sm:$0xff] 0.0
        %474 = vst [vmem:[#allocation2 + $0xb0] sm:$0xff] 0.0
        %475 = vst [vmem:[#allocation2 + $0xb8] sm:$0xff] 0.0
        %476 = vst [vmem:[#allocation2 + $0xc0] sm:$0xff] 0.0
        %477 = vst [vmem:[#allocation2 + $0xc8] sm:$0xff] 0.0
        %478 = vst [vmem:[#allocation2 + $0xd0] sm:$0xff] 0.0
        %479 = vst [vmem:[#allocation2 + $0xd8] sm:$0xff] 0.0
        %480 = vst [vmem:[#allocation2 + $0xe0] sm:$0xff] 0.0
        %481 = vst [vmem:[#allocation2 + $0xe8] sm:$0xff] 0.0
        %482 = vst [vmem:[#allocation2 + $0xf0] sm:$0xff] 0.0
        %483 = vst [vmem:[#allocation2 + $0xf8] sm:$0xff] 0.0
      $region44: #{bottleneck_forward.6} parent=35 // pred_fallthru
        _
      %v484 = vld [vmem:[%s392] sm:$0xf]
      %v485 = vld [vmem:[%s392 + $0x4] sm:$0xf]
      %v486 = vld [vmem:[%s392 + $0x8] sm:$0xf]
      %v487 = vld [vmem:[%s392 + $0xc] sm:$0xf]
      %v488 = vld [vmem:[%s392 + $0x10] sm:$0xf]
      %v489 = vld [vmem:[%s392 + $0x14] sm:$0xf]
      %v490 = vld [vmem:[%s392 + $0x18] sm:$0xf]
      %v491 = vld [vmem:[%s392 + $0x1c] sm:$0xf]
      %v492 = vld [vmem:[%s392 + $0x20] sm:$0xf]
      %v493 = vld [vmem:[%s392 + $0x24] sm:$0xf]
      %v494 = vld [vmem:[%s392 + $0x28] sm:$0xf]
      %v495 = vld [vmem:[%s392 + $0x2c] sm:$0xf]
      %v496 = vld [vmem:[%s392 + $0x30] sm:$0xf]
      %v497 = vld [vmem:[%s392 + $0x34] sm:$0xf]
      %v498 = vld [vmem:[%s392 + $0x38] sm:$0xf]
      %v499 = vld [vmem:[%s392 + $0x3c] sm:$0xf]
      %v500 = vld [vmem:[%s392 + $0x40] sm:$0xf]
      %v501 = vld [vmem:[%s392 + $0x44] sm:$0xf]
      %v502 = vld [vmem:[%s392 + $0x48] sm:$0xf]
      %v503 = vld [vmem:[%s392 + $0x4c] sm:$0xf]
      %v504 = vld [vmem:[%s392 + $0x50] sm:$0xf]
      %v505 = vld [vmem:[%s392 + $0x54] sm:$0xf]
      %v506 = vld [vmem:[%s392 + $0x58] sm:$0xf]
      %v507 = vld [vmem:[%s392 + $0x5c] sm:$0xf]
      %v508 = vld [vmem:[%s392 + $0x60] sm:$0xf]
      %v509 = vld [vmem:[%s392 + $0x64] sm:$0xf]
      %v510 = vld [vmem:[%s392 + $0x68] sm:$0xf]
      %v511 = vld [vmem:[%s392 + $0x6c] sm:$0xf]
      %v512 = vld [vmem:[%s392 + $0x70] sm:$0xf]
      %v513 = vld [vmem:[%s392 + $0x74] sm:$0xf]
      %v514 = vld [vmem:[%s392 + $0x78] sm:$0xf]
      %v515 = vld [vmem:[%s392 + $0x7c] sm:$0xf]
      %v516 = vunpack.c.l.bf16 %v484
      %v517 = vunpack.c.l.bf16 %v485
      %v518 = vunpack.c.l.bf16 %v486
      %v519 = vunpack.c.l.bf16 %v487
      %v520 = vunpack.c.l.bf16 %v488
      %v521 = vunpack.c.l.bf16 %v489
      %v522 = vunpack.c.l.bf16 %v490
      %v523 = vunpack.c.l.bf16 %v491
      %v524 = vunpack.c.l.bf16 %v492
      %v525 = vunpack.c.l.bf16 %v493
      %v526 = vunpack.c.l.bf16 %v494
      %v527 = vunpack.c.l.bf16 %v495
      %v528 = vunpack.c.l.bf16 %v496
      %v529 = vunpack.c.l.bf16 %v497
      %v530 = vunpack.c.l.bf16 %v498
      %v531 = vunpack.c.l.bf16 %v499
      %v532 = vunpack.c.l.bf16 %v500
      %v533 = vunpack.c.l.bf16 %v501
      %v534 = vunpack.c.l.bf16 %v502
      %v535 = vunpack.c.l.bf16 %v503
      %v536 = vunpack.c.l.bf16 %v504
      %v537 = vunpack.c.l.bf16 %v505
      %v538 = vunpack.c.l.bf16 %v506
      %v539 = vunpack.c.l.bf16 %v507
      %v540 = vunpack.c.l.bf16 %v508
      %v541 = vunpack.c.l.bf16 %v509
      %v542 = vunpack.c.l.bf16 %v510
      %v543 = vunpack.c.l.bf16 %v511
      %v544 = vunpack.c.l.bf16 %v512
      %v545 = vunpack.c.l.bf16 %v513
      %v546 = vunpack.c.l.bf16 %v514
      %v547 = vunpack.c.l.bf16 %v515
      %v548 = vld [vmem:[%s399] sm:$0x1]
      %v550 = vlaneseq
      %v551 = vshrl.u32 %v550, 7
      %v552 = vsub.s32 0, %v551
      %v553 = vrot.slane %v548, %v552
      %v555 = vmul.f32 %v516, %v553
      %v556 = vmul.f32 %v517, %v553
      %v557 = vmul.f32 %v518, %v553
      %v558 = vmul.f32 %v519, %v553
      %v559 = vmul.f32 %v520, %v553
      %v560 = vmul.f32 %v521, %v553
      %v561 = vmul.f32 %v522, %v553
      %v562 = vmul.f32 %v523, %v553
      %v563 = vmul.f32 %v524, %v553
      %v564 = vmul.f32 %v525, %v553
      %v565 = vmul.f32 %v526, %v553
      %v566 = vmul.f32 %v527, %v553
      %v567 = vmul.f32 %v528, %v553
      %v568 = vmul.f32 %v529, %v553
      %v569 = vmul.f32 %v530, %v553
      %v570 = vmul.f32 %v531, %v553
      %v571 = vmul.f32 %v532, %v553
      %v572 = vmul.f32 %v533, %v553
      %v573 = vmul.f32 %v534, %v553
      %v574 = vmul.f32 %v535, %v553
      %v575 = vmul.f32 %v536, %v553
      %v576 = vmul.f32 %v537, %v553
      %v577 = vmul.f32 %v538, %v553
      %v578 = vmul.f32 %v539, %v553
      %v579 = vmul.f32 %v540, %v553
      %v580 = vmul.f32 %v541, %v553
      %v581 = vmul.f32 %v542, %v553
      %v582 = vmul.f32 %v543, %v553
      %v583 = vmul.f32 %v544, %v553
      %v584 = vmul.f32 %v545, %v553
      %v585 = vmul.f32 %v546, %v553
      %v586 = vmul.f32 %v547, %v553
      %v587 = vld [vmem:[%s405] sm:$0x1]
      %v589 = vlaneseq
      %v590 = vshrl.u32 %v589, 7
      %v591 = vsub.s32 0, %v590
      %v592 = vrot.slane %v587, %v591
      %v594 = vadd.f32 %v555, %v592
      %v595 = vadd.f32 %v556, %v592
      %v596 = vadd.f32 %v557, %v592
      %v597 = vadd.f32 %v558, %v592
      %v598 = vadd.f32 %v559, %v592
      %v599 = vadd.f32 %v560, %v592
      %v600 = vadd.f32 %v561, %v592
      %v601 = vadd.f32 %v562, %v592
      %v602 = vadd.f32 %v563, %v592
      %v603 = vadd.f32 %v564, %v592
      %v604 = vadd.f32 %v565, %v592
      %v605 = vadd.f32 %v566, %v592
      %v606 = vadd.f32 %v567, %v592
      %v607 = vadd.f32 %v568, %v592
      %v608 = vadd.f32 %v569, %v592
      %v609 = vadd.f32 %v570, %v592
      %v610 = vadd.f32 %v571, %v592
      %v611 = vadd.f32 %v572, %v592
      %v612 = vadd.f32 %v573, %v592
      %v613 = vadd.f32 %v574, %v592
      %v614 = vadd.f32 %v575, %v592
      %v615 = vadd.f32 %v576, %v592
      %v616 = vadd.f32 %v577, %v592
      %v617 = vadd.f32 %v578, %v592
      %v618 = vadd.f32 %v579, %v592
      %v619 = vadd.f32 %v580, %v592
      %v620 = vadd.f32 %v581, %v592
      %v621 = vadd.f32 %v582, %v592
      %v622 = vadd.f32 %v583, %v592
      %v623 = vadd.f32 %v584, %v592
      %v624 = vadd.f32 %v585, %v592
      %v625 = vadd.f32 %v586, %v592
      %v626 = vmax.f32 %v594, 0.0
      %v627 = vmax.f32 %v595, 0.0
      %v628 = vmax.f32 %v596, 0.0
      %v629 = vmax.f32 %v597, 0.0
      %v630 = vmax.f32 %v598, 0.0
      %v631 = vmax.f32 %v599, 0.0
      %v632 = vmax.f32 %v600, 0.0
      %v633 = vmax.f32 %v601, 0.0
      %v634 = vmax.f32 %v602, 0.0
      %v635 = vmax.f32 %v603, 0.0
      %v636 = vmax.f32 %v604, 0.0
      %v637 = vmax.f32 %v605, 0.0
      %v638 = vmax.f32 %v606, 0.0
      %v639 = vmax.f32 %v607, 0.0
      %v640 = vmax.f32 %v608, 0.0
      %v641 = vmax.f32 %v609, 0.0
      %v642 = vmax.f32 %v610, 0.0
      %v643 = vmax.f32 %v611, 0.0
      %v644 = vmax.f32 %v612, 0.0
      %v645 = vmax.f32 %v613, 0.0
      %v646 = vmax.f32 %v614, 0.0
      %v647 = vmax.f32 %v615, 0.0
      %v648 = vmax.f32 %v616, 0.0
      %v649 = vmax.f32 %v617, 0.0
      %v650 = vmax.f32 %v618, 0.0
      %v651 = vmax.f32 %v619, 0.0
      %v652 = vmax.f32 %v620, 0.0
      %v653 = vmax.f32 %v621, 0.0
      %v654 = vmax.f32 %v622, 0.0
      %v655 = vmax.f32 %v623, 0.0
      %v656 = vmax.f32 %v624, 0.0
      %v657 = vmax.f32 %v625, 0.0
      %v658 = vpack.c.bf16 %v627, %v626
      %v659 = vpack.c.bf16 %v629, %v628
      %v660 = vpack.c.bf16 %v631, %v630
      %v661 = vpack.c.bf16 %v633, %v632
      %v662 = vpack.c.bf16 %v635, %v634
      %v663 = vpack.c.bf16 %v637, %v636
      %v664 = vpack.c.bf16 %v639, %v638
      %v665 = vpack.c.bf16 %v641, %v640
      %v666 = vpack.c.bf16 %v643, %v642
      %v667 = vpack.c.bf16 %v645, %v644
      %v668 = vpack.c.bf16 %v647, %v646
      %v669 = vpack.c.bf16 %v649, %v648
      %v670 = vpack.c.bf16 %v651, %v650
      %v671 = vpack.c.bf16 %v653, %v652
      %v672 = vpack.c.bf16 %v655, %v654
      %v673 = vpack.c.bf16 %v657, %v656
      %v674 = vld [vmem:[#allocation2] sm:$0xff]
      %v675 = vld [vmem:[#allocation2 + $0x8] sm:$0xff]
      %v676 = vld [vmem:[#allocation2 + $0x10] sm:$0xff]
      %v677 = vld [vmem:[#allocation2 + $0x18] sm:$0xff]
      %v678 = vld [vmem:[#allocation2 + $0x20] sm:$0xff]
      %v679 = vld [vmem:[#allocation2 + $0x28] sm:$0xff]
      %v680 = vld [vmem:[#allocation2 + $0x30] sm:$0xff]
      %v681 = vld [vmem:[#allocation2 + $0x38] sm:$0xff]
      %v682 = vld [vmem:[#allocation2 + $0x40] sm:$0xff]
      %v683 = vld [vmem:[#allocation2 + $0x48] sm:$0xff]
      %v684 = vld [vmem:[#allocation2 + $0x50] sm:$0xff]
      %v685 = vld [vmem:[#allocation2 + $0x58] sm:$0xff]
      %v686 = vld [vmem:[#allocation2 + $0x60] sm:$0xff]
      %v687 = vld [vmem:[#allocation2 + $0x68] sm:$0xff]
      %v688 = vld [vmem:[#allocation2 + $0x70] sm:$0xff]
      %v689 = vld [vmem:[#allocation2 + $0x78] sm:$0xff]
      %v690 = vld [vmem:[#allocation2 + $0x80] sm:$0xff]
      %v691 = vld [vmem:[#allocation2 + $0x88] sm:$0xff]
      %v692 = vld [vmem:[#allocation2 + $0x90] sm:$0xff]
      %v693 = vld [vmem:[#allocation2 + $0x98] sm:$0xff]
      %v694 = vld [vmem:[#allocation2 + $0xa0] sm:$0xff]
      %v695 = vld [vmem:[#allocation2 + $0xa8] sm:$0xff]
      %v696 = vld [vmem:[#allocation2 + $0xb0] sm:$0xff]
      %v697 = vld [vmem:[#allocation2 + $0xb8] sm:$0xff]
      %v698 = vld [vmem:[#allocation2 + $0xc0] sm:$0xff]
      %v699 = vld [vmem:[#allocation2 + $0xc8] sm:$0xff]
      %v700 = vld [vmem:[#allocation2 + $0xd0] sm:$0xff]
      %v701 = vld [vmem:[#allocation2 + $0xd8] sm:$0xff]
      %v702 = vld [vmem:[#allocation2 + $0xe0] sm:$0xff]
      %v703 = vld [vmem:[#allocation2 + $0xe8] sm:$0xff]
      %v704 = vld [vmem:[#allocation2 + $0xf0] sm:$0xff]
      %v705 = vld [vmem:[#allocation2 + $0xf8] sm:$0xff]
      %v706 = vld [vmem:[%s413] sm:$0xf]
      %v707 = vld [vmem:[%s413 + $0x4] sm:$0xf]
      %v708 = vld [vmem:[%s413 + $0x8] sm:$0xf]
      %v709 = vld [vmem:[%s413 + $0xc] sm:$0xf]
      %v710 = vld [vmem:[%s413 + $0x10] sm:$0xf]
      %v711 = vld [vmem:[%s413 + $0x14] sm:$0xf]
      %v712 = vld [vmem:[%s413 + $0x18] sm:$0xf]
      %v713 = vld [vmem:[%s413 + $0x1c] sm:$0xf]
      %v714 = vld [vmem:[%s413 + $0x20] sm:$0xf]
      %v715 = vld [vmem:[%s413 + $0x24] sm:$0xf]
      %v716 = vld [vmem:[%s413 + $0x28] sm:$0xf]
      %v717 = vld [vmem:[%s413 + $0x2c] sm:$0xf]
      %v718 = vld [vmem:[%s413 + $0x30] sm:$0xf]
      %v719 = vld [vmem:[%s413 + $0x34] sm:$0xf]
      %v720 = vld [vmem:[%s413 + $0x38] sm:$0xf]
      %v721 = vld [vmem:[%s413 + $0x3c] sm:$0xf]
      %v738 = vunpack.c.l.b16 %v706
      %v739 = vunpack.c.l.b16 %v707
      %v740 = vunpack.c.l.b16 %v708
      %v741 = vunpack.c.l.b16 %v709
      %v742 = vunpack.c.l.b16 %v710
      %v743 = vunpack.c.l.b16 %v711
      %v744 = vunpack.c.l.b16 %v712
      %v745 = vunpack.c.l.b16 %v713
      %v746 = vunpack.c.l.b16 %v714
      %v747 = vunpack.c.l.b16 %v715
      %v748 = vunpack.c.l.b16 %v716
      %v749 = vunpack.c.l.b16 %v717
      %v750 = vunpack.c.l.b16 %v718
      %v751 = vunpack.c.l.b16 %v719
      %v752 = vunpack.c.l.b16 %v720
      %v753 = vunpack.c.l.b16 %v721
      %v754 = vpack.c.b16 %v739, %v738
      %v755 = vpack.c.b16 %v741, %v740
      %v756 = vpack.c.b16 %v743, %v742
      %v757 = vpack.c.b16 %v745, %v744
      %v758 = vpack.c.b16 %v747, %v746
      %v759 = vpack.c.b16 %v749, %v748
      %v760 = vpack.c.b16 %v751, %v750
      %v761 = vpack.c.b16 %v753, %v752
      %770 = vmatprep.subr.bf16.mxu0 0
      %771 = vmatpush1.bf16.msra.mxu0 %v761
      %772 = vmatprep.subr.bf16.mxu0 0
      %773 = vmatpush1.bf16.msra.mxu0 %v760
      %774 = vmatprep.subr.bf16.mxu0 0
      %775 = vmatpush1.bf16.msra.mxu0 %v759
      %776 = vmatprep.subr.bf16.mxu0 0
      %777 = vmatpush1.bf16.msra.mxu0 %v758
      %778 = vmatprep.subr.bf16.mxu0 0
      %779 = vmatpush1.bf16.msra.mxu0 %v757
      %780 = vmatprep.subr.bf16.mxu0 0
      %781 = vmatpush1.bf16.msra.mxu0 %v756
      %782 = vmatprep.subr.bf16.mxu0 0
      %783 = vmatpush1.bf16.msra.mxu0 %v755
      %784 = vmatprep.subr.bf16.mxu0 0
      %785 = vmatpush1.bf16.msra.mxu0 %v754
      %786 = vmatprep.subr.bf16.mxu0 0
      %787 = vmatpush2.bf16.msra.mxu0 0
      %788 = vmatprep.subr.bf16.mxu0 0
      %789 = vmatpush2.bf16.msra.mxu0 0
      %790 = vmatprep.subr.bf16.mxu0 0
      %791 = vmatpush2.bf16.msra.mxu0 0
      %792 = vmatprep.subr.bf16.mxu0 0
      %793 = vmatpush2.bf16.msra.mxu0 0
      %794 = vmatprep.subr.bf16.mxu0 0
      %795 = vmatpush2.bf16.msra.mxu0 0
      %796 = vmatprep.subr.bf16.mxu0 0
      %797 = vmatpush2.bf16.msra.mxu0 0
      %798 = vmatprep.subr.bf16.mxu0 0
      %799 = vmatpush2.bf16.msra.mxu0 0
      %800 = vmatprep.subr.bf16.mxu0 0
      %801 = vmatpush2.bf16.msra.mxu0 0
      %802 = vmatprep.mubr.bf16.mxu0 0
      %803 = vmatmul.mubr.bf16.gmra.mxu0 %v658
      %v804 = vpop.f32.mrf.mxu0
      %v805 = vadd.f32 0.0, %v804
      %v806 = vpop.f32.mrf.mxu0
      %v807 = vpop.f32.mrf.mxu0
      %v808 = vadd.f32 0.0, %v807
      %v809 = vpop.f32.mrf.mxu0
      %810 = vmatprep.mubr.bf16.mxu0 0
      %811 = vmatmul.mubr.bf16.gmra.mxu0 %v659
      %v812 = vpop.f32.mrf.mxu0
      %v813 = vadd.f32 0.0, %v812
      %v814 = vpop.f32.mrf.mxu0
      %v815 = vpop.f32.mrf.mxu0
      %v816 = vadd.f32 0.0, %v815
      %v817 = vpop.f32.mrf.mxu0
      %818 = vmatprep.mubr.bf16.mxu0 0
      %819 = vmatmul.mubr.bf16.gmra.mxu0 %v660
      %v820 = vpop.f32.mrf.mxu0
      %v821 = vadd.f32 0.0, %v820
      %v822 = vpop.f32.mrf.mxu0
      %v823 = vpop.f32.mrf.mxu0
      %v824 = vadd.f32 0.0, %v823
      %v825 = vpop.f32.mrf.mxu0
      %826 = vmatprep.mubr.bf16.mxu0 0
      %827 = vmatmul.mubr.bf16.gmra.mxu0 %v661
      %v828 = vpop.f32.mrf.mxu0
      %v829 = vadd.f32 0.0, %v828
      %v830 = vpop.f32.mrf.mxu0
      %v831 = vpop.f32.mrf.mxu0
      %v832 = vadd.f32 0.0, %v831
      %v833 = vpop.f32.mrf.mxu0
      %834 = vmatprep.mubr.bf16.mxu0 0
      %835 = vmatmul.mubr.bf16.gmra.mxu0 %v662
      %v836 = vpop.f32.mrf.mxu0
      %v837 = vadd.f32 0.0, %v836
      %v838 = vpop.f32.mrf.mxu0
      %v839 = vpop.f32.mrf.mxu0
      %v840 = vadd.f32 0.0, %v839
      %v841 = vpop.f32.mrf.mxu0
      %842 = vmatprep.mubr.bf16.mxu0 0
      %843 = vmatmul.mubr.bf16.gmra.mxu0 %v663
      %v844 = vpop.f32.mrf.mxu0
      %v845 = vadd.f32 0.0, %v844
      %v846 = vpop.f32.mrf.mxu0
      %v847 = vpop.f32.mrf.mxu0
      %v848 = vadd.f32 0.0, %v847
      %v849 = vpop.f32.mrf.mxu0
      %850 = vmatprep.mubr.bf16.mxu0 0
      %851 = vmatmul.mubr.bf16.gmra.mxu0 %v664
      %v852 = vpop.f32.mrf.mxu0
      %v853 = vadd.f32 0.0, %v852
      %v854 = vpop.f32.mrf.mxu0
      %v855 = vpop.f32.mrf.mxu0
      %v856 = vadd.f32 0.0, %v855
      %v857 = vpop.f32.mrf.mxu0
      %858 = vmatprep.mubr.bf16.mxu0 0
      %859 = vmatmul.mubr.bf16.gmra.mxu0 %v665
      %v860 = vpop.f32.mrf.mxu0
      %v861 = vadd.f32 0.0, %v860
      %v862 = vpop.f32.mrf.mxu0
      %v863 = vpop.f32.mrf.mxu0
      %v864 = vadd.f32 0.0, %v863
      %v865 = vpop.f32.mrf.mxu0
      %866 = vmatprep.mubr.bf16.mxu0 0
      %867 = vmatmul.mubr.bf16.gmra.mxu0 %v666
      %v868 = vpop.f32.mrf.mxu0
      %v869 = vadd.f32 0.0, %v868
      %v870 = vpop.f32.mrf.mxu0
      %v871 = vpop.f32.mrf.mxu0
      %v872 = vadd.f32 0.0, %v871
      %v873 = vpop.f32.mrf.mxu0
      %874 = vmatprep.mubr.bf16.mxu0 0
      %875 = vmatmul.mubr.bf16.gmra.mxu0 %v667
      %v876 = vpop.f32.mrf.mxu0
      %v877 = vadd.f32 0.0, %v876
      %v878 = vpop.f32.mrf.mxu0
      %v879 = vpop.f32.mrf.mxu0
      %v880 = vadd.f32 0.0, %v879
      %v881 = vpop.f32.mrf.mxu0
      %882 = vmatprep.mubr.bf16.mxu0 0
      %883 = vmatmul.mubr.bf16.gmra.mxu0 %v668
      %v884 = vpop.f32.mrf.mxu0
      %v885 = vadd.f32 0.0, %v884
      %v886 = vpop.f32.mrf.mxu0
      %v887 = vpop.f32.mrf.mxu0
      %v888 = vadd.f32 0.0, %v887
      %v889 = vpop.f32.mrf.mxu0
      %890 = vmatprep.mubr.bf16.mxu0 0
      %891 = vmatmul.mubr.bf16.gmra.mxu0 %v669
      %v892 = vpop.f32.mrf.mxu0
      %v893 = vadd.f32 0.0, %v892
      %v894 = vpop.f32.mrf.mxu0
      %v895 = vpop.f32.mrf.mxu0
      %v896 = vadd.f32 0.0, %v895
      %v897 = vpop.f32.mrf.mxu0
      %898 = vmatprep.mubr.bf16.mxu0 0
      %899 = vmatmul.mubr.bf16.gmra.mxu0 %v670
      %v900 = vpop.f32.mrf.mxu0
      %v901 = vadd.f32 0.0, %v900
      %v902 = vpop.f32.mrf.mxu0
      %v903 = vpop.f32.mrf.mxu0
      %v904 = vadd.f32 0.0, %v903
      %v905 = vpop.f32.mrf.mxu0
      %906 = vmatprep.mubr.bf16.mxu0 0
      %907 = vmatmul.mubr.bf16.gmra.mxu0 %v671
      %v908 = vpop.f32.mrf.mxu0
      %v909 = vadd.f32 0.0, %v908
      %v910 = vpop.f32.mrf.mxu0
      %v911 = vpop.f32.mrf.mxu0
      %v912 = vadd.f32 0.0, %v911
      %v913 = vpop.f32.mrf.mxu0
      %914 = vmatprep.mubr.bf16.mxu0 0
      %915 = vmatmul.mubr.bf16.gmra.mxu0 %v672
      %v916 = vpop.f32.mrf.mxu0
      %v917 = vadd.f32 0.0, %v916
      %v918 = vpop.f32.mrf.mxu0
      %v919 = vpop.f32.mrf.mxu0
      %v920 = vadd.f32 0.0, %v919
      %v921 = vpop.f32.mrf.mxu0
      %922 = vmatprep.mubr.bf16.mxu0 0
      %923 = vmatmul.mubr.bf16.gmra.mxu0 %v673
      %v924 = vpop.f32.mrf.mxu0
      %v925 = vadd.f32 0.0, %v924
      %v926 = vpop.f32.mrf.mxu0
      %v927 = vpop.f32.mrf.mxu0
      %v928 = vadd.f32 0.0, %v927
      %v929 = vpop.f32.mrf.mxu0
      %930 = vdwg.mxu0
      %v931 = vadd.f32 %v674, %v805
      %v932 = vadd.f32 %v675, %v808
      %v933 = vadd.f32 %v676, %v813
      %v934 = vadd.f32 %v677, %v816
      %v935 = vadd.f32 %v678, %v821
      %v936 = vadd.f32 %v679, %v824
      %v937 = vadd.f32 %v680, %v829
      %v938 = vadd.f32 %v681, %v832
      %v939 = vadd.f32 %v682, %v837
      %v940 = vadd.f32 %v683, %v840
      %v941 = vadd.f32 %v684, %v845
      %v942 = vadd.f32 %v685, %v848
      %v943 = vadd.f32 %v686, %v853
      %v944 = vadd.f32 %v687, %v856
      %v945 = vadd.f32 %v688, %v861
      %v946 = vadd.f32 %v689, %v864
      %v947 = vadd.f32 %v690, %v869
      %v948 = vadd.f32 %v691, %v872
      %v949 = vadd.f32 %v692, %v877
      %v950 = vadd.f32 %v693, %v880
      %v951 = vadd.f32 %v694, %v885
      %v952 = vadd.f32 %v695, %v888
      %v953 = vadd.f32 %v696, %v893
      %v954 = vadd.f32 %v697, %v896
      %v955 = vadd.f32 %v698, %v901
      %v956 = vadd.f32 %v699, %v904
      %v957 = vadd.f32 %v700, %v909
      %v958 = vadd.f32 %v701, %v912
      %v959 = vadd.f32 %v702, %v917
      %v960 = vadd.f32 %v703, %v920
      %v961 = vadd.f32 %v704, %v925
      %v962 = vadd.f32 %v705, %v928
      %963 = vst [vmem:[#allocation2] sm:$0xff] %v931
      %964 = vst [vmem:[#allocation2 + $0x8] sm:$0xff] %v932
      %965 = vst [vmem:[#allocation2 + $0x10] sm:$0xff] %v933
      %966 = vst [vmem:[#allocation2 + $0x18] sm:$0xff] %v934
      %967 = vst [vmem:[#allocation2 + $0x20] sm:$0xff] %v935
      %968 = vst [vmem:[#allocation2 + $0x28] sm:$0xff] %v936
      %969 = vst [vmem:[#allocation2 + $0x30] sm:$0xff] %v937
      %970 = vst [vmem:[#allocation2 + $0x38] sm:$0xff] %v938
      %971 = vst [vmem:[#allocation2 + $0x40] sm:$0xff] %v939
      %972 = vst [vmem:[#allocation2 + $0x48] sm:$0xff] %v940
      %973 = vst [vmem:[#allocation2 + $0x50] sm:$0xff] %v941
      %974 = vst [vmem:[#allocation2 + $0x58] sm:$0xff] %v942
      %975 = vst [vmem:[#allocation2 + $0x60] sm:$0xff] %v943
      %976 = vst [vmem:[#allocation2 + $0x68] sm:$0xff] %v944
      %977 = vst [vmem:[#allocation2 + $0x70] sm:$0xff] %v945
      %978 = vst [vmem:[#allocation2 + $0x78] sm:$0xff] %v946
      %979 = vst [vmem:[#allocation2 + $0x80] sm:$0xff] %v947
      %980 = vst [vmem:[#allocation2 + $0x88] sm:$0xff] %v948
      %981 = vst [vmem:[#allocation2 + $0x90] sm:$0xff] %v949
      %982 = vst [vmem:[#allocation2 + $0x98] sm:$0xff] %v950
      %983 = vst [vmem:[#allocation2 + $0xa0] sm:$0xff] %v951
      %984 = vst [vmem:[#allocation2 + $0xa8] sm:$0xff] %v952
      %985 = vst [vmem:[#allocation2 + $0xb0] sm:$0xff] %v953
      %986 = vst [vmem:[#allocation2 + $0xb8] sm:$0xff] %v954
      %987 = vst [vmem:[#allocation2 + $0xc0] sm:$0xff] %v955
      %988 = vst [vmem:[#allocation2 + $0xc8] sm:$0xff] %v956
      %989 = vst [vmem:[#allocation2 + $0xd0] sm:$0xff] %v957
      %990 = vst [vmem:[#allocation2 + $0xd8] sm:$0xff] %v958
      %991 = vst [vmem:[#allocation2 + $0xe0] sm:$0xff] %v959
      %992 = vst [vmem:[#allocation2 + $0xe8] sm:$0xff] %v960
      %993 = vst [vmem:[#allocation2 + $0xf0] sm:$0xff] %v961
      %994 = vst [vmem:[#allocation2 + $0xf8] sm:$0xff] %v962
      // Predicated region
      $region45: #{bottleneck_forward.6} parent=35 // pred_check
        %p995 = pneg %p442
      $region46: #{bottleneck_forward.6} parent=35 // pred_check_branch
        %997 = sbr.rel (%p995) target = $region48
      $region47: #{bottleneck_forward.6} parent=35 // pred_region
        %v998 = vld [vmem:[#allocation2] sm:$0xff]
        %v999 = vld [vmem:[#allocation2 + $0x8] sm:$0xff]
        %v1000 = vld [vmem:[#allocation2 + $0x10] sm:$0xff]
        %v1001 = vld [vmem:[#allocation2 + $0x18] sm:$0xff]
        %v1002 = vld [vmem:[#allocation2 + $0x20] sm:$0xff]
        %v1003 = vld [vmem:[#allocation2 + $0x28] sm:$0xff]
        %v1004 = vld [vmem:[#allocation2 + $0x30] sm:$0xff]
        %v1005 = vld [vmem:[#allocation2 + $0x38] sm:$0xff]
        %v1006 = vld [vmem:[#allocation2 + $0x40] sm:$0xff]
        %v1007 = vld [vmem:[#allocation2 + $0x48] sm:$0xff]
        %v1008 = vld [vmem:[#allocation2 + $0x50] sm:$0xff]
        %v1009 = vld [vmem:[#allocation2 + $0x58] sm:$0xff]
        %v1010 = vld [vmem:[#allocation2 + $0x60] sm:$0xff]
        %v1011 = vld [vmem:[#allocation2 + $0x68] sm:$0xff]
        %v1012 = vld [vmem:[#allocation2 + $0x70] sm:$0xff]
        %v1013 = vld [vmem:[#allocation2 + $0x78] sm:$0xff]
        %v1014 = vld [vmem:[#allocation2 + $0x80] sm:$0xff]
        %v1015 = vld [vmem:[#allocation2 + $0x88] sm:$0xff]
        %v1016 = vld [vmem:[#allocation2 + $0x90] sm:$0xff]
        %v1017 = vld [vmem:[#allocation2 + $0x98] sm:$0xff]
        %v1018 = vld [vmem:[#allocation2 + $0xa0] sm:$0xff]
        %v1019 = vld [vmem:[#allocation2 + $0xa8] sm:$0xff]
        %v1020 = vld [vmem:[#allocation2 + $0xb0] sm:$0xff]
        %v1021 = vld [vmem:[#allocation2 + $0xb8] sm:$0xff]
        %v1022 = vld [vmem:[#allocation2 + $0xc0] sm:$0xff]
        %v1023 = vld [vmem:[#allocation2 + $0xc8] sm:$0xff]
        %v1024 = vld [vmem:[#allocation2 + $0xd0] sm:$0xff]
        %v1025 = vld [vmem:[#allocation2 + $0xd8] sm:$0xff]
        %v1026 = vld [vmem:[#allocation2 + $0xe0] sm:$0xff]
        %v1027 = vld [vmem:[#allocation2 + $0xe8] sm:$0xff]
        %v1028 = vld [vmem:[#allocation2 + $0xf0] sm:$0xff]
        %v1029 = vld [vmem:[#allocation2 + $0xf8] sm:$0xff]
        %v1030 = vpack.c.bf16 %v999, %v998
        %v1031 = vpack.c.bf16 %v1001, %v1000
        %v1032 = vpack.c.bf16 %v1003, %v1002
        %v1033 = vpack.c.bf16 %v1005, %v1004
        %v1034 = vpack.c.bf16 %v1007, %v1006
        %v1035 = vpack.c.bf16 %v1009, %v1008
        %v1036 = vpack.c.bf16 %v1011, %v1010
        %v1037 = vpack.c.bf16 %v1013, %v1012
        %v1038 = vpack.c.bf16 %v1015, %v1014
        %v1039 = vpack.c.bf16 %v1017, %v1016
        %v1040 = vpack.c.bf16 %v1019, %v1018
        %v1041 = vpack.c.bf16 %v1021, %v1020
        %v1042 = vpack.c.bf16 %v1023, %v1022
        %v1043 = vpack.c.bf16 %v1025, %v1024
        %v1044 = vpack.c.bf16 %v1027, %v1026
        %v1045 = vpack.c.bf16 %v1029, %v1028
        %v1062 = vunpack.c.l.b16 %v1030
        %v1063 = vunpack.c.h.b16 %v1030
        %v1064 = vunpack.c.l.b16 %v1031
        %v1065 = vunpack.c.h.b16 %v1031
        %v1066 = vunpack.c.l.b16 %v1032
        %v1067 = vunpack.c.h.b16 %v1032
        %v1068 = vunpack.c.l.b16 %v1033
        %v1069 = vunpack.c.h.b16 %v1033
        %v1070 = vunpack.c.l.b16 %v1034
        %v1071 = vunpack.c.h.b16 %v1034
        %v1072 = vunpack.c.l.b16 %v1035
        %v1073 = vunpack.c.h.b16 %v1035
        %v1074 = vunpack.c.l.b16 %v1036
        %v1075 = vunpack.c.h.b16 %v1036
        %v1076 = vunpack.c.l.b16 %v1037
        %v1077 = vunpack.c.h.b16 %v1037
        %v1078 = vunpack.c.l.b16 %v1038
        %v1079 = vunpack.c.h.b16 %v1038
        %v1080 = vunpack.c.l.b16 %v1039
        %v1081 = vunpack.c.h.b16 %v1039
        %v1082 = vunpack.c.l.b16 %v1040
        %v1083 = vunpack.c.h.b16 %v1040
        %v1084 = vunpack.c.l.b16 %v1041
        %v1085 = vunpack.c.h.b16 %v1041
        %v1086 = vunpack.c.l.b16 %v1042
        %v1087 = vunpack.c.h.b16 %v1042
        %v1088 = vunpack.c.l.b16 %v1043
        %v1089 = vunpack.c.h.b16 %v1043
        %v1090 = vunpack.c.l.b16 %v1044
        %v1091 = vunpack.c.h.b16 %v1044
        %v1092 = vunpack.c.l.b16 %v1045
        %v1093 = vunpack.c.h.b16 %v1045
        %v1094 = vpack.c.b16 %v1062, %v1062
        %v1095 = vpack.c.b16 %v1063, %v1063
        %v1096 = vpack.c.b16 %v1064, %v1064
        %v1097 = vpack.c.b16 %v1065, %v1065
        %v1098 = vpack.c.b16 %v1066, %v1066
        %v1099 = vpack.c.b16 %v1067, %v1067
        %v1100 = vpack.c.b16 %v1068, %v1068
        %v1101 = vpack.c.b16 %v1069, %v1069
        %v1102 = vpack.c.b16 %v1070, %v1070
        %v1103 = vpack.c.b16 %v1071, %v1071
        %v1104 = vpack.c.b16 %v1072, %v1072
        %v1105 = vpack.c.b16 %v1073, %v1073
        %v1106 = vpack.c.b16 %v1074, %v1074
        %v1107 = vpack.c.b16 %v1075, %v1075
        %v1108 = vpack.c.b16 %v1076, %v1076
        %v1109 = vpack.c.b16 %v1077, %v1077
        %v1110 = vpack.c.b16 %v1078, %v1078
        %v1111 = vpack.c.b16 %v1079, %v1079
        %v1112 = vpack.c.b16 %v1080, %v1080
        %v1113 = vpack.c.b16 %v1081, %v1081
        %v1114 = vpack.c.b16 %v1082, %v1082
        %v1115 = vpack.c.b16 %v1083, %v1083
        %v1116 = vpack.c.b16 %v1084, %v1084
        %v1117 = vpack.c.b16 %v1085, %v1085
        %v1118 = vpack.c.b16 %v1086, %v1086
        %v1119 = vpack.c.b16 %v1087, %v1087
        %v1120 = vpack.c.b16 %v1088, %v1088
        %v1121 = vpack.c.b16 %v1089, %v1089
        %v1122 = vpack.c.b16 %v1090, %v1090
        %v1123 = vpack.c.b16 %v1091, %v1091
        %v1124 = vpack.c.b16 %v1092, %v1092
        %v1125 = vpack.c.b16 %v1093, %v1093
        %1158 = vst [vmem:[%s426] sm:$0xf] %v1094
        %1159 = vst [vmem:[%s426 + $0x4] sm:$0xf] %v1095
        %1160 = vst [vmem:[%s426 + $0x8] sm:$0xf] %v1096
        %1161 = vst [vmem:[%s426 + $0xc] sm:$0xf] %v1097
        %1162 = vst [vmem:[%s426 + $0x10] sm:$0xf] %v1098
        %1163 = vst [vmem:[%s426 + $0x14] sm:$0xf] %v1099
        %1164 = vst [vmem:[%s426 + $0x18] sm:$0xf] %v1100
        %1165 = vst [vmem:[%s426 + $0x1c] sm:$0xf] %v1101
        %1166 = vst [vmem:[%s426 + $0x20] sm:$0xf] %v1102
        %1167 = vst [vmem:[%s426 + $0x24] sm:$0xf] %v1103
        %1168 = vst [vmem:[%s426 + $0x28] sm:$0xf] %v1104
        %1169 = vst [vmem:[%s426 + $0x2c] sm:$0xf] %v1105
        %1170 = vst [vmem:[%s426 + $0x30] sm:$0xf] %v1106
        %1171 = vst [vmem:[%s426 + $0x34] sm:$0xf] %v1107
        %1172 = vst [vmem:[%s426 + $0x38] sm:$0xf] %v1108
        %1173 = vst [vmem:[%s426 + $0x3c] sm:$0xf] %v1109
        %1174 = vst [vmem:[%s426 + $0x40] sm:$0xf] %v1110
        %1175 = vst [vmem:[%s426 + $0x44] sm:$0xf] %v1111
        %1176 = vst [vmem:[%s426 + $0x48] sm:$0xf] %v1112
        %1177 = vst [vmem:[%s426 + $0x4c] sm:$0xf] %v1113
        %1178 = vst [vmem:[%s426 + $0x50] sm:$0xf] %v1114
        %1179 = vst [vmem:[%s426 + $0x54] sm:$0xf] %v1115
        %1180 = vst [vmem:[%s426 + $0x58] sm:$0xf] %v1116
        %1181 = vst [vmem:[%s426 + $0x5c] sm:$0xf] %v1117
        %1182 = vst [vmem:[%s426 + $0x60] sm:$0xf] %v1118
        %1183 = vst [vmem:[%s426 + $0x64] sm:$0xf] %v1119
        %1184 = vst [vmem:[%s426 + $0x68] sm:$0xf] %v1120
        %1185 = vst [vmem:[%s426 + $0x6c] sm:$0xf] %v1121
        %1186 = vst [vmem:[%s426 + $0x70] sm:$0xf] %v1122
        %1187 = vst [vmem:[%s426 + $0x74] sm:$0xf] %v1123
        %1188 = vst [vmem:[%s426 + $0x78] sm:$0xf] %v1124
        %1189 = vst [vmem:[%s426 + $0x7c] sm:$0xf] %v1125
        %v1190 = vld [vmem:[%s433] sm:$0x1]
        %v1191 = vadd.f32 %v998, %v999
        %v1192 = vadd.f32 %v1191, %v1000
        %v1193 = vadd.f32 %v1192, %v1001
        %v1194 = vadd.f32 %v1193, %v1002
        %v1195 = vadd.f32 %v1194, %v1003
        %v1196 = vadd.f32 %v1195, %v1004
        %v1197 = vadd.f32 %v1196, %v1005
        %v1198 = vadd.f32 %v1197, %v1006
        %v1199 = vadd.f32 %v1198, %v1007
        %v1200 = vadd.f32 %v1199, %v1008
        %v1201 = vadd.f32 %v1200, %v1009
        %v1202 = vadd.f32 %v1201, %v1010
        %v1203 = vadd.f32 %v1202, %v1011
        %v1204 = vadd.f32 %v1203, %v1012
        %v1205 = vadd.f32 %v1204, %v1013
        %v1206 = vadd.f32 %v1205, %v1014
        %v1207 = vadd.f32 %v1206, %v1015
        %v1208 = vadd.f32 %v1207, %v1016
        %v1209 = vadd.f32 %v1208, %v1017
        %v1210 = vadd.f32 %v1209, %v1018
        %v1211 = vadd.f32 %v1210, %v1019
        %v1212 = vadd.f32 %v1211, %v1020
        %v1213 = vadd.f32 %v1212, %v1021
        %v1214 = vadd.f32 %v1213, %v1022
        %v1215 = vadd.f32 %v1214, %v1023
        %v1216 = vadd.f32 %v1215, %v1024
        %v1217 = vadd.f32 %v1216, %v1025
        %v1218 = vadd.f32 %v1217, %v1026
        %v1219 = vadd.f32 %v1218, %v1027
        %v1220 = vadd.f32 %v1219, %v1028
        %v1221 = vadd.f32 %v1220, %v1029
        %v1222 = vrot.slane %v1221, 4
        %v1223 = vadd.f32 %v1221, %v1222
        %v1224 = vrot.slane %v1223, 2
        %v1225 = vadd.f32 %v1223, %v1224
        %v1226 = vrot.slane %v1225, 1
        %v1227 = vadd.f32 %v1225, %v1226
        %v1228 = vadd.f32 %v1190, %v1227
        %1229 = vst [vmem:[%s433] sm:$0x1] %v1228
        %v1230 = vld [vmem:[%s439] sm:$0x1]
        %v1231 = vmul.f32 %v998, %v998
        %v1232 = vmul.f32 %v999, %v999
        %v1233 = vmul.f32 %v1000, %v1000
        %v1234 = vmul.f32 %v1001, %v1001
        %v1235 = vmul.f32 %v1002, %v1002
        %v1236 = vmul.f32 %v1003, %v1003
        %v1237 = vmul.f32 %v1004, %v1004
        %v1238 = vmul.f32 %v1005, %v1005
        %v1239 = vmul.f32 %v1006, %v1006
        %v1240 = vmul.f32 %v1007, %v1007
        %v1241 = vmul.f32 %v1008, %v1008
        %v1242 = vmul.f32 %v1009, %v1009
        %v1243 = vmul.f32 %v1010, %v1010
        %v1244 = vmul.f32 %v1011, %v1011
        %v1245 = vmul.f32 %v1012, %v1012
        %v1246 = vmul.f32 %v1013, %v1013
        %v1247 = vmul.f32 %v1014, %v1014
        %v1248 = vmul.f32 %v1015, %v1015
        %v1249 = vmul.f32 %v1016, %v1016
        %v1250 = vmul.f32 %v1017, %v1017
        %v1251 = vmul.f32 %v1018, %v1018
        %v1252 = vmul.f32 %v1019, %v1019
        %v1253 = vmul.f32 %v1020, %v1020
        %v1254 = vmul.f32 %v1021, %v1021
        %v1255 = vmul.f32 %v1022, %v1022
        %v1256 = vmul.f32 %v1023, %v1023
        %v1257 = vmul.f32 %v1024, %v1024
        %v1258 = vmul.f32 %v1025, %v1025
        %v1259 = vmul.f32 %v1026, %v1026
        %v1260 = vmul.f32 %v1027, %v1027
        %v1261 = vmul.f32 %v1028, %v1028
        %v1262 = vmul.f32 %v1029, %v1029
        %v1263 = vadd.f32 %v1231, %v1232
        %v1264 = vadd.f32 %v1263, %v1233
        %v1265 = vadd.f32 %v1264, %v1234
        %v1266 = vadd.f32 %v1265, %v1235
        %v1267 = vadd.f32 %v1266, %v1236
        %v1268 = vadd.f32 %v1267, %v1237
        %v1269 = vadd.f32 %v1268, %v1238
        %v1270 = vadd.f32 %v1269, %v1239
        %v1271 = vadd.f32 %v1270, %v1240
        %v1272 = vadd.f32 %v1271, %v1241
        %v1273 = vadd.f32 %v1272, %v1242
        %v1274 = vadd.f32 %v1273, %v1243
        %v1275 = vadd.f32 %v1274, %v1244
        %v1276 = vadd.f32 %v1275, %v1245
        %v1277 = vadd.f32 %v1276, %v1246
        %v1278 = vadd.f32 %v1277, %v1247
        %v1279 = vadd.f32 %v1278, %v1248
        %v1280 = vadd.f32 %v1279, %v1249
        %v1281 = vadd.f32 %v1280, %v1250
        %v1282 = vadd.f32 %v1281, %v1251
        %v1283 = vadd.f32 %v1282, %v1252
        %v1284 = vadd.f32 %v1283, %v1253
        %v1285 = vadd.f32 %v1284, %v1254
        %v1286 = vadd.f32 %v1285, %v1255
        %v1287 = vadd.f32 %v1286, %v1256
        %v1288 = vadd.f32 %v1287, %v1257
        %v1289 = vadd.f32 %v1288, %v1258
        %v1290 = vadd.f32 %v1289, %v1259
        %v1291 = vadd.f32 %v1290, %v1260
        %v1292 = vadd.f32 %v1291, %v1261
        %v1293 = vadd.f32 %v1292, %v1262
        %v1294 = vrot.slane %v1293, 4
        %v1295 = vadd.f32 %v1293, %v1294
        %v1296 = vrot.slane %v1295, 2
        %v1297 = vadd.f32 %v1295, %v1296
        %v1298 = vrot.slane %v1297, 1
        %v1299 = vadd.f32 %v1297, %v1298
        %v1300 = vadd.f32 %v1230, %v1299
        %1301 = vst [vmem:[%s439] sm:$0x1] %v1300
      $region48: #{bottleneck_forward.6} parent=35 // pred_fallthru
        _
      %s1302 = smul.u32 32, %s26
      %p1303 = scmp.lt.s32.totalorder %s24, 1
      %s1304 = scalar_select %p1303, %s24, 1
      %p1305 = scmp.lt.s32.totalorder %s1302, 31
      %s1306 = scalar_select %p1305, %s1302, 31
      %p1307 = scmp.lt.s32.totalorder %s25, 0
      %s1308 = scalar_select %p1307, %s25, 0
      %s1309 = sadd.s32 %s1308, %s1306
      %s1310 = smul.addr %s1304, 32
      %s1311 = sadd.s32 %s1309, %s1310
      %s1312 = smul.addr %s1311, 4
      %s1313 = scalar_lea.vmem %s4, %s1312
      %p1314 = scmp.lt.s32.totalorder %s24, 1
      %s1315 = scalar_select %p1314, %s24, 1
      %p1316 = scmp.lt.s32.totalorder %s25, 0
      %s1317 = scalar_select %p1316, %s25, 0
      %s1318 = sadd.s32 %s1317, %s1315
      %s1319 = scalar_lea.vmem %s5, %s1318
      %p1320 = scmp.lt.s32.totalorder %s24, 1
      %s1321 = scalar_select %p1320, %s24, 1
      %p1322 = scmp.lt.s32.totalorder %s25, 0
      %s1323 = scalar_select %p1322, %s25, 0
      %s1324 = sadd.s32 %s1323, %s1321
      %s1325 = scalar_lea.vmem %s6, %s1324
      // Predicated region
      $region49: #{bottleneck_forward.6} parent=35 // pred_check
        %p1326 = pneg %p180
      $region50: #{bottleneck_forward.6} parent=35 // pred_check_branch
        %1328 = sbr.rel (%p1326) target = $region52
      $region51: #{bottleneck_forward.6} parent=35 // pred_region
        %s1329 = smul.u32 32, %s26
      $region52: #{bottleneck_forward.6} parent=35 // pred_fallthru
        _
      // Predicated region
      $region53: #{bottleneck_forward.6} parent=35 // pred_check
        %p1330 = pneg %p208
      $region54: #{bottleneck_forward.6} parent=35 // pred_check_branch
        %1332 = sbr.rel (%p1330) target = $region56
      $region55: #{bottleneck_forward.6} parent=35 // pred_region
        _
      $region56: #{bottleneck_forward.6} parent=35 // pred_fallthru
        _
      // Predicated region
      $region57: #{bottleneck_forward.6} parent=35 // pred_check
        %p1333 = pneg %p236
      $region58: #{bottleneck_forward.6} parent=35 // pred_check_branch
        %1335 = sbr.rel (%p1333) target = $region60
      $region59: #{bottleneck_forward.6} parent=35 // pred_region
        _
      $region60: #{bottleneck_forward.6} parent=35 // pred_fallthru
        _
    $region36: #{bottleneck_forward.6} parent=5 // pred_fallthru
      _
    %p1336 = scmp.le.s32.totalorder 2, %s13
    // Predicated region
    $region61: #{bottleneck_forward.6} parent=5 // pred_check
      %p1337 = pneg %p1336
    $region62: #{bottleneck_forward.6} parent=5 // pred_check_branch
      %1339 = sbr.rel (%p1337) target = $region64
    $region63: #{bottleneck_forward.6} parent=5 // pred_region
      %s1340 = ssub.s32 %s13, 2
      // Predicated region
      $region65: #{bottleneck_forward.6} parent=63 // pred_check
        %p1341 = pneg %p186
      $region66: #{bottleneck_forward.6} parent=63 // pred_check_branch
        %1343 = sbr.rel (%p1341) target = $region68
      $region67: #{bottleneck_forward.6} parent=63 // pred_region
        %s1344 = smul.u32 32, %s30
        %p1345 = scmp.lt.s32.totalorder %s28, 1
        %s1346 = scalar_select %p1345, %s28, 1
        %p1347 = scmp.lt.s32.totalorder %s1344, 31
        %s1348 = scalar_select %p1347, %s1344, 31
        %p1349 = scmp.lt.s32.totalorder %s29, 0
        %s1350 = scalar_select %p1349, %s29, 0
        %s1351 = sadd.s32 %s1350, %s1348
        %s1352 = smul.addr %s1346, 32
        %s1353 = sadd.s32 %s1351, %s1352
        %s1354 = smul.addr %s1353, 4
        %s1355 = scalar_lea.vmem %s4, %s1354
      $region68: #{bottleneck_forward.6} parent=63 // pred_fallthru
        _
      // Predicated region
      $region69: #{bottleneck_forward.6} parent=63 // pred_check
        %p1356 = pneg %p214
      $region70: #{bottleneck_forward.6} parent=63 // pred_check_branch
        %1358 = sbr.rel (%p1356) target = $region72
      $region71: #{bottleneck_forward.6} parent=63 // pred_region
        %p1359 = scmp.lt.s32.totalorder %s28, 1
        %s1360 = scalar_select %p1359, %s28, 1
        %p1361 = scmp.lt.s32.totalorder %s29, 0
        %s1362 = scalar_select %p1361, %s29, 0
        %s1363 = sadd.s32 %s1362, %s1360
        %s1364 = scalar_lea.vmem %s5, %s1363
      $region72: #{bottleneck_forward.6} parent=63 // pred_fallthru
        _
      // Predicated region
      $region73: #{bottleneck_forward.6} parent=63 // pred_check
        %p1365 = pneg %p242
      $region74: #{bottleneck_forward.6} parent=63 // pred_check_branch
        %1367 = sbr.rel (%p1365) target = $region76
      $region75: #{bottleneck_forward.6} parent=63 // pred_region
        %p1368 = scmp.lt.s32.totalorder %s28, 1
        %s1369 = scalar_select %p1368, %s28, 1
        %p1370 = scmp.lt.s32.totalorder %s29, 0
        %s1371 = scalar_select %p1370, %s29, 0
        %s1372 = sadd.s32 %s1371, %s1369
        %s1373 = scalar_lea.vmem %s6, %s1372
      $region76: #{bottleneck_forward.6} parent=63 // pred_fallthru
        _
    $region64: #{bottleneck_forward.6} parent=5 // pred_fallthru
      _
  $region6: #{bottleneck_forward.6} parent=0 // loop_footer
    %s17 = sadd.s32 1, %s13
  $region7: #{bottleneck_forward.6} parent=0 // loop_footer_branch
    %12 = sbr.rel target = $region3
  $region8: #{bottleneck_forward.6} parent=0 // loop_exit
    _

// kernel: bottleneck_forward.5
$region0: #{bottleneck_forward.5}
  #allocation0 [shape = 'u32[]', space=smem, size = 0x4, offset = 0x4, fixed_abs, tag = 'smem constant byte address 0x4 - core index']
  #allocation1 [shape = 'u32[144,128]{1,0:T(1,128)}', space=vmem, size = 0x12000, scoped, tag = 'internal scratch']
  #allocation2 [shape = 'bf16[18,18,128]{2,1,0:T(8,128)(2,1)}', space=vmem, size = 0x1b000, scoped, tag = 'scratch operand']
  #allocation3 [shape = 'f32[256,128]{1,0:T(8,128)}', space=vmem, size = 0x20000, scoped, tag = 'scratch operand']
  %s0 = inlined_call_operand.vmem [shape: bf16[2,16,16,128], index: 0, kind: input, shape index: {}]
  %s1 = inlined_call_operand.vmem [shape: f32[2,1,128], index: 1, kind: input, shape index: {}]
  %s2 = inlined_call_operand.vmem [shape: f32[2,1,128], index: 2, kind: input, shape index: {}]
  %s3 = inlined_call_operand.vmem [shape: bf16[9,128,128], index: 3, kind: input, shape index: {}]
  %s4 = inlined_call_operand.vmem [shape: bf16[2,256,128], index: 4, kind: output, shape index: {0}]
  %s5 = inlined_call_operand.vmem [shape: f32[2,1,128], index: 5, kind: output, shape index: {1}]
  %s6 = inlined_call_operand.vmem [shape: f32[2,1,128], index: 6, kind: output, shape index: {2}]
  %7 = xla_tuple %s4, %s5, %s6
  %s8 = sld [smem:[#allocation0]]
  $region73: #{bottleneck_forward.5} parent=0
    _
  %s10 = ssub.s32 1, %s8
  %s11 = scalar_select 0, %s10, %s8
  loop: start=0, step=1, limit=4
  $region2: #{bottleneck_forward.5} parent=0 // loop_pre_header
    _
  $region3: #{bottleneck_forward.5} parent=0 // loop_header
    %s13 = sphi 0, %s17
    %p14 = scmp.ge.s32.totalorder %s13, 4
    %s20 = sphi 0, %s39
    %s21 = sphi 0, %s35
    %s22 = sphi 0, %s31
    %s23 = sphi 0, %s20
    %s24 = sphi 0, %s21
    %s25 = sphi 0, %s22
    %s26 = sphi 0, %s23
    %s27 = sphi 0, %s24
    %s28 = sphi 0, %s25
    %s44 = sphi 0, %s46
    %s47 = sphi 0, %s44
    %s48 = sphi 0, %s47
    %s64 = sphi 0, %s48
    %s72 = sphi 0, %s74
    %s75 = sphi 0, %s72
    %s76 = sphi 0, %s75
    %s92 = sphi 0, %s76
    %s100 = sphi 0, %s102
    %s103 = sphi 0, %s100
    %s104 = sphi 0, %s103
    %s120 = sphi 0, %s104
    %s128 = sphi 0, %s130
    %s131 = sphi 0, %s128
    %s132 = sphi 0, %s131
    %s148 = sphi 0, %s132
    %s156 = sphi 0, %s158
    %s159 = sphi 0, %s156
    %s160 = sphi 0, %s159
    %s176 = sphi 0, %s160
    %s184 = sphi 0, %s186
    %s187 = sphi 0, %s184
    %s188 = sphi 0, %s187
    %s204 = sphi 0, %s188
    %s212 = sphi 0, %s214
    %s215 = sphi 0, %s212
    %s216 = sphi 0, %s215
    %s232 = sphi 0, %s216
  $region4: #{bottleneck_forward.5} parent=0 // loop_header_branch
    %16 = sbr.rel (%p14) target = $region8
  $region5: #{bottleneck_forward.5} parent=0 // loop_body
    %s18 = ssub.s32 %s13, 1
    %s19 = ssub.s32 %s13, 2
    %s29 = sadd.s32 1, %s22
    %p30 = scmp.ge.s32.totalorder %s29, 1
    %s31 = scalar_select %p30, 0, %s29
    %s32 = sadd.s32 1, %s21
    %s33 = scalar_select %p30, %s32, %s21
    %p34 = scmp.ge.s32.totalorder %s33, 1
    %s35 = scalar_select %p34, 0, %s33
    %s36 = sadd.s32 1, %s20
    %s37 = scalar_select %p34, %s36, %s20
    %p38 = scmp.ge.s32.totalorder %s37, 2
    %s39 = scalar_select %p38, 0, %s37
    %s40 = ssub.s32 %s20, %s39
    %s41 = ssub.s32 %s22, %s31
    %s42 = sor.u32 %s40, %s41
    %p43 = scmp.eq.s32.totalorder %s42, 0
    %s45 = sadd.s32 %s44, 1
    %s46 = scalar_select %p43, %s44, %s45
    %p49 = pneg %p43
    %p50 = scmp.eq.s32.totalorder %s13, 1
    %p51 = por %p49, %p50
    %p52 = scmp.ne.s32.totalorder %s44, %s47
    %p53 = scmp.eq.s32.totalorder %s13, 0
    %p54 = por %p52, %p53
    %p55 = scmp.ne.s32.totalorder %s44, %s47
    %p56 = scmp.eq.s32.totalorder %s18, 1
    %p57 = por %p55, %p56
    %p58 = scmp.ne.s32.totalorder %s47, %s48
    %p59 = scmp.eq.s32.totalorder %s18, 0
    %p60 = por %p58, %p59
    %p61 = scmp.ne.s32.totalorder %s47, %s48
    %p62 = scmp.eq.s32.totalorder %s19, 1
    %p63 = por %p61, %p62
    %p65 = scmp.ne.s32.totalorder %s48, %s64
    %p66 = scmp.eq.s32.totalorder %s19, 0
    %p67 = por %p65, %p66
    %s68 = ssub.s32 %s20, %s39
    %s69 = ssub.s32 %s22, %s31
    %s70 = sor.u32 %s68, %s69
    %p71 = scmp.eq.s32.totalorder %s70, 0
    %s73 = sadd.s32 %s72, 1
    %s74 = scalar_select %p71, %s72, %s73
    %p77 = pneg %p71
    %p78 = scmp.eq.s32.totalorder %s13, 1
    %p79 = por %p77, %p78
    %p80 = scmp.ne.s32.totalorder %s72, %s75
    %p81 = scmp.eq.s32.totalorder %s13, 0
    %p82 = por %p80, %p81
    %p83 = scmp.ne.s32.totalorder %s72, %s75
    %p84 = scmp.eq.s32.totalorder %s18, 1
    %p85 = por %p83, %p84
    %p86 = scmp.ne.s32.totalorder %s75, %s76
    %p87 = scmp.eq.s32.totalorder %s18, 0
    %p88 = por %p86, %p87
    %p89 = scmp.ne.s32.totalorder %s75, %s76
    %p90 = scmp.eq.s32.totalorder %s19, 1
    %p91 = por %p89, %p90
    %p93 = scmp.ne.s32.totalorder %s76, %s92
    %p94 = scmp.eq.s32.totalorder %s19, 0
    %p95 = por %p93, %p94
    %s96 = ssub.s32 %s20, %s39
    %s97 = ssub.s32 %s22, %s31
    %s98 = sor.u32 %s96, %s97
    %p99 = scmp.eq.s32.totalorder %s98, 0
    %s101 = sadd.s32 %s100, 1
    %s102 = scalar_select %p99, %s100, %s101
    %p105 = pneg %p99
    %p106 = scmp.eq.s32.totalorder %s13, 1
    %p107 = por %p105, %p106
    %p108 = scmp.ne.s32.totalorder %s100, %s103
    %p109 = scmp.eq.s32.totalorder %s13, 0
    %p110 = por %p108, %p109
    %p111 = scmp.ne.s32.totalorder %s100, %s103
    %p112 = scmp.eq.s32.totalorder %s18, 1
    %p113 = por %p111, %p112
    %p114 = scmp.ne.s32.totalorder %s103, %s104
    %p115 = scmp.eq.s32.totalorder %s18, 0
    %p116 = por %p114, %p115
    %p117 = scmp.ne.s32.totalorder %s103, %s104
    %p118 = scmp.eq.s32.totalorder %s19, 1
    %p119 = por %p117, %p118
    %p121 = scmp.ne.s32.totalorder %s104, %s120
    %p122 = scmp.eq.s32.totalorder %s19, 0
    %p123 = por %p121, %p122
    %s124 = ssub.s32 %s22, %s31
    %s125 = ssub.s32 %s21, %s35
    %s126 = sor.u32 %s124, %s125
    %p127 = scmp.eq.s32.totalorder %s126, 0
    %s129 = sadd.s32 %s128, 1
    %s130 = scalar_select %p127, %s128, %s129
    %p133 = pneg %p127
    %p134 = scmp.eq.s32.totalorder %s13, 1
    %p135 = por %p133, %p134
    %p136 = scmp.ne.s32.totalorder %s128, %s131
    %p137 = scmp.eq.s32.totalorder %s13, 0
    %p138 = por %p136, %p137
    %p139 = scmp.ne.s32.totalorder %s128, %s131
    %p140 = scmp.eq.s32.totalorder %s18, 1
    %p141 = por %p139, %p140
    %p142 = scmp.ne.s32.totalorder %s131, %s132
    %p143 = scmp.eq.s32.totalorder %s18, 0
    %p144 = por %p142, %p143
    %p145 = scmp.ne.s32.totalorder %s131, %s132
    %p146 = scmp.eq.s32.totalorder %s19, 1
    %p147 = por %p145, %p146
    %p149 = scmp.ne.s32.totalorder %s132, %s148
    %p150 = scmp.eq.s32.totalorder %s19, 0
    %p151 = por %p149, %p150
    %s152 = ssub.s32 %s20, %s39
    %s153 = ssub.s32 %s21, %s35
    %s154 = sor.u32 %s152, %s153
    %p155 = scmp.eq.s32.totalorder %s154, 0
    %s157 = sadd.s32 %s156, 1
    %s158 = scalar_select %p155, %s156, %s157
    %p161 = pneg %p155
    %p162 = scmp.eq.s32.totalorder %s13, 1
    %p163 = por %p161, %p162
    %p164 = scmp.ne.s32.totalorder %s156, %s159
    %p165 = scmp.eq.s32.totalorder %s13, 0
    %p166 = por %p164, %p165
    %p167 = scmp.ne.s32.totalorder %s156, %s159
    %p168 = scmp.eq.s32.totalorder %s18, 1
    %p169 = por %p167, %p168
    %p170 = scmp.ne.s32.totalorder %s159, %s160
    %p171 = scmp.eq.s32.totalorder %s18, 0
    %p172 = por %p170, %p171
    %p173 = scmp.ne.s32.totalorder %s159, %s160
    %p174 = scmp.eq.s32.totalorder %s19, 1
    %p175 = por %p173, %p174
    %p177 = scmp.ne.s32.totalorder %s160, %s176
    %p178 = scmp.eq.s32.totalorder %s19, 0
    %p179 = por %p177, %p178
    %s180 = ssub.s32 %s20, %s39
    %s181 = ssub.s32 %s21, %s35
    %s182 = sor.u32 %s180, %s181
    %p183 = scmp.eq.s32.totalorder %s182, 0
    %s185 = sadd.s32 %s184, 1
    %s186 = scalar_select %p183, %s184, %s185
    %p189 = pneg %p183
    %p190 = scmp.eq.s32.totalorder %s13, 1
    %p191 = por %p189, %p190
    %p192 = scmp.ne.s32.totalorder %s184, %s187
    %p193 = scmp.eq.s32.totalorder %s13, 0
    %p194 = por %p192, %p193
    %p195 = scmp.ne.s32.totalorder %s184, %s187
    %p196 = scmp.eq.s32.totalorder %s18, 1
    %p197 = por %p195, %p196
    %p198 = scmp.ne.s32.totalorder %s187, %s188
    %p199 = scmp.eq.s32.totalorder %s18, 0
    %p200 = por %p198, %p199
    %p201 = scmp.ne.s32.totalorder %s187, %s188
    %p202 = scmp.eq.s32.totalorder %s19, 1
    %p203 = por %p201, %p202
    %p205 = scmp.ne.s32.totalorder %s188, %s204
    %p206 = scmp.eq.s32.totalorder %s19, 0
    %p207 = por %p205, %p206
    %s208 = ssub.s32 %s20, %s39
    %s209 = ssub.s32 %s21, %s35
    %s210 = sor.u32 %s208, %s209
    %p211 = scmp.eq.s32.totalorder %s210, 0
    %s213 = sadd.s32 %s212, 1
    %s214 = scalar_select %p211, %s212, %s213
    %p217 = pneg %p211
    %p218 = scmp.eq.s32.totalorder %s13, 1
    %p219 = por %p217, %p218
    %p220 = scmp.ne.s32.totalorder %s212, %s215
    %p221 = scmp.eq.s32.totalorder %s13, 0
    %p222 = por %p220, %p221
    %p223 = scmp.ne.s32.totalorder %s212, %s215
    %p224 = scmp.eq.s32.totalorder %s18, 1
    %p225 = por %p223, %p224
    %p226 = scmp.ne.s32.totalorder %s215, %s216
    %p227 = scmp.eq.s32.totalorder %s18, 0
    %p228 = por %p226, %p227
    %p229 = scmp.ne.s32.totalorder %s215, %s216
    %p230 = scmp.eq.s32.totalorder %s19, 1
    %p231 = por %p229, %p230
    %p233 = scmp.ne.s32.totalorder %s216, %s232
    %p234 = scmp.eq.s32.totalorder %s19, 0
    %p235 = por %p233, %p234
    %p236 = scmp.le.s32.totalorder 1, %s13
    %p237 = scmp.lt.s32.totalorder %s13, 3
    %p238 = pnand %p236, %p237
    %p239 = pneg %p238
    // Predicated region
    $region9: #{bottleneck_forward.5} parent=5 // pred_check
      _
    $region10: #{bottleneck_forward.5} parent=5 // pred_check_branch
      %241 = sbr.rel (%p238) target = $region12
    $region11: #{bottleneck_forward.5} parent=5 // pred_region
      %s242 = ssub.s32 %s13, 1
      // Predicated region
      $region13: #{bottleneck_forward.5} parent=11 // pred_check
        %p243 = pneg %p144
      $region14: #{bottleneck_forward.5} parent=11 // pred_check_branch
        %245 = sbr.rel (%p243) target = $region16
      $region15: #{bottleneck_forward.5} parent=11 // pred_region
        %s246 = smul.u32 16, %s25
        %p247 = scmp.lt.s32.totalorder %s246, 15
        %s248 = scalar_select %p247, %s246, 15
        %p249 = scmp.lt.s32.totalorder %s24, 0
        %s250 = scalar_select %p249, %s24, 0
        %s251 = sadd.s32 %s250, %s248
        %s252 = smul.addr %s251, 4
        %s253 = scalar_lea.vmem %s3, %s252
        %s254 = smul.u32 16, %s25
      $region16: #{bottleneck_forward.5} parent=11 // pred_fallthru
        _
    $region12: #{bottleneck_forward.5} parent=5 // pred_fallthru
      _
    %p255 = scmp.lt.s32.totalorder %s13, 2
    // Predicated region
    $region17: #{bottleneck_forward.5} parent=5 // pred_check
      %p256 = pneg %p255
    $region18: #{bottleneck_forward.5} parent=5 // pred_check_branch
      %258 = sbr.rel (%p256) target = $region20
    $region19: #{bottleneck_forward.5} parent=5 // pred_region
      // Predicated region
      $region21: #{bottleneck_forward.5} parent=19 // pred_check
        %p259 = pneg %p54
      $region22: #{bottleneck_forward.5} parent=19 // pred_check_branch
        %261 = sbr.rel (%p259) target = $region24
      $region23: #{bottleneck_forward.5} parent=19 // pred_region
        %p262 = scmp.lt.s32.totalorder %s20, 1
        %s263 = scalar_select %p262, %s20, 1
        %p264 = scmp.lt.s32.totalorder %s22, 0
        %s265 = scalar_select %p264, %s22, 0
        %s266 = smul.addr %s263, 32
        %s267 = sadd.s32 %s265, %s266
        %s268 = smul.addr %s267, 4
        %s269 = scalar_lea.vmem %s0, %s268
      $region24: #{bottleneck_forward.5} parent=19 // pred_fallthru
        _
      // Predicated region
      $region25: #{bottleneck_forward.5} parent=19 // pred_check
        %p270 = pneg %p82
      $region26: #{bottleneck_forward.5} parent=19 // pred_check_branch
        %272 = sbr.rel (%p270) target = $region28
      $region27: #{bottleneck_forward.5} parent=19 // pred_region
        %p273 = scmp.lt.s32.totalorder %s20, 1
        %s274 = scalar_select %p273, %s20, 1
        %p275 = scmp.lt.s32.totalorder %s22, 0
        %s276 = scalar_select %p275, %s22, 0
        %s277 = sadd.s32 %s276, %s274
        %s278 = scalar_lea.vmem %s1, %s277
      $region28: #{bottleneck_forward.5} parent=19 // pred_fallthru
        _
      // Predicated region
      $region29: #{bottleneck_forward.5} parent=19 // pred_check
        %p279 = pneg %p110
      $region30: #{bottleneck_forward.5} parent=19 // pred_check_branch
        %281 = sbr.rel (%p279) target = $region32
      $region31: #{bottleneck_forward.5} parent=19 // pred_region
        %p282 = scmp.lt.s32.totalorder %s20, 1
        %s283 = scalar_select %p282, %s20, 1
        %p284 = scmp.lt.s32.totalorder %s22, 0
        %s285 = scalar_select %p284, %s22, 0
        %s286 = sadd.s32 %s285, %s283
        %s287 = scalar_lea.vmem %s2, %s286
      $region32: #{bottleneck_forward.5} parent=19 // pred_fallthru
        _
    $region20: #{bottleneck_forward.5} parent=5 // pred_fallthru
      _
    %p288 = scmp.le.s32.totalorder 1, %s13
    %p289 = scmp.lt.s32.totalorder %s13, 3
    %p290 = pnand %p288, %p289
    %p291 = pneg %p290
    // Predicated region
    $region33: #{bottleneck_forward.5} parent=5 // pred_check
      _
    $region34: #{bottleneck_forward.5} parent=5 // pred_check_branch
      %293 = sbr.rel (%p290) target = $region36
    $region35: #{bottleneck_forward.5} parent=5 // pred_region
      %s294 = ssub.s32 %s13, 1
      %p295 = scmp.lt.s32.totalorder %s23, 1
      %s296 = scalar_select %p295, %s23, 1
      %p297 = scmp.lt.s32.totalorder %s25, 0
      %s298 = scalar_select %p297, %s25, 0
      %s299 = smul.addr %s296, 32
      %s300 = sadd.s32 %s298, %s299
      %s301 = smul.addr %s300, 4
      %s302 = scalar_lea.vmem %s0, %s301
      %p303 = pneg %p60
      %p304 = pneg %p57
      %p305 = scmp.lt.s32.totalorder %s23, 1
      %s306 = scalar_select %p305, %s23, 1
      %p307 = scmp.lt.s32.totalorder %s25, 0
      %s308 = scalar_select %p307, %s25, 0
      %s309 = sadd.s32 %s308, %s306
      %s310 = scalar_lea.vmem %s1, %s309
      %p311 = pneg %p88
      %p312 = pneg %p85
      %p313 = scmp.lt.s32.totalorder %s23, 1
      %s314 = scalar_select %p313, %s23, 1
      %p315 = scmp.lt.s32.totalorder %s25, 0
      %s316 = scalar_select %p315, %s25, 0
      %s317 = sadd.s32 %s316, %s314
      %s318 = scalar_lea.vmem %s2, %s317
      %p319 = pneg %p116
      %p320 = pneg %p113
      %s321 = smul.u32 16, %s25
      %p322 = scmp.lt.s32.totalorder %s321, 15
      %s323 = scalar_select %p322, %s321, 15
      %p324 = scmp.lt.s32.totalorder %s24, 0
      %s325 = scalar_select %p324, %s24, 0
      %s326 = sadd.s32 %s325, %s323
      %s327 = smul.addr %s326, 4
      %s328 = scalar_lea.vmem %s3, %s327
      %p329 = pneg %p144
      %p330 = pneg %p141
      %p331 = pneg %p172
      %p332 = pneg %p169
      %p333 = scmp.lt.s32.totalorder %s23, 1
      %s334 = scalar_select %p333, %s23, 1
      %p335 = scmp.lt.s32.totalorder %s24, 0
      %s336 = scalar_select %p335, %s24, 0
      %s337 = smul.addr %s334, 32
      %s338 = sadd.s32 %s336, %s337
      %s339 = smul.addr %s338, 4
      %s340 = scalar_lea.vmem %s4, %s339
      %p341 = pneg %p200
      %p342 = pneg %p197
      %p343 = scmp.lt.s32.totalorder %s23, 1
      %s344 = scalar_select %p343, %s23, 1
      %p345 = scmp.lt.s32.totalorder %s24, 0
      %s346 = scalar_select %p345, %s24, 0
      %s347 = sadd.s32 %s346, %s344
      %s348 = scalar_lea.vmem %s5, %s347
      %p349 = pneg %p228
      %p350 = pneg %p225
      %p351 = scmp.lt.s32.totalorder %s23, 1
      %s352 = scalar_select %p351, %s23, 1
      %p353 = scmp.lt.s32.totalorder %s24, 0
      %s354 = scalar_select %p353, %s24, 0
      %s355 = sadd.s32 %s354, %s352
      %s356 = scalar_lea.vmem %s6, %s355
      %p357 = scmp.lt.s32.totalorder %s23, 1
      %s358 = scalar_select %p357, %s23, 1
      %p359 = scmp.lt.s32.totalorder %s25, 0
      %s360 = scalar_select %p359, %s25, 0
      %s361 = smul.addr %s358, 32
      %s362 = sadd.s32 %s360, %s361
      %s363 = smul.addr %s362, 4
      %s364 = scalar_lea.vmem %s0, %s363
      %p365 = scmp.lt.s32.totalorder %s23, 1
      %s366 = scalar_select %p365, %s23, 1
      %p367 = scmp.lt.s32.totalorder %s25, 0
      %s368 = scalar_select %p367, %s25, 0
      %s369 = sadd.s32 %s368, %s366
      %s370 = scalar_lea.vmem %s1, %s369
      %p371 = scmp.lt.s32.totalorder %s23, 1
      %s372 = scalar_select %p371, %s23, 1
      %p373 = scmp.lt.s32.totalorder %s25, 0
      %s374 = scalar_select %p373, %s25, 0
      %s375 = sadd.s32 %s374, %s372
      %s376 = scalar_lea.vmem %s2, %s375
      %s377 = smul.u32 16, %s25
      %p378 = scmp.lt.s32.totalorder %s377, 15
      %s379 = scalar_select %p378, %s377, 15
      %p380 = scmp.lt.s32.totalorder %s24, 0
      %s381 = scalar_select %p380, %s24, 0
      %s382 = sadd.s32 %s381, %s379
      %s383 = smul.addr %s382, 4
      %s384 = scalar_lea.vmem %s3, %s383
      %s385 = smul.u32 16, %s25
      %p386 = scmp.lt.s32.totalorder %s23, 1
      %s387 = scalar_select %p386, %s23, 1
      %p388 = scmp.lt.s32.totalorder %s24, 0
      %s389 = scalar_select %p388, %s24, 0
      %s390 = smul.addr %s387, 32
      %s391 = sadd.s32 %s389, %s390
      %s392 = smul.addr %s391, 4
      %s393 = scalar_lea.vmem %s4, %s392
      %p394 = scmp.lt.s32.totalorder %s23, 1
      %s395 = scalar_select %p394, %s23, 1
      %p396 = scmp.lt.s32.totalorder %s24, 0
      %s397 = scalar_select %p396, %s24, 0
      %s398 = sadd.s32 %s397, %s395
      %s399 = scalar_lea.vmem %s5, %s398
      %p400 = scmp.lt.s32.totalorder %s23, 1
      %s401 = scalar_select %p400, %s23, 1
      %p402 = scmp.lt.s32.totalorder %s24, 0
      %s403 = scalar_select %p402, %s24, 0
      %s404 = sadd.s32 %s403, %s401
      %s405 = scalar_lea.vmem %s6, %s404
      %p407 = scmp.eq.s32.totalorder %s25, 0
      // Predicated region
      $region37: #{bottleneck_forward.5} parent=35 // pred_check
        %p408 = pneg %p407
      $region38: #{bottleneck_forward.5} parent=35 // pred_check_branch
        %410 = sbr.rel (%p408) target = $region40
      $region39: #{bottleneck_forward.5} parent=35 // pred_region
        %411 = vst [vmem:[#allocation2] sm:$0xf] 0
        %412 = vst [vmem:[#allocation2 + $0x4] sm:$0xf] 0
        %413 = vst [vmem:[#allocation2 + $0x8] sm:$0x1] 0
        %414 = vst [vmem:[#allocation2 + $0xc] sm:$0xf] 0
        %415 = vst [vmem:[#allocation2 + $0x10] sm:$0xf] 0
        %416 = vst [vmem:[#allocation2 + $0x14] sm:$0x1] 0
        %417 = vst [vmem:[#allocation2 + $0x18] sm:$0xf] 0
        %418 = vst [vmem:[#allocation2 + $0x1c] sm:$0xf] 0
        %419 = vst [vmem:[#allocation2 + $0x20] sm:$0x1] 0
        %420 = vst [vmem:[#allocation2 + $0x24] sm:$0xf] 0
        %421 = vst [vmem:[#allocation2 + $0x28] sm:$0xf] 0
        %422 = vst [vmem:[#allocation2 + $0x2c] sm:$0x1] 0
        %423 = vst [vmem:[#allocation2 + $0x30] sm:$0xf] 0
        %424 = vst [vmem:[#allocation2 + $0x34] sm:$0xf] 0
        %425 = vst [vmem:[#allocation2 + $0x38] sm:$0x1] 0
        %426 = vst [vmem:[#allocation2 + $0x3c] sm:$0xf] 0
        %427 = vst [vmem:[#allocation2 + $0x40] sm:$0xf] 0
        %428 = vst [vmem:[#allocation2 + $0x44] sm:$0x1] 0
        %429 = vst [vmem:[#allocation2 + $0x48] sm:$0xf] 0
        %430 = vst [vmem:[#allocation2 + $0x4c] sm:$0xf] 0
        %431 = vst [vmem:[#allocation2 + $0x50] sm:$0x1] 0
        %432 = vst [vmem:[#allocation2 + $0x54] sm:$0xf] 0
        %433 = vst [vmem:[#allocation2 + $0x58] sm:$0xf] 0
        %434 = vst [vmem:[#allocation2 + $0x5c] sm:$0x1] 0
        %435 = vst [vmem:[#allocation2 + $0x60] sm:$0xf] 0
        %436 = vst [vmem:[#allocation2 + $0x64] sm:$0xf] 0
        %437 = vst [vmem:[#allocation2 + $0x68] sm:$0x1] 0
        %438 = vst [vmem:[#allocation2 + $0x6c] sm:$0xf] 0
        %439 = vst [vmem:[#allocation2 + $0x70] sm:$0xf] 0
        %440 = vst [vmem:[#allocation2 + $0x74] sm:$0x1] 0
        %441 = vst [vmem:[#allocation2 + $0x78] sm:$0xf] 0
        %442 = vst [vmem:[#allocation2 + $0x7c] sm:$0xf] 0
        %443 = vst [vmem:[#allocation2 + $0x80] sm:$0x1] 0
        %444 = vst [vmem:[#allocation2 + $0x84] sm:$0xf] 0
        %445 = vst [vmem:[#allocation2 + $0x88] sm:$0xf] 0
        %446 = vst [vmem:[#allocation2 + $0x8c] sm:$0x1] 0
        %447 = vst [vmem:[#allocation2 + $0x90] sm:$0xf] 0
        %448 = vst [vmem:[#allocation2 + $0x94] sm:$0xf] 0
        %449 = vst [vmem:[#allocation2 + $0x98] sm:$0x1] 0
        %450 = vst [vmem:[#allocation2 + $0x9c] sm:$0xf] 0
        %451 = vst [vmem:[#allocation2 + $0xa0] sm:$0xf] 0
        %452 = vst [vmem:[#allocation2 + $0xa4] sm:$0x1] 0
        %453 = vst [vmem:[#allocation2 + $0xa8] sm:$0xf] 0
        %454 = vst [vmem:[#allocation2 + $0xac] sm:$0xf] 0
        %455 = vst [vmem:[#allocation2 + $0xb0] sm:$0x1] 0
        %456 = vst [vmem:[#allocation2 + $0xb4] sm:$0xf] 0
        %457 = vst [vmem:[#allocation2 + $0xb8] sm:$0xf] 0
        %458 = vst [vmem:[#allocation2 + $0xbc] sm:$0x1] 0
        %459 = vst [vmem:[#allocation2 + $0xc0] sm:$0xf] 0
        %460 = vst [vmem:[#allocation2 + $0xc4] sm:$0xf] 0
        %461 = vst [vmem:[#allocation2 + $0xc8] sm:$0x1] 0
        %462 = vst [vmem:[#allocation2 + $0xcc] sm:$0xf] 0
        %463 = vst [vmem:[#allocation2 + $0xd0] sm:$0xf] 0
        %464 = vst [vmem:[#allocation2 + $0xd4] sm:$0x1] 0
        %465 = vst [vmem:[#allocation3] sm:$0xff] 0.0
        %466 = vst [vmem:[#allocation3 + $0x8] sm:$0xff] 0.0
        %467 = vst [vmem:[#allocation3 + $0x10] sm:$0xff] 0.0
        %468 = vst [vmem:[#allocation3 + $0x18] sm:$0xff] 0.0
        %469 = vst [vmem:[#allocation3 + $0x20] sm:$0xff] 0.0
        %470 = vst [vmem:[#allocation3 + $0x28] sm:$0xff] 0.0
        %471 = vst [vmem:[#allocation3 + $0x30] sm:$0xff] 0.0
        %472 = vst [vmem:[#allocation3 + $0x38] sm:$0xff] 0.0
        %473 = vst [vmem:[#allocation3 + $0x40] sm:$0xff] 0.0
        %474 = vst [vmem:[#allocation3 + $0x48] sm:$0xff] 0.0
        %475 = vst [vmem:[#allocation3 + $0x50] sm:$0xff] 0.0
        %476 = vst [vmem:[#allocation3 + $0x58] sm:$0xff] 0.0
        %477 = vst [vmem:[#allocation3 + $0x60] sm:$0xff] 0.0
        %478 = vst [vmem:[#allocation3 + $0x68] sm:$0xff] 0.0
        %479 = vst [vmem:[#allocation3 + $0x70] sm:$0xff] 0.0
        %480 = vst [vmem:[#allocation3 + $0x78] sm:$0xff] 0.0
        %481 = vst [vmem:[#allocation3 + $0x80] sm:$0xff] 0.0
        %482 = vst [vmem:[#allocation3 + $0x88] sm:$0xff] 0.0
        %483 = vst [vmem:[#allocation3 + $0x90] sm:$0xff] 0.0
        %484 = vst [vmem:[#allocation3 + $0x98] sm:$0xff] 0.0
        %485 = vst [vmem:[#allocation3 + $0xa0] sm:$0xff] 0.0
        %486 = vst [vmem:[#allocation3 + $0xa8] sm:$0xff] 0.0
        %487 = vst [vmem:[#allocation3 + $0xb0] sm:$0xff] 0.0
        %488 = vst [vmem:[#allocation3 + $0xb8] sm:$0xff] 0.0
        %489 = vst [vmem:[#allocation3 + $0xc0] sm:$0xff] 0.0
        %490 = vst [vmem:[#allocation3 + $0xc8] sm:$0xff] 0.0
        %491 = vst [vmem:[#allocation3 + $0xd0] sm:$0xff] 0.0
        %492 = vst [vmem:[#allocation3 + $0xd8] sm:$0xff] 0.0
        %493 = vst [vmem:[#allocation3 + $0xe0] sm:$0xff] 0.0
        %494 = vst [vmem:[#allocation3 + $0xe8] sm:$0xff] 0.0
        %495 = vst [vmem:[#allocation3 + $0xf0] sm:$0xff] 0.0
        %496 = vst [vmem:[#allocation3 + $0xf8] sm:$0xff] 0.0
      $region40: #{bottleneck_forward.5} parent=35 // pred_fallthru
        _
      %v497 = vld [vmem:[%s364] sm:$0xf]
      %v498 = vld [vmem:[%s364 + $0x4] sm:$0xf]
      %v499 = vld [vmem:[%s364 + $0x8] sm:$0xf]
      %v500 = vld [vmem:[%s364 + $0xc] sm:$0xf]
      %v501 = vld [vmem:[%s364 + $0x10] sm:$0xf]
      %v502 = vld [vmem:[%s364 + $0x14] sm:$0xf]
      %v503 = vld [vmem:[%s364 + $0x18] sm:$0xf]
      %v504 = vld [vmem:[%s364 + $0x1c] sm:$0xf]
      %v505 = vld [vmem:[%s364 + $0x20] sm:$0xf]
      %v506 = vld [vmem:[%s364 + $0x24] sm:$0xf]
      %v507 = vld [vmem:[%s364 + $0x28] sm:$0xf]
      %v508 = vld [vmem:[%s364 + $0x2c] sm:$0xf]
      %v509 = vld [vmem:[%s364 + $0x30] sm:$0xf]
      %v510 = vld [vmem:[%s364 + $0x34] sm:$0xf]
      %v511 = vld [vmem:[%s364 + $0x38] sm:$0xf]
      %v512 = vld [vmem:[%s364 + $0x3c] sm:$0xf]
      %v513 = vld [vmem:[%s364 + $0x40] sm:$0xf]
      %v514 = vld [vmem:[%s364 + $0x44] sm:$0xf]
      %v515 = vld [vmem:[%s364 + $0x48] sm:$0xf]
      %v516 = vld [vmem:[%s364 + $0x4c] sm:$0xf]
      %v517 = vld [vmem:[%s364 + $0x50] sm:$0xf]
      %v518 = vld [vmem:[%s364 + $0x54] sm:$0xf]
      %v519 = vld [vmem:[%s364 + $0x58] sm:$0xf]
      %v520 = vld [vmem:[%s364 + $0x5c] sm:$0xf]
      %v521 = vld [vmem:[%s364 + $0x60] sm:$0xf]
      %v522 = vld [vmem:[%s364 + $0x64] sm:$0xf]
      %v523 = vld [vmem:[%s364 + $0x68] sm:$0xf]
      %v524 = vld [vmem:[%s364 + $0x6c] sm:$0xf]
      %v525 = vld [vmem:[%s364 + $0x70] sm:$0xf]
      %v526 = vld [vmem:[%s364 + $0x74] sm:$0xf]
      %v527 = vld [vmem:[%s364 + $0x78] sm:$0xf]
      %v528 = vld [vmem:[%s364 + $0x7c] sm:$0xf]
      %v529 = vunpack.c.l.bf16 %v497
      %v530 = vunpack.c.l.bf16 %v498
      %v531 = vunpack.c.l.bf16 %v499
      %v532 = vunpack.c.l.bf16 %v500
      %v533 = vunpack.c.l.bf16 %v501
      %v534 = vunpack.c.l.bf16 %v502
      %v535 = vunpack.c.l.bf16 %v503
      %v536 = vunpack.c.l.bf16 %v504
      %v537 = vunpack.c.l.bf16 %v505
      %v538 = vunpack.c.l.bf16 %v506
      %v539 = vunpack.c.l.bf16 %v507
      %v540 = vunpack.c.l.bf16 %v508
      %v541 = vunpack.c.l.bf16 %v509
      %v542 = vunpack.c.l.bf16 %v510
      %v543 = vunpack.c.l.bf16 %v511
      %v544 = vunpack.c.l.bf16 %v512
      %v545 = vunpack.c.l.bf16 %v513
      %v546 = vunpack.c.l.bf16 %v514
      %v547 = vunpack.c.l.bf16 %v515
      %v548 = vunpack.c.l.bf16 %v516
      %v549 = vunpack.c.l.bf16 %v517
      %v550 = vunpack.c.l.bf16 %v518
      %v551 = vunpack.c.l.bf16 %v519
      %v552 = vunpack.c.l.bf16 %v520
      %v553 = vunpack.c.l.bf16 %v521
      %v554 = vunpack.c.l.bf16 %v522
      %v555 = vunpack.c.l.bf16 %v523
      %v556 = vunpack.c.l.bf16 %v524
      %v557 = vunpack.c.l.bf16 %v525
      %v558 = vunpack.c.l.bf16 %v526
      %v559 = vunpack.c.l.bf16 %v527
      %v560 = vunpack.c.l.bf16 %v528
      %v561 = vld [vmem:[%s370] sm:$0x1]
      %v563 = vlaneseq
      %v564 = vshrl.u32 %v563, 7
      %v565 = vsub.s32 0, %v564
      %v566 = vrot.slane %v561, %v565
      %v568 = vmul.f32 %v529, %v566
      %v569 = vmul.f32 %v530, %v566
      %v570 = vmul.f32 %v531, %v566
      %v571 = vmul.f32 %v532, %v566
      %v572 = vmul.f32 %v533, %v566
      %v573 = vmul.f32 %v534, %v566
      %v574 = vmul.f32 %v535, %v566
      %v575 = vmul.f32 %v536, %v566
      %v576 = vmul.f32 %v537, %v566
      %v577 = vmul.f32 %v538, %v566
      %v578 = vmul.f32 %v539, %v566
      %v579 = vmul.f32 %v540, %v566
      %v580 = vmul.f32 %v541, %v566
      %v581 = vmul.f32 %v542, %v566
      %v582 = vmul.f32 %v543, %v566
      %v583 = vmul.f32 %v544, %v566
      %v584 = vmul.f32 %v545, %v566
      %v585 = vmul.f32 %v546, %v566
      %v586 = vmul.f32 %v547, %v566
      %v587 = vmul.f32 %v548, %v566
      %v588 = vmul.f32 %v549, %v566
      %v589 = vmul.f32 %v550, %v566
      %v590 = vmul.f32 %v551, %v566
      %v591 = vmul.f32 %v552, %v566
      %v592 = vmul.f32 %v553, %v566
      %v593 = vmul.f32 %v554, %v566
      %v594 = vmul.f32 %v555, %v566
      %v595 = vmul.f32 %v556, %v566
      %v596 = vmul.f32 %v557, %v566
      %v597 = vmul.f32 %v558, %v566
      %v598 = vmul.f32 %v559, %v566
      %v599 = vmul.f32 %v560, %v566
      %v600 = vld [vmem:[%s376] sm:$0x1]
      %v602 = vlaneseq
      %v603 = vshrl.u32 %v602, 7
      %v604 = vsub.s32 0, %v603
      %v605 = vrot.slane %v600, %v604
      %v607 = vadd.f32 %v568, %v605
      %v608 = vadd.f32 %v569, %v605
      %v609 = vadd.f32 %v570, %v605
      %v610 = vadd.f32 %v571, %v605
      %v611 = vadd.f32 %v572, %v605
      %v612 = vadd.f32 %v573, %v605
      %v613 = vadd.f32 %v574, %v605
      %v614 = vadd.f32 %v575, %v605
      %v615 = vadd.f32 %v576, %v605
      %v616 = vadd.f32 %v577, %v605
      %v617 = vadd.f32 %v578, %v605
      %v618 = vadd.f32 %v579, %v605
      %v619 = vadd.f32 %v580, %v605
      %v620 = vadd.f32 %v581, %v605
      %v621 = vadd.f32 %v582, %v605
      %v622 = vadd.f32 %v583, %v605
      %v623 = vadd.f32 %v584, %v605
      %v624 = vadd.f32 %v585, %v605
      %v625 = vadd.f32 %v586, %v605
      %v626 = vadd.f32 %v587, %v605
      %v627 = vadd.f32 %v588, %v605
      %v628 = vadd.f32 %v589, %v605
      %v629 = vadd.f32 %v590, %v605
      %v630 = vadd.f32 %v591, %v605
      %v631 = vadd.f32 %v592, %v605
      %v632 = vadd.f32 %v593, %v605
      %v633 = vadd.f32 %v594, %v605
      %v634 = vadd.f32 %v595, %v605
      %v635 = vadd.f32 %v596, %v605
      %v636 = vadd.f32 %v597, %v605
      %v637 = vadd.f32 %v598, %v605
      %v638 = vadd.f32 %v599, %v605
      %v639 = vmax.f32 %v607, 0.0
      %v640 = vmax.f32 %v608, 0.0
      %v641 = vmax.f32 %v609, 0.0
      %v642 = vmax.f32 %v610, 0.0
      %v643 = vmax.f32 %v611, 0.0
      %v644 = vmax.f32 %v612, 0.0
      %v645 = vmax.f32 %v613, 0.0
      %v646 = vmax.f32 %v614, 0.0
      %v647 = vmax.f32 %v615, 0.0
      %v648 = vmax.f32 %v616, 0.0
      %v649 = vmax.f32 %v617, 0.0
      %v650 = vmax.f32 %v618, 0.0
      %v651 = vmax.f32 %v619, 0.0
      %v652 = vmax.f32 %v620, 0.0
      %v653 = vmax.f32 %v621, 0.0
      %v654 = vmax.f32 %v622, 0.0
      %v655 = vmax.f32 %v623, 0.0
      %v656 = vmax.f32 %v624, 0.0
      %v657 = vmax.f32 %v625, 0.0
      %v658 = vmax.f32 %v626, 0.0
      %v659 = vmax.f32 %v627, 0.0
      %v660 = vmax.f32 %v628, 0.0
      %v661 = vmax.f32 %v629, 0.0
      %v662 = vmax.f32 %v630, 0.0
      %v663 = vmax.f32 %v631, 0.0
      %v664 = vmax.f32 %v632, 0.0
      %v665 = vmax.f32 %v633, 0.0
      %v666 = vmax.f32 %v634, 0.0
      %v667 = vmax.f32 %v635, 0.0
      %v668 = vmax.f32 %v636, 0.0
      %v669 = vmax.f32 %v637, 0.0
      %v670 = vmax.f32 %v638, 0.0
      %v671 = vpack.c.bf16 %v640, %v639
      %v672 = vpack.c.bf16 %v642, %v641
      %v673 = vpack.c.bf16 %v644, %v643
      %v674 = vpack.c.bf16 %v646, %v645
      %v675 = vpack.c.bf16 %v648, %v647
      %v676 = vpack.c.bf16 %v650, %v649
      %v677 = vpack.c.bf16 %v652, %v651
      %v678 = vpack.c.bf16 %v654, %v653
      %v679 = vpack.c.bf16 %v656, %v655
      %v680 = vpack.c.bf16 %v658, %v657
      %v681 = vpack.c.bf16 %v660, %v659
      %v682 = vpack.c.bf16 %v662, %v661
      %v683 = vpack.c.bf16 %v664, %v663
      %v684 = vpack.c.bf16 %v666, %v665
      %v685 = vpack.c.bf16 %v668, %v667
      %v686 = vpack.c.bf16 %v670, %v669
      %v703 = vunpack.c.l.b16 %v671
      %v704 = vunpack.c.h.b16 %v671
      %v705 = vunpack.c.l.b16 %v672
      %v706 = vunpack.c.h.b16 %v672
      %v707 = vunpack.c.l.b16 %v673
      %v708 = vunpack.c.h.b16 %v673
      %v709 = vunpack.c.l.b16 %v674
      %v710 = vunpack.c.h.b16 %v674
      %v711 = vunpack.c.l.b16 %v675
      %v712 = vunpack.c.h.b16 %v675
      %v713 = vunpack.c.l.b16 %v676
      %v714 = vunpack.c.h.b16 %v676
      %v715 = vunpack.c.l.b16 %v677
      %v716 = vunpack.c.h.b16 %v677
      %v717 = vunpack.c.l.b16 %v678
      %v718 = vunpack.c.h.b16 %v678
      %v719 = vunpack.c.l.b16 %v679
      %v720 = vunpack.c.h.b16 %v679
      %v721 = vunpack.c.l.b16 %v680
      %v722 = vunpack.c.h.b16 %v680
      %v723 = vunpack.c.l.b16 %v681
      %v724 = vunpack.c.h.b16 %v681
      %v725 = vunpack.c.l.b16 %v682
      %v726 = vunpack.c.h.b16 %v682
      %v727 = vunpack.c.l.b16 %v683
      %v728 = vunpack.c.h.b16 %v683
      %v729 = vunpack.c.l.b16 %v684
      %v730 = vunpack.c.h.b16 %v684
      %v731 = vunpack.c.l.b16 %v685
      %v732 = vunpack.c.h.b16 %v685
      %v733 = vunpack.c.l.b16 %v686
      %v734 = vunpack.c.h.b16 %v686
      %v735 = vpack.c.b16 %v703, %v703
      %v736 = vpack.c.b16 %v704, %v704
      %v737 = vpack.c.b16 %v705, %v705
      %v738 = vpack.c.b16 %v706, %v706
      %v739 = vpack.c.b16 %v707, %v707
      %v740 = vpack.c.b16 %v708, %v708
      %v741 = vpack.c.b16 %v709, %v709
      %v742 = vpack.c.b16 %v710, %v710
      %v743 = vpack.c.b16 %v711, %v711
      %v744 = vpack.c.b16 %v712, %v712
      %v745 = vpack.c.b16 %v713, %v713
      %v746 = vpack.c.b16 %v714, %v714
      %v747 = vpack.c.b16 %v715, %v715
      %v748 = vpack.c.b16 %v716, %v716
      %v749 = vpack.c.b16 %v717, %v717
      %v750 = vpack.c.b16 %v718, %v718
      %v751 = vpack.c.b16 %v719, %v719
      %v752 = vpack.c.b16 %v720, %v720
      %v753 = vpack.c.b16 %v721, %v721
      %v754 = vpack.c.b16 %v722, %v722
      %v755 = vpack.c.b16 %v723, %v723
      %v756 = vpack.c.b16 %v724, %v724
      %v757 = vpack.c.b16 %v725, %v725
      %v758 = vpack.c.b16 %v726, %v726
      %v759 = vpack.c.b16 %v727, %v727
      %v760 = vpack.c.b16 %v728, %v728
      %v761 = vpack.c.b16 %v729, %v729
      %v762 = vpack.c.b16 %v730, %v730
      %v763 = vpack.c.b16 %v731, %v731
      %v764 = vpack.c.b16 %v732, %v732
      %v765 = vpack.c.b16 %v733, %v733
      %v766 = vpack.c.b16 %v734, %v734
      %vm767 = vsmask.f32 256
      %vm768 = vsmask.f32 4368
      %vm769 = vmor %vm767, %vm768
      %v771 = vshrl.u32 %v735, 16
      %v773 = vrot.slane %v771, 7
      %v774 = vshll.u32 %v735, 16
      %v776 = vor.u32 %v773, %v774
      %v777 = vrot.slane %v773, 4
      %v779 = vshrl.u32 %v736, 16
      %v781 = vrot.slane %v779, 7
      %v782 = vshll.u32 %v736, 16
      %v784 = vor.u32 %v781, %v782
      %v785 = vsel %vm769, %v777, %v784
      %v786 = vrot.slane %v781, 4
      %v788 = vshrl.u32 %v737, 16
      %v790 = vrot.slane %v788, 7
      %v791 = vshll.u32 %v737, 16
      %v793 = vor.u32 %v790, %v791
      %v794 = vrot.slane %v790, 4
      %v796 = vshrl.u32 %v738, 16
      %v798 = vrot.slane %v796, 7
      %v799 = vshll.u32 %v738, 16
      %v801 = vor.u32 %v798, %v799
      %v802 = vsel %vm769, %v794, %v801
      %v803 = vrot.slane %v798, 4
      %v805 = vshrl.u32 %v739, 16
      %v807 = vrot.slane %v805, 7
      %v808 = vshll.u32 %v739, 16
      %v810 = vor.u32 %v807, %v808
      %v811 = vrot.slane %v807, 4
      %v813 = vshrl.u32 %v740, 16
      %v815 = vrot.slane %v813, 7
      %v816 = vshll.u32 %v740, 16
      %v818 = vor.u32 %v815, %v816
      %v819 = vsel %vm769, %v811, %v818
      %v820 = vrot.slane %v815, 4
      %v822 = vshrl.u32 %v741, 16
      %v824 = vrot.slane %v822, 7
      %v825 = vshll.u32 %v741, 16
      %v827 = vor.u32 %v824, %v825
      %v828 = vrot.slane %v824, 4
      %v830 = vshrl.u32 %v742, 16
      %v832 = vrot.slane %v830, 7
      %v833 = vshll.u32 %v742, 16
      %v835 = vor.u32 %v832, %v833
      %v836 = vsel %vm769, %v828, %v835
      %v837 = vrot.slane %v832, 4
      %v839 = vshrl.u32 %v743, 16
      %v841 = vrot.slane %v839, 7
      %v842 = vshll.u32 %v743, 16
      %v844 = vor.u32 %v841, %v842
      %v845 = vrot.slane %v841, 4
      %v847 = vshrl.u32 %v744, 16
      %v849 = vrot.slane %v847, 7
      %v850 = vshll.u32 %v744, 16
      %v852 = vor.u32 %v849, %v850
      %v853 = vsel %vm769, %v845, %v852
      %v854 = vrot.slane %v849, 4
      %v856 = vshrl.u32 %v745, 16
      %v858 = vrot.slane %v856, 7
      %v859 = vshll.u32 %v745, 16
      %v861 = vor.u32 %v858, %v859
      %v862 = vrot.slane %v858, 4
      %v864 = vshrl.u32 %v746, 16
      %v866 = vrot.slane %v864, 7
      %v867 = vshll.u32 %v746, 16
      %v869 = vor.u32 %v866, %v867
      %v870 = vsel %vm769, %v862, %v869
      %v871 = vrot.slane %v866, 4
      %v873 = vshrl.u32 %v747, 16
      %v875 = vrot.slane %v873, 7
      %v876 = vshll.u32 %v747, 16
      %v878 = vor.u32 %v875, %v876
      %v879 = vrot.slane %v875, 4
      %v881 = vshrl.u32 %v748, 16
      %v883 = vrot.slane %v881, 7
      %v884 = vshll.u32 %v748, 16
      %v886 = vor.u32 %v883, %v884
      %v887 = vsel %vm769, %v879, %v886
      %v888 = vrot.slane %v883, 4
      %v890 = vshrl.u32 %v749, 16
      %v892 = vrot.slane %v890, 7
      %v893 = vshll.u32 %v749, 16
      %v895 = vor.u32 %v892, %v893
      %v896 = vrot.slane %v892, 4
      %v898 = vshrl.u32 %v750, 16
      %v900 = vrot.slane %v898, 7
      %v901 = vshll.u32 %v750, 16
      %v903 = vor.u32 %v900, %v901
      %v904 = vsel %vm769, %v896, %v903
      %v905 = vrot.slane %v900, 4
      %v907 = vshrl.u32 %v751, 16
      %v909 = vrot.slane %v907, 7
      %v910 = vshll.u32 %v751, 16
      %v912 = vor.u32 %v909, %v910
      %v913 = vrot.slane %v909, 4
      %v915 = vshrl.u32 %v752, 16
      %v917 = vrot.slane %v915, 7
      %v918 = vshll.u32 %v752, 16
      %v920 = vor.u32 %v917, %v918
      %v921 = vsel %vm769, %v913, %v920
      %v922 = vrot.slane %v917, 4
      %v924 = vshrl.u32 %v753, 16
      %v926 = vrot.slane %v924, 7
      %v927 = vshll.u32 %v753, 16
      %v929 = vor.u32 %v926, %v927
      %v930 = vrot.slane %v926, 4
      %v932 = vshrl.u32 %v754, 16
      %v934 = vrot.slane %v932, 7
      %v935 = vshll.u32 %v754, 16
      %v937 = vor.u32 %v934, %v935
      %v938 = vsel %vm769, %v930, %v937
      %v939 = vrot.slane %v934, 4
      %v941 = vshrl.u32 %v755, 16
      %v943 = vrot.slane %v941, 7
      %v944 = vshll.u32 %v755, 16
      %v946 = vor.u32 %v943, %v944
      %v947 = vrot.slane %v943, 4
      %v949 = vshrl.u32 %v756, 16
      %v951 = vrot.slane %v949, 7
      %v952 = vshll.u32 %v756, 16
      %v954 = vor.u32 %v951, %v952
      %v955 = vsel %vm769, %v947, %v954
      %v956 = vrot.slane %v951, 4
      %v958 = vshrl.u32 %v757, 16
      %v960 = vrot.slane %v958, 7
      %v961 = vshll.u32 %v757, 16
      %v963 = vor.u32 %v960, %v961
      %v964 = vrot.slane %v960, 4
      %v966 = vshrl.u32 %v758, 16
      %v968 = vrot.slane %v966, 7
      %v969 = vshll.u32 %v758, 16
      %v971 = vor.u32 %v968, %v969
      %v972 = vsel %vm769, %v964, %v971
      %v973 = vrot.slane %v968, 4
      %v975 = vshrl.u32 %v759, 16
      %v977 = vrot.slane %v975, 7
      %v978 = vshll.u32 %v759, 16
      %v980 = vor.u32 %v977, %v978
      %v981 = vrot.slane %v977, 4
      %v983 = vshrl.u32 %v760, 16
      %v985 = vrot.slane %v983, 7
      %v986 = vshll.u32 %v760, 16
      %v988 = vor.u32 %v985, %v986
      %v989 = vsel %vm769, %v981, %v988
      %v990 = vrot.slane %v985, 4
      %v992 = vshrl.u32 %v761, 16
      %v994 = vrot.slane %v992, 7
      %v995 = vshll.u32 %v761, 16
      %v997 = vor.u32 %v994, %v995
      %v998 = vrot.slane %v994, 4
      %v1000 = vshrl.u32 %v762, 16
      %v1002 = vrot.slane %v1000, 7
      %v1003 = vshll.u32 %v762, 16
      %v1005 = vor.u32 %v1002, %v1003
      %v1006 = vsel %vm769, %v998, %v1005
      %v1007 = vrot.slane %v1002, 4
      %v1009 = vshrl.u32 %v763, 16
      %v1011 = vrot.slane %v1009, 7
      %v1012 = vshll.u32 %v763, 16
      %v1014 = vor.u32 %v1011, %v1012
      %v1015 = vrot.slane %v1011, 4
      %v1017 = vshrl.u32 %v764, 16
      %v1019 = vrot.slane %v1017, 7
      %v1020 = vshll.u32 %v764, 16
      %v1022 = vor.u32 %v1019, %v1020
      %v1023 = vsel %vm769, %v1015, %v1022
      %v1024 = vrot.slane %v1019, 4
      %v1026 = vshrl.u32 %v765, 16
      %v1028 = vrot.slane %v1026, 7
      %v1029 = vshll.u32 %v765, 16
      %v1031 = vor.u32 %v1028, %v1029
      %v1032 = vrot.slane %v1028, 4
      %v1034 = vshrl.u32 %v766, 16
      %v1036 = vrot.slane %v1034, 7
      %v1037 = vshll.u32 %v766, 16
      %v1039 = vor.u32 %v1036, %v1037
      %v1040 = vsel %vm769, %v1032, %v1039
      %v1041 = vrot.slane %v1036, 4
      %s1090 = scalar_lea.vmem [#allocation2], 12
      %vm1091 = vcmask 1043456
      %vm1092 = vsmask.f32 7938
      %vm1093 = vmand %vm1091, %vm1092
      %v1094 = vld [vmem:[%s1090] sm:$0xf]
      %v1095 = vsel %vm1093, %v776, %v1094
      %1096 = vst [vmem:[%s1090] sm:$0xf] %v1095
      %1097 = vst [vmem:[%s1090 + $0x4] sm:$0xf] %v785
      %vm1098 = vcmask 1040384
      %vm1099 = vmand %vm1098, %vm767
      %v1100 = vld [vmem:[%s1090 + $0x8] sm:$0x1]
      %v1101 = vsel %vm1099, %v786, %v1100
      %1102 = vst [vmem:[%s1090 + $0x8] sm:$0x1] %v1101
      %v1103 = vld [vmem:[%s1090 + $0xc] sm:$0xf]
      %v1104 = vsel %vm1093, %v793, %v1103
      %1105 = vst [vmem:[%s1090 + $0xc] sm:$0xf] %v1104
      %1106 = vst [vmem:[%s1090 + $0x10] sm:$0xf] %v802
      %v1107 = vld [vmem:[%s1090 + $0x14] sm:$0x1]
      %v1108 = vsel %vm1099, %v803, %v1107
      %1109 = vst [vmem:[%s1090 + $0x14] sm:$0x1] %v1108
      %v1110 = vld [vmem:[%s1090 + $0x18] sm:$0xf]
      %v1111 = vsel %vm1093, %v810, %v1110
      %1112 = vst [vmem:[%s1090 + $0x18] sm:$0xf] %v1111
      %1113 = vst [vmem:[%s1090 + $0x1c] sm:$0xf] %v819
      %v1114 = vld [vmem:[%s1090 + $0x20] sm:$0x1]
      %v1115 = vsel %vm1099, %v820, %v1114
      %1116 = vst [vmem:[%s1090 + $0x20] sm:$0x1] %v1115
      %v1117 = vld [vmem:[%s1090 + $0x24] sm:$0xf]
      %v1118 = vsel %vm1093, %v827, %v1117
      %1119 = vst [vmem:[%s1090 + $0x24] sm:$0xf] %v1118
      %1120 = vst [vmem:[%s1090 + $0x28] sm:$0xf] %v836
      %v1121 = vld [vmem:[%s1090 + $0x2c] sm:$0x1]
      %v1122 = vsel %vm1099, %v837, %v1121
      %1123 = vst [vmem:[%s1090 + $0x2c] sm:$0x1] %v1122
      %v1124 = vld [vmem:[%s1090 + $0x30] sm:$0xf]
      %v1125 = vsel %vm1093, %v844, %v1124
      %1126 = vst [vmem:[%s1090 + $0x30] sm:$0xf] %v1125
      %1127 = vst [vmem:[%s1090 + $0x34] sm:$0xf] %v853
      %v1128 = vld [vmem:[%s1090 + $0x38] sm:$0x1]
      %v1129 = vsel %vm1099, %v854, %v1128
      %1130 = vst [vmem:[%s1090 + $0x38] sm:$0x1] %v1129
      %v1131 = vld [vmem:[%s1090 + $0x3c] sm:$0xf]
      %v1132 = vsel %vm1093, %v861, %v1131
      %1133 = vst [vmem:[%s1090 + $0x3c] sm:$0xf] %v1132
      %1134 = vst [vmem:[%s1090 + $0x40] sm:$0xf] %v870
      %v1135 = vld [vmem:[%s1090 + $0x44] sm:$0x1]
      %v1136 = vsel %vm1099, %v871, %v1135
      %1137 = vst [vmem:[%s1090 + $0x44] sm:$0x1] %v1136
      %v1138 = vld [vmem:[%s1090 + $0x48] sm:$0xf]
      %v1139 = vsel %vm1093, %v878, %v1138
      %1140 = vst [vmem:[%s1090 + $0x48] sm:$0xf] %v1139
      %1141 = vst [vmem:[%s1090 + $0x4c] sm:$0xf] %v887
      %v1142 = vld [vmem:[%s1090 + $0x50] sm:$0x1]
      %v1143 = vsel %vm1099, %v888, %v1142
      %1144 = vst [vmem:[%s1090 + $0x50] sm:$0x1] %v1143
      %v1145 = vld [vmem:[%s1090 + $0x54] sm:$0xf]
      %v1146 = vsel %vm1093, %v895, %v1145
      %1147 = vst [vmem:[%s1090 + $0x54] sm:$0xf] %v1146
      %1148 = vst [vmem:[%s1090 + $0x58] sm:$0xf] %v904
      %v1149 = vld [vmem:[%s1090 + $0x5c] sm:$0x1]
      %v1150 = vsel %vm1099, %v905, %v1149
      %1151 = vst [vmem:[%s1090 + $0x5c] sm:$0x1] %v1150
      %v1152 = vld [vmem:[%s1090 + $0x60] sm:$0xf]
      %v1153 = vsel %vm1093, %v912, %v1152
      %1154 = vst [vmem:[%s1090 + $0x60] sm:$0xf] %v1153
      %1155 = vst [vmem:[%s1090 + $0x64] sm:$0xf] %v921
      %v1156 = vld [vmem:[%s1090 + $0x68] sm:$0x1]
      %v1157 = vsel %vm1099, %v922, %v1156
      %1158 = vst [vmem:[%s1090 + $0x68] sm:$0x1] %v1157
      %v1159 = vld [vmem:[%s1090 + $0x6c] sm:$0xf]
      %v1160 = vsel %vm1093, %v929, %v1159
      %1161 = vst [vmem:[%s1090 + $0x6c] sm:$0xf] %v1160
      %1162 = vst [vmem:[%s1090 + $0x70] sm:$0xf] %v938
      %v1163 = vld [vmem:[%s1090 + $0x74] sm:$0x1]
      %v1164 = vsel %vm1099, %v939, %v1163
      %1165 = vst [vmem:[%s1090 + $0x74] sm:$0x1] %v1164
      %v1166 = vld [vmem:[%s1090 + $0x78] sm:$0xf]
      %v1167 = vsel %vm1093, %v946, %v1166
      %1168 = vst [vmem:[%s1090 + $0x78] sm:$0xf] %v1167
      %1169 = vst [vmem:[%s1090 + $0x7c] sm:$0xf] %v955
      %v1170 = vld [vmem:[%s1090 + $0x80] sm:$0x1]
      %v1171 = vsel %vm1099, %v956, %v1170
      %1172 = vst [vmem:[%s1090 + $0x80] sm:$0x1] %v1171
      %v1173 = vld [vmem:[%s1090 + $0x84] sm:$0xf]
      %v1174 = vsel %vm1093, %v963, %v1173
      %1175 = vst [vmem:[%s1090 + $0x84] sm:$0xf] %v1174
      %1176 = vst [vmem:[%s1090 + $0x88] sm:$0xf] %v972
      %v1177 = vld [vmem:[%s1090 + $0x8c] sm:$0x1]
      %v1178 = vsel %vm1099, %v973, %v1177
      %1179 = vst [vmem:[%s1090 + $0x8c] sm:$0x1] %v1178
      %v1180 = vld [vmem:[%s1090 + $0x90] sm:$0xf]
      %v1181 = vsel %vm1093, %v980, %v1180
      %1182 = vst [vmem:[%s1090 + $0x90] sm:$0xf] %v1181
      %1183 = vst [vmem:[%s1090 + $0x94] sm:$0xf] %v989
      %v1184 = vld [vmem:[%s1090 + $0x98] sm:$0x1]
      %v1185 = vsel %vm1099, %v990, %v1184
      %1186 = vst [vmem:[%s1090 + $0x98] sm:$0x1] %v1185
      %v1187 = vld [vmem:[%s1090 + $0x9c] sm:$0xf]
      %v1188 = vsel %vm1093, %v997, %v1187
      %1189 = vst [vmem:[%s1090 + $0x9c] sm:$0xf] %v1188
      %1190 = vst [vmem:[%s1090 + $0xa0] sm:$0xf] %v1006
      %v1191 = vld [vmem:[%s1090 + $0xa4] sm:$0x1]
      %v1192 = vsel %vm1099, %v1007, %v1191
      %1193 = vst [vmem:[%s1090 + $0xa4] sm:$0x1] %v1192
      %v1194 = vld [vmem:[%s1090 + $0xa8] sm:$0xf]
      %v1195 = vsel %vm1093, %v1014, %v1194
      %1196 = vst [vmem:[%s1090 + $0xa8] sm:$0xf] %v1195
      %1197 = vst [vmem:[%s1090 + $0xac] sm:$0xf] %v1023
      %v1198 = vld [vmem:[%s1090 + $0xb0] sm:$0x1]
      %v1199 = vsel %vm1099, %v1024, %v1198
      %1200 = vst [vmem:[%s1090 + $0xb0] sm:$0x1] %v1199
      %v1201 = vld [vmem:[%s1090 + $0xb4] sm:$0xf]
      %v1202 = vsel %vm1093, %v1031, %v1201
      %1203 = vst [vmem:[%s1090 + $0xb4] sm:$0xf] %v1202
      %1204 = vst [vmem:[%s1090 + $0xb8] sm:$0xf] %v1040
      %v1205 = vld [vmem:[%s1090 + $0xbc] sm:$0x1]
      %v1206 = vsel %vm1099, %v1041, %v1205
      %1207 = vst [vmem:[%s1090 + $0xbc] sm:$0x1] %v1206
      %v1208 = vld [vmem:[#allocation2] sm:$0xf]
      %v1209 = vld [vmem:[#allocation2 + $0x4] sm:$0xf]
      %v1210 = vld [vmem:[#allocation2 + $0xc] sm:$0xf]
      %v1211 = vld [vmem:[#allocation2 + $0x10] sm:$0xf]
      %v1212 = vld [vmem:[#allocation2 + $0x18] sm:$0xf]
      %v1213 = vld [vmem:[#allocation2 + $0x1c] sm:$0xf]
      %v1214 = vld [vmem:[#allocation2 + $0x24] sm:$0xf]
      %v1215 = vld [vmem:[#allocation2 + $0x28] sm:$0xf]
      %v1216 = vld [vmem:[#allocation2 + $0x30] sm:$0xf]
      %v1217 = vld [vmem:[#allocation2 + $0x34] sm:$0xf]
      %v1218 = vld [vmem:[#allocation2 + $0x3c] sm:$0xf]
      %v1219 = vld [vmem:[#allocation2 + $0x40] sm:$0xf]
      %v1220 = vld [vmem:[#allocation2 + $0x48] sm:$0xf]
      %v1221 = vld [vmem:[#allocation2 + $0x4c] sm:$0xf]
      %v1222 = vld [vmem:[#allocation2 + $0x54] sm:$0xf]
      %v1223 = vld [vmem:[#allocation2 + $0x58] sm:$0xf]
      %v1224 = vld [vmem:[#allocation2 + $0x60] sm:$0xf]
      %v1225 = vld [vmem:[#allocation2 + $0x64] sm:$0xf]
      %v1226 = vld [vmem:[#allocation2 + $0x6c] sm:$0xf]
      %v1227 = vld [vmem:[#allocation2 + $0x70] sm:$0xf]
      %v1228 = vld [vmem:[#allocation2 + $0x78] sm:$0xf]
      %v1229 = vld [vmem:[#allocation2 + $0x7c] sm:$0xf]
      %v1230 = vld [vmem:[#allocation2 + $0x84] sm:$0xf]
      %v1231 = vld [vmem:[#allocation2 + $0x88] sm:$0xf]
      %v1232 = vld [vmem:[#allocation2 + $0x90] sm:$0xf]
      %v1233 = vld [vmem:[#allocation2 + $0x94] sm:$0xf]
      %v1234 = vld [vmem:[#allocation2 + $0x9c] sm:$0xf]
      %v1235 = vld [vmem:[#allocation2 + $0xa0] sm:$0xf]
      %v1236 = vld [vmem:[#allocation2 + $0xa8] sm:$0xf]
      %v1237 = vld [vmem:[#allocation2 + $0xac] sm:$0xf]
      %v1238 = vld [vmem:[#allocation2 + $0xb4] sm:$0xf]
      %v1239 = vld [vmem:[#allocation2 + $0xb8] sm:$0xf]
      %v1240 = vld [vmem:[#allocation3] sm:$0xff]
      %v1241 = vld [vmem:[#allocation3 + $0x8] sm:$0xff]
      %v1242 = vld [vmem:[#allocation3 + $0x10] sm:$0xff]
      %v1243 = vld [vmem:[#allocation3 + $0x18] sm:$0xff]
      %v1244 = vld [vmem:[#allocation3 + $0x20] sm:$0xff]
      %v1245 = vld [vmem:[#allocation3 + $0x28] sm:$0xff]
      %v1246 = vld [vmem:[#allocation3 + $0x30] sm:$0xff]
      %v1247 = vld [vmem:[#allocation3 + $0x38] sm:$0xff]
      %v1248 = vld [vmem:[#allocation3 + $0x40] sm:$0xff]
      %v1249 = vld [vmem:[#allocation3 + $0x48] sm:$0xff]
      %v1250 = vld [vmem:[#allocation3 + $0x50] sm:$0xff]
      %v1251 = vld [vmem:[#allocation3 + $0x58] sm:$0xff]
      %v1252 = vld [vmem:[#allocation3 + $0x60] sm:$0xff]
      %v1253 = vld [vmem:[#allocation3 + $0x68] sm:$0xff]
      %v1254 = vld [vmem:[#allocation3 + $0x70] sm:$0xff]
      %v1255 = vld [vmem:[#allocation3 + $0x78] sm:$0xff]
      %v1256 = vld [vmem:[#allocation3 + $0x80] sm:$0xff]
      %v1257 = vld [vmem:[#allocation3 + $0x88] sm:$0xff]
      %v1258 = vld [vmem:[#allocation3 + $0x90] sm:$0xff]
      %v1259 = vld [vmem:[#allocation3 + $0x98] sm:$0xff]
      %v1260 = vld [vmem:[#allocation3 + $0xa0] sm:$0xff]
      %v1261 = vld [vmem:[#allocation3 + $0xa8] sm:$0xff]
      %v1262 = vld [vmem:[#allocation3 + $0xb0] sm:$0xff]
      %v1263 = vld [vmem:[#allocation3 + $0xb8] sm:$0xff]
      %v1264 = vld [vmem:[#allocation3 + $0xc0] sm:$0xff]
      %v1265 = vld [vmem:[#allocation3 + $0xc8] sm:$0xff]
      %v1266 = vld [vmem:[#allocation3 + $0xd0] sm:$0xff]
      %v1267 = vld [vmem:[#allocation3 + $0xd8] sm:$0xff]
      %v1268 = vld [vmem:[#allocation3 + $0xe0] sm:$0xff]
      %v1269 = vld [vmem:[#allocation3 + $0xe8] sm:$0xff]
      %v1270 = vld [vmem:[#allocation3 + $0xf0] sm:$0xff]
      %v1271 = vld [vmem:[#allocation3 + $0xf8] sm:$0xff]
      %v1272 = vld [vmem:[%s384] sm:$0xf]
      %v1273 = vld [vmem:[%s384 + $0x4] sm:$0xf]
      %v1274 = vld [vmem:[%s384 + $0x8] sm:$0xf]
      %v1275 = vld [vmem:[%s384 + $0xc] sm:$0xf]
      %v1276 = vld [vmem:[%s384 + $0x10] sm:$0xf]
      %v1277 = vld [vmem:[%s384 + $0x14] sm:$0xf]
      %v1278 = vld [vmem:[%s384 + $0x18] sm:$0xf]
      %v1279 = vld [vmem:[%s384 + $0x1c] sm:$0xf]
      %v1280 = vld [vmem:[%s384 + $0x20] sm:$0xf]
      %v1281 = vld [vmem:[%s384 + $0x24] sm:$0xf]
      %v1282 = vld [vmem:[%s384 + $0x28] sm:$0xf]
      %v1283 = vld [vmem:[%s384 + $0x2c] sm:$0xf]
      %v1284 = vld [vmem:[%s384 + $0x30] sm:$0xf]
      %v1285 = vld [vmem:[%s384 + $0x34] sm:$0xf]
      %v1286 = vld [vmem:[%s384 + $0x38] sm:$0xf]
      %v1287 = vld [vmem:[%s384 + $0x3c] sm:$0xf]
      %v1320 = vunpack.c.l.b16 %v1208
      %v1321 = vunpack.c.l.b16 %v1209
      %v1322 = vunpack.c.l.b16 %v1210
      %v1323 = vunpack.c.l.b16 %v1211
      %v1324 = vunpack.c.l.b16 %v1212
      %v1325 = vunpack.c.l.b16 %v1213
      %v1326 = vunpack.c.l.b16 %v1214
      %v1327 = vunpack.c.l.b16 %v1215
      %v1328 = vunpack.c.l.b16 %v1216
      %v1329 = vunpack.c.l.b16 %v1217
      %v1330 = vunpack.c.l.b16 %v1218
      %v1331 = vunpack.c.l.b16 %v1219
      %v1332 = vunpack.c.l.b16 %v1220
      %v1333 = vunpack.c.l.b16 %v1221
      %v1334 = vunpack.c.l.b16 %v1222
      %v1335 = vunpack.c.l.b16 %v1223
      %v1336 = vunpack.c.l.b16 %v1224
      %v1337 = vunpack.c.l.b16 %v1225
      %v1338 = vunpack.c.l.b16 %v1226
      %v1339 = vunpack.c.l.b16 %v1227
      %v1340 = vunpack.c.l.b16 %v1228
      %v1341 = vunpack.c.l.b16 %v1229
      %v1342 = vunpack.c.l.b16 %v1230
      %v1343 = vunpack.c.l.b16 %v1231
      %v1344 = vunpack.c.l.b16 %v1232
      %v1345 = vunpack.c.l.b16 %v1233
      %v1346 = vunpack.c.l.b16 %v1234
      %v1347 = vunpack.c.l.b16 %v1235
      %v1348 = vunpack.c.l.b16 %v1236
      %v1349 = vunpack.c.l.b16 %v1237
      %v1350 = vunpack.c.l.b16 %v1238
      %v1351 = vunpack.c.l.b16 %v1239
      %v1352 = vpack.c.b16 %v1321, %v1320
      %v1353 = vpack.c.b16 %v1323, %v1322
      %v1354 = vpack.c.b16 %v1325, %v1324
      %v1355 = vpack.c.b16 %v1327, %v1326
      %v1356 = vpack.c.b16 %v1329, %v1328
      %v1357 = vpack.c.b16 %v1331, %v1330
      %v1358 = vpack.c.b16 %v1333, %v1332
      %v1359 = vpack.c.b16 %v1335, %v1334
      %v1360 = vpack.c.b16 %v1337, %v1336
      %v1361 = vpack.c.b16 %v1339, %v1338
      %v1362 = vpack.c.b16 %v1341, %v1340
      %v1363 = vpack.c.b16 %v1343, %v1342
      %v1364 = vpack.c.b16 %v1345, %v1344
      %v1365 = vpack.c.b16 %v1347, %v1346
      %v1366 = vpack.c.b16 %v1349, %v1348
      %v1367 = vpack.c.b16 %v1351, %v1350
      %v1400 = vunpack.c.l.b16 %v1272
      %v1401 = vunpack.c.l.b16 %v1273
      %v1402 = vunpack.c.l.b16 %v1274
      %v1403 = vunpack.c.l.b16 %v1275
      %v1404 = vunpack.c.l.b16 %v1276
      %v1405 = vunpack.c.l.b16 %v1277
      %v1406 = vunpack.c.l.b16 %v1278
      %v1407 = vunpack.c.l.b16 %v1279
      %v1408 = vunpack.c.l.b16 %v1280
      %v1409 = vunpack.c.l.b16 %v1281
      %v1410 = vunpack.c.l.b16 %v1282
      %v1411 = vunpack.c.l.b16 %v1283
      %v1412 = vunpack.c.l.b16 %v1284
      %v1413 = vunpack.c.l.b16 %v1285
      %v1414 = vunpack.c.l.b16 %v1286
      %v1415 = vunpack.c.l.b16 %v1287
      %v1416 = vpack.c.b16 %v1401, %v1400
      %v1417 = vpack.c.b16 %v1403, %v1402
      %v1418 = vpack.c.b16 %v1405, %v1404
      %v1419 = vpack.c.b16 %v1407, %v1406
      %v1420 = vpack.c.b16 %v1409, %v1408
      %v1421 = vpack.c.b16 %v1411, %v1410
      %v1422 = vpack.c.b16 %v1413, %v1412
      %v1423 = vpack.c.b16 %v1415, %v1414
      %1432 = vmatprep.subr.bf16.mxu0 0
      %1433 = vmatpush1.bf16.msra.mxu0 %v1423
      %1434 = vmatprep.subr.bf16.mxu0 0
      %1435 = vmatpush1.bf16.msra.mxu0 %v1422
      %1436 = vmatprep.subr.bf16.mxu0 0
      %1437 = vmatpush1.bf16.msra.mxu0 %v1421
      %1438 = vmatprep.subr.bf16.mxu0 0
      %1439 = vmatpush1.bf16.msra.mxu0 %v1420
      %1440 = vmatprep.subr.bf16.mxu0 0
      %1441 = vmatpush1.bf16.msra.mxu0 %v1419
      %1442 = vmatprep.subr.bf16.mxu0 0
      %1443 = vmatpush1.bf16.msra.mxu0 %v1418
      %1444 = vmatprep.subr.bf16.mxu0 0
      %1445 = vmatpush1.bf16.msra.mxu0 %v1417
      %1446 = vmatprep.subr.bf16.mxu0 0
      %1447 = vmatpush1.bf16.msra.mxu0 %v1416
      %1448 = vmatprep.subr.bf16.mxu0 0
      %1449 = vmatpush2.bf16.msra.mxu0 0
      %1450 = vmatprep.subr.bf16.mxu0 0
      %1451 = vmatpush2.bf16.msra.mxu0 0
      %1452 = vmatprep.subr.bf16.mxu0 0
      %1453 = vmatpush2.bf16.msra.mxu0 0
      %1454 = vmatprep.subr.bf16.mxu0 0
      %1455 = vmatpush2.bf16.msra.mxu0 0
      %1456 = vmatprep.subr.bf16.mxu0 0
      %1457 = vmatpush2.bf16.msra.mxu0 0
      %1458 = vmatprep.subr.bf16.mxu0 0
      %1459 = vmatpush2.bf16.msra.mxu0 0
      %1460 = vmatprep.subr.bf16.mxu0 0
      %1461 = vmatpush2.bf16.msra.mxu0 0
      %1462 = vmatprep.subr.bf16.mxu0 0
      %1463 = vmatpush2.bf16.msra.mxu0 0
      %1464 = vmatprep.mubr.bf16.mxu0 0
      %1465 = vmatmul.mubr.bf16.gmra.mxu0 %v1352
      %v1466 = vpop.f32.mrf.mxu0
      %v1467 = vadd.f32 0.0, %v1466
      %v1468 = vpop.f32.mrf.mxu0
      %v1469 = vpop.f32.mrf.mxu0
      %v1470 = vadd.f32 0.0, %v1469
      %v1471 = vpop.f32.mrf.mxu0
      %1472 = vmatprep.mubr.bf16.mxu0 0
      %1473 = vmatmul.mubr.bf16.gmra.mxu0 %v1353
      %v1474 = vpop.f32.mrf.mxu0
      %v1475 = vadd.f32 0.0, %v1474
      %v1476 = vpop.f32.mrf.mxu0
      %v1477 = vpop.f32.mrf.mxu0
      %v1478 = vadd.f32 0.0, %v1477
      %v1479 = vpop.f32.mrf.mxu0
      %1480 = vmatprep.mubr.bf16.mxu0 0
      %1481 = vmatmul.mubr.bf16.gmra.mxu0 %v1354
      %v1482 = vpop.f32.mrf.mxu0
      %v1483 = vadd.f32 0.0, %v1482
      %v1484 = vpop.f32.mrf.mxu0
      %v1485 = vpop.f32.mrf.mxu0
      %v1486 = vadd.f32 0.0, %v1485
      %v1487 = vpop.f32.mrf.mxu0
      %1488 = vmatprep.mubr.bf16.mxu0 0
      %1489 = vmatmul.mubr.bf16.gmra.mxu0 %v1355
      %v1490 = vpop.f32.mrf.mxu0
      %v1491 = vadd.f32 0.0, %v1490
      %v1492 = vpop.f32.mrf.mxu0
      %v1493 = vpop.f32.mrf.mxu0
      %v1494 = vadd.f32 0.0, %v1493
      %v1495 = vpop.f32.mrf.mxu0
      %1496 = vmatprep.mubr.bf16.mxu0 0
      %1497 = vmatmul.mubr.bf16.gmra.mxu0 %v1356
      %v1498 = vpop.f32.mrf.mxu0
      %v1499 = vadd.f32 0.0, %v1498
      %v1500 = vpop.f32.mrf.mxu0
      %v1501 = vpop.f32.mrf.mxu0
      %v1502 = vadd.f32 0.0, %v1501
      %v1503 = vpop.f32.mrf.mxu0
      %1504 = vmatprep.mubr.bf16.mxu0 0
      %1505 = vmatmul.mubr.bf16.gmra.mxu0 %v1357
      %v1506 = vpop.f32.mrf.mxu0
      %v1507 = vadd.f32 0.0, %v1506
      %v1508 = vpop.f32.mrf.mxu0
      %v1509 = vpop.f32.mrf.mxu0
      %v1510 = vadd.f32 0.0, %v1509
      %v1511 = vpop.f32.mrf.mxu0
      %1512 = vmatprep.mubr.bf16.mxu0 0
      %1513 = vmatmul.mubr.bf16.gmra.mxu0 %v1358
      %v1514 = vpop.f32.mrf.mxu0
      %v1515 = vadd.f32 0.0, %v1514
      %v1516 = vpop.f32.mrf.mxu0
      %v1517 = vpop.f32.mrf.mxu0
      %v1518 = vadd.f32 0.0, %v1517
      %v1519 = vpop.f32.mrf.mxu0
      %1520 = vmatprep.mubr.bf16.mxu0 0
      %1521 = vmatmul.mubr.bf16.gmra.mxu0 %v1359
      %v1522 = vpop.f32.mrf.mxu0
      %v1523 = vadd.f32 0.0, %v1522
      %v1524 = vpop.f32.mrf.mxu0
      %v1525 = vpop.f32.mrf.mxu0
      %v1526 = vadd.f32 0.0, %v1525
      %v1527 = vpop.f32.mrf.mxu0
      %1528 = vmatprep.mubr.bf16.mxu0 0
      %1529 = vmatmul.mubr.bf16.gmra.mxu0 %v1360
      %v1530 = vpop.f32.mrf.mxu0
      %v1531 = vadd.f32 0.0, %v1530
      %v1532 = vpop.f32.mrf.mxu0
      %v1533 = vpop.f32.mrf.mxu0
      %v1534 = vadd.f32 0.0, %v1533
      %v1535 = vpop.f32.mrf.mxu0
      %1536 = vmatprep.mubr.bf16.mxu0 0
      %1537 = vmatmul.mubr.bf16.gmra.mxu0 %v1361
      %v1538 = vpop.f32.mrf.mxu0
      %v1539 = vadd.f32 0.0, %v1538
      %v1540 = vpop.f32.mrf.mxu0
      %v1541 = vpop.f32.mrf.mxu0
      %v1542 = vadd.f32 0.0, %v1541
      %v1543 = vpop.f32.mrf.mxu0
      %1544 = vmatprep.mubr.bf16.mxu0 0
      %1545 = vmatmul.mubr.bf16.gmra.mxu0 %v1362
      %v1546 = vpop.f32.mrf.mxu0
      %v1547 = vadd.f32 0.0, %v1546
      %v1548 = vpop.f32.mrf.mxu0
      %v1549 = vpop.f32.mrf.mxu0
      %v1550 = vadd.f32 0.0, %v1549
      %v1551 = vpop.f32.mrf.mxu0
      %1552 = vmatprep.mubr.bf16.mxu0 0
      %1553 = vmatmul.mubr.bf16.gmra.mxu0 %v1363
      %v1554 = vpop.f32.mrf.mxu0
      %v1555 = vadd.f32 0.0, %v1554
      %v1556 = vpop.f32.mrf.mxu0
      %v1557 = vpop.f32.mrf.mxu0
      %v1558 = vadd.f32 0.0, %v1557
      %v1559 = vpop.f32.mrf.mxu0
      %1560 = vmatprep.mubr.bf16.mxu0 0
      %1561 = vmatmul.mubr.bf16.gmra.mxu0 %v1364
      %v1562 = vpop.f32.mrf.mxu0
      %v1563 = vadd.f32 0.0, %v1562
      %v1564 = vpop.f32.mrf.mxu0
      %v1565 = vpop.f32.mrf.mxu0
      %v1566 = vadd.f32 0.0, %v1565
      %v1567 = vpop.f32.mrf.mxu0
      %1568 = vmatprep.mubr.bf16.mxu0 0
      %1569 = vmatmul.mubr.bf16.gmra.mxu0 %v1365
      %v1570 = vpop.f32.mrf.mxu0
      %v1571 = vadd.f32 0.0, %v1570
      %v1572 = vpop.f32.mrf.mxu0
      %v1573 = vpop.f32.mrf.mxu0
      %v1574 = vadd.f32 0.0, %v1573
      %v1575 = vpop.f32.mrf.mxu0
      %1576 = vmatprep.mubr.bf16.mxu0 0
      %1577 = vmatmul.mubr.bf16.gmra.mxu0 %v1366
      %v1578 = vpop.f32.mrf.mxu0
      %v1579 = vadd.f32 0.0, %v1578
      %v1580 = vpop.f32.mrf.mxu0
      %v1581 = vpop.f32.mrf.mxu0
      %v1582 = vadd.f32 0.0, %v1581
      %v1583 = vpop.f32.mrf.mxu0
      %1584 = vmatprep.mubr.bf16.mxu0 0
      %1585 = vmatmul.mubr.bf16.gmra.mxu0 %v1367
      %v1586 = vpop.f32.mrf.mxu0
      %v1587 = vadd.f32 0.0, %v1586
      %v1588 = vpop.f32.mrf.mxu0
      %v1589 = vpop.f32.mrf.mxu0
      %v1590 = vadd.f32 0.0, %v1589
      %v1591 = vpop.f32.mrf.mxu0
      %1592 = vdwg.mxu0
      %v1593 = vadd.f32 %v1240, %v1467
      %v1594 = vadd.f32 %v1241, %v1470
      %v1595 = vadd.f32 %v1242, %v1475
      %v1596 = vadd.f32 %v1243, %v1478
      %v1597 = vadd.f32 %v1244, %v1483
      %v1598 = vadd.f32 %v1245, %v1486
      %v1599 = vadd.f32 %v1246, %v1491
      %v1600 = vadd.f32 %v1247, %v1494
      %v1601 = vadd.f32 %v1248, %v1499
      %v1602 = vadd.f32 %v1249, %v1502
      %v1603 = vadd.f32 %v1250, %v1507
      %v1604 = vadd.f32 %v1251, %v1510
      %v1605 = vadd.f32 %v1252, %v1515
      %v1606 = vadd.f32 %v1253, %v1518
      %v1607 = vadd.f32 %v1254, %v1523
      %v1608 = vadd.f32 %v1255, %v1526
      %v1609 = vadd.f32 %v1256, %v1531
      %v1610 = vadd.f32 %v1257, %v1534
      %v1611 = vadd.f32 %v1258, %v1539
      %v1612 = vadd.f32 %v1259, %v1542
      %v1613 = vadd.f32 %v1260, %v1547
      %v1614 = vadd.f32 %v1261, %v1550
      %v1615 = vadd.f32 %v1262, %v1555
      %v1616 = vadd.f32 %v1263, %v1558
      %v1617 = vadd.f32 %v1264, %v1563
      %v1618 = vadd.f32 %v1265, %v1566
      %v1619 = vadd.f32 %v1266, %v1571
      %v1620 = vadd.f32 %v1267, %v1574
      %v1621 = vadd.f32 %v1268, %v1579
      %v1622 = vadd.f32 %v1269, %v1582
      %v1623 = vadd.f32 %v1270, %v1587
      %v1624 = vadd.f32 %v1271, %v1590
      %1625 = vst [vmem:[#allocation3] sm:$0xff] %v1593
      %1626 = vst [vmem:[#allocation3 + $0x8] sm:$0xff] %v1594
      %1627 = vst [vmem:[#allocation3 + $0x10] sm:$0xff] %v1595
      %1628 = vst [vmem:[#allocation3 + $0x18] sm:$0xff] %v1596
      %1629 = vst [vmem:[#allocation3 + $0x20] sm:$0xff] %v1597
      %1630 = vst [vmem:[#allocation3 + $0x28] sm:$0xff] %v1598
      %1631 = vst [vmem:[#allocation3 + $0x30] sm:$0xff] %v1599
      %1632 = vst [vmem:[#allocation3 + $0x38] sm:$0xff] %v1600
      %1633 = vst [vmem:[#allocation3 + $0x40] sm:$0xff] %v1601
      %1634 = vst [vmem:[#allocation3 + $0x48] sm:$0xff] %v1602
      %1635 = vst [vmem:[#allocation3 + $0x50] sm:$0xff] %v1603
      %1636 = vst [vmem:[#allocation3 + $0x58] sm:$0xff] %v1604
      %1637 = vst [vmem:[#allocation3 + $0x60] sm:$0xff] %v1605
      %1638 = vst [vmem:[#allocation3 + $0x68] sm:$0xff] %v1606
      %1639 = vst [vmem:[#allocation3 + $0x70] sm:$0xff] %v1607
      %1640 = vst [vmem:[#allocation3 + $0x78] sm:$0xff] %v1608
      %1641 = vst [vmem:[#allocation3 + $0x80] sm:$0xff] %v1609
      %1642 = vst [vmem:[#allocation3 + $0x88] sm:$0xff] %v1610
      %1643 = vst [vmem:[#allocation3 + $0x90] sm:$0xff] %v1611
      %1644 = vst [vmem:[#allocation3 + $0x98] sm:$0xff] %v1612
      %1645 = vst [vmem:[#allocation3 + $0xa0] sm:$0xff] %v1613
      %1646 = vst [vmem:[#allocation3 + $0xa8] sm:$0xff] %v1614
      %1647 = vst [vmem:[#allocation3 + $0xb0] sm:$0xff] %v1615
      %1648 = vst [vmem:[#allocation3 + $0xb8] sm:$0xff] %v1616
      %1649 = vst [vmem:[#allocation3 + $0xc0] sm:$0xff] %v1617
      %1650 = vst [vmem:[#allocation3 + $0xc8] sm:$0xff] %v1618
      %1651 = vst [vmem:[#allocation3 + $0xd0] sm:$0xff] %v1619
      %1652 = vst [vmem:[#allocation3 + $0xd8] sm:$0xff] %v1620
      %1653 = vst [vmem:[#allocation3 + $0xe0] sm:$0xff] %v1621
      %1654 = vst [vmem:[#allocation3 + $0xe8] sm:$0xff] %v1622
      %1655 = vst [vmem:[#allocation3 + $0xf0] sm:$0xff] %v1623
      %1656 = vst [vmem:[#allocation3 + $0xf8] sm:$0xff] %v1624
      %v1657 = vld [vmem:[#allocation2] sm:$0xf]
      %v1658 = vld [vmem:[#allocation2 + $0x4] sm:$0xf]
      %v1659 = vld [vmem:[#allocation2 + $0x8] sm:$0x1]
      %v1660 = vld [vmem:[#allocation2 + $0xc] sm:$0xf]
      %v1661 = vld [vmem:[#allocation2 + $0x10] sm:$0xf]
      %v1662 = vld [vmem:[#allocation2 + $0x14] sm:$0x1]
      %v1663 = vld [vmem:[#allocation2 + $0x18] sm:$0xf]
      %v1664 = vld [vmem:[#allocation2 + $0x1c] sm:$0xf]
      %v1665 = vld [vmem:[#allocation2 + $0x20] sm:$0x1]
      %v1666 = vld [vmem:[#allocation2 + $0x24] sm:$0xf]
      %v1667 = vld [vmem:[#allocation2 + $0x28] sm:$0xf]
      %v1668 = vld [vmem:[#allocation2 + $0x2c] sm:$0x1]
      %v1669 = vld [vmem:[#allocation2 + $0x30] sm:$0xf]
      %v1670 = vld [vmem:[#allocation2 + $0x34] sm:$0xf]
      %v1671 = vld [vmem:[#allocation2 + $0x38] sm:$0x1]
      %v1672 = vld [vmem:[#allocation2 + $0x3c] sm:$0xf]
      %v1673 = vld [vmem:[#allocation2 + $0x40] sm:$0xf]
      %v1674 = vld [vmem:[#allocation2 + $0x44] sm:$0x1]
      %v1675 = vld [vmem:[#allocation2 + $0x48] sm:$0xf]
      %v1676 = vld [vmem:[#allocation2 + $0x4c] sm:$0xf]
      %v1677 = vld [vmem:[#allocation2 + $0x50] sm:$0x1]
      %v1678 = vld [vmem:[#allocation2 + $0x54] sm:$0xf]
      %v1679 = vld [vmem:[#allocation2 + $0x58] sm:$0xf]
      %v1680 = vld [vmem:[#allocation2 + $0x5c] sm:$0x1]
      %v1681 = vld [vmem:[#allocation2 + $0x60] sm:$0xf]
      %v1682 = vld [vmem:[#allocation2 + $0x64] sm:$0xf]
      %v1683 = vld [vmem:[#allocation2 + $0x68] sm:$0x1]
      %v1684 = vld [vmem:[#allocation2 + $0x6c] sm:$0xf]
      %v1685 = vld [vmem:[#allocation2 + $0x70] sm:$0xf]
      %v1686 = vld [vmem:[#allocation2 + $0x74] sm:$0x1]
      %v1687 = vld [vmem:[#allocation2 + $0x78] sm:$0xf]
      %v1688 = vld [vmem:[#allocation2 + $0x7c] sm:$0xf]
      %v1689 = vld [vmem:[#allocation2 + $0x80] sm:$0x1]
      %v1690 = vld [vmem:[#allocation2 + $0x84] sm:$0xf]
      %v1691 = vld [vmem:[#allocation2 + $0x88] sm:$0xf]
      %v1692 = vld [vmem:[#allocation2 + $0x8c] sm:$0x1]
      %v1693 = vld [vmem:[#allocation2 + $0x90] sm:$0xf]
      %v1694 = vld [vmem:[#allocation2 + $0x94] sm:$0xf]
      %v1695 = vld [vmem:[#allocation2 + $0x98] sm:$0x1]
      %v1696 = vld [vmem:[#allocation2 + $0x9c] sm:$0xf]
      %v1697 = vld [vmem:[#allocation2 + $0xa0] sm:$0xf]
      %v1698 = vld [vmem:[#allocation2 + $0xa4] sm:$0x1]
      %v1699 = vld [vmem:[#allocation2 + $0xa8] sm:$0xf]
      %v1700 = vld [vmem:[#allocation2 + $0xac] sm:$0xf]
      %v1701 = vld [vmem:[#allocation2 + $0xb0] sm:$0x1]
      %v1702 = vld [vmem:[#allocation2 + $0xb4] sm:$0xf]
      %v1703 = vld [vmem:[#allocation2 + $0xb8] sm:$0xf]
      %v1704 = vld [vmem:[#allocation2 + $0xbc] sm:$0x1]
      %vm1705 = vsmask.f32 3328
      %vm1706 = vsmask.f32 7440
      %vm1707 = vmor %vm1705, %vm1706
      %v1709 = vshrl.u32 %v1657, 16
      %v1711 = vrot.slane %v1709, 4
      %v1712 = vshll.u32 %v1657, 16
      %v1714 = vrot.slane %v1712, 5
      %v1715 = vor.u32 %v1711, %v1714
      %v1716 = vrot.slane %v1715, 4
      %v1718 = vshll.u32 %v1658, 16
      %v1720 = vrot.slane %v1718, 5
      %v1721 = vsel %vm1707, %v1716, %v1720
      %v1722 = vshrl.u32 %v1658, 16
      %v1724 = vrot.slane %v1722, 4
      %v1725 = vor.u32 %v1724, %v1720
      %v1726 = vrot.slane %v1725, 4
      %v1728 = vshll.u32 %v1659, 16
      %v1730 = vrot.slane %v1728, 5
      %v1731 = vsel %vm1707, %v1726, %v1730
      %v1733 = vshrl.u32 %v1660, 16
      %v1735 = vrot.slane %v1733, 4
      %v1736 = vshll.u32 %v1660, 16
      %v1738 = vrot.slane %v1736, 5
      %v1739 = vor.u32 %v1735, %v1738
      %v1740 = vrot.slane %v1739, 4
      %v1742 = vshll.u32 %v1661, 16
      %v1744 = vrot.slane %v1742, 5
      %v1745 = vsel %vm1707, %v1740, %v1744
      %v1746 = vshrl.u32 %v1661, 16
      %v1748 = vrot.slane %v1746, 4
      %v1749 = vor.u32 %v1748, %v1744
      %v1750 = vrot.slane %v1749, 4
      %v1752 = vshll.u32 %v1662, 16
      %v1754 = vrot.slane %v1752, 5
      %v1755 = vsel %vm1707, %v1750, %v1754
      %v1757 = vshrl.u32 %v1663, 16
      %v1759 = vrot.slane %v1757, 4
      %v1760 = vshll.u32 %v1663, 16
      %v1762 = vrot.slane %v1760, 5
      %v1763 = vor.u32 %v1759, %v1762
      %v1764 = vrot.slane %v1763, 4
      %v1766 = vshll.u32 %v1664, 16
      %v1768 = vrot.slane %v1766, 5
      %v1769 = vsel %vm1707, %v1764, %v1768
      %v1770 = vshrl.u32 %v1664, 16
      %v1772 = vrot.slane %v1770, 4
      %v1773 = vor.u32 %v1772, %v1768
      %v1774 = vrot.slane %v1773, 4
      %v1776 = vshll.u32 %v1665, 16
      %v1778 = vrot.slane %v1776, 5
      %v1779 = vsel %vm1707, %v1774, %v1778
      %v1781 = vshrl.u32 %v1666, 16
      %v1783 = vrot.slane %v1781, 4
      %v1784 = vshll.u32 %v1666, 16
      %v1786 = vrot.slane %v1784, 5
      %v1787 = vor.u32 %v1783, %v1786
      %v1788 = vrot.slane %v1787, 4
      %v1790 = vshll.u32 %v1667, 16
      %v1792 = vrot.slane %v1790, 5
      %v1793 = vsel %vm1707, %v1788, %v1792
      %v1794 = vshrl.u32 %v1667, 16
      %v1796 = vrot.slane %v1794, 4
      %v1797 = vor.u32 %v1796, %v1792
      %v1798 = vrot.slane %v1797, 4
      %v1800 = vshll.u32 %v1668, 16
      %v1802 = vrot.slane %v1800, 5
      %v1803 = vsel %vm1707, %v1798, %v1802
      %v1805 = vshrl.u32 %v1669, 16
      %v1807 = vrot.slane %v1805, 4
      %v1808 = vshll.u32 %v1669, 16
      %v1810 = vrot.slane %v1808, 5
      %v1811 = vor.u32 %v1807, %v1810
      %v1812 = vrot.slane %v1811, 4
      %v1814 = vshll.u32 %v1670, 16
      %v1816 = vrot.slane %v1814, 5
      %v1817 = vsel %vm1707, %v1812, %v1816
      %v1818 = vshrl.u32 %v1670, 16
      %v1820 = vrot.slane %v1818, 4
      %v1821 = vor.u32 %v1820, %v1816
      %v1822 = vrot.slane %v1821, 4
      %v1824 = vshll.u32 %v1671, 16
      %v1826 = vrot.slane %v1824, 5
      %v1827 = vsel %vm1707, %v1822, %v1826
      %v1829 = vshrl.u32 %v1672, 16
      %v1831 = vrot.slane %v1829, 4
      %v1832 = vshll.u32 %v1672, 16
      %v1834 = vrot.slane %v1832, 5
      %v1835 = vor.u32 %v1831, %v1834
      %v1836 = vrot.slane %v1835, 4
      %v1838 = vshll.u32 %v1673, 16
      %v1840 = vrot.slane %v1838, 5
      %v1841 = vsel %vm1707, %v1836, %v1840
      %v1842 = vshrl.u32 %v1673, 16
      %v1844 = vrot.slane %v1842, 4
      %v1845 = vor.u32 %v1844, %v1840
      %v1846 = vrot.slane %v1845, 4
      %v1848 = vshll.u32 %v1674, 16
      %v1850 = vrot.slane %v1848, 5
      %v1851 = vsel %vm1707, %v1846, %v1850
      %v1853 = vshrl.u32 %v1675, 16
      %v1855 = vrot.slane %v1853, 4
      %v1856 = vshll.u32 %v1675, 16
      %v1858 = vrot.slane %v1856, 5
      %v1859 = vor.u32 %v1855, %v1858
      %v1860 = vrot.slane %v1859, 4
      %v1862 = vshll.u32 %v1676, 16
      %v1864 = vrot.slane %v1862, 5
      %v1865 = vsel %vm1707, %v1860, %v1864
      %v1866 = vshrl.u32 %v1676, 16
      %v1868 = vrot.slane %v1866, 4
      %v1869 = vor.u32 %v1868, %v1864
      %v1870 = vrot.slane %v1869, 4
      %v1872 = vshll.u32 %v1677, 16
      %v1874 = vrot.slane %v1872, 5
      %v1875 = vsel %vm1707, %v1870, %v1874
      %v1877 = vshrl.u32 %v1678, 16
      %v1879 = vrot.slane %v1877, 4
      %v1880 = vshll.u32 %v1678, 16
      %v1882 = vrot.slane %v1880, 5
      %v1883 = vor.u32 %v1879, %v1882
      %v1884 = vrot.slane %v1883, 4
      %v1886 = vshll.u32 %v1679, 16
      %v1888 = vrot.slane %v1886, 5
      %v1889 = vsel %vm1707, %v1884, %v1888
      %v1890 = vshrl.u32 %v1679, 16
      %v1892 = vrot.slane %v1890, 4
      %v1893 = vor.u32 %v1892, %v1888
      %v1894 = vrot.slane %v1893, 4
      %v1896 = vshll.u32 %v1680, 16
      %v1898 = vrot.slane %v1896, 5
      %v1899 = vsel %vm1707, %v1894, %v1898
      %v1901 = vshrl.u32 %v1681, 16
      %v1903 = vrot.slane %v1901, 4
      %v1904 = vshll.u32 %v1681, 16
      %v1906 = vrot.slane %v1904, 5
      %v1907 = vor.u32 %v1903, %v1906
      %v1908 = vrot.slane %v1907, 4
      %v1910 = vshll.u32 %v1682, 16
      %v1912 = vrot.slane %v1910, 5
      %v1913 = vsel %vm1707, %v1908, %v1912
      %v1914 = vshrl.u32 %v1682, 16
      %v1916 = vrot.slane %v1914, 4
      %v1917 = vor.u32 %v1916, %v1912
      %v1918 = vrot.slane %v1917, 4
      %v1920 = vshll.u32 %v1683, 16
      %v1922 = vrot.slane %v1920, 5
      %v1923 = vsel %vm1707, %v1918, %v1922
      %v1925 = vshrl.u32 %v1684, 16
      %v1927 = vrot.slane %v1925, 4
      %v1928 = vshll.u32 %v1684, 16
      %v1930 = vrot.slane %v1928, 5
      %v1931 = vor.u32 %v1927, %v1930
      %v1932 = vrot.slane %v1931, 4
      %v1934 = vshll.u32 %v1685, 16
      %v1936 = vrot.slane %v1934, 5
      %v1937 = vsel %vm1707, %v1932, %v1936
      %v1938 = vshrl.u32 %v1685, 16
      %v1940 = vrot.slane %v1938, 4
      %v1941 = vor.u32 %v1940, %v1936
      %v1942 = vrot.slane %v1941, 4
      %v1944 = vshll.u32 %v1686, 16
      %v1946 = vrot.slane %v1944, 5
      %v1947 = vsel %vm1707, %v1942, %v1946
      %v1949 = vshrl.u32 %v1687, 16
      %v1951 = vrot.slane %v1949, 4
      %v1952 = vshll.u32 %v1687, 16
      %v1954 = vrot.slane %v1952, 5
      %v1955 = vor.u32 %v1951, %v1954
      %v1956 = vrot.slane %v1955, 4
      %v1958 = vshll.u32 %v1688, 16
      %v1960 = vrot.slane %v1958, 5
      %v1961 = vsel %vm1707, %v1956, %v1960
      %v1962 = vshrl.u32 %v1688, 16
      %v1964 = vrot.slane %v1962, 4
      %v1965 = vor.u32 %v1964, %v1960
      %v1966 = vrot.slane %v1965, 4
      %v1968 = vshll.u32 %v1689, 16
      %v1970 = vrot.slane %v1968, 5
      %v1971 = vsel %vm1707, %v1966, %v1970
      %v1973 = vshrl.u32 %v1690, 16
      %v1975 = vrot.slane %v1973, 4
      %v1976 = vshll.u32 %v1690, 16
      %v1978 = vrot.slane %v1976, 5
      %v1979 = vor.u32 %v1975, %v1978
      %v1980 = vrot.slane %v1979, 4
      %v1982 = vshll.u32 %v1691, 16
      %v1984 = vrot.slane %v1982, 5
      %v1985 = vsel %vm1707, %v1980, %v1984
      %v1986 = vshrl.u32 %v1691, 16
      %v1988 = vrot.slane %v1986, 4
      %v1989 = vor.u32 %v1988, %v1984
      %v1990 = vrot.slane %v1989, 4
      %v1992 = vshll.u32 %v1692, 16
      %v1994 = vrot.slane %v1992, 5
      %v1995 = vsel %vm1707, %v1990, %v1994
      %v1997 = vshrl.u32 %v1693, 16
      %v1999 = vrot.slane %v1997, 4
      %v2000 = vshll.u32 %v1693, 16
      %v2002 = vrot.slane %v2000, 5
      %v2003 = vor.u32 %v1999, %v2002
      %v2004 = vrot.slane %v2003, 4
      %v2006 = vshll.u32 %v1694, 16
      %v2008 = vrot.slane %v2006, 5
      %v2009 = vsel %vm1707, %v2004, %v2008
      %v2010 = vshrl.u32 %v1694, 16
      %v2012 = vrot.slane %v2010, 4
      %v2013 = vor.u32 %v2012, %v2008
      %v2014 = vrot.slane %v2013, 4
      %v2016 = vshll.u32 %v1695, 16
      %v2018 = vrot.slane %v2016, 5
      %v2019 = vsel %vm1707, %v2014, %v2018
      %v2021 = vshrl.u32 %v1696, 16
      %v2023 = vrot.slane %v2021, 4
      %v2024 = vshll.u32 %v1696, 16
      %v2026 = vrot.slane %v2024, 5
      %v2027 = vor.u32 %v2023, %v2026
      %v2028 = vrot.slane %v2027, 4
      %v2030 = vshll.u32 %v1697, 16
      %v2032 = vrot.slane %v2030, 5
      %v2033 = vsel %vm1707, %v2028, %v2032
      %v2034 = vshrl.u32 %v1697, 16
      %v2036 = vrot.slane %v2034, 4
      %v2037 = vor.u32 %v2036, %v2032
      %v2038 = vrot.slane %v2037, 4
      %v2040 = vshll.u32 %v1698, 16
      %v2042 = vrot.slane %v2040, 5
      %v2043 = vsel %vm1707, %v2038, %v2042
      %v2045 = vshrl.u32 %v1699, 16
      %v2047 = vrot.slane %v2045, 4
      %v2048 = vshll.u32 %v1699, 16
      %v2050 = vrot.slane %v2048, 5
      %v2051 = vor.u32 %v2047, %v2050
      %v2052 = vrot.slane %v2051, 4
      %v2054 = vshll.u32 %v1700, 16
      %v2056 = vrot.slane %v2054, 5
      %v2057 = vsel %vm1707, %v2052, %v2056
      %v2058 = vshrl.u32 %v1700, 16
      %v2060 = vrot.slane %v2058, 4
      %v2061 = vor.u32 %v2060, %v2056
      %v2062 = vrot.slane %v2061, 4
      %v2064 = vshll.u32 %v1701, 16
      %v2066 = vrot.slane %v2064, 5
      %v2067 = vsel %vm1707, %v2062, %v2066
      %v2069 = vshrl.u32 %v1702, 16
      %v2071 = vrot.slane %v2069, 4
      %v2072 = vshll.u32 %v1702, 16
      %v2074 = vrot.slane %v2072, 5
      %v2075 = vor.u32 %v2071, %v2074
      %v2076 = vrot.slane %v2075, 4
      %v2078 = vshll.u32 %v1703, 16
      %v2080 = vrot.slane %v2078, 5
      %v2081 = vsel %vm1707, %v2076, %v2080
      %v2082 = vshrl.u32 %v1703, 16
      %v2084 = vrot.slane %v2082, 4
      %v2085 = vor.u32 %v2084, %v2080
      %v2086 = vrot.slane %v2085, 4
      %v2088 = vshll.u32 %v1704, 16
      %v2090 = vrot.slane %v2088, 5
      %v2091 = vsel %vm1707, %v2086, %v2090
      %v2092 = vld [vmem:[#allocation3] sm:$0xff]
      %v2093 = vld [vmem:[#allocation3 + $0x8] sm:$0xff]
      %v2094 = vld [vmem:[#allocation3 + $0x10] sm:$0xff]
      %v2095 = vld [vmem:[#allocation3 + $0x18] sm:$0xff]
      %v2096 = vld [vmem:[#allocation3 + $0x20] sm:$0xff]
      %v2097 = vld [vmem:[#allocation3 + $0x28] sm:$0xff]
      %v2098 = vld [vmem:[#allocation3 + $0x30] sm:$0xff]
      %v2099 = vld [vmem:[#allocation3 + $0x38] sm:$0xff]
      %v2100 = vld [vmem:[#allocation3 + $0x40] sm:$0xff]
      %v2101 = vld [vmem:[#allocation3 + $0x48] sm:$0xff]
      %v2102 = vld [vmem:[#allocation3 + $0x50] sm:$0xff]
      %v2103 = vld [vmem:[#allocation3 + $0x58] sm:$0xff]
      %v2104 = vld [vmem:[#allocation3 + $0x60] sm:$0xff]
      %v2105 = vld [vmem:[#allocation3 + $0x68] sm:$0xff]
      %v2106 = vld [vmem:[#allocation3 + $0x70] sm:$0xff]
      %v2107 = vld [vmem:[#allocation3 + $0x78] sm:$0xff]
      %v2108 = vld [vmem:[#allocation3 + $0x80] sm:$0xff]
      %v2109 = vld [vmem:[#allocation3 + $0x88] sm:$0xff]
      %v2110 = vld [vmem:[#allocation3 + $0x90] sm:$0xff]
      %v2111 = vld [vmem:[#allocation3 + $0x98] sm:$0xff]
      %v2112 = vld [vmem:[#allocation3 + $0xa0] sm:$0xff]
      %v2113 = vld [vmem:[#allocation3 + $0xa8] sm:$0xff]
      %v2114 = vld [vmem:[#allocation3 + $0xb0] sm:$0xff]
      %v2115 = vld [vmem:[#allocation3 + $0xb8] sm:$0xff]
      %v2116 = vld [vmem:[#allocation3 + $0xc0] sm:$0xff]
      %v2117 = vld [vmem:[#allocation3 + $0xc8] sm:$0xff]
      %v2118 = vld [vmem:[#allocation3 + $0xd0] sm:$0xff]
      %v2119 = vld [vmem:[#allocation3 + $0xd8] sm:$0xff]
      %v2120 = vld [vmem:[#allocation3 + $0xe0] sm:$0xff]
      %v2121 = vld [vmem:[#allocation3 + $0xe8] sm:$0xff]
      %v2122 = vld [vmem:[#allocation3 + $0xf0] sm:$0xff]
      %v2123 = vld [vmem:[#allocation3 + $0xf8] sm:$0xff]
      %s2124 = scalar_lea.vmem %s384, 64
      %v2125 = vld [vmem:[%s2124] sm:$0xf]
      %v2126 = vld [vmem:[%s2124 + $0x4] sm:$0xf]
      %v2127 = vld [vmem:[%s2124 + $0x8] sm:$0xf]
      %v2128 = vld [vmem:[%s2124 + $0xc] sm:$0xf]
      %v2129 = vld [vmem:[%s2124 + $0x10] sm:$0xf]
      %v2130 = vld [vmem:[%s2124 + $0x14] sm:$0xf]
      %v2131 = vld [vmem:[%s2124 + $0x18] sm:$0xf]
      %v2132 = vld [vmem:[%s2124 + $0x1c] sm:$0xf]
      %v2133 = vld [vmem:[%s2124 + $0x20] sm:$0xf]
      %v2134 = vld [vmem:[%s2124 + $0x24] sm:$0xf]
      %v2135 = vld [vmem:[%s2124 + $0x28] sm:$0xf]
      %v2136 = vld [vmem:[%s2124 + $0x2c] sm:$0xf]
      %v2137 = vld [vmem:[%s2124 + $0x30] sm:$0xf]
      %v2138 = vld [vmem:[%s2124 + $0x34] sm:$0xf]
      %v2139 = vld [vmem:[%s2124 + $0x38] sm:$0xf]
      %v2140 = vld [vmem:[%s2124 + $0x3c] sm:$0xf]
      %v2141 = vunpack.c.l.b16 %v1721
      %v2142 = vunpack.c.l.b16 %v1731
      %v2143 = vunpack.c.l.b16 %v1745
      %v2144 = vunpack.c.l.b16 %v1755
      %v2145 = vunpack.c.l.b16 %v1769
      %v2146 = vunpack.c.l.b16 %v1779
      %v2147 = vunpack.c.l.b16 %v1793
      %v2148 = vunpack.c.l.b16 %v1803
      %v2149 = vunpack.c.l.b16 %v1817
      %v2150 = vunpack.c.l.b16 %v1827
      %v2151 = vunpack.c.l.b16 %v1841
      %v2152 = vunpack.c.l.b16 %v1851
      %v2153 = vunpack.c.l.b16 %v1865
      %v2154 = vunpack.c.l.b16 %v1875
      %v2155 = vunpack.c.l.b16 %v1889
      %v2156 = vunpack.c.l.b16 %v1899
      %v2157 = vunpack.c.l.b16 %v1913
      %v2158 = vunpack.c.l.b16 %v1923
      %v2159 = vunpack.c.l.b16 %v1937
      %v2160 = vunpack.c.l.b16 %v1947
      %v2161 = vunpack.c.l.b16 %v1961
      %v2162 = vunpack.c.l.b16 %v1971
      %v2163 = vunpack.c.l.b16 %v1985
      %v2164 = vunpack.c.l.b16 %v1995
      %v2165 = vunpack.c.l.b16 %v2009
      %v2166 = vunpack.c.l.b16 %v2019
      %v2167 = vunpack.c.l.b16 %v2033
      %v2168 = vunpack.c.l.b16 %v2043
      %v2169 = vunpack.c.l.b16 %v2057
      %v2170 = vunpack.c.l.b16 %v2067
      %v2171 = vunpack.c.l.b16 %v2081
      %v2172 = vunpack.c.l.b16 %v2091
      %v2173 = vpack.c.b16 %v2142, %v2141
      %v2174 = vpack.c.b16 %v2144, %v2143
      %v2175 = vpack.c.b16 %v2146, %v2145
      %v2176 = vpack.c.b16 %v2148, %v2147
      %v2177 = vpack.c.b16 %v2150, %v2149
      %v2178 = vpack.c.b16 %v2152, %v2151
      %v2179 = vpack.c.b16 %v2154, %v2153
      %v2180 = vpack.c.b16 %v2156, %v2155
      %v2181 = vpack.c.b16 %v2158, %v2157
      %v2182 = vpack.c.b16 %v2160, %v2159
      %v2183 = vpack.c.b16 %v2162, %v2161
      %v2184 = vpack.c.b16 %v2164, %v2163
      %v2185 = vpack.c.b16 %v2166, %v2165
      %v2186 = vpack.c.b16 %v2168, %v2167
      %v2187 = vpack.c.b16 %v2170, %v2169
      %v2188 = vpack.c.b16 %v2172, %v2171
      %v2221 = vunpack.c.l.b16 %v2125
      %v2222 = vunpack.c.l.b16 %v2126
      %v2223 = vunpack.c.l.b16 %v2127
      %v2224 = vunpack.c.l.b16 %v2128
      %v2225 = vunpack.c.l.b16 %v2129
      %v2226 = vunpack.c.l.b16 %v2130
      %v2227 = vunpack.c.l.b16 %v2131
      %v2228 = vunpack.c.l.b16 %v2132
      %v2229 = vunpack.c.l.b16 %v2133
      %v2230 = vunpack.c.l.b16 %v2134
      %v2231 = vunpack.c.l.b16 %v2135
      %v2232 = vunpack.c.l.b16 %v2136
      %v2233 = vunpack.c.l.b16 %v2137
      %v2234 = vunpack.c.l.b16 %v2138
      %v2235 = vunpack.c.l.b16 %v2139
      %v2236 = vunpack.c.l.b16 %v2140
      %v2237 = vpack.c.b16 %v2222, %v2221
      %v2238 = vpack.c.b16 %v2224, %v2223
      %v2239 = vpack.c.b16 %v2226, %v2225
      %v2240 = vpack.c.b16 %v2228, %v2227
      %v2241 = vpack.c.b16 %v2230, %v2229
      %v2242 = vpack.c.b16 %v2232, %v2231
      %v2243 = vpack.c.b16 %v2234, %v2233
      %v2244 = vpack.c.b16 %v2236, %v2235
      %2253 = vmatprep.subr.bf16.mxu0 0
      %2254 = vmatpush1.bf16.msra.mxu0 %v2244
      %2255 = vmatprep.subr.bf16.mxu0 0
      %2256 = vmatpush1.bf16.msra.mxu0 %v2243
      %2257 = vmatprep.subr.bf16.mxu0 0
      %2258 = vmatpush1.bf16.msra.mxu0 %v2242
      %2259 = vmatprep.subr.bf16.mxu0 0
      %2260 = vmatpush1.bf16.msra.mxu0 %v2241
      %2261 = vmatprep.subr.bf16.mxu0 0
      %2262 = vmatpush1.bf16.msra.mxu0 %v2240
      %2263 = vmatprep.subr.bf16.mxu0 0
      %2264 = vmatpush1.bf16.msra.mxu0 %v2239
      %2265 = vmatprep.subr.bf16.mxu0 0
      %2266 = vmatpush1.bf16.msra.mxu0 %v2238
      %2267 = vmatprep.subr.bf16.mxu0 0
      %2268 = vmatpush1.bf16.msra.mxu0 %v2237
      %2269 = vmatprep.subr.bf16.mxu0 0
      %2270 = vmatpush2.bf16.msra.mxu0 0
      %2271 = vmatprep.subr.bf16.mxu0 0
      %2272 = vmatpush2.bf16.msra.mxu0 0
      %2273 = vmatprep.subr.bf16.mxu0 0
      %2274 = vmatpush2.bf16.msra.mxu0 0
      %2275 = vmatprep.subr.bf16.mxu0 0
      %2276 = vmatpush2.bf16.msra.mxu0 0
      %2277 = vmatprep.subr.bf16.mxu0 0
      %2278 = vmatpush2.bf16.msra.mxu0 0
      %2279 = vmatprep.subr.bf16.mxu0 0
      %2280 = vmatpush2.bf16.msra.mxu0 0
      %2281 = vmatprep.subr.bf16.mxu0 0
      %2282 = vmatpush2.bf16.msra.mxu0 0
      %2283 = vmatprep.subr.bf16.mxu0 0
      %2284 = vmatpush2.bf16.msra.mxu0 0
      %2285 = vmatprep.mubr.bf16.mxu0 0
      %2286 = vmatmul.mubr.bf16.gmra.mxu0 %v2173
      %v2287 = vpop.f32.mrf.mxu0
      %v2288 = vadd.f32 0.0, %v2287
      %v2289 = vpop.f32.mrf.mxu0
      %v2290 = vpop.f32.mrf.mxu0
      %v2291 = vadd.f32 0.0, %v2290
      %v2292 = vpop.f32.mrf.mxu0
      %2293 = vmatprep.mubr.bf16.mxu0 0
      %2294 = vmatmul.mubr.bf16.gmra.mxu0 %v2174
      %v2295 = vpop.f32.mrf.mxu0
      %v2296 = vadd.f32 0.0, %v2295
      %v2297 = vpop.f32.mrf.mxu0
      %v2298 = vpop.f32.mrf.mxu0
      %v2299 = vadd.f32 0.0, %v2298
      %v2300 = vpop.f32.mrf.mxu0
      %2301 = vmatprep.mubr.bf16.mxu0 0
      %2302 = vmatmul.mubr.bf16.gmra.mxu0 %v2175
      %v2303 = vpop.f32.mrf.mxu0
      %v2304 = vadd.f32 0.0, %v2303
      %v2305 = vpop.f32.mrf.mxu0
      %v2306 = vpop.f32.mrf.mxu0
      %v2307 = vadd.f32 0.0, %v2306
      %v2308 = vpop.f32.mrf.mxu0
      %2309 = vmatprep.mubr.bf16.mxu0 0
      %2310 = vmatmul.mubr.bf16.gmra.mxu0 %v2176
      %v2311 = vpop.f32.mrf.mxu0
      %v2312 = vadd.f32 0.0, %v2311
      %v2313 = vpop.f32.mrf.mxu0
      %v2314 = vpop.f32.mrf.mxu0
      %v2315 = vadd.f32 0.0, %v2314
      %v2316 = vpop.f32.mrf.mxu0
      %2317 = vmatprep.mubr.bf16.mxu0 0
      %2318 = vmatmul.mubr.bf16.gmra.mxu0 %v2177
      %v2319 = vpop.f32.mrf.mxu0
      %v2320 = vadd.f32 0.0, %v2319
      %v2321 = vpop.f32.mrf.mxu0
      %v2322 = vpop.f32.mrf.mxu0
      %v2323 = vadd.f32 0.0, %v2322
      %v2324 = vpop.f32.mrf.mxu0
      %2325 = vmatprep.mubr.bf16.mxu0 0
      %2326 = vmatmul.mubr.bf16.gmra.mxu0 %v2178
      %v2327 = vpop.f32.mrf.mxu0
      %v2328 = vadd.f32 0.0, %v2327
      %v2329 = vpop.f32.mrf.mxu0
      %v2330 = vpop.f32.mrf.mxu0
      %v2331 = vadd.f32 0.0, %v2330
      %v2332 = vpop.f32.mrf.mxu0
      %2333 = vmatprep.mubr.bf16.mxu0 0
      %2334 = vmatmul.mubr.bf16.gmra.mxu0 %v2179
      %v2335 = vpop.f32.mrf.mxu0
      %v2336 = vadd.f32 0.0, %v2335
      %v2337 = vpop.f32.mrf.mxu0
      %v2338 = vpop.f32.mrf.mxu0
      %v2339 = vadd.f32 0.0, %v2338
      %v2340 = vpop.f32.mrf.mxu0
      %2341 = vmatprep.mubr.bf16.mxu0 0
      %2342 = vmatmul.mubr.bf16.gmra.mxu0 %v2180
      %v2343 = vpop.f32.mrf.mxu0
      %v2344 = vadd.f32 0.0, %v2343
      %v2345 = vpop.f32.mrf.mxu0
      %v2346 = vpop.f32.mrf.mxu0
      %v2347 = vadd.f32 0.0, %v2346
      %v2348 = vpop.f32.mrf.mxu0
      %2349 = vmatprep.mubr.bf16.mxu0 0
      %2350 = vmatmul.mubr.bf16.gmra.mxu0 %v2181
      %v2351 = vpop.f32.mrf.mxu0
      %v2352 = vadd.f32 0.0, %v2351
      %v2353 = vpop.f32.mrf.mxu0
      %v2354 = vpop.f32.mrf.mxu0
      %v2355 = vadd.f32 0.0, %v2354
      %v2356 = vpop.f32.mrf.mxu0
      %2357 = vmatprep.mubr.bf16.mxu0 0
      %2358 = vmatmul.mubr.bf16.gmra.mxu0 %v2182
      %v2359 = vpop.f32.mrf.mxu0
      %v2360 = vadd.f32 0.0, %v2359
      %v2361 = vpop.f32.mrf.mxu0
      %v2362 = vpop.f32.mrf.mxu0
      %v2363 = vadd.f32 0.0, %v2362
      %v2364 = vpop.f32.mrf.mxu0
      %2365 = vmatprep.mubr.bf16.mxu0 0
      %2366 = vmatmul.mubr.bf16.gmra.mxu0 %v2183
      %v2367 = vpop.f32.mrf.mxu0
      %v2368 = vadd.f32 0.0, %v2367
      %v2369 = vpop.f32.mrf.mxu0
      %v2370 = vpop.f32.mrf.mxu0
      %v2371 = vadd.f32 0.0, %v2370
      %v2372 = vpop.f32.mrf.mxu0
      %2373 = vmatprep.mubr.bf16.mxu0 0
      %2374 = vmatmul.mubr.bf16.gmra.mxu0 %v2184
      %v2375 = vpop.f32.mrf.mxu0
      %v2376 = vadd.f32 0.0, %v2375
      %v2377 = vpop.f32.mrf.mxu0
      %v2378 = vpop.f32.mrf.mxu0
      %v2379 = vadd.f32 0.0, %v2378
      %v2380 = vpop.f32.mrf.mxu0
      %2381 = vmatprep.mubr.bf16.mxu0 0
      %2382 = vmatmul.mubr.bf16.gmra.mxu0 %v2185
      %v2383 = vpop.f32.mrf.mxu0
      %v2384 = vadd.f32 0.0, %v2383
      %v2385 = vpop.f32.mrf.mxu0
      %v2386 = vpop.f32.mrf.mxu0
      %v2387 = vadd.f32 0.0, %v2386
      %v2388 = vpop.f32.mrf.mxu0
      %2389 = vmatprep.mubr.bf16.mxu0 0
      %2390 = vmatmul.mubr.bf16.gmra.mxu0 %v2186
      %v2391 = vpop.f32.mrf.mxu0
      %v2392 = vadd.f32 0.0, %v2391
      %v2393 = vpop.f32.mrf.mxu0
      %v2394 = vpop.f32.mrf.mxu0
      %v2395 = vadd.f32 0.0, %v2394
      %v2396 = vpop.f32.mrf.mxu0
      %2397 = vmatprep.mubr.bf16.mxu0 0
      %2398 = vmatmul.mubr.bf16.gmra.mxu0 %v2187
      %v2399 = vpop.f32.mrf.mxu0
      %v2400 = vadd.f32 0.0, %v2399
      %v2401 = vpop.f32.mrf.mxu0
      %v2402 = vpop.f32.mrf.mxu0
      %v2403 = vadd.f32 0.0, %v2402
      %v2404 = vpop.f32.mrf.mxu0
      %2405 = vmatprep.mubr.bf16.mxu0 0
      %2406 = vmatmul.mubr.bf16.gmra.mxu0 %v2188
      %v2407 = vpop.f32.mrf.mxu0
      %v2408 = vadd.f32 0.0, %v2407
      %v2409 = vpop.f32.mrf.mxu0
      %v2410 = vpop.f32.mrf.mxu0
      %v2411 = vadd.f32 0.0, %v2410
      %v2412 = vpop.f32.mrf.mxu0
      %2413 = vdwg.mxu0
      %v2414 = vadd.f32 %v2092, %v2288
      %v2415 = vadd.f32 %v2093, %v2291
      %v2416 = vadd.f32 %v2094, %v2296
      %v2417 = vadd.f32 %v2095, %v2299
      %v2418 = vadd.f32 %v2096, %v2304
      %v2419 = vadd.f32 %v2097, %v2307
      %v2420 = vadd.f32 %v2098, %v2312
      %v2421 = vadd.f32 %v2099, %v2315
      %v2422 = vadd.f32 %v2100, %v2320
      %v2423 = vadd.f32 %v2101, %v2323
      %v2424 = vadd.f32 %v2102, %v2328
      %v2425 = vadd.f32 %v2103, %v2331
      %v2426 = vadd.f32 %v2104, %v2336
      %v2427 = vadd.f32 %v2105, %v2339
      %v2428 = vadd.f32 %v2106, %v2344
      %v2429 = vadd.f32 %v2107, %v2347
      %v2430 = vadd.f32 %v2108, %v2352
      %v2431 = vadd.f32 %v2109, %v2355
      %v2432 = vadd.f32 %v2110, %v2360
      %v2433 = vadd.f32 %v2111, %v2363
      %v2434 = vadd.f32 %v2112, %v2368
      %v2435 = vadd.f32 %v2113, %v2371
      %v2436 = vadd.f32 %v2114, %v2376
      %v2437 = vadd.f32 %v2115, %v2379
      %v2438 = vadd.f32 %v2116, %v2384
      %v2439 = vadd.f32 %v2117, %v2387
      %v2440 = vadd.f32 %v2118, %v2392
      %v2441 = vadd.f32 %v2119, %v2395
      %v2442 = vadd.f32 %v2120, %v2400
      %v2443 = vadd.f32 %v2121, %v2403
      %v2444 = vadd.f32 %v2122, %v2408
      %v2445 = vadd.f32 %v2123, %v2411
      %2446 = vst [vmem:[#allocation3] sm:$0xff] %v2414
      %2447 = vst [vmem:[#allocation3 + $0x8] sm:$0xff] %v2415
      %2448 = vst [vmem:[#allocation3 + $0x10] sm:$0xff] %v2416
      %2449 = vst [vmem:[#allocation3 + $0x18] sm:$0xff] %v2417
      %2450 = vst [vmem:[#allocation3 + $0x20] sm:$0xff] %v2418
      %2451 = vst [vmem:[#allocation3 + $0x28] sm:$0xff] %v2419
      %2452 = vst [vmem:[#allocation3 + $0x30] sm:$0xff] %v2420
      %2453 = vst [vmem:[#allocation3 + $0x38] sm:$0xff] %v2421
      %2454 = vst [vmem:[#allocation3 + $0x40] sm:$0xff] %v2422
      %2455 = vst [vmem:[#allocation3 + $0x48] sm:$0xff] %v2423
      %2456 = vst [vmem:[#allocation3 + $0x50] sm:$0xff] %v2424
      %2457 = vst [vmem:[#allocation3 + $0x58] sm:$0xff] %v2425
      %2458 = vst [vmem:[#allocation3 + $0x60] sm:$0xff] %v2426
      %2459 = vst [vmem:[#allocation3 + $0x68] sm:$0xff] %v2427
      %2460 = vst [vmem:[#allocation3 + $0x70] sm:$0xff] %v2428
      %2461 = vst [vmem:[#allocation3 + $0x78] sm:$0xff] %v2429
      %2462 = vst [vmem:[#allocation3 + $0x80] sm:$0xff] %v2430
      %2463 = vst [vmem:[#allocation3 + $0x88] sm:$0xff] %v2431
      %2464 = vst [vmem:[#allocation3 + $0x90] sm:$0xff] %v2432
      %2465 = vst [vmem:[#allocation3 + $0x98] sm:$0xff] %v2433
      %2466 = vst [vmem:[#allocation3 + $0xa0] sm:$0xff] %v2434
      %2467 = vst [vmem:[#allocation3 + $0xa8] sm:$0xff] %v2435
      %2468 = vst [vmem:[#allocation3 + $0xb0] sm:$0xff] %v2436
      %2469 = vst [vmem:[#allocation3 + $0xb8] sm:$0xff] %v2437
      %2470 = vst [vmem:[#allocation3 + $0xc0] sm:$0xff] %v2438
      %2471 = vst [vmem:[#allocation3 + $0xc8] sm:$0xff] %v2439
      %2472 = vst [vmem:[#allocation3 + $0xd0] sm:$0xff] %v2440
      %2473 = vst [vmem:[#allocation3 + $0xd8] sm:$0xff] %v2441
      %2474 = vst [vmem:[#allocation3 + $0xe0] sm:$0xff] %v2442
      %2475 = vst [vmem:[#allocation3 + $0xe8] sm:$0xff] %v2443
      %2476 = vst [vmem:[#allocation3 + $0xf0] sm:$0xff] %v2444
      %2477 = vst [vmem:[#allocation3 + $0xf8] sm:$0xff] %v2445
      %v2478 = vld [vmem:[#allocation2] sm:$0xe]
      %v2479 = vld [vmem:[#allocation2 + $0x4] sm:$0xf]
      %v2480 = vld [vmem:[#allocation2 + $0x8] sm:$0x1]
      %v2481 = vld [vmem:[#allocation2 + $0xc] sm:$0xe]
      %v2482 = vld [vmem:[#allocation2 + $0x10] sm:$0xf]
      %v2483 = vld [vmem:[#allocation2 + $0x14] sm:$0x1]
      %v2484 = vld [vmem:[#allocation2 + $0x18] sm:$0xe]
      %v2485 = vld [vmem:[#allocation2 + $0x1c] sm:$0xf]
      %v2486 = vld [vmem:[#allocation2 + $0x20] sm:$0x1]
      %v2487 = vld [vmem:[#allocation2 + $0x24] sm:$0xe]
      %v2488 = vld [vmem:[#allocation2 + $0x28] sm:$0xf]
      %v2489 = vld [vmem:[#allocation2 + $0x2c] sm:$0x1]
      %v2490 = vld [vmem:[#allocation2 + $0x30] sm:$0xe]
      %v2491 = vld [vmem:[#allocation2 + $0x34] sm:$0xf]
      %v2492 = vld [vmem:[#allocation2 + $0x38] sm:$0x1]
      %v2493 = vld [vmem:[#allocation2 + $0x3c] sm:$0xe]
      %v2494 = vld [vmem:[#allocation2 + $0x40] sm:$0xf]
      %v2495 = vld [vmem:[#allocation2 + $0x44] sm:$0x1]
      %v2496 = vld [vmem:[#allocation2 + $0x48] sm:$0xe]
      %v2497 = vld [vmem:[#allocation2 + $0x4c] sm:$0xf]
      %v2498 = vld [vmem:[#allocation2 + $0x50] sm:$0x1]
      %v2499 = vld [vmem:[#allocation2 + $0x54] sm:$0xe]
      %v2500 = vld [vmem:[#allocation2 + $0x58] sm:$0xf]
      %v2501 = vld [vmem:[#allocation2 + $0x5c] sm:$0x1]
      %v2502 = vld [vmem:[#allocation2 + $0x60] sm:$0xe]
      %v2503 = vld [vmem:[#allocation2 + $0x64] sm:$0xf]
      %v2504 = vld [vmem:[#allocation2 + $0x68] sm:$0x1]
      %v2505 = vld [vmem:[#allocation2 + $0x6c] sm:$0xe]
      %v2506 = vld [vmem:[#allocation2 + $0x70] sm:$0xf]
      %v2507 = vld [vmem:[#allocation2 + $0x74] sm:$0x1]
      %v2508 = vld [vmem:[#allocation2 + $0x78] sm:$0xe]
      %v2509 = vld [vmem:[#allocation2 + $0x7c] sm:$0xf]
      %v2510 = vld [vmem:[#allocation2 + $0x80] sm:$0x1]
      %v2511 = vld [vmem:[#allocation2 + $0x84] sm:$0xe]
      %v2512 = vld [vmem:[#allocation2 + $0x88] sm:$0xf]
      %v2513 = vld [vmem:[#allocation2 + $0x8c] sm:$0x1]
      %v2514 = vld [vmem:[#allocation2 + $0x90] sm:$0xe]
      %v2515 = vld [vmem:[#allocation2 + $0x94] sm:$0xf]
      %v2516 = vld [vmem:[#allocation2 + $0x98] sm:$0x1]
      %v2517 = vld [vmem:[#allocation2 + $0x9c] sm:$0xe]
      %v2518 = vld [vmem:[#allocation2 + $0xa0] sm:$0xf]
      %v2519 = vld [vmem:[#allocation2 + $0xa4] sm:$0x1]
      %v2520 = vld [vmem:[#allocation2 + $0xa8] sm:$0xe]
      %v2521 = vld [vmem:[#allocation2 + $0xac] sm:$0xf]
      %v2522 = vld [vmem:[#allocation2 + $0xb0] sm:$0x1]
      %v2523 = vld [vmem:[#allocation2 + $0xb4] sm:$0xe]
      %v2524 = vld [vmem:[#allocation2 + $0xb8] sm:$0xf]
      %v2525 = vld [vmem:[#allocation2 + $0xbc] sm:$0x1]
      %vm2574 = vcmask 1042432
      %vm2575 = vcmask 1046532
      %vm2576 = vmor %vm2574, %vm2575
      %v2577 = vrot.slane %v2478, 5
      %v2578 = vrot.slane %v2577, 4
      %v2579 = vrot.slane %v2479, 5
      %v2580 = vsel %vm2576, %v2578, %v2579
      %v2581 = vrot.slane %v2579, 4
      %v2582 = vrot.slane %v2480, 5
      %v2583 = vsel %vm2576, %v2581, %v2582
      %v2584 = vrot.slane %v2481, 5
      %v2585 = vrot.slane %v2584, 4
      %v2586 = vrot.slane %v2482, 5
      %v2587 = vsel %vm2576, %v2585, %v2586
      %v2588 = vrot.slane %v2586, 4
      %v2589 = vrot.slane %v2483, 5
      %v2590 = vsel %vm2576, %v2588, %v2589
      %v2591 = vrot.slane %v2484, 5
      %v2592 = vrot.slane %v2591, 4
      %v2593 = vrot.slane %v2485, 5
      %v2594 = vsel %vm2576, %v2592, %v2593
      %v2595 = vrot.slane %v2593, 4
      %v2596 = vrot.slane %v2486, 5
      %v2597 = vsel %vm2576, %v2595, %v2596
      %v2598 = vrot.slane %v2487, 5
      %v2599 = vrot.slane %v2598, 4
      %v2600 = vrot.slane %v2488, 5
      %v2601 = vsel %vm2576, %v2599, %v2600
      %v2602 = vrot.slane %v2600, 4
      %v2603 = vrot.slane %v2489, 5
      %v2604 = vsel %vm2576, %v2602, %v2603
      %v2605 = vrot.slane %v2490, 5
      %v2606 = vrot.slane %v2605, 4
      %v2607 = vrot.slane %v2491, 5
      %v2608 = vsel %vm2576, %v2606, %v2607
      %v2609 = vrot.slane %v2607, 4
      %v2610 = vrot.slane %v2492, 5
      %v2611 = vsel %vm2576, %v2609, %v2610
      %v2612 = vrot.slane %v2493, 5
      %v2613 = vrot.slane %v2612, 4
      %v2614 = vrot.slane %v2494, 5
      %v2615 = vsel %vm2576, %v2613, %v2614
      %v2616 = vrot.slane %v2614, 4
      %v2617 = vrot.slane %v2495, 5
      %v2618 = vsel %vm2576, %v2616, %v2617
      %v2619 = vrot.slane %v2496, 5
      %v2620 = vrot.slane %v2619, 4
      %v2621 = vrot.slane %v2497, 5
      %v2622 = vsel %vm2576, %v2620, %v2621
      %v2623 = vrot.slane %v2621, 4
      %v2624 = vrot.slane %v2498, 5
      %v2625 = vsel %vm2576, %v2623, %v2624
      %v2626 = vrot.slane %v2499, 5
      %v2627 = vrot.slane %v2626, 4
      %v2628 = vrot.slane %v2500, 5
      %v2629 = vsel %vm2576, %v2627, %v2628
      %v2630 = vrot.slane %v2628, 4
      %v2631 = vrot.slane %v2501, 5
      %v2632 = vsel %vm2576, %v2630, %v2631
      %v2633 = vrot.slane %v2502, 5
      %v2634 = vrot.slane %v2633, 4
      %v2635 = vrot.slane %v2503, 5
      %v2636 = vsel %vm2576, %v2634, %v2635
      %v2637 = vrot.slane %v2635, 4
      %v2638 = vrot.slane %v2504, 5
      %v2639 = vsel %vm2576, %v2637, %v2638
      %v2640 = vrot.slane %v2505, 5
      %v2641 = vrot.slane %v2640, 4
      %v2642 = vrot.slane %v2506, 5
      %v2643 = vsel %vm2576, %v2641, %v2642
      %v2644 = vrot.slane %v2642, 4
      %v2645 = vrot.slane %v2507, 5
      %v2646 = vsel %vm2576, %v2644, %v2645
      %v2647 = vrot.slane %v2508, 5
      %v2648 = vrot.slane %v2647, 4
      %v2649 = vrot.slane %v2509, 5
      %v2650 = vsel %vm2576, %v2648, %v2649
      %v2651 = vrot.slane %v2649, 4
      %v2652 = vrot.slane %v2510, 5
      %v2653 = vsel %vm2576, %v2651, %v2652
      %v2654 = vrot.slane %v2511, 5
      %v2655 = vrot.slane %v2654, 4
      %v2656 = vrot.slane %v2512, 5
      %v2657 = vsel %vm2576, %v2655, %v2656
      %v2658 = vrot.slane %v2656, 4
      %v2659 = vrot.slane %v2513, 5
      %v2660 = vsel %vm2576, %v2658, %v2659
      %v2661 = vrot.slane %v2514, 5
      %v2662 = vrot.slane %v2661, 4
      %v2663 = vrot.slane %v2515, 5
      %v2664 = vsel %vm2576, %v2662, %v2663
      %v2665 = vrot.slane %v2663, 4
      %v2666 = vrot.slane %v2516, 5
      %v2667 = vsel %vm2576, %v2665, %v2666
      %v2668 = vrot.slane %v2517, 5
      %v2669 = vrot.slane %v2668, 4
      %v2670 = vrot.slane %v2518, 5
      %v2671 = vsel %vm2576, %v2669, %v2670
      %v2672 = vrot.slane %v2670, 4
      %v2673 = vrot.slane %v2519, 5
      %v2674 = vsel %vm2576, %v2672, %v2673
      %v2675 = vrot.slane %v2520, 5
      %v2676 = vrot.slane %v2675, 4
      %v2677 = vrot.slane %v2521, 5
      %v2678 = vsel %vm2576, %v2676, %v2677
      %v2679 = vrot.slane %v2677, 4
      %v2680 = vrot.slane %v2522, 5
      %v2681 = vsel %vm2576, %v2679, %v2680
      %v2682 = vrot.slane %v2523, 5
      %v2683 = vrot.slane %v2682, 4
      %v2684 = vrot.slane %v2524, 5
      %v2685 = vsel %vm2576, %v2683, %v2684
      %v2686 = vrot.slane %v2684, 4
      %v2687 = vrot.slane %v2525, 5
      %v2688 = vsel %vm2576, %v2686, %v2687
      %v2689 = vld [vmem:[#allocation3] sm:$0xff]
      %v2690 = vld [vmem:[#allocation3 + $0x8] sm:$0xff]
      %v2691 = vld [vmem:[#allocation3 + $0x10] sm:$0xff]
      %v2692 = vld [vmem:[#allocation3 + $0x18] sm:$0xff]
      %v2693 = vld [vmem:[#allocation3 + $0x20] sm:$0xff]
      %v2694 = vld [vmem:[#allocation3 + $0x28] sm:$0xff]
      %v2695 = vld [vmem:[#allocation3 + $0x30] sm:$0xff]
      %v2696 = vld [vmem:[#allocation3 + $0x38] sm:$0xff]
      %v2697 = vld [vmem:[#allocation3 + $0x40] sm:$0xff]
      %v2698 = vld [vmem:[#allocation3 + $0x48] sm:$0xff]
      %v2699 = vld [vmem:[#allocation3 + $0x50] sm:$0xff]
      %v2700 = vld [vmem:[#allocation3 + $0x58] sm:$0xff]
      %v2701 = vld [vmem:[#allocation3 + $0x60] sm:$0xff]
      %v2702 = vld [vmem:[#allocation3 + $0x68] sm:$0xff]
      %v2703 = vld [vmem:[#allocation3 + $0x70] sm:$0xff]
      %v2704 = vld [vmem:[#allocation3 + $0x78] sm:$0xff]
      %v2705 = vld [vmem:[#allocation3 + $0x80] sm:$0xff]
      %v2706 = vld [vmem:[#allocation3 + $0x88] sm:$0xff]
      %v2707 = vld [vmem:[#allocation3 + $0x90] sm:$0xff]
      %v2708 = vld [vmem:[#allocation3 + $0x98] sm:$0xff]
      %v2709 = vld [vmem:[#allocation3 + $0xa0] sm:$0xff]
      %v2710 = vld [vmem:[#allocation3 + $0xa8] sm:$0xff]
      %v2711 = vld [vmem:[#allocation3 + $0xb0] sm:$0xff]
      %v2712 = vld [vmem:[#allocation3 + $0xb8] sm:$0xff]
      %v2713 = vld [vmem:[#allocation3 + $0xc0] sm:$0xff]
      %v2714 = vld [vmem:[#allocation3 + $0xc8] sm:$0xff]
      %v2715 = vld [vmem:[#allocation3 + $0xd0] sm:$0xff]
      %v2716 = vld [vmem:[#allocation3 + $0xd8] sm:$0xff]
      %v2717 = vld [vmem:[#allocation3 + $0xe0] sm:$0xff]
      %v2718 = vld [vmem:[#allocation3 + $0xe8] sm:$0xff]
      %v2719 = vld [vmem:[#allocation3 + $0xf0] sm:$0xff]
      %v2720 = vld [vmem:[#allocation3 + $0xf8] sm:$0xff]
      %s2721 = scalar_lea.vmem %s384, 128
      %v2722 = vld [vmem:[%s2721] sm:$0xf]
      %v2723 = vld [vmem:[%s2721 + $0x4] sm:$0xf]
      %v2724 = vld [vmem:[%s2721 + $0x8] sm:$0xf]
      %v2725 = vld [vmem:[%s2721 + $0xc] sm:$0xf]
      %v2726 = vld [vmem:[%s2721 + $0x10] sm:$0xf]
      %v2727 = vld [vmem:[%s2721 + $0x14] sm:$0xf]
      %v2728 = vld [vmem:[%s2721 + $0x18] sm:$0xf]
      %v2729 = vld [vmem:[%s2721 + $0x1c] sm:$0xf]
      %v2730 = vld [vmem:[%s2721 + $0x20] sm:$0xf]
      %v2731 = vld [vmem:[%s2721 + $0x24] sm:$0xf]
      %v2732 = vld [vmem:[%s2721 + $0x28] sm:$0xf]
      %v2733 = vld [vmem:[%s2721 + $0x2c] sm:$0xf]
      %v2734 = vld [vmem:[%s2721 + $0x30] sm:$0xf]
      %v2735 = vld [vmem:[%s2721 + $0x34] sm:$0xf]
      %v2736 = vld [vmem:[%s2721 + $0x38] sm:$0xf]
      %v2737 = vld [vmem:[%s2721 + $0x3c] sm:$0xf]
      %v2738 = vunpack.c.l.b16 %v2580
      %v2739 = vunpack.c.l.b16 %v2583
      %v2740 = vunpack.c.l.b16 %v2587
      %v2741 = vunpack.c.l.b16 %v2590
      %v2742 = vunpack.c.l.b16 %v2594
      %v2743 = vunpack.c.l.b16 %v2597
      %v2744 = vunpack.c.l.b16 %v2601
      %v2745 = vunpack.c.l.b16 %v2604
      %v2746 = vunpack.c.l.b16 %v2608
      %v2747 = vunpack.c.l.b16 %v2611
      %v2748 = vunpack.c.l.b16 %v2615
      %v2749 = vunpack.c.l.b16 %v2618
      %v2750 = vunpack.c.l.b16 %v2622
      %v2751 = vunpack.c.l.b16 %v2625
      %v2752 = vunpack.c.l.b16 %v2629
      %v2753 = vunpack.c.l.b16 %v2632
      %v2754 = vunpack.c.l.b16 %v2636
      %v2755 = vunpack.c.l.b16 %v2639
      %v2756 = vunpack.c.l.b16 %v2643
      %v2757 = vunpack.c.l.b16 %v2646
      %v2758 = vunpack.c.l.b16 %v2650
      %v2759 = vunpack.c.l.b16 %v2653
      %v2760 = vunpack.c.l.b16 %v2657
      %v2761 = vunpack.c.l.b16 %v2660
      %v2762 = vunpack.c.l.b16 %v2664
      %v2763 = vunpack.c.l.b16 %v2667
      %v2764 = vunpack.c.l.b16 %v2671
      %v2765 = vunpack.c.l.b16 %v2674
      %v2766 = vunpack.c.l.b16 %v2678
      %v2767 = vunpack.c.l.b16 %v2681
      %v2768 = vunpack.c.l.b16 %v2685
      %v2769 = vunpack.c.l.b16 %v2688
      %v2770 = vpack.c.b16 %v2739, %v2738
      %v2771 = vpack.c.b16 %v2741, %v2740
      %v2772 = vpack.c.b16 %v2743, %v2742
      %v2773 = vpack.c.b16 %v2745, %v2744
      %v2774 = vpack.c.b16 %v2747, %v2746
      %v2775 = vpack.c.b16 %v2749, %v2748
      %v2776 = vpack.c.b16 %v2751, %v2750
      %v2777 = vpack.c.b16 %v2753, %v2752
      %v2778 = vpack.c.b16 %v2755, %v2754
      %v2779 = vpack.c.b16 %v2757, %v2756
      %v2780 = vpack.c.b16 %v2759, %v2758
      %v2781 = vpack.c.b16 %v2761, %v2760
      %v2782 = vpack.c.b16 %v2763, %v2762
      %v2783 = vpack.c.b16 %v2765, %v2764
      %v2784 = vpack.c.b16 %v2767, %v2766
      %v2785 = vpack.c.b16 %v2769, %v2768
      %v2818 = vunpack.c.l.b16 %v2722
      %v2819 = vunpack.c.l.b16 %v2723
      %v2820 = vunpack.c.l.b16 %v2724
      %v2821 = vunpack.c.l.b16 %v2725
      %v2822 = vunpack.c.l.b16 %v2726
      %v2823 = vunpack.c.l.b16 %v2727
      %v2824 = vunpack.c.l.b16 %v2728
      %v2825 = vunpack.c.l.b16 %v2729
      %v2826 = vunpack.c.l.b16 %v2730
      %v2827 = vunpack.c.l.b16 %v2731
      %v2828 = vunpack.c.l.b16 %v2732
      %v2829 = vunpack.c.l.b16 %v2733
      %v2830 = vunpack.c.l.b16 %v2734
      %v2831 = vunpack.c.l.b16 %v2735
      %v2832 = vunpack.c.l.b16 %v2736
      %v2833 = vunpack.c.l.b16 %v2737
      %v2834 = vpack.c.b16 %v2819, %v2818
      %v2835 = vpack.c.b16 %v2821, %v2820
      %v2836 = vpack.c.b16 %v2823, %v2822
      %v2837 = vpack.c.b16 %v2825, %v2824
      %v2838 = vpack.c.b16 %v2827, %v2826
      %v2839 = vpack.c.b16 %v2829, %v2828
      %v2840 = vpack.c.b16 %v2831, %v2830
      %v2841 = vpack.c.b16 %v2833, %v2832
      %2850 = vmatprep.subr.bf16.mxu0 0
      %2851 = vmatpush1.bf16.msra.mxu0 %v2841
      %2852 = vmatprep.subr.bf16.mxu0 0
      %2853 = vmatpush1.bf16.msra.mxu0 %v2840
      %2854 = vmatprep.subr.bf16.mxu0 0
      %2855 = vmatpush1.bf16.msra.mxu0 %v2839
      %2856 = vmatprep.subr.bf16.mxu0 0
      %2857 = vmatpush1.bf16.msra.mxu0 %v2838
      %2858 = vmatprep.subr.bf16.mxu0 0
      %2859 = vmatpush1.bf16.msra.mxu0 %v2837
      %2860 = vmatprep.subr.bf16.mxu0 0
      %2861 = vmatpush1.bf16.msra.mxu0 %v2836
      %2862 = vmatprep.subr.bf16.mxu0 0
      %2863 = vmatpush1.bf16.msra.mxu0 %v2835
      %2864 = vmatprep.subr.bf16.mxu0 0
      %2865 = vmatpush1.bf16.msra.mxu0 %v2834
      %2866 = vmatprep.subr.bf16.mxu0 0
      %2867 = vmatpush2.bf16.msra.mxu0 0
      %2868 = vmatprep.subr.bf16.mxu0 0
      %2869 = vmatpush2.bf16.msra.mxu0 0
      %2870 = vmatprep.subr.bf16.mxu0 0
      %2871 = vmatpush2.bf16.msra.mxu0 0
      %2872 = vmatprep.subr.bf16.mxu0 0
      %2873 = vmatpush2.bf16.msra.mxu0 0
      %2874 = vmatprep.subr.bf16.mxu0 0
      %2875 = vmatpush2.bf16.msra.mxu0 0
      %2876 = vmatprep.subr.bf16.mxu0 0
      %2877 = vmatpush2.bf16.msra.mxu0 0
      %2878 = vmatprep.subr.bf16.mxu0 0
      %2879 = vmatpush2.bf16.msra.mxu0 0
      %2880 = vmatprep.subr.bf16.mxu0 0
      %2881 = vmatpush2.bf16.msra.mxu0 0
      %2882 = vmatprep.mubr.bf16.mxu0 0
      %2883 = vmatmul.mubr.bf16.gmra.mxu0 %v2770
      %v2884 = vpop.f32.mrf.mxu0
      %v2885 = vadd.f32 0.0, %v2884
      %v2886 = vpop.f32.mrf.mxu0
      %v2887 = vpop.f32.mrf.mxu0
      %v2888 = vadd.f32 0.0, %v2887
      %v2889 = vpop.f32.mrf.mxu0
      %2890 = vmatprep.mubr.bf16.mxu0 0
      %2891 = vmatmul.mubr.bf16.gmra.mxu0 %v2771
      %v2892 = vpop.f32.mrf.mxu0
      %v2893 = vadd.f32 0.0, %v2892
      %v2894 = vpop.f32.mrf.mxu0
      %v2895 = vpop.f32.mrf.mxu0
      %v2896 = vadd.f32 0.0, %v2895
      %v2897 = vpop.f32.mrf.mxu0
      %2898 = vmatprep.mubr.bf16.mxu0 0
      %2899 = vmatmul.mubr.bf16.gmra.mxu0 %v2772
      %v2900 = vpop.f32.mrf.mxu0
      %v2901 = vadd.f32 0.0, %v2900
      %v2902 = vpop.f32.mrf.mxu0
      %v2903 = vpop.f32.mrf.mxu0
      %v2904 = vadd.f32 0.0, %v2903
      %v2905 = vpop.f32.mrf.mxu0
      %2906 = vmatprep.mubr.bf16.mxu0 0
      %2907 = vmatmul.mubr.bf16.gmra.mxu0 %v2773
      %v2908 = vpop.f32.mrf.mxu0
      %v2909 = vadd.f32 0.0, %v2908
      %v2910 = vpop.f32.mrf.mxu0
      %v2911 = vpop.f32.mrf.mxu0
      %v2912 = vadd.f32 0.0, %v2911
      %v2913 = vpop.f32.mrf.mxu0
      %2914 = vmatprep.mubr.bf16.mxu0 0
      %2915 = vmatmul.mubr.bf16.gmra.mxu0 %v2774
      %v2916 = vpop.f32.mrf.mxu0
      %v2917 = vadd.f32 0.0, %v2916
      %v2918 = vpop.f32.mrf.mxu0
      %v2919 = vpop.f32.mrf.mxu0
      %v2920 = vadd.f32 0.0, %v2919
      %v2921 = vpop.f32.mrf.mxu0
      %2922 = vmatprep.mubr.bf16.mxu0 0
      %2923 = vmatmul.mubr.bf16.gmra.mxu0 %v2775
      %v2924 = vpop.f32.mrf.mxu0
      %v2925 = vadd.f32 0.0, %v2924
      %v2926 = vpop.f32.mrf.mxu0
      %v2927 = vpop.f32.mrf.mxu0
      %v2928 = vadd.f32 0.0, %v2927
      %v2929 = vpop.f32.mrf.mxu0
      %2930 = vmatprep.mubr.bf16.mxu0 0
      %2931 = vmatmul.mubr.bf16.gmra.mxu0 %v2776
      %v2932 = vpop.f32.mrf.mxu0
      %v2933 = vadd.f32 0.0, %v2932
      %v2934 = vpop.f32.mrf.mxu0
      %v2935 = vpop.f32.mrf.mxu0
      %v2936 = vadd.f32 0.0, %v2935
      %v2937 = vpop.f32.mrf.mxu0
      %2938 = vmatprep.mubr.bf16.mxu0 0
      %2939 = vmatmul.mubr.bf16.gmra.mxu0 %v2777
      %v2940 = vpop.f32.mrf.mxu0
      %v2941 = vadd.f32 0.0, %v2940
      %v2942 = vpop.f32.mrf.mxu0
      %v2943 = vpop.f32.mrf.mxu0
      %v2944 = vadd.f32 0.0, %v2943
      %v2945 = vpop.f32.mrf.mxu0
      %2946 = vmatprep.mubr.bf16.mxu0 0
      %2947 = vmatmul.mubr.bf16.gmra.mxu0 %v2778
      %v2948 = vpop.f32.mrf.mxu0
      %v2949 = vadd.f32 0.0, %v2948
      %v2950 = vpop.f32.mrf.mxu0
      %v2951 = vpop.f32.mrf.mxu0
      %v2952 = vadd.f32 0.0, %v2951
      %v2953 = vpop.f32.mrf.mxu0
      %2954 = vmatprep.mubr.bf16.mxu0 0
      %2955 = vmatmul.mubr.bf16.gmra.mxu0 %v2779
      %v2956 = vpop.f32.mrf.mxu0
      %v2957 = vadd.f32 0.0, %v2956
      %v2958 = vpop.f32.mrf.mxu0
      %v2959 = vpop.f32.mrf.mxu0
      %v2960 = vadd.f32 0.0, %v2959
      %v2961 = vpop.f32.mrf.mxu0
      %2962 = vmatprep.mubr.bf16.mxu0 0
      %2963 = vmatmul.mubr.bf16.gmra.mxu0 %v2780
      %v2964 = vpop.f32.mrf.mxu0
      %v2965 = vadd.f32 0.0, %v2964
      %v2966 = vpop.f32.mrf.mxu0
      %v2967 = vpop.f32.mrf.mxu0
      %v2968 = vadd.f32 0.0, %v2967
      %v2969 = vpop.f32.mrf.mxu0
      %2970 = vmatprep.mubr.bf16.mxu0 0
      %2971 = vmatmul.mubr.bf16.gmra.mxu0 %v2781
      %v2972 = vpop.f32.mrf.mxu0
      %v2973 = vadd.f32 0.0, %v2972
      %v2974 = vpop.f32.mrf.mxu0
      %v2975 = vpop.f32.mrf.mxu0
      %v2976 = vadd.f32 0.0, %v2975
      %v2977 = vpop.f32.mrf.mxu0
      %2978 = vmatprep.mubr.bf16.mxu0 0
      %2979 = vmatmul.mubr.bf16.gmra.mxu0 %v2782
      %v2980 = vpop.f32.mrf.mxu0
      %v2981 = vadd.f32 0.0, %v2980
      %v2982 = vpop.f32.mrf.mxu0
      %v2983 = vpop.f32.mrf.mxu0
      %v2984 = vadd.f32 0.0, %v2983
      %v2985 = vpop.f32.mrf.mxu0
      %2986 = vmatprep.mubr.bf16.mxu0 0
      %2987 = vmatmul.mubr.bf16.gmra.mxu0 %v2783
      %v2988 = vpop.f32.mrf.mxu0
      %v2989 = vadd.f32 0.0, %v2988
      %v2990 = vpop.f32.mrf.mxu0
      %v2991 = vpop.f32.mrf.mxu0
      %v2992 = vadd.f32 0.0, %v2991
      %v2993 = vpop.f32.mrf.mxu0
      %2994 = vmatprep.mubr.bf16.mxu0 0
      %2995 = vmatmul.mubr.bf16.gmra.mxu0 %v2784
      %v2996 = vpop.f32.mrf.mxu0
      %v2997 = vadd.f32 0.0, %v2996
      %v2998 = vpop.f32.mrf.mxu0
      %v2999 = vpop.f32.mrf.mxu0
      %v3000 = vadd.f32 0.0, %v2999
      %v3001 = vpop.f32.mrf.mxu0
      %3002 = vmatprep.mubr.bf16.mxu0 0
      %3003 = vmatmul.mubr.bf16.gmra.mxu0 %v2785
      %v3004 = vpop.f32.mrf.mxu0
      %v3005 = vadd.f32 0.0, %v3004
      %v3006 = vpop.f32.mrf.mxu0
      %v3007 = vpop.f32.mrf.mxu0
      %v3008 = vadd.f32 0.0, %v3007
      %v3009 = vpop.f32.mrf.mxu0
      %3010 = vdwg.mxu0
      %v3011 = vadd.f32 %v2689, %v2885
      %v3012 = vadd.f32 %v2690, %v2888
      %v3013 = vadd.f32 %v2691, %v2893
      %v3014 = vadd.f32 %v2692, %v2896
      %v3015 = vadd.f32 %v2693, %v2901
      %v3016 = vadd.f32 %v2694, %v2904
      %v3017 = vadd.f32 %v2695, %v2909
      %v3018 = vadd.f32 %v2696, %v2912
      %v3019 = vadd.f32 %v2697, %v2917
      %v3020 = vadd.f32 %v2698, %v2920
      %v3021 = vadd.f32 %v2699, %v2925
      %v3022 = vadd.f32 %v2700, %v2928
      %v3023 = vadd.f32 %v2701, %v2933
      %v3024 = vadd.f32 %v2702, %v2936
      %v3025 = vadd.f32 %v2703, %v2941
      %v3026 = vadd.f32 %v2704, %v2944
      %v3027 = vadd.f32 %v2705, %v2949
      %v3028 = vadd.f32 %v2706, %v2952
      %v3029 = vadd.f32 %v2707, %v2957
      %v3030 = vadd.f32 %v2708, %v2960
      %v3031 = vadd.f32 %v2709, %v2965
      %v3032 = vadd.f32 %v2710, %v2968
      %v3033 = vadd.f32 %v2711, %v2973
      %v3034 = vadd.f32 %v2712, %v2976
      %v3035 = vadd.f32 %v2713, %v2981
      %v3036 = vadd.f32 %v2714, %v2984
      %v3037 = vadd.f32 %v2715, %v2989
      %v3038 = vadd.f32 %v2716, %v2992
      %v3039 = vadd.f32 %v2717, %v2997
      %v3040 = vadd.f32 %v2718, %v3000
      %v3041 = vadd.f32 %v2719, %v3005
      %v3042 = vadd.f32 %v2720, %v3008
      %3043 = vst [vmem:[#allocation3] sm:$0xff] %v3011
      %3044 = vst [vmem:[#allocation3 + $0x8] sm:$0xff] %v3012
      %3045 = vst [vmem:[#allocation3 + $0x10] sm:$0xff] %v3013
      %3046 = vst [vmem:[#allocation3 + $0x18] sm:$0xff] %v3014
      %3047 = vst [vmem:[#allocation3 + $0x20] sm:$0xff] %v3015
      %3048 = vst [vmem:[#allocation3 + $0x28] sm:$0xff] %v3016
      %3049 = vst [vmem:[#allocation3 + $0x30] sm:$0xff] %v3017
      %3050 = vst [vmem:[#allocation3 + $0x38] sm:$0xff] %v3018
      %3051 = vst [vmem:[#allocation3 + $0x40] sm:$0xff] %v3019
      %3052 = vst [vmem:[#allocation3 + $0x48] sm:$0xff] %v3020
      %3053 = vst [vmem:[#allocation3 + $0x50] sm:$0xff] %v3021
      %3054 = vst [vmem:[#allocation3 + $0x58] sm:$0xff] %v3022
      %3055 = vst [vmem:[#allocation3 + $0x60] sm:$0xff] %v3023
      %3056 = vst [vmem:[#allocation3 + $0x68] sm:$0xff] %v3024
      %3057 = vst [vmem:[#allocation3 + $0x70] sm:$0xff] %v3025
      %3058 = vst [vmem:[#allocation3 + $0x78] sm:$0xff] %v3026
      %3059 = vst [vmem:[#allocation3 + $0x80] sm:$0xff] %v3027
      %3060 = vst [vmem:[#allocation3 + $0x88] sm:$0xff] %v3028
      %3061 = vst [vmem:[#allocation3 + $0x90] sm:$0xff] %v3029
      %3062 = vst [vmem:[#allocation3 + $0x98] sm:$0xff] %v3030
      %3063 = vst [vmem:[#allocation3 + $0xa0] sm:$0xff] %v3031
      %3064 = vst [vmem:[#allocation3 + $0xa8] sm:$0xff] %v3032
      %3065 = vst [vmem:[#allocation3 + $0xb0] sm:$0xff] %v3033
      %3066 = vst [vmem:[#allocation3 + $0xb8] sm:$0xff] %v3034
      %3067 = vst [vmem:[#allocation3 + $0xc0] sm:$0xff] %v3035
      %3068 = vst [vmem:[#allocation3 + $0xc8] sm:$0xff] %v3036
      %3069 = vst [vmem:[#allocation3 + $0xd0] sm:$0xff] %v3037
      %3070 = vst [vmem:[#allocation3 + $0xd8] sm:$0xff] %v3038
      %3071 = vst [vmem:[#allocation3 + $0xe0] sm:$0xff] %v3039
      %3072 = vst [vmem:[#allocation3 + $0xe8] sm:$0xff] %v3040
      %3073 = vst [vmem:[#allocation3 + $0xf0] sm:$0xff] %v3041
      %3074 = vst [vmem:[#allocation3 + $0xf8] sm:$0xff] %v3042
      %v3075 = vld [vmem:[%s1090] sm:$0xf]
      %v3076 = vld [vmem:[%s1090 + $0x4] sm:$0xf]
      %v3077 = vld [vmem:[%s1090 + $0xc] sm:$0xf]
      %v3078 = vld [vmem:[%s1090 + $0x10] sm:$0xf]
      %v3079 = vld [vmem:[%s1090 + $0x18] sm:$0xf]
      %v3080 = vld [vmem:[%s1090 + $0x1c] sm:$0xf]
      %v3081 = vld [vmem:[%s1090 + $0x24] sm:$0xf]
      %v3082 = vld [vmem:[%s1090 + $0x28] sm:$0xf]
      %v3083 = vld [vmem:[%s1090 + $0x30] sm:$0xf]
      %v3084 = vld [vmem:[%s1090 + $0x34] sm:$0xf]
      %v3085 = vld [vmem:[%s1090 + $0x3c] sm:$0xf]
      %v3086 = vld [vmem:[%s1090 + $0x40] sm:$0xf]
      %v3087 = vld [vmem:[%s1090 + $0x48] sm:$0xf]
      %v3088 = vld [vmem:[%s1090 + $0x4c] sm:$0xf]
      %v3089 = vld [vmem:[%s1090 + $0x54] sm:$0xf]
      %v3090 = vld [vmem:[%s1090 + $0x58] sm:$0xf]
      %v3091 = vld [vmem:[%s1090 + $0x60] sm:$0xf]
      %v3092 = vld [vmem:[%s1090 + $0x64] sm:$0xf]
      %v3093 = vld [vmem:[%s1090 + $0x6c] sm:$0xf]
      %v3094 = vld [vmem:[%s1090 + $0x70] sm:$0xf]
      %v3095 = vld [vmem:[%s1090 + $0x78] sm:$0xf]
      %v3096 = vld [vmem:[%s1090 + $0x7c] sm:$0xf]
      %v3097 = vld [vmem:[%s1090 + $0x84] sm:$0xf]
      %v3098 = vld [vmem:[%s1090 + $0x88] sm:$0xf]
      %v3099 = vld [vmem:[%s1090 + $0x90] sm:$0xf]
      %v3100 = vld [vmem:[%s1090 + $0x94] sm:$0xf]
      %v3101 = vld [vmem:[%s1090 + $0x9c] sm:$0xf]
      %v3102 = vld [vmem:[%s1090 + $0xa0] sm:$0xf]
      %v3103 = vld [vmem:[%s1090 + $0xa8] sm:$0xf]
      %v3104 = vld [vmem:[%s1090 + $0xac] sm:$0xf]
      %v3105 = vld [vmem:[%s1090 + $0xb4] sm:$0xf]
      %v3106 = vld [vmem:[%s1090 + $0xb8] sm:$0xf]
      %v3107 = vld [vmem:[#allocation3] sm:$0xff]
      %v3108 = vld [vmem:[#allocation3 + $0x8] sm:$0xff]
      %v3109 = vld [vmem:[#allocation3 + $0x10] sm:$0xff]
      %v3110 = vld [vmem:[#allocation3 + $0x18] sm:$0xff]
      %v3111 = vld [vmem:[#allocation3 + $0x20] sm:$0xff]
      %v3112 = vld [vmem:[#allocation3 + $0x28] sm:$0xff]
      %v3113 = vld [vmem:[#allocation3 + $0x30] sm:$0xff]
      %v3114 = vld [vmem:[#allocation3 + $0x38] sm:$0xff]
      %v3115 = vld [vmem:[#allocation3 + $0x40] sm:$0xff]
      %v3116 = vld [vmem:[#allocation3 + $0x48] sm:$0xff]
      %v3117 = vld [vmem:[#allocation3 + $0x50] sm:$0xff]
      %v3118 = vld [vmem:[#allocation3 + $0x58] sm:$0xff]
      %v3119 = vld [vmem:[#allocation3 + $0x60] sm:$0xff]
      %v3120 = vld [vmem:[#allocation3 + $0x68] sm:$0xff]
      %v3121 = vld [vmem:[#allocation3 + $0x70] sm:$0xff]
      %v3122 = vld [vmem:[#allocation3 + $0x78] sm:$0xff]
      %v3123 = vld [vmem:[#allocation3 + $0x80] sm:$0xff]
      %v3124 = vld [vmem:[#allocation3 + $0x88] sm:$0xff]
      %v3125 = vld [vmem:[#allocation3 + $0x90] sm:$0xff]
      %v3126 = vld [vmem:[#allocation3 + $0x98] sm:$0xff]
      %v3127 = vld [vmem:[#allocation3 + $0xa0] sm:$0xff]
      %v3128 = vld [vmem:[#allocation3 + $0xa8] sm:$0xff]
      %v3129 = vld [vmem:[#allocation3 + $0xb0] sm:$0xff]
      %v3130 = vld [vmem:[#allocation3 + $0xb8] sm:$0xff]
      %v3131 = vld [vmem:[#allocation3 + $0xc0] sm:$0xff]
      %v3132 = vld [vmem:[#allocation3 + $0xc8] sm:$0xff]
      %v3133 = vld [vmem:[#allocation3 + $0xd0] sm:$0xff]
      %v3134 = vld [vmem:[#allocation3 + $0xd8] sm:$0xff]
      %v3135 = vld [vmem:[#allocation3 + $0xe0] sm:$0xff]
      %v3136 = vld [vmem:[#allocation3 + $0xe8] sm:$0xff]
      %v3137 = vld [vmem:[#allocation3 + $0xf0] sm:$0xff]
      %v3138 = vld [vmem:[#allocation3 + $0xf8] sm:$0xff]
      %s3139 = scalar_lea.vmem %s384, 192
      %v3140 = vld [vmem:[%s3139] sm:$0xf]
      %v3141 = vld [vmem:[%s3139 + $0x4] sm:$0xf]
      %v3142 = vld [vmem:[%s3139 + $0x8] sm:$0xf]
      %v3143 = vld [vmem:[%s3139 + $0xc] sm:$0xf]
      %v3144 = vld [vmem:[%s3139 + $0x10] sm:$0xf]
      %v3145 = vld [vmem:[%s3139 + $0x14] sm:$0xf]
      %v3146 = vld [vmem:[%s3139 + $0x18] sm:$0xf]
      %v3147 = vld [vmem:[%s3139 + $0x1c] sm:$0xf]
      %v3148 = vld [vmem:[%s3139 + $0x20] sm:$0xf]
      %v3149 = vld [vmem:[%s3139 + $0x24] sm:$0xf]
      %v3150 = vld [vmem:[%s3139 + $0x28] sm:$0xf]
      %v3151 = vld [vmem:[%s3139 + $0x2c] sm:$0xf]
      %v3152 = vld [vmem:[%s3139 + $0x30] sm:$0xf]
      %v3153 = vld [vmem:[%s3139 + $0x34] sm:$0xf]
      %v3154 = vld [vmem:[%s3139 + $0x38] sm:$0xf]
      %v3155 = vld [vmem:[%s3139 + $0x3c] sm:$0xf]
      %v3188 = vunpack.c.l.b16 %v3075
      %v3189 = vunpack.c.l.b16 %v3076
      %v3190 = vunpack.c.l.b16 %v3077
      %v3191 = vunpack.c.l.b16 %v3078
      %v3192 = vunpack.c.l.b16 %v3079
      %v3193 = vunpack.c.l.b16 %v3080
      %v3194 = vunpack.c.l.b16 %v3081
      %v3195 = vunpack.c.l.b16 %v3082
      %v3196 = vunpack.c.l.b16 %v3083
      %v3197 = vunpack.c.l.b16 %v3084
      %v3198 = vunpack.c.l.b16 %v3085
      %v3199 = vunpack.c.l.b16 %v3086
      %v3200 = vunpack.c.l.b16 %v3087
      %v3201 = vunpack.c.l.b16 %v3088
      %v3202 = vunpack.c.l.b16 %v3089
      %v3203 = vunpack.c.l.b16 %v3090
      %v3204 = vunpack.c.l.b16 %v3091
      %v3205 = vunpack.c.l.b16 %v3092
      %v3206 = vunpack.c.l.b16 %v3093
      %v3207 = vunpack.c.l.b16 %v3094
      %v3208 = vunpack.c.l.b16 %v3095
      %v3209 = vunpack.c.l.b16 %v3096
      %v3210 = vunpack.c.l.b16 %v3097
      %v3211 = vunpack.c.l.b16 %v3098
      %v3212 = vunpack.c.l.b16 %v3099
      %v3213 = vunpack.c.l.b16 %v3100
      %v3214 = vunpack.c.l.b16 %v3101
      %v3215 = vunpack.c.l.b16 %v3102
      %v3216 = vunpack.c.l.b16 %v3103
      %v3217 = vunpack.c.l.b16 %v3104
      %v3218 = vunpack.c.l.b16 %v3105
      %v3219 = vunpack.c.l.b16 %v3106
      %v3220 = vpack.c.b16 %v3189, %v3188
      %v3221 = vpack.c.b16 %v3191, %v3190
      %v3222 = vpack.c.b16 %v3193, %v3192
      %v3223 = vpack.c.b16 %v3195, %v3194
      %v3224 = vpack.c.b16 %v3197, %v3196
      %v3225 = vpack.c.b16 %v3199, %v3198
      %v3226 = vpack.c.b16 %v3201, %v3200
      %v3227 = vpack.c.b16 %v3203, %v3202
      %v3228 = vpack.c.b16 %v3205, %v3204
      %v3229 = vpack.c.b16 %v3207, %v3206
      %v3230 = vpack.c.b16 %v3209, %v3208
      %v3231 = vpack.c.b16 %v3211, %v3210
      %v3232 = vpack.c.b16 %v3213, %v3212
      %v3233 = vpack.c.b16 %v3215, %v3214
      %v3234 = vpack.c.b16 %v3217, %v3216
      %v3235 = vpack.c.b16 %v3219, %v3218
      %v3268 = vunpack.c.l.b16 %v3140
      %v3269 = vunpack.c.l.b16 %v3141
      %v3270 = vunpack.c.l.b16 %v3142
      %v3271 = vunpack.c.l.b16 %v3143
      %v3272 = vunpack.c.l.b16 %v3144
      %v3273 = vunpack.c.l.b16 %v3145
      %v3274 = vunpack.c.l.b16 %v3146
      %v3275 = vunpack.c.l.b16 %v3147
      %v3276 = vunpack.c.l.b16 %v3148
      %v3277 = vunpack.c.l.b16 %v3149
      %v3278 = vunpack.c.l.b16 %v3150
      %v3279 = vunpack.c.l.b16 %v3151
      %v3280 = vunpack.c.l.b16 %v3152
      %v3281 = vunpack.c.l.b16 %v3153
      %v3282 = vunpack.c.l.b16 %v3154
      %v3283 = vunpack.c.l.b16 %v3155
      %v3284 = vpack.c.b16 %v3269, %v3268
      %v3285 = vpack.c.b16 %v3271, %v3270
      %v3286 = vpack.c.b16 %v3273, %v3272
      %v3287 = vpack.c.b16 %v3275, %v3274
      %v3288 = vpack.c.b16 %v3277, %v3276
      %v3289 = vpack.c.b16 %v3279, %v3278
      %v3290 = vpack.c.b16 %v3281, %v3280
      %v3291 = vpack.c.b16 %v3283, %v3282
      %3300 = vmatprep.subr.bf16.mxu0 0
      %3301 = vmatpush1.bf16.msra.mxu0 %v3291
      %3302 = vmatprep.subr.bf16.mxu0 0
      %3303 = vmatpush1.bf16.msra.mxu0 %v3290
      %3304 = vmatprep.subr.bf16.mxu0 0
      %3305 = vmatpush1.bf16.msra.mxu0 %v3289
      %3306 = vmatprep.subr.bf16.mxu0 0
      %3307 = vmatpush1.bf16.msra.mxu0 %v3288
      %3308 = vmatprep.subr.bf16.mxu0 0
      %3309 = vmatpush1.bf16.msra.mxu0 %v3287
      %3310 = vmatprep.subr.bf16.mxu0 0
      %3311 = vmatpush1.bf16.msra.mxu0 %v3286
      %3312 = vmatprep.subr.bf16.mxu0 0
      %3313 = vmatpush1.bf16.msra.mxu0 %v3285
      %3314 = vmatprep.subr.bf16.mxu0 0
      %3315 = vmatpush1.bf16.msra.mxu0 %v3284
      %3316 = vmatprep.subr.bf16.mxu0 0
      %3317 = vmatpush2.bf16.msra.mxu0 0
      %3318 = vmatprep.subr.bf16.mxu0 0
      %3319 = vmatpush2.bf16.msra.mxu0 0
      %3320 = vmatprep.subr.bf16.mxu0 0
      %3321 = vmatpush2.bf16.msra.mxu0 0
      %3322 = vmatprep.subr.bf16.mxu0 0
      %3323 = vmatpush2.bf16.msra.mxu0 0
      %3324 = vmatprep.subr.bf16.mxu0 0
      %3325 = vmatpush2.bf16.msra.mxu0 0
      %3326 = vmatprep.subr.bf16.mxu0 0
      %3327 = vmatpush2.bf16.msra.mxu0 0
      %3328 = vmatprep.subr.bf16.mxu0 0
      %3329 = vmatpush2.bf16.msra.mxu0 0
      %3330 = vmatprep.subr.bf16.mxu0 0
      %3331 = vmatpush2.bf16.msra.mxu0 0
      %3332 = vmatprep.mubr.bf16.mxu0 0
      %3333 = vmatmul.mubr.bf16.gmra.mxu0 %v3220
      %v3334 = vpop.f32.mrf.mxu0
      %v3335 = vadd.f32 0.0, %v3334
      %v3336 = vpop.f32.mrf.mxu0
      %v3337 = vpop.f32.mrf.mxu0
      %v3338 = vadd.f32 0.0, %v3337
      %v3339 = vpop.f32.mrf.mxu0
      %3340 = vmatprep.mubr.bf16.mxu0 0
      %3341 = vmatmul.mubr.bf16.gmra.mxu0 %v3221
      %v3342 = vpop.f32.mrf.mxu0
      %v3343 = vadd.f32 0.0, %v3342
      %v3344 = vpop.f32.mrf.mxu0
      %v3345 = vpop.f32.mrf.mxu0
      %v3346 = vadd.f32 0.0, %v3345
      %v3347 = vpop.f32.mrf.mxu0
      %3348 = vmatprep.mubr.bf16.mxu0 0
      %3349 = vmatmul.mubr.bf16.gmra.mxu0 %v3222
      %v3350 = vpop.f32.mrf.mxu0
      %v3351 = vadd.f32 0.0, %v3350
      %v3352 = vpop.f32.mrf.mxu0
      %v3353 = vpop.f32.mrf.mxu0
      %v3354 = vadd.f32 0.0, %v3353
      %v3355 = vpop.f32.mrf.mxu0
      %3356 = vmatprep.mubr.bf16.mxu0 0
      %3357 = vmatmul.mubr.bf16.gmra.mxu0 %v3223
      %v3358 = vpop.f32.mrf.mxu0
      %v3359 = vadd.f32 0.0, %v3358
      %v3360 = vpop.f32.mrf.mxu0
      %v3361 = vpop.f32.mrf.mxu0
      %v3362 = vadd.f32 0.0, %v3361
      %v3363 = vpop.f32.mrf.mxu0
      %3364 = vmatprep.mubr.bf16.mxu0 0
      %3365 = vmatmul.mubr.bf16.gmra.mxu0 %v3224
      %v3366 = vpop.f32.mrf.mxu0
      %v3367 = vadd.f32 0.0, %v3366
      %v3368 = vpop.f32.mrf.mxu0
      %v3369 = vpop.f32.mrf.mxu0
      %v3370 = vadd.f32 0.0, %v3369
      %v3371 = vpop.f32.mrf.mxu0
      %3372 = vmatprep.mubr.bf16.mxu0 0
      %3373 = vmatmul.mubr.bf16.gmra.mxu0 %v3225
      %v3374 = vpop.f32.mrf.mxu0
      %v3375 = vadd.f32 0.0, %v3374
      %v3376 = vpop.f32.mrf.mxu0
      %v3377 = vpop.f32.mrf.mxu0
      %v3378 = vadd.f32 0.0, %v3377
      %v3379 = vpop.f32.mrf.mxu0
      %3380 = vmatprep.mubr.bf16.mxu0 0
      %3381 = vmatmul.mubr.bf16.gmra.mxu0 %v3226
      %v3382 = vpop.f32.mrf.mxu0
      %v3383 = vadd.f32 0.0, %v3382
      %v3384 = vpop.f32.mrf.mxu0
      %v3385 = vpop.f32.mrf.mxu0
      %v3386 = vadd.f32 0.0, %v3385
      %v3387 = vpop.f32.mrf.mxu0
      %3388 = vmatprep.mubr.bf16.mxu0 0
      %3389 = vmatmul.mubr.bf16.gmra.mxu0 %v3227
      %v3390 = vpop.f32.mrf.mxu0
      %v3391 = vadd.f32 0.0, %v3390
      %v3392 = vpop.f32.mrf.mxu0
      %v3393 = vpop.f32.mrf.mxu0
      %v3394 = vadd.f32 0.0, %v3393
      %v3395 = vpop.f32.mrf.mxu0
      %3396 = vmatprep.mubr.bf16.mxu0 0
      %3397 = vmatmul.mubr.bf16.gmra.mxu0 %v3228
      %v3398 = vpop.f32.mrf.mxu0
      %v3399 = vadd.f32 0.0, %v3398
      %v3400 = vpop.f32.mrf.mxu0
      %v3401 = vpop.f32.mrf.mxu0
      %v3402 = vadd.f32 0.0, %v3401
      %v3403 = vpop.f32.mrf.mxu0
      %3404 = vmatprep.mubr.bf16.mxu0 0
      %3405 = vmatmul.mubr.bf16.gmra.mxu0 %v3229
      %v3406 = vpop.f32.mrf.mxu0
      %v3407 = vadd.f32 0.0, %v3406
      %v3408 = vpop.f32.mrf.mxu0
      %v3409 = vpop.f32.mrf.mxu0
      %v3410 = vadd.f32 0.0, %v3409
      %v3411 = vpop.f32.mrf.mxu0
      %3412 = vmatprep.mubr.bf16.mxu0 0
      %3413 = vmatmul.mubr.bf16.gmra.mxu0 %v3230
      %v3414 = vpop.f32.mrf.mxu0
      %v3415 = vadd.f32 0.0, %v3414
      %v3416 = vpop.f32.mrf.mxu0
      %v3417 = vpop.f32.mrf.mxu0
      %v3418 = vadd.f32 0.0, %v3417
      %v3419 = vpop.f32.mrf.mxu0
      %3420 = vmatprep.mubr.bf16.mxu0 0
      %3421 = vmatmul.mubr.bf16.gmra.mxu0 %v3231
      %v3422 = vpop.f32.mrf.mxu0
      %v3423 = vadd.f32 0.0, %v3422
      %v3424 = vpop.f32.mrf.mxu0
      %v3425 = vpop.f32.mrf.mxu0
      %v3426 = vadd.f32 0.0, %v3425
      %v3427 = vpop.f32.mrf.mxu0
      %3428 = vmatprep.mubr.bf16.mxu0 0
      %3429 = vmatmul.mubr.bf16.gmra.mxu0 %v3232
      %v3430 = vpop.f32.mrf.mxu0
      %v3431 = vadd.f32 0.0, %v3430
      %v3432 = vpop.f32.mrf.mxu0
      %v3433 = vpop.f32.mrf.mxu0
      %v3434 = vadd.f32 0.0, %v3433
      %v3435 = vpop.f32.mrf.mxu0
      %3436 = vmatprep.mubr.bf16.mxu0 0
      %3437 = vmatmul.mubr.bf16.gmra.mxu0 %v3233
      %v3438 = vpop.f32.mrf.mxu0
      %v3439 = vadd.f32 0.0, %v3438
      %v3440 = vpop.f32.mrf.mxu0
      %v3441 = vpop.f32.mrf.mxu0
      %v3442 = vadd.f32 0.0, %v3441
      %v3443 = vpop.f32.mrf.mxu0
      %3444 = vmatprep.mubr.bf16.mxu0 0
      %3445 = vmatmul.mubr.bf16.gmra.mxu0 %v3234
      %v3446 = vpop.f32.mrf.mxu0
      %v3447 = vadd.f32 0.0, %v3446
      %v3448 = vpop.f32.mrf.mxu0
      %v3449 = vpop.f32.mrf.mxu0
      %v3450 = vadd.f32 0.0, %v3449
      %v3451 = vpop.f32.mrf.mxu0
      %3452 = vmatprep.mubr.bf16.mxu0 0
      %3453 = vmatmul.mubr.bf16.gmra.mxu0 %v3235
      %v3454 = vpop.f32.mrf.mxu0
      %v3455 = vadd.f32 0.0, %v3454
      %v3456 = vpop.f32.mrf.mxu0
      %v3457 = vpop.f32.mrf.mxu0
      %v3458 = vadd.f32 0.0, %v3457
      %v3459 = vpop.f32.mrf.mxu0
      %3460 = vdwg.mxu0
      %v3461 = vadd.f32 %v3107, %v3335
      %v3462 = vadd.f32 %v3108, %v3338
      %v3463 = vadd.f32 %v3109, %v3343
      %v3464 = vadd.f32 %v3110, %v3346
      %v3465 = vadd.f32 %v3111, %v3351
      %v3466 = vadd.f32 %v3112, %v3354
      %v3467 = vadd.f32 %v3113, %v3359
      %v3468 = vadd.f32 %v3114, %v3362
      %v3469 = vadd.f32 %v3115, %v3367
      %v3470 = vadd.f32 %v3116, %v3370
      %v3471 = vadd.f32 %v3117, %v3375
      %v3472 = vadd.f32 %v3118, %v3378
      %v3473 = vadd.f32 %v3119, %v3383
      %v3474 = vadd.f32 %v3120, %v3386
      %v3475 = vadd.f32 %v3121, %v3391
      %v3476 = vadd.f32 %v3122, %v3394
      %v3477 = vadd.f32 %v3123, %v3399
      %v3478 = vadd.f32 %v3124, %v3402
      %v3479 = vadd.f32 %v3125, %v3407
      %v3480 = vadd.f32 %v3126, %v3410
      %v3481 = vadd.f32 %v3127, %v3415
      %v3482 = vadd.f32 %v3128, %v3418
      %v3483 = vadd.f32 %v3129, %v3423
      %v3484 = vadd.f32 %v3130, %v3426
      %v3485 = vadd.f32 %v3131, %v3431
      %v3486 = vadd.f32 %v3132, %v3434
      %v3487 = vadd.f32 %v3133, %v3439
      %v3488 = vadd.f32 %v3134, %v3442
      %v3489 = vadd.f32 %v3135, %v3447
      %v3490 = vadd.f32 %v3136, %v3450
      %v3491 = vadd.f32 %v3137, %v3455
      %v3492 = vadd.f32 %v3138, %v3458
      %3493 = vst [vmem:[#allocation3] sm:$0xff] %v3461
      %3494 = vst [vmem:[#allocation3 + $0x8] sm:$0xff] %v3462
      %3495 = vst [vmem:[#allocation3 + $0x10] sm:$0xff] %v3463
      %3496 = vst [vmem:[#allocation3 + $0x18] sm:$0xff] %v3464
      %3497 = vst [vmem:[#allocation3 + $0x20] sm:$0xff] %v3465
      %3498 = vst [vmem:[#allocation3 + $0x28] sm:$0xff] %v3466
      %3499 = vst [vmem:[#allocation3 + $0x30] sm:$0xff] %v3467
      %3500 = vst [vmem:[#allocation3 + $0x38] sm:$0xff] %v3468
      %3501 = vst [vmem:[#allocation3 + $0x40] sm:$0xff] %v3469
      %3502 = vst [vmem:[#allocation3 + $0x48] sm:$0xff] %v3470
      %3503 = vst [vmem:[#allocation3 + $0x50] sm:$0xff] %v3471
      %3504 = vst [vmem:[#allocation3 + $0x58] sm:$0xff] %v3472
      %3505 = vst [vmem:[#allocation3 + $0x60] sm:$0xff] %v3473
      %3506 = vst [vmem:[#allocation3 + $0x68] sm:$0xff] %v3474
      %3507 = vst [vmem:[#allocation3 + $0x70] sm:$0xff] %v3475
      %3508 = vst [vmem:[#allocation3 + $0x78] sm:$0xff] %v3476
      %3509 = vst [vmem:[#allocation3 + $0x80] sm:$0xff] %v3477
      %3510 = vst [vmem:[#allocation3 + $0x88] sm:$0xff] %v3478
      %3511 = vst [vmem:[#allocation3 + $0x90] sm:$0xff] %v3479
      %3512 = vst [vmem:[#allocation3 + $0x98] sm:$0xff] %v3480
      %3513 = vst [vmem:[#allocation3 + $0xa0] sm:$0xff] %v3481
      %3514 = vst [vmem:[#allocation3 + $0xa8] sm:$0xff] %v3482
      %3515 = vst [vmem:[#allocation3 + $0xb0] sm:$0xff] %v3483
      %3516 = vst [vmem:[#allocation3 + $0xb8] sm:$0xff] %v3484
      %3517 = vst [vmem:[#allocation3 + $0xc0] sm:$0xff] %v3485
      %3518 = vst [vmem:[#allocation3 + $0xc8] sm:$0xff] %v3486
      %3519 = vst [vmem:[#allocation3 + $0xd0] sm:$0xff] %v3487
      %3520 = vst [vmem:[#allocation3 + $0xd8] sm:$0xff] %v3488
      %3521 = vst [vmem:[#allocation3 + $0xe0] sm:$0xff] %v3489
      %3522 = vst [vmem:[#allocation3 + $0xe8] sm:$0xff] %v3490
      %3523 = vst [vmem:[#allocation3 + $0xf0] sm:$0xff] %v3491
      %3524 = vst [vmem:[#allocation3 + $0xf8] sm:$0xff] %v3492
      %v3525 = vld [vmem:[%s1090] sm:$0xf]
      %v3526 = vld [vmem:[%s1090 + $0x4] sm:$0xf]
      %v3527 = vld [vmem:[%s1090 + $0x8] sm:$0x1]
      %v3528 = vld [vmem:[%s1090 + $0xc] sm:$0xf]
      %v3529 = vld [vmem:[%s1090 + $0x10] sm:$0xf]
      %v3530 = vld [vmem:[%s1090 + $0x14] sm:$0x1]
      %v3531 = vld [vmem:[%s1090 + $0x18] sm:$0xf]
      %v3532 = vld [vmem:[%s1090 + $0x1c] sm:$0xf]
      %v3533 = vld [vmem:[%s1090 + $0x20] sm:$0x1]
      %v3534 = vld [vmem:[%s1090 + $0x24] sm:$0xf]
      %v3535 = vld [vmem:[%s1090 + $0x28] sm:$0xf]
      %v3536 = vld [vmem:[%s1090 + $0x2c] sm:$0x1]
      %v3537 = vld [vmem:[%s1090 + $0x30] sm:$0xf]
      %v3538 = vld [vmem:[%s1090 + $0x34] sm:$0xf]
      %v3539 = vld [vmem:[%s1090 + $0x38] sm:$0x1]
      %v3540 = vld [vmem:[%s1090 + $0x3c] sm:$0xf]
      %v3541 = vld [vmem:[%s1090 + $0x40] sm:$0xf]
      %v3542 = vld [vmem:[%s1090 + $0x44] sm:$0x1]
      %v3543 = vld [vmem:[%s1090 + $0x48] sm:$0xf]
      %v3544 = vld [vmem:[%s1090 + $0x4c] sm:$0xf]
      %v3545 = vld [vmem:[%s1090 + $0x50] sm:$0x1]
      %v3546 = vld [vmem:[%s1090 + $0x54] sm:$0xf]
      %v3547 = vld [vmem:[%s1090 + $0x58] sm:$0xf]
      %v3548 = vld [vmem:[%s1090 + $0x5c] sm:$0x1]
      %v3549 = vld [vmem:[%s1090 + $0x60] sm:$0xf]
      %v3550 = vld [vmem:[%s1090 + $0x64] sm:$0xf]
      %v3551 = vld [vmem:[%s1090 + $0x68] sm:$0x1]
      %v3552 = vld [vmem:[%s1090 + $0x6c] sm:$0xf]
      %v3553 = vld [vmem:[%s1090 + $0x70] sm:$0xf]
      %v3554 = vld [vmem:[%s1090 + $0x74] sm:$0x1]
      %v3555 = vld [vmem:[%s1090 + $0x78] sm:$0xf]
      %v3556 = vld [vmem:[%s1090 + $0x7c] sm:$0xf]
      %v3557 = vld [vmem:[%s1090 + $0x80] sm:$0x1]
      %v3558 = vld [vmem:[%s1090 + $0x84] sm:$0xf]
      %v3559 = vld [vmem:[%s1090 + $0x88] sm:$0xf]
      %v3560 = vld [vmem:[%s1090 + $0x8c] sm:$0x1]
      %v3561 = vld [vmem:[%s1090 + $0x90] sm:$0xf]
      %v3562 = vld [vmem:[%s1090 + $0x94] sm:$0xf]
      %v3563 = vld [vmem:[%s1090 + $0x98] sm:$0x1]
      %v3564 = vld [vmem:[%s1090 + $0x9c] sm:$0xf]
      %v3565 = vld [vmem:[%s1090 + $0xa0] sm:$0xf]
      %v3566 = vld [vmem:[%s1090 + $0xa4] sm:$0x1]
      %v3567 = vld [vmem:[%s1090 + $0xa8] sm:$0xf]
      %v3568 = vld [vmem:[%s1090 + $0xac] sm:$0xf]
      %v3569 = vld [vmem:[%s1090 + $0xb0] sm:$0x1]
      %v3570 = vld [vmem:[%s1090 + $0xb4] sm:$0xf]
      %v3571 = vld [vmem:[%s1090 + $0xb8] sm:$0xf]
      %v3572 = vld [vmem:[%s1090 + $0xbc] sm:$0x1]
      %v3574 = vshrl.u32 %v3525, 16
      %v3576 = vrot.slane %v3574, 4
      %v3577 = vshll.u32 %v3525, 16
      %v3579 = vrot.slane %v3577, 5
      %v3580 = vor.u32 %v3576, %v3579
      %v3581 = vrot.slane %v3580, 4
      %v3583 = vshll.u32 %v3526, 16
      %v3585 = vrot.slane %v3583, 5
      %v3586 = vsel %vm1707, %v3581, %v3585
      %v3587 = vshrl.u32 %v3526, 16
      %v3589 = vrot.slane %v3587, 4
      %v3590 = vor.u32 %v3589, %v3585
      %v3591 = vrot.slane %v3590, 4
      %v3593 = vshll.u32 %v3527, 16
      %v3595 = vrot.slane %v3593, 5
      %v3596 = vsel %vm1707, %v3591, %v3595
      %v3598 = vshrl.u32 %v3528, 16
      %v3600 = vrot.slane %v3598, 4
      %v3601 = vshll.u32 %v3528, 16
      %v3603 = vrot.slane %v3601, 5
      %v3604 = vor.u32 %v3600, %v3603
      %v3605 = vrot.slane %v3604, 4
      %v3607 = vshll.u32 %v3529, 16
      %v3609 = vrot.slane %v3607, 5
      %v3610 = vsel %vm1707, %v3605, %v3609
      %v3611 = vshrl.u32 %v3529, 16
      %v3613 = vrot.slane %v3611, 4
      %v3614 = vor.u32 %v3613, %v3609
      %v3615 = vrot.slane %v3614, 4
      %v3617 = vshll.u32 %v3530, 16
      %v3619 = vrot.slane %v3617, 5
      %v3620 = vsel %vm1707, %v3615, %v3619
      %v3622 = vshrl.u32 %v3531, 16
      %v3624 = vrot.slane %v3622, 4
      %v3625 = vshll.u32 %v3531, 16
      %v3627 = vrot.slane %v3625, 5
      %v3628 = vor.u32 %v3624, %v3627
      %v3629 = vrot.slane %v3628, 4
      %v3631 = vshll.u32 %v3532, 16
      %v3633 = vrot.slane %v3631, 5
      %v3634 = vsel %vm1707, %v3629, %v3633
      %v3635 = vshrl.u32 %v3532, 16
      %v3637 = vrot.slane %v3635, 4
      %v3638 = vor.u32 %v3637, %v3633
      %v3639 = vrot.slane %v3638, 4
      %v3641 = vshll.u32 %v3533, 16
      %v3643 = vrot.slane %v3641, 5
      %v3644 = vsel %vm1707, %v3639, %v3643
      %v3646 = vshrl.u32 %v3534, 16
      %v3648 = vrot.slane %v3646, 4
      %v3649 = vshll.u32 %v3534, 16
      %v3651 = vrot.slane %v3649, 5
      %v3652 = vor.u32 %v3648, %v3651
      %v3653 = vrot.slane %v3652, 4
      %v3655 = vshll.u32 %v3535, 16
      %v3657 = vrot.slane %v3655, 5
      %v3658 = vsel %vm1707, %v3653, %v3657
      %v3659 = vshrl.u32 %v3535, 16
      %v3661 = vrot.slane %v3659, 4
      %v3662 = vor.u32 %v3661, %v3657
      %v3663 = vrot.slane %v3662, 4
      %v3665 = vshll.u32 %v3536, 16
      %v3667 = vrot.slane %v3665, 5
      %v3668 = vsel %vm1707, %v3663, %v3667
      %v3670 = vshrl.u32 %v3537, 16
      %v3672 = vrot.slane %v3670, 4
      %v3673 = vshll.u32 %v3537, 16
      %v3675 = vrot.slane %v3673, 5
      %v3676 = vor.u32 %v3672, %v3675
      %v3677 = vrot.slane %v3676, 4
      %v3679 = vshll.u32 %v3538, 16
      %v3681 = vrot.slane %v3679, 5
      %v3682 = vsel %vm1707, %v3677, %v3681
      %v3683 = vshrl.u32 %v3538, 16
      %v3685 = vrot.slane %v3683, 4
      %v3686 = vor.u32 %v3685, %v3681
      %v3687 = vrot.slane %v3686, 4
      %v3689 = vshll.u32 %v3539, 16
      %v3691 = vrot.slane %v3689, 5
      %v3692 = vsel %vm1707, %v3687, %v3691
      %v3694 = vshrl.u32 %v3540, 16
      %v3696 = vrot.slane %v3694, 4
      %v3697 = vshll.u32 %v3540, 16
      %v3699 = vrot.slane %v3697, 5
      %v3700 = vor.u32 %v3696, %v3699
      %v3701 = vrot.slane %v3700, 4
      %v3703 = vshll.u32 %v3541, 16
      %v3705 = vrot.slane %v3703, 5
      %v3706 = vsel %vm1707, %v3701, %v3705
      %v3707 = vshrl.u32 %v3541, 16
      %v3709 = vrot.slane %v3707, 4
      %v3710 = vor.u32 %v3709, %v3705
      %v3711 = vrot.slane %v3710, 4
      %v3713 = vshll.u32 %v3542, 16
      %v3715 = vrot.slane %v3713, 5
      %v3716 = vsel %vm1707, %v3711, %v3715
      %v3718 = vshrl.u32 %v3543, 16
      %v3720 = vrot.slane %v3718, 4
      %v3721 = vshll.u32 %v3543, 16
      %v3723 = vrot.slane %v3721, 5
      %v3724 = vor.u32 %v3720, %v3723
      %v3725 = vrot.slane %v3724, 4
      %v3727 = vshll.u32 %v3544, 16
      %v3729 = vrot.slane %v3727, 5
      %v3730 = vsel %vm1707, %v3725, %v3729
      %v3731 = vshrl.u32 %v3544, 16
      %v3733 = vrot.slane %v3731, 4
      %v3734 = vor.u32 %v3733, %v3729
      %v3735 = vrot.slane %v3734, 4
      %v3737 = vshll.u32 %v3545, 16
      %v3739 = vrot.slane %v3737, 5
      %v3740 = vsel %vm1707, %v3735, %v3739
      %v3742 = vshrl.u32 %v3546, 16
      %v3744 = vrot.slane %v3742, 4
      %v3745 = vshll.u32 %v3546, 16
      %v3747 = vrot.slane %v3745, 5
      %v3748 = vor.u32 %v3744, %v3747
      %v3749 = vrot.slane %v3748, 4
      %v3751 = vshll.u32 %v3547, 16
      %v3753 = vrot.slane %v3751, 5
      %v3754 = vsel %vm1707, %v3749, %v3753
      %v3755 = vshrl.u32 %v3547, 16
      %v3757 = vrot.slane %v3755, 4
      %v3758 = vor.u32 %v3757, %v3753
      %v3759 = vrot.slane %v3758, 4
      %v3761 = vshll.u32 %v3548, 16
      %v3763 = vrot.slane %v3761, 5
      %v3764 = vsel %vm1707, %v3759, %v3763
      %v3766 = vshrl.u32 %v3549, 16
      %v3768 = vrot.slane %v3766, 4
      %v3769 = vshll.u32 %v3549, 16
      %v3771 = vrot.slane %v3769, 5
      %v3772 = vor.u32 %v3768, %v3771
      %v3773 = vrot.slane %v3772, 4
      %v3775 = vshll.u32 %v3550, 16
      %v3777 = vrot.slane %v3775, 5
      %v3778 = vsel %vm1707, %v3773, %v3777
      %v3779 = vshrl.u32 %v3550, 16
      %v3781 = vrot.slane %v3779, 4
      %v3782 = vor.u32 %v3781, %v3777
      %v3783 = vrot.slane %v3782, 4
      %v3785 = vshll.u32 %v3551, 16
      %v3787 = vrot.slane %v3785, 5
      %v3788 = vsel %vm1707, %v3783, %v3787
      %v3790 = vshrl.u32 %v3552, 16
      %v3792 = vrot.slane %v3790, 4
      %v3793 = vshll.u32 %v3552, 16
      %v3795 = vrot.slane %v3793, 5
      %v3796 = vor.u32 %v3792, %v3795
      %v3797 = vrot.slane %v3796, 4
      %v3799 = vshll.u32 %v3553, 16
      %v3801 = vrot.slane %v3799, 5
      %v3802 = vsel %vm1707, %v3797, %v3801
      %v3803 = vshrl.u32 %v3553, 16
      %v3805 = vrot.slane %v3803, 4
      %v3806 = vor.u32 %v3805, %v3801
      %v3807 = vrot.slane %v3806, 4
      %v3809 = vshll.u32 %v3554, 16
      %v3811 = vrot.slane %v3809, 5
      %v3812 = vsel %vm1707, %v3807, %v3811
      %v3814 = vshrl.u32 %v3555, 16
      %v3816 = vrot.slane %v3814, 4
      %v3817 = vshll.u32 %v3555, 16
      %v3819 = vrot.slane %v3817, 5
      %v3820 = vor.u32 %v3816, %v3819
      %v3821 = vrot.slane %v3820, 4
      %v3823 = vshll.u32 %v3556, 16
      %v3825 = vrot.slane %v3823, 5
      %v3826 = vsel %vm1707, %v3821, %v3825
      %v3827 = vshrl.u32 %v3556, 16
      %v3829 = vrot.slane %v3827, 4
      %v3830 = vor.u32 %v3829, %v3825
      %v3831 = vrot.slane %v3830, 4
      %v3833 = vshll.u32 %v3557, 16
      %v3835 = vrot.slane %v3833, 5
      %v3836 = vsel %vm1707, %v3831, %v3835
      %v3838 = vshrl.u32 %v3558, 16
      %v3840 = vrot.slane %v3838, 4
      %v3841 = vshll.u32 %v3558, 16
      %v3843 = vrot.slane %v3841, 5
      %v3844 = vor.u32 %v3840, %v3843
      %v3845 = vrot.slane %v3844, 4
      %v3847 = vshll.u32 %v3559, 16
      %v3849 = vrot.slane %v3847, 5
      %v3850 = vsel %vm1707, %v3845, %v3849
      %v3851 = vshrl.u32 %v3559, 16
      %v3853 = vrot.slane %v3851, 4
      %v3854 = vor.u32 %v3853, %v3849
      %v3855 = vrot.slane %v3854, 4
      %v3857 = vshll.u32 %v3560, 16
      %v3859 = vrot.slane %v3857, 5
      %v3860 = vsel %vm1707, %v3855, %v3859
      %v3862 = vshrl.u32 %v3561, 16
      %v3864 = vrot.slane %v3862, 4
      %v3865 = vshll.u32 %v3561, 16
      %v3867 = vrot.slane %v3865, 5
      %v3868 = vor.u32 %v3864, %v3867
      %v3869 = vrot.slane %v3868, 4
      %v3871 = vshll.u32 %v3562, 16
      %v3873 = vrot.slane %v3871, 5
      %v3874 = vsel %vm1707, %v3869, %v3873
      %v3875 = vshrl.u32 %v3562, 16
      %v3877 = vrot.slane %v3875, 4
      %v3878 = vor.u32 %v3877, %v3873
      %v3879 = vrot.slane %v3878, 4
      %v3881 = vshll.u32 %v3563, 16
      %v3883 = vrot.slane %v3881, 5
      %v3884 = vsel %vm1707, %v3879, %v3883
      %v3886 = vshrl.u32 %v3564, 16
      %v3888 = vrot.slane %v3886, 4
      %v3889 = vshll.u32 %v3564, 16
      %v3891 = vrot.slane %v3889, 5
      %v3892 = vor.u32 %v3888, %v3891
      %v3893 = vrot.slane %v3892, 4
      %v3895 = vshll.u32 %v3565, 16
      %v3897 = vrot.slane %v3895, 5
      %v3898 = vsel %vm1707, %v3893, %v3897
      %v3899 = vshrl.u32 %v3565, 16
      %v3901 = vrot.slane %v3899, 4
      %v3902 = vor.u32 %v3901, %v3897
      %v3903 = vrot.slane %v3902, 4
      %v3905 = vshll.u32 %v3566, 16
      %v3907 = vrot.slane %v3905, 5
      %v3908 = vsel %vm1707, %v3903, %v3907
      %v3910 = vshrl.u32 %v3567, 16
      %v3912 = vrot.slane %v3910, 4
      %v3913 = vshll.u32 %v3567, 16
      %v3915 = vrot.slane %v3913, 5
      %v3916 = vor.u32 %v3912, %v3915
      %v3917 = vrot.slane %v3916, 4
      %v3919 = vshll.u32 %v3568, 16
      %v3921 = vrot.slane %v3919, 5
      %v3922 = vsel %vm1707, %v3917, %v3921
      %v3923 = vshrl.u32 %v3568, 16
      %v3925 = vrot.slane %v3923, 4
      %v3926 = vor.u32 %v3925, %v3921
      %v3927 = vrot.slane %v3926, 4
      %v3929 = vshll.u32 %v3569, 16
      %v3931 = vrot.slane %v3929, 5
      %v3932 = vsel %vm1707, %v3927, %v3931
      %v3934 = vshrl.u32 %v3570, 16
      %v3936 = vrot.slane %v3934, 4
      %v3937 = vshll.u32 %v3570, 16
      %v3939 = vrot.slane %v3937, 5
      %v3940 = vor.u32 %v3936, %v3939
      %v3941 = vrot.slane %v3940, 4
      %v3943 = vshll.u32 %v3571, 16
      %v3945 = vrot.slane %v3943, 5
      %v3946 = vsel %vm1707, %v3941, %v3945
      %v3947 = vshrl.u32 %v3571, 16
      %v3949 = vrot.slane %v3947, 4
      %v3950 = vor.u32 %v3949, %v3945
      %v3951 = vrot.slane %v3950, 4
      %v3953 = vshll.u32 %v3572, 16
      %v3955 = vrot.slane %v3953, 5
      %v3956 = vsel %vm1707, %v3951, %v3955
      %v3957 = vld [vmem:[#allocation3] sm:$0xff]
      %v3958 = vld [vmem:[#allocation3 + $0x8] sm:$0xff]
      %v3959 = vld [vmem:[#allocation3 + $0x10] sm:$0xff]
      %v3960 = vld [vmem:[#allocation3 + $0x18] sm:$0xff]
      %v3961 = vld [vmem:[#allocation3 + $0x20] sm:$0xff]
      %v3962 = vld [vmem:[#allocation3 + $0x28] sm:$0xff]
      %v3963 = vld [vmem:[#allocation3 + $0x30] sm:$0xff]
      %v3964 = vld [vmem:[#allocation3 + $0x38] sm:$0xff]
      %v3965 = vld [vmem:[#allocation3 + $0x40] sm:$0xff]
      %v3966 = vld [vmem:[#allocation3 + $0x48] sm:$0xff]
      %v3967 = vld [vmem:[#allocation3 + $0x50] sm:$0xff]
      %v3968 = vld [vmem:[#allocation3 + $0x58] sm:$0xff]
      %v3969 = vld [vmem:[#allocation3 + $0x60] sm:$0xff]
      %v3970 = vld [vmem:[#allocation3 + $0x68] sm:$0xff]
      %v3971 = vld [vmem:[#allocation3 + $0x70] sm:$0xff]
      %v3972 = vld [vmem:[#allocation3 + $0x78] sm:$0xff]
      %v3973 = vld [vmem:[#allocation3 + $0x80] sm:$0xff]
      %v3974 = vld [vmem:[#allocation3 + $0x88] sm:$0xff]
      %v3975 = vld [vmem:[#allocation3 + $0x90] sm:$0xff]
      %v3976 = vld [vmem:[#allocation3 + $0x98] sm:$0xff]
      %v3977 = vld [vmem:[#allocation3 + $0xa0] sm:$0xff]
      %v3978 = vld [vmem:[#allocation3 + $0xa8] sm:$0xff]
      %v3979 = vld [vmem:[#allocation3 + $0xb0] sm:$0xff]
      %v3980 = vld [vmem:[#allocation3 + $0xb8] sm:$0xff]
      %v3981 = vld [vmem:[#allocation3 + $0xc0] sm:$0xff]
      %v3982 = vld [vmem:[#allocation3 + $0xc8] sm:$0xff]
      %v3983 = vld [vmem:[#allocation3 + $0xd0] sm:$0xff]
      %v3984 = vld [vmem:[#allocation3 + $0xd8] sm:$0xff]
      %v3985 = vld [vmem:[#allocation3 + $0xe0] sm:$0xff]
      %v3986 = vld [vmem:[#allocation3 + $0xe8] sm:$0xff]
      %v3987 = vld [vmem:[#allocation3 + $0xf0] sm:$0xff]
      %v3988 = vld [vmem:[#allocation3 + $0xf8] sm:$0xff]
      %s3989 = scalar_lea.vmem %s384, 256
      %v3990 = vld [vmem:[%s3989] sm:$0xf]
      %v3991 = vld [vmem:[%s3989 + $0x4] sm:$0xf]
      %v3992 = vld [vmem:[%s3989 + $0x8] sm:$0xf]
      %v3993 = vld [vmem:[%s3989 + $0xc] sm:$0xf]
      %v3994 = vld [vmem:[%s3989 + $0x10] sm:$0xf]
      %v3995 = vld [vmem:[%s3989 + $0x14] sm:$0xf]
      %v3996 = vld [vmem:[%s3989 + $0x18] sm:$0xf]
      %v3997 = vld [vmem:[%s3989 + $0x1c] sm:$0xf]
      %v3998 = vld [vmem:[%s3989 + $0x20] sm:$0xf]
      %v3999 = vld [vmem:[%s3989 + $0x24] sm:$0xf]
      %v4000 = vld [vmem:[%s3989 + $0x28] sm:$0xf]
      %v4001 = vld [vmem:[%s3989 + $0x2c] sm:$0xf]
      %v4002 = vld [vmem:[%s3989 + $0x30] sm:$0xf]
      %v4003 = vld [vmem:[%s3989 + $0x34] sm:$0xf]
      %v4004 = vld [vmem:[%s3989 + $0x38] sm:$0xf]
      %v4005 = vld [vmem:[%s3989 + $0x3c] sm:$0xf]
      %v4006 = vunpack.c.l.b16 %v3586
      %v4007 = vunpack.c.l.b16 %v3596
      %v4008 = vunpack.c.l.b16 %v3610
      %v4009 = vunpack.c.l.b16 %v3620
      %v4010 = vunpack.c.l.b16 %v3634
      %v4011 = vunpack.c.l.b16 %v3644
      %v4012 = vunpack.c.l.b16 %v3658
      %v4013 = vunpack.c.l.b16 %v3668
      %v4014 = vunpack.c.l.b16 %v3682
      %v4015 = vunpack.c.l.b16 %v3692
      %v4016 = vunpack.c.l.b16 %v3706
      %v4017 = vunpack.c.l.b16 %v3716
      %v4018 = vunpack.c.l.b16 %v3730
      %v4019 = vunpack.c.l.b16 %v3740
      %v4020 = vunpack.c.l.b16 %v3754
      %v4021 = vunpack.c.l.b16 %v3764
      %v4022 = vunpack.c.l.b16 %v3778
      %v4023 = vunpack.c.l.b16 %v3788
      %v4024 = vunpack.c.l.b16 %v3802
      %v4025 = vunpack.c.l.b16 %v3812
      %v4026 = vunpack.c.l.b16 %v3826
      %v4027 = vunpack.c.l.b16 %v3836
      %v4028 = vunpack.c.l.b16 %v3850
      %v4029 = vunpack.c.l.b16 %v3860
      %v4030 = vunpack.c.l.b16 %v3874
      %v4031 = vunpack.c.l.b16 %v3884
      %v4032 = vunpack.c.l.b16 %v3898
      %v4033 = vunpack.c.l.b16 %v3908
      %v4034 = vunpack.c.l.b16 %v3922
      %v4035 = vunpack.c.l.b16 %v3932
      %v4036 = vunpack.c.l.b16 %v3946
      %v4037 = vunpack.c.l.b16 %v3956
      %v4038 = vpack.c.b16 %v4007, %v4006
      %v4039 = vpack.c.b16 %v4009, %v4008
      %v4040 = vpack.c.b16 %v4011, %v4010
      %v4041 = vpack.c.b16 %v4013, %v4012
      %v4042 = vpack.c.b16 %v4015, %v4014
      %v4043 = vpack.c.b16 %v4017, %v4016
      %v4044 = vpack.c.b16 %v4019, %v4018
      %v4045 = vpack.c.b16 %v4021, %v4020
      %v4046 = vpack.c.b16 %v4023, %v4022
      %v4047 = vpack.c.b16 %v4025, %v4024
      %v4048 = vpack.c.b16 %v4027, %v4026
      %v4049 = vpack.c.b16 %v4029, %v4028
      %v4050 = vpack.c.b16 %v4031, %v4030
      %v4051 = vpack.c.b16 %v4033, %v4032
      %v4052 = vpack.c.b16 %v4035, %v4034
      %v4053 = vpack.c.b16 %v4037, %v4036
      %v4086 = vunpack.c.l.b16 %v3990
      %v4087 = vunpack.c.l.b16 %v3991
      %v4088 = vunpack.c.l.b16 %v3992
      %v4089 = vunpack.c.l.b16 %v3993
      %v4090 = vunpack.c.l.b16 %v3994
      %v4091 = vunpack.c.l.b16 %v3995
      %v4092 = vunpack.c.l.b16 %v3996
      %v4093 = vunpack.c.l.b16 %v3997
      %v4094 = vunpack.c.l.b16 %v3998
      %v4095 = vunpack.c.l.b16 %v3999
      %v4096 = vunpack.c.l.b16 %v4000
      %v4097 = vunpack.c.l.b16 %v4001
      %v4098 = vunpack.c.l.b16 %v4002
      %v4099 = vunpack.c.l.b16 %v4003
      %v4100 = vunpack.c.l.b16 %v4004
      %v4101 = vunpack.c.l.b16 %v4005
      %v4102 = vpack.c.b16 %v4087, %v4086
      %v4103 = vpack.c.b16 %v4089, %v4088
      %v4104 = vpack.c.b16 %v4091, %v4090
      %v4105 = vpack.c.b16 %v4093, %v4092
      %v4106 = vpack.c.b16 %v4095, %v4094
      %v4107 = vpack.c.b16 %v4097, %v4096
      %v4108 = vpack.c.b16 %v4099, %v4098
      %v4109 = vpack.c.b16 %v4101, %v4100
      %4118 = vmatprep.subr.bf16.mxu0 0
      %4119 = vmatpush1.bf16.msra.mxu0 %v4109
      %4120 = vmatprep.subr.bf16.mxu0 0
      %4121 = vmatpush1.bf16.msra.mxu0 %v4108
      %4122 = vmatprep.subr.bf16.mxu0 0
      %4123 = vmatpush1.bf16.msra.mxu0 %v4107
      %4124 = vmatprep.subr.bf16.mxu0 0
      %4125 = vmatpush1.bf16.msra.mxu0 %v4106
      %4126 = vmatprep.subr.bf16.mxu0 0
      %4127 = vmatpush1.bf16.msra.mxu0 %v4105
      %4128 = vmatprep.subr.bf16.mxu0 0
      %4129 = vmatpush1.bf16.msra.mxu0 %v4104
      %4130 = vmatprep.subr.bf16.mxu0 0
      %4131 = vmatpush1.bf16.msra.mxu0 %v4103
      %4132 = vmatprep.subr.bf16.mxu0 0
      %4133 = vmatpush1.bf16.msra.mxu0 %v4102
      %4134 = vmatprep.subr.bf16.mxu0 0
      %4135 = vmatpush2.bf16.msra.mxu0 0
      %4136 = vmatprep.subr.bf16.mxu0 0
      %4137 = vmatpush2.bf16.msra.mxu0 0
      %4138 = vmatprep.subr.bf16.mxu0 0
      %4139 = vmatpush2.bf16.msra.mxu0 0
      %4140 = vmatprep.subr.bf16.mxu0 0
      %4141 = vmatpush2.bf16.msra.mxu0 0
      %4142 = vmatprep.subr.bf16.mxu0 0
      %4143 = vmatpush2.bf16.msra.mxu0 0
      %4144 = vmatprep.subr.bf16.mxu0 0
      %4145 = vmatpush2.bf16.msra.mxu0 0
      %4146 = vmatprep.subr.bf16.mxu0 0
      %4147 = vmatpush2.bf16.msra.mxu0 0
      %4148 = vmatprep.subr.bf16.mxu0 0
      %4149 = vmatpush2.bf16.msra.mxu0 0
      %4150 = vmatprep.mubr.bf16.mxu0 0
      %4151 = vmatmul.mubr.bf16.gmra.mxu0 %v4038
      %v4152 = vpop.f32.mrf.mxu0
      %v4153 = vadd.f32 0.0, %v4152
      %v4154 = vpop.f32.mrf.mxu0
      %v4155 = vpop.f32.mrf.mxu0
      %v4156 = vadd.f32 0.0, %v4155
      %v4157 = vpop.f32.mrf.mxu0
      %4158 = vmatprep.mubr.bf16.mxu0 0
      %4159 = vmatmul.mubr.bf16.gmra.mxu0 %v4039
      %v4160 = vpop.f32.mrf.mxu0
      %v4161 = vadd.f32 0.0, %v4160
      %v4162 = vpop.f32.mrf.mxu0
      %v4163 = vpop.f32.mrf.mxu0
      %v4164 = vadd.f32 0.0, %v4163
      %v4165 = vpop.f32.mrf.mxu0
      %4166 = vmatprep.mubr.bf16.mxu0 0
      %4167 = vmatmul.mubr.bf16.gmra.mxu0 %v4040
      %v4168 = vpop.f32.mrf.mxu0
      %v4169 = vadd.f32 0.0, %v4168
      %v4170 = vpop.f32.mrf.mxu0
      %v4171 = vpop.f32.mrf.mxu0
      %v4172 = vadd.f32 0.0, %v4171
      %v4173 = vpop.f32.mrf.mxu0
      %4174 = vmatprep.mubr.bf16.mxu0 0
      %4175 = vmatmul.mubr.bf16.gmra.mxu0 %v4041
      %v4176 = vpop.f32.mrf.mxu0
      %v4177 = vadd.f32 0.0, %v4176
      %v4178 = vpop.f32.mrf.mxu0
      %v4179 = vpop.f32.mrf.mxu0
      %v4180 = vadd.f32 0.0, %v4179
      %v4181 = vpop.f32.mrf.mxu0
      %4182 = vmatprep.mubr.bf16.mxu0 0
      %4183 = vmatmul.mubr.bf16.gmra.mxu0 %v4042
      %v4184 = vpop.f32.mrf.mxu0
      %v4185 = vadd.f32 0.0, %v4184
      %v4186 = vpop.f32.mrf.mxu0
      %v4187 = vpop.f32.mrf.mxu0
      %v4188 = vadd.f32 0.0, %v4187
      %v4189 = vpop.f32.mrf.mxu0
      %4190 = vmatprep.mubr.bf16.mxu0 0
      %4191 = vmatmul.mubr.bf16.gmra.mxu0 %v4043
      %v4192 = vpop.f32.mrf.mxu0
      %v4193 = vadd.f32 0.0, %v4192
      %v4194 = vpop.f32.mrf.mxu0
      %v4195 = vpop.f32.mrf.mxu0
      %v4196 = vadd.f32 0.0, %v4195
      %v4197 = vpop.f32.mrf.mxu0
      %4198 = vmatprep.mubr.bf16.mxu0 0
      %4199 = vmatmul.mubr.bf16.gmra.mxu0 %v4044
      %v4200 = vpop.f32.mrf.mxu0
      %v4201 = vadd.f32 0.0, %v4200
      %v4202 = vpop.f32.mrf.mxu0
      %v4203 = vpop.f32.mrf.mxu0
      %v4204 = vadd.f32 0.0, %v4203
      %v4205 = vpop.f32.mrf.mxu0
      %4206 = vmatprep.mubr.bf16.mxu0 0
      %4207 = vmatmul.mubr.bf16.gmra.mxu0 %v4045
      %v4208 = vpop.f32.mrf.mxu0
      %v4209 = vadd.f32 0.0, %v4208
      %v4210 = vpop.f32.mrf.mxu0
      %v4211 = vpop.f32.mrf.mxu0
      %v4212 = vadd.f32 0.0, %v4211
      %v4213 = vpop.f32.mrf.mxu0
      %4214 = vmatprep.mubr.bf16.mxu0 0
      %4215 = vmatmul.mubr.bf16.gmra.mxu0 %v4046
      %v4216 = vpop.f32.mrf.mxu0
      %v4217 = vadd.f32 0.0, %v4216
      %v4218 = vpop.f32.mrf.mxu0
      %v4219 = vpop.f32.mrf.mxu0
      %v4220 = vadd.f32 0.0, %v4219
      %v4221 = vpop.f32.mrf.mxu0
      %4222 = vmatprep.mubr.bf16.mxu0 0
      %4223 = vmatmul.mubr.bf16.gmra.mxu0 %v4047
      %v4224 = vpop.f32.mrf.mxu0
      %v4225 = vadd.f32 0.0, %v4224
      %v4226 = vpop.f32.mrf.mxu0
      %v4227 = vpop.f32.mrf.mxu0
      %v4228 = vadd.f32 0.0, %v4227
      %v4229 = vpop.f32.mrf.mxu0
      %4230 = vmatprep.mubr.bf16.mxu0 0
      %4231 = vmatmul.mubr.bf16.gmra.mxu0 %v4048
      %v4232 = vpop.f32.mrf.mxu0
      %v4233 = vadd.f32 0.0, %v4232
      %v4234 = vpop.f32.mrf.mxu0
      %v4235 = vpop.f32.mrf.mxu0
      %v4236 = vadd.f32 0.0, %v4235
      %v4237 = vpop.f32.mrf.mxu0
      %4238 = vmatprep.mubr.bf16.mxu0 0
      %4239 = vmatmul.mubr.bf16.gmra.mxu0 %v4049
      %v4240 = vpop.f32.mrf.mxu0
      %v4241 = vadd.f32 0.0, %v4240
      %v4242 = vpop.f32.mrf.mxu0
      %v4243 = vpop.f32.mrf.mxu0
      %v4244 = vadd.f32 0.0, %v4243
      %v4245 = vpop.f32.mrf.mxu0
      %4246 = vmatprep.mubr.bf16.mxu0 0
      %4247 = vmatmul.mubr.bf16.gmra.mxu0 %v4050
      %v4248 = vpop.f32.mrf.mxu0
      %v4249 = vadd.f32 0.0, %v4248
      %v4250 = vpop.f32.mrf.mxu0
      %v4251 = vpop.f32.mrf.mxu0
      %v4252 = vadd.f32 0.0, %v4251
      %v4253 = vpop.f32.mrf.mxu0
      %4254 = vmatprep.mubr.bf16.mxu0 0
      %4255 = vmatmul.mubr.bf16.gmra.mxu0 %v4051
      %v4256 = vpop.f32.mrf.mxu0
      %v4257 = vadd.f32 0.0, %v4256
      %v4258 = vpop.f32.mrf.mxu0
      %v4259 = vpop.f32.mrf.mxu0
      %v4260 = vadd.f32 0.0, %v4259
      %v4261 = vpop.f32.mrf.mxu0
      %4262 = vmatprep.mubr.bf16.mxu0 0
      %4263 = vmatmul.mubr.bf16.gmra.mxu0 %v4052
      %v4264 = vpop.f32.mrf.mxu0
      %v4265 = vadd.f32 0.0, %v4264
      %v4266 = vpop.f32.mrf.mxu0
      %v4267 = vpop.f32.mrf.mxu0
      %v4268 = vadd.f32 0.0, %v4267
      %v4269 = vpop.f32.mrf.mxu0
      %4270 = vmatprep.mubr.bf16.mxu0 0
      %4271 = vmatmul.mubr.bf16.gmra.mxu0 %v4053
      %v4272 = vpop.f32.mrf.mxu0
      %v4273 = vadd.f32 0.0, %v4272
      %v4274 = vpop.f32.mrf.mxu0
      %v4275 = vpop.f32.mrf.mxu0
      %v4276 = vadd.f32 0.0, %v4275
      %v4277 = vpop.f32.mrf.mxu0
      %4278 = vdwg.mxu0
      %v4279 = vadd.f32 %v3957, %v4153
      %v4280 = vadd.f32 %v3958, %v4156
      %v4281 = vadd.f32 %v3959, %v4161
      %v4282 = vadd.f32 %v3960, %v4164
      %v4283 = vadd.f32 %v3961, %v4169
      %v4284 = vadd.f32 %v3962, %v4172
      %v4285 = vadd.f32 %v3963, %v4177
      %v4286 = vadd.f32 %v3964, %v4180
      %v4287 = vadd.f32 %v3965, %v4185
      %v4288 = vadd.f32 %v3966, %v4188
      %v4289 = vadd.f32 %v3967, %v4193
      %v4290 = vadd.f32 %v3968, %v4196
      %v4291 = vadd.f32 %v3969, %v4201
      %v4292 = vadd.f32 %v3970, %v4204
      %v4293 = vadd.f32 %v3971, %v4209
      %v4294 = vadd.f32 %v3972, %v4212
      %v4295 = vadd.f32 %v3973, %v4217
      %v4296 = vadd.f32 %v3974, %v4220
      %v4297 = vadd.f32 %v3975, %v4225
      %v4298 = vadd.f32 %v3976, %v4228
      %v4299 = vadd.f32 %v3977, %v4233
      %v4300 = vadd.f32 %v3978, %v4236
      %v4301 = vadd.f32 %v3979, %v4241
      %v4302 = vadd.f32 %v3980, %v4244
      %v4303 = vadd.f32 %v3981, %v4249
      %v4304 = vadd.f32 %v3982, %v4252
      %v4305 = vadd.f32 %v3983, %v4257
      %v4306 = vadd.f32 %v3984, %v4260
      %v4307 = vadd.f32 %v3985, %v4265
      %v4308 = vadd.f32 %v3986, %v4268
      %v4309 = vadd.f32 %v3987, %v4273
      %v4310 = vadd.f32 %v3988, %v4276
      %4311 = vst [vmem:[#allocation3] sm:$0xff] %v4279
      %4312 = vst [vmem:[#allocation3 + $0x8] sm:$0xff] %v4280
      %4313 = vst [vmem:[#allocation3 + $0x10] sm:$0xff] %v4281
      %4314 = vst [vmem:[#allocation3 + $0x18] sm:$0xff] %v4282
      %4315 = vst [vmem:[#allocation3 + $0x20] sm:$0xff] %v4283
      %4316 = vst [vmem:[#allocation3 + $0x28] sm:$0xff] %v4284
      %4317 = vst [vmem:[#allocation3 + $0x30] sm:$0xff] %v4285
      %4318 = vst [vmem:[#allocation3 + $0x38] sm:$0xff] %v4286
      %4319 = vst [vmem:[#allocation3 + $0x40] sm:$0xff] %v4287
      %4320 = vst [vmem:[#allocation3 + $0x48] sm:$0xff] %v4288
      %4321 = vst [vmem:[#allocation3 + $0x50] sm:$0xff] %v4289
      %4322 = vst [vmem:[#allocation3 + $0x58] sm:$0xff] %v4290
      %4323 = vst [vmem:[#allocation3 + $0x60] sm:$0xff] %v4291
      %4324 = vst [vmem:[#allocation3 + $0x68] sm:$0xff] %v4292
      %4325 = vst [vmem:[#allocation3 + $0x70] sm:$0xff] %v4293
      %4326 = vst [vmem:[#allocation3 + $0x78] sm:$0xff] %v4294
      %4327 = vst [vmem:[#allocation3 + $0x80] sm:$0xff] %v4295
      %4328 = vst [vmem:[#allocation3 + $0x88] sm:$0xff] %v4296
      %4329 = vst [vmem:[#allocation3 + $0x90] sm:$0xff] %v4297
      %4330 = vst [vmem:[#allocation3 + $0x98] sm:$0xff] %v4298
      %4331 = vst [vmem:[#allocation3 + $0xa0] sm:$0xff] %v4299
      %4332 = vst [vmem:[#allocation3 + $0xa8] sm:$0xff] %v4300
      %4333 = vst [vmem:[#allocation3 + $0xb0] sm:$0xff] %v4301
      %4334 = vst [vmem:[#allocation3 + $0xb8] sm:$0xff] %v4302
      %4335 = vst [vmem:[#allocation3 + $0xc0] sm:$0xff] %v4303
      %4336 = vst [vmem:[#allocation3 + $0xc8] sm:$0xff] %v4304
      %4337 = vst [vmem:[#allocation3 + $0xd0] sm:$0xff] %v4305
      %4338 = vst [vmem:[#allocation3 + $0xd8] sm:$0xff] %v4306
      %4339 = vst [vmem:[#allocation3 + $0xe0] sm:$0xff] %v4307
      %4340 = vst [vmem:[#allocation3 + $0xe8] sm:$0xff] %v4308
      %4341 = vst [vmem:[#allocation3 + $0xf0] sm:$0xff] %v4309
      %4342 = vst [vmem:[#allocation3 + $0xf8] sm:$0xff] %v4310
      %v4343 = vld [vmem:[%s1090] sm:$0xe]
      %v4344 = vld [vmem:[%s1090 + $0x4] sm:$0xf]
      %v4345 = vld [vmem:[%s1090 + $0x8] sm:$0x1]
      %v4346 = vld [vmem:[%s1090 + $0xc] sm:$0xe]
      %v4347 = vld [vmem:[%s1090 + $0x10] sm:$0xf]
      %v4348 = vld [vmem:[%s1090 + $0x14] sm:$0x1]
      %v4349 = vld [vmem:[%s1090 + $0x18] sm:$0xe]
      %v4350 = vld [vmem:[%s1090 + $0x1c] sm:$0xf]
      %v4351 = vld [vmem:[%s1090 + $0x20] sm:$0x1]
      %v4352 = vld [vmem:[%s1090 + $0x24] sm:$0xe]
      %v4353 = vld [vmem:[%s1090 + $0x28] sm:$0xf]
      %v4354 = vld [vmem:[%s1090 + $0x2c] sm:$0x1]
      %v4355 = vld [vmem:[%s1090 + $0x30] sm:$0xe]
      %v4356 = vld [vmem:[%s1090 + $0x34] sm:$0xf]
      %v4357 = vld [vmem:[%s1090 + $0x38] sm:$0x1]
      %v4358 = vld [vmem:[%s1090 + $0x3c] sm:$0xe]
      %v4359 = vld [vmem:[%s1090 + $0x40] sm:$0xf]
      %v4360 = vld [vmem:[%s1090 + $0x44] sm:$0x1]
      %v4361 = vld [vmem:[%s1090 + $0x48] sm:$0xe]
      %v4362 = vld [vmem:[%s1090 + $0x4c] sm:$0xf]
      %v4363 = vld [vmem:[%s1090 + $0x50] sm:$0x1]
      %v4364 = vld [vmem:[%s1090 + $0x54] sm:$0xe]
      %v4365 = vld [vmem:[%s1090 + $0x58] sm:$0xf]
      %v4366 = vld [vmem:[%s1090 + $0x5c] sm:$0x1]
      %v4367 = vld [vmem:[%s1090 + $0x60] sm:$0xe]
      %v4368 = vld [vmem:[%s1090 + $0x64] sm:$0xf]
      %v4369 = vld [vmem:[%s1090 + $0x68] sm:$0x1]
      %v4370 = vld [vmem:[%s1090 + $0x6c] sm:$0xe]
      %v4371 = vld [vmem:[%s1090 + $0x70] sm:$0xf]
      %v4372 = vld [vmem:[%s1090 + $0x74] sm:$0x1]
      %v4373 = vld [vmem:[%s1090 + $0x78] sm:$0xe]
      %v4374 = vld [vmem:[%s1090 + $0x7c] sm:$0xf]
      %v4375 = vld [vmem:[%s1090 + $0x80] sm:$0x1]
      %v4376 = vld [vmem:[%s1090 + $0x84] sm:$0xe]
      %v4377 = vld [vmem:[%s1090 + $0x88] sm:$0xf]
      %v4378 = vld [vmem:[%s1090 + $0x8c] sm:$0x1]
      %v4379 = vld [vmem:[%s1090 + $0x90] sm:$0xe]
      %v4380 = vld [vmem:[%s1090 + $0x94] sm:$0xf]
      %v4381 = vld [vmem:[%s1090 + $0x98] sm:$0x1]
      %v4382 = vld [vmem:[%s1090 + $0x9c] sm:$0xe]
      %v4383 = vld [vmem:[%s1090 + $0xa0] sm:$0xf]
      %v4384 = vld [vmem:[%s1090 + $0xa4] sm:$0x1]
      %v4385 = vld [vmem:[%s1090 + $0xa8] sm:$0xe]
      %v4386 = vld [vmem:[%s1090 + $0xac] sm:$0xf]
      %v4387 = vld [vmem:[%s1090 + $0xb0] sm:$0x1]
      %v4388 = vld [vmem:[%s1090 + $0xb4] sm:$0xe]
      %v4389 = vld [vmem:[%s1090 + $0xb8] sm:$0xf]
      %v4390 = vld [vmem:[%s1090 + $0xbc] sm:$0x1]
      %v4439 = vrot.slane %v4343, 5
      %v4440 = vrot.slane %v4439, 4
      %v4441 = vrot.slane %v4344, 5
      %v4442 = vsel %vm2576, %v4440, %v4441
      %v4443 = vrot.slane %v4441, 4
      %v4444 = vrot.slane %v4345, 5
      %v4445 = vsel %vm2576, %v4443, %v4444
      %v4446 = vrot.slane %v4346, 5
      %v4447 = vrot.slane %v4446, 4
      %v4448 = vrot.slane %v4347, 5
      %v4449 = vsel %vm2576, %v4447, %v4448
      %v4450 = vrot.slane %v4448, 4
      %v4451 = vrot.slane %v4348, 5
      %v4452 = vsel %vm2576, %v4450, %v4451
      %v4453 = vrot.slane %v4349, 5
      %v4454 = vrot.slane %v4453, 4
      %v4455 = vrot.slane %v4350, 5
      %v4456 = vsel %vm2576, %v4454, %v4455
      %v4457 = vrot.slane %v4455, 4
      %v4458 = vrot.slane %v4351, 5
      %v4459 = vsel %vm2576, %v4457, %v4458
      %v4460 = vrot.slane %v4352, 5
      %v4461 = vrot.slane %v4460, 4
      %v4462 = vrot.slane %v4353, 5
      %v4463 = vsel %vm2576, %v4461, %v4462
      %v4464 = vrot.slane %v4462, 4
      %v4465 = vrot.slane %v4354, 5
      %v4466 = vsel %vm2576, %v4464, %v4465
      %v4467 = vrot.slane %v4355, 5
      %v4468 = vrot.slane %v4467, 4
      %v4469 = vrot.slane %v4356, 5
      %v4470 = vsel %vm2576, %v4468, %v4469
      %v4471 = vrot.slane %v4469, 4
      %v4472 = vrot.slane %v4357, 5
      %v4473 = vsel %vm2576, %v4471, %v4472
      %v4474 = vrot.slane %v4358, 5
      %v4475 = vrot.slane %v4474, 4
      %v4476 = vrot.slane %v4359, 5
      %v4477 = vsel %vm2576, %v4475, %v4476
      %v4478 = vrot.slane %v4476, 4
      %v4479 = vrot.slane %v4360, 5
      %v4480 = vsel %vm2576, %v4478, %v4479
      %v4481 = vrot.slane %v4361, 5
      %v4482 = vrot.slane %v4481, 4
      %v4483 = vrot.slane %v4362, 5
      %v4484 = vsel %vm2576, %v4482, %v4483
      %v4485 = vrot.slane %v4483, 4
      %v4486 = vrot.slane %v4363, 5
      %v4487 = vsel %vm2576, %v4485, %v4486
      %v4488 = vrot.slane %v4364, 5
      %v4489 = vrot.slane %v4488, 4
      %v4490 = vrot.slane %v4365, 5
      %v4491 = vsel %vm2576, %v4489, %v4490
      %v4492 = vrot.slane %v4490, 4
      %v4493 = vrot.slane %v4366, 5
      %v4494 = vsel %vm2576, %v4492, %v4493
      %v4495 = vrot.slane %v4367, 5
      %v4496 = vrot.slane %v4495, 4
      %v4497 = vrot.slane %v4368, 5
      %v4498 = vsel %vm2576, %v4496, %v4497
      %v4499 = vrot.slane %v4497, 4
      %v4500 = vrot.slane %v4369, 5
      %v4501 = vsel %vm2576, %v4499, %v4500
      %v4502 = vrot.slane %v4370, 5
      %v4503 = vrot.slane %v4502, 4
      %v4504 = vrot.slane %v4371, 5
      %v4505 = vsel %vm2576, %v4503, %v4504
      %v4506 = vrot.slane %v4504, 4
      %v4507 = vrot.slane %v4372, 5
      %v4508 = vsel %vm2576, %v4506, %v4507
      %v4509 = vrot.slane %v4373, 5
      %v4510 = vrot.slane %v4509, 4
      %v4511 = vrot.slane %v4374, 5
      %v4512 = vsel %vm2576, %v4510, %v4511
      %v4513 = vrot.slane %v4511, 4
      %v4514 = vrot.slane %v4375, 5
      %v4515 = vsel %vm2576, %v4513, %v4514
      %v4516 = vrot.slane %v4376, 5
      %v4517 = vrot.slane %v4516, 4
      %v4518 = vrot.slane %v4377, 5
      %v4519 = vsel %vm2576, %v4517, %v4518
      %v4520 = vrot.slane %v4518, 4
      %v4521 = vrot.slane %v4378, 5
      %v4522 = vsel %vm2576, %v4520, %v4521
      %v4523 = vrot.slane %v4379, 5
      %v4524 = vrot.slane %v4523, 4
      %v4525 = vrot.slane %v4380, 5
      %v4526 = vsel %vm2576, %v4524, %v4525
      %v4527 = vrot.slane %v4525, 4
      %v4528 = vrot.slane %v4381, 5
      %v4529 = vsel %vm2576, %v4527, %v4528
      %v4530 = vrot.slane %v4382, 5
      %v4531 = vrot.slane %v4530, 4
      %v4532 = vrot.slane %v4383, 5
      %v4533 = vsel %vm2576, %v4531, %v4532
      %v4534 = vrot.slane %v4532, 4
      %v4535 = vrot.slane %v4384, 5
      %v4536 = vsel %vm2576, %v4534, %v4535
      %v4537 = vrot.slane %v4385, 5
      %v4538 = vrot.slane %v4537, 4
      %v4539 = vrot.slane %v4386, 5
      %v4540 = vsel %vm2576, %v4538, %v4539
      %v4541 = vrot.slane %v4539, 4
      %v4542 = vrot.slane %v4387, 5
      %v4543 = vsel %vm2576, %v4541, %v4542
      %v4544 = vrot.slane %v4388, 5
      %v4545 = vrot.slane %v4544, 4
      %v4546 = vrot.slane %v4389, 5
      %v4547 = vsel %vm2576, %v4545, %v4546
      %v4548 = vrot.slane %v4546, 4
      %v4549 = vrot.slane %v4390, 5
      %v4550 = vsel %vm2576, %v4548, %v4549
      %v4551 = vld [vmem:[#allocation3] sm:$0xff]
      %v4552 = vld [vmem:[#allocation3 + $0x8] sm:$0xff]
      %v4553 = vld [vmem:[#allocation3 + $0x10] sm:$0xff]
      %v4554 = vld [vmem:[#allocation3 + $0x18] sm:$0xff]
      %v4555 = vld [vmem:[#allocation3 + $0x20] sm:$0xff]
      %v4556 = vld [vmem:[#allocation3 + $0x28] sm:$0xff]
      %v4557 = vld [vmem:[#allocation3 + $0x30] sm:$0xff]
      %v4558 = vld [vmem:[#allocation3 + $0x38] sm:$0xff]
      %v4559 = vld [vmem:[#allocation3 + $0x40] sm:$0xff]
      %v4560 = vld [vmem:[#allocation3 + $0x48] sm:$0xff]
      %v4561 = vld [vmem:[#allocation3 + $0x50] sm:$0xff]
      %v4562 = vld [vmem:[#allocation3 + $0x58] sm:$0xff]
      %v4563 = vld [vmem:[#allocation3 + $0x60] sm:$0xff]
      %v4564 = vld [vmem:[#allocation3 + $0x68] sm:$0xff]
      %v4565 = vld [vmem:[#allocation3 + $0x70] sm:$0xff]
      %v4566 = vld [vmem:[#allocation3 + $0x78] sm:$0xff]
      %v4567 = vld [vmem:[#allocation3 + $0x80] sm:$0xff]
      %v4568 = vld [vmem:[#allocation3 + $0x88] sm:$0xff]
      %v4569 = vld [vmem:[#allocation3 + $0x90] sm:$0xff]
      %v4570 = vld [vmem:[#allocation3 + $0x98] sm:$0xff]
      %v4571 = vld [vmem:[#allocation3 + $0xa0] sm:$0xff]
      %v4572 = vld [vmem:[#allocation3 + $0xa8] sm:$0xff]
      %v4573 = vld [vmem:[#allocation3 + $0xb0] sm:$0xff]
      %v4574 = vld [vmem:[#allocation3 + $0xb8] sm:$0xff]
      %v4575 = vld [vmem:[#allocation3 + $0xc0] sm:$0xff]
      %v4576 = vld [vmem:[#allocation3 + $0xc8] sm:$0xff]
      %v4577 = vld [vmem:[#allocation3 + $0xd0] sm:$0xff]
      %v4578 = vld [vmem:[#allocation3 + $0xd8] sm:$0xff]
      %v4579 = vld [vmem:[#allocation3 + $0xe0] sm:$0xff]
      %v4580 = vld [vmem:[#allocation3 + $0xe8] sm:$0xff]
      %v4581 = vld [vmem:[#allocation3 + $0xf0] sm:$0xff]
      %v4582 = vld [vmem:[#allocation3 + $0xf8] sm:$0xff]
      %s4583 = scalar_lea.vmem %s384, 320
      %v4584 = vld [vmem:[%s4583] sm:$0xf]
      %v4585 = vld [vmem:[%s4583 + $0x4] sm:$0xf]
      %v4586 = vld [vmem:[%s4583 + $0x8] sm:$0xf]
      %v4587 = vld [vmem:[%s4583 + $0xc] sm:$0xf]
      %v4588 = vld [vmem:[%s4583 + $0x10] sm:$0xf]
      %v4589 = vld [vmem:[%s4583 + $0x14] sm:$0xf]
      %v4590 = vld [vmem:[%s4583 + $0x18] sm:$0xf]
      %v4591 = vld [vmem:[%s4583 + $0x1c] sm:$0xf]
      %v4592 = vld [vmem:[%s4583 + $0x20] sm:$0xf]
      %v4593 = vld [vmem:[%s4583 + $0x24] sm:$0xf]
      %v4594 = vld [vmem:[%s4583 + $0x28] sm:$0xf]
      %v4595 = vld [vmem:[%s4583 + $0x2c] sm:$0xf]
      %v4596 = vld [vmem:[%s4583 + $0x30] sm:$0xf]
      %v4597 = vld [vmem:[%s4583 + $0x34] sm:$0xf]
      %v4598 = vld [vmem:[%s4583 + $0x38] sm:$0xf]
      %v4599 = vld [vmem:[%s4583 + $0x3c] sm:$0xf]
      %v4600 = vunpack.c.l.b16 %v4442
      %v4601 = vunpack.c.l.b16 %v4445
      %v4602 = vunpack.c.l.b16 %v4449
      %v4603 = vunpack.c.l.b16 %v4452
      %v4604 = vunpack.c.l.b16 %v4456
      %v4605 = vunpack.c.l.b16 %v4459
      %v4606 = vunpack.c.l.b16 %v4463
      %v4607 = vunpack.c.l.b16 %v4466
      %v4608 = vunpack.c.l.b16 %v4470
      %v4609 = vunpack.c.l.b16 %v4473
      %v4610 = vunpack.c.l.b16 %v4477
      %v4611 = vunpack.c.l.b16 %v4480
      %v4612 = vunpack.c.l.b16 %v4484
      %v4613 = vunpack.c.l.b16 %v4487
      %v4614 = vunpack.c.l.b16 %v4491
      %v4615 = vunpack.c.l.b16 %v4494
      %v4616 = vunpack.c.l.b16 %v4498
      %v4617 = vunpack.c.l.b16 %v4501
      %v4618 = vunpack.c.l.b16 %v4505
      %v4619 = vunpack.c.l.b16 %v4508
      %v4620 = vunpack.c.l.b16 %v4512
      %v4621 = vunpack.c.l.b16 %v4515
      %v4622 = vunpack.c.l.b16 %v4519
      %v4623 = vunpack.c.l.b16 %v4522
      %v4624 = vunpack.c.l.b16 %v4526
      %v4625 = vunpack.c.l.b16 %v4529
      %v4626 = vunpack.c.l.b16 %v4533
      %v4627 = vunpack.c.l.b16 %v4536
      %v4628 = vunpack.c.l.b16 %v4540
      %v4629 = vunpack.c.l.b16 %v4543
      %v4630 = vunpack.c.l.b16 %v4547
      %v4631 = vunpack.c.l.b16 %v4550
      %v4632 = vpack.c.b16 %v4601, %v4600
      %v4633 = vpack.c.b16 %v4603, %v4602
      %v4634 = vpack.c.b16 %v4605, %v4604
      %v4635 = vpack.c.b16 %v4607, %v4606
      %v4636 = vpack.c.b16 %v4609, %v4608
      %v4637 = vpack.c.b16 %v4611, %v4610
      %v4638 = vpack.c.b16 %v4613, %v4612
      %v4639 = vpack.c.b16 %v4615, %v4614
      %v4640 = vpack.c.b16 %v4617, %v4616
      %v4641 = vpack.c.b16 %v4619, %v4618
      %v4642 = vpack.c.b16 %v4621, %v4620
      %v4643 = vpack.c.b16 %v4623, %v4622
      %v4644 = vpack.c.b16 %v4625, %v4624
      %v4645 = vpack.c.b16 %v4627, %v4626
      %v4646 = vpack.c.b16 %v4629, %v4628
      %v4647 = vpack.c.b16 %v4631, %v4630
      %v4680 = vunpack.c.l.b16 %v4584
      %v4681 = vunpack.c.l.b16 %v4585
      %v4682 = vunpack.c.l.b16 %v4586
      %v4683 = vunpack.c.l.b16 %v4587
      %v4684 = vunpack.c.l.b16 %v4588
      %v4685 = vunpack.c.l.b16 %v4589
      %v4686 = vunpack.c.l.b16 %v4590
      %v4687 = vunpack.c.l.b16 %v4591
      %v4688 = vunpack.c.l.b16 %v4592
      %v4689 = vunpack.c.l.b16 %v4593
      %v4690 = vunpack.c.l.b16 %v4594
      %v4691 = vunpack.c.l.b16 %v4595
      %v4692 = vunpack.c.l.b16 %v4596
      %v4693 = vunpack.c.l.b16 %v4597
      %v4694 = vunpack.c.l.b16 %v4598
      %v4695 = vunpack.c.l.b16 %v4599
      %v4696 = vpack.c.b16 %v4681, %v4680
      %v4697 = vpack.c.b16 %v4683, %v4682
      %v4698 = vpack.c.b16 %v4685, %v4684
      %v4699 = vpack.c.b16 %v4687, %v4686
      %v4700 = vpack.c.b16 %v4689, %v4688
      %v4701 = vpack.c.b16 %v4691, %v4690
      %v4702 = vpack.c.b16 %v4693, %v4692
      %v4703 = vpack.c.b16 %v4695, %v4694
      %4712 = vmatprep.subr.bf16.mxu0 0
      %4713 = vmatpush1.bf16.msra.mxu0 %v4703
      %4714 = vmatprep.subr.bf16.mxu0 0
      %4715 = vmatpush1.bf16.msra.mxu0 %v4702
      %4716 = vmatprep.subr.bf16.mxu0 0
      %4717 = vmatpush1.bf16.msra.mxu0 %v4701
      %4718 = vmatprep.subr.bf16.mxu0 0
      %4719 = vmatpush1.bf16.msra.mxu0 %v4700
      %4720 = vmatprep.subr.bf16.mxu0 0
      %4721 = vmatpush1.bf16.msra.mxu0 %v4699
      %4722 = vmatprep.subr.bf16.mxu0 0
      %4723 = vmatpush1.bf16.msra.mxu0 %v4698
      %4724 = vmatprep.subr.bf16.mxu0 0
      %4725 = vmatpush1.bf16.msra.mxu0 %v4697
      %4726 = vmatprep.subr.bf16.mxu0 0
      %4727 = vmatpush1.bf16.msra.mxu0 %v4696
      %4728 = vmatprep.subr.bf16.mxu0 0
      %4729 = vmatpush2.bf16.msra.mxu0 0
      %4730 = vmatprep.subr.bf16.mxu0 0
      %4731 = vmatpush2.bf16.msra.mxu0 0
      %4732 = vmatprep.subr.bf16.mxu0 0
      %4733 = vmatpush2.bf16.msra.mxu0 0
      %4734 = vmatprep.subr.bf16.mxu0 0
      %4735 = vmatpush2.bf16.msra.mxu0 0
      %4736 = vmatprep.subr.bf16.mxu0 0
      %4737 = vmatpush2.bf16.msra.mxu0 0
      %4738 = vmatprep.subr.bf16.mxu0 0
      %4739 = vmatpush2.bf16.msra.mxu0 0
      %4740 = vmatprep.subr.bf16.mxu0 0
      %4741 = vmatpush2.bf16.msra.mxu0 0
      %4742 = vmatprep.subr.bf16.mxu0 0
      %4743 = vmatpush2.bf16.msra.mxu0 0
      %4744 = vmatprep.mubr.bf16.mxu0 0
      %4745 = vmatmul.mubr.bf16.gmra.mxu0 %v4632
      %v4746 = vpop.f32.mrf.mxu0
      %v4747 = vadd.f32 0.0, %v4746
      %v4748 = vpop.f32.mrf.mxu0
      %v4749 = vpop.f32.mrf.mxu0
      %v4750 = vadd.f32 0.0, %v4749
      %v4751 = vpop.f32.mrf.mxu0
      %4752 = vmatprep.mubr.bf16.mxu0 0
      %4753 = vmatmul.mubr.bf16.gmra.mxu0 %v4633
      %v4754 = vpop.f32.mrf.mxu0
      %v4755 = vadd.f32 0.0, %v4754
      %v4756 = vpop.f32.mrf.mxu0
      %v4757 = vpop.f32.mrf.mxu0
      %v4758 = vadd.f32 0.0, %v4757
      %v4759 = vpop.f32.mrf.mxu0
      %4760 = vmatprep.mubr.bf16.mxu0 0
      %4761 = vmatmul.mubr.bf16.gmra.mxu0 %v4634
      %v4762 = vpop.f32.mrf.mxu0
      %v4763 = vadd.f32 0.0, %v4762
      %v4764 = vpop.f32.mrf.mxu0
      %v4765 = vpop.f32.mrf.mxu0
      %v4766 = vadd.f32 0.0, %v4765
      %v4767 = vpop.f32.mrf.mxu0
      %4768 = vmatprep.mubr.bf16.mxu0 0
      %4769 = vmatmul.mubr.bf16.gmra.mxu0 %v4635
      %v4770 = vpop.f32.mrf.mxu0
      %v4771 = vadd.f32 0.0, %v4770
      %v4772 = vpop.f32.mrf.mxu0
      %v4773 = vpop.f32.mrf.mxu0
      %v4774 = vadd.f32 0.0, %v4773
      %v4775 = vpop.f32.mrf.mxu0
      %4776 = vmatprep.mubr.bf16.mxu0 0
      %4777 = vmatmul.mubr.bf16.gmra.mxu0 %v4636
      %v4778 = vpop.f32.mrf.mxu0
      %v4779 = vadd.f32 0.0, %v4778
      %v4780 = vpop.f32.mrf.mxu0
      %v4781 = vpop.f32.mrf.mxu0
      %v4782 = vadd.f32 0.0, %v4781
      %v4783 = vpop.f32.mrf.mxu0
      %4784 = vmatprep.mubr.bf16.mxu0 0
      %4785 = vmatmul.mubr.bf16.gmra.mxu0 %v4637
      %v4786 = vpop.f32.mrf.mxu0
      %v4787 = vadd.f32 0.0, %v4786
      %v4788 = vpop.f32.mrf.mxu0
      %v4789 = vpop.f32.mrf.mxu0
      %v4790 = vadd.f32 0.0, %v4789
      %v4791 = vpop.f32.mrf.mxu0
      %4792 = vmatprep.mubr.bf16.mxu0 0
      %4793 = vmatmul.mubr.bf16.gmra.mxu0 %v4638
      %v4794 = vpop.f32.mrf.mxu0
      %v4795 = vadd.f32 0.0, %v4794
      %v4796 = vpop.f32.mrf.mxu0
      %v4797 = vpop.f32.mrf.mxu0
      %v4798 = vadd.f32 0.0, %v4797
      %v4799 = vpop.f32.mrf.mxu0
      %4800 = vmatprep.mubr.bf16.mxu0 0
      %4801 = vmatmul.mubr.bf16.gmra.mxu0 %v4639
      %v4802 = vpop.f32.mrf.mxu0
      %v4803 = vadd.f32 0.0, %v4802
      %v4804 = vpop.f32.mrf.mxu0
      %v4805 = vpop.f32.mrf.mxu0
      %v4806 = vadd.f32 0.0, %v4805
      %v4807 = vpop.f32.mrf.mxu0
      %4808 = vmatprep.mubr.bf16.mxu0 0
      %4809 = vmatmul.mubr.bf16.gmra.mxu0 %v4640
      %v4810 = vpop.f32.mrf.mxu0
      %v4811 = vadd.f32 0.0, %v4810
      %v4812 = vpop.f32.mrf.mxu0
      %v4813 = vpop.f32.mrf.mxu0
      %v4814 = vadd.f32 0.0, %v4813
      %v4815 = vpop.f32.mrf.mxu0
      %4816 = vmatprep.mubr.bf16.mxu0 0
      %4817 = vmatmul.mubr.bf16.gmra.mxu0 %v4641
      %v4818 = vpop.f32.mrf.mxu0
      %v4819 = vadd.f32 0.0, %v4818
      %v4820 = vpop.f32.mrf.mxu0
      %v4821 = vpop.f32.mrf.mxu0
      %v4822 = vadd.f32 0.0, %v4821
      %v4823 = vpop.f32.mrf.mxu0
      %4824 = vmatprep.mubr.bf16.mxu0 0
      %4825 = vmatmul.mubr.bf16.gmra.mxu0 %v4642
      %v4826 = vpop.f32.mrf.mxu0
      %v4827 = vadd.f32 0.0, %v4826
      %v4828 = vpop.f32.mrf.mxu0
      %v4829 = vpop.f32.mrf.mxu0
      %v4830 = vadd.f32 0.0, %v4829
      %v4831 = vpop.f32.mrf.mxu0
      %4832 = vmatprep.mubr.bf16.mxu0 0
      %4833 = vmatmul.mubr.bf16.gmra.mxu0 %v4643
      %v4834 = vpop.f32.mrf.mxu0
      %v4835 = vadd.f32 0.0, %v4834
      %v4836 = vpop.f32.mrf.mxu0
      %v4837 = vpop.f32.mrf.mxu0
      %v4838 = vadd.f32 0.0, %v4837
      %v4839 = vpop.f32.mrf.mxu0
      %4840 = vmatprep.mubr.bf16.mxu0 0
      %4841 = vmatmul.mubr.bf16.gmra.mxu0 %v4644
      %v4842 = vpop.f32.mrf.mxu0
      %v4843 = vadd.f32 0.0, %v4842
      %v4844 = vpop.f32.mrf.mxu0
      %v4845 = vpop.f32.mrf.mxu0
      %v4846 = vadd.f32 0.0, %v4845
      %v4847 = vpop.f32.mrf.mxu0
      %4848 = vmatprep.mubr.bf16.mxu0 0
      %4849 = vmatmul.mubr.bf16.gmra.mxu0 %v4645
      %v4850 = vpop.f32.mrf.mxu0
      %v4851 = vadd.f32 0.0, %v4850
      %v4852 = vpop.f32.mrf.mxu0
      %v4853 = vpop.f32.mrf.mxu0
      %v4854 = vadd.f32 0.0, %v4853
      %v4855 = vpop.f32.mrf.mxu0
      %4856 = vmatprep.mubr.bf16.mxu0 0
      %4857 = vmatmul.mubr.bf16.gmra.mxu0 %v4646
      %v4858 = vpop.f32.mrf.mxu0
      %v4859 = vadd.f32 0.0, %v4858
      %v4860 = vpop.f32.mrf.mxu0
      %v4861 = vpop.f32.mrf.mxu0
      %v4862 = vadd.f32 0.0, %v4861
      %v4863 = vpop.f32.mrf.mxu0
      %4864 = vmatprep.mubr.bf16.mxu0 0
      %4865 = vmatmul.mubr.bf16.gmra.mxu0 %v4647
      %v4866 = vpop.f32.mrf.mxu0
      %v4867 = vadd.f32 0.0, %v4866
      %v4868 = vpop.f32.mrf.mxu0
      %v4869 = vpop.f32.mrf.mxu0
      %v4870 = vadd.f32 0.0, %v4869
      %v4871 = vpop.f32.mrf.mxu0
      %4872 = vdwg.mxu0
      %v4873 = vadd.f32 %v4551, %v4747
      %v4874 = vadd.f32 %v4552, %v4750
      %v4875 = vadd.f32 %v4553, %v4755
      %v4876 = vadd.f32 %v4554, %v4758
      %v4877 = vadd.f32 %v4555, %v4763
      %v4878 = vadd.f32 %v4556, %v4766
      %v4879 = vadd.f32 %v4557, %v4771
      %v4880 = vadd.f32 %v4558, %v4774
      %v4881 = vadd.f32 %v4559, %v4779
      %v4882 = vadd.f32 %v4560, %v4782
      %v4883 = vadd.f32 %v4561, %v4787
      %v4884 = vadd.f32 %v4562, %v4790
      %v4885 = vadd.f32 %v4563, %v4795
      %v4886 = vadd.f32 %v4564, %v4798
      %v4887 = vadd.f32 %v4565, %v4803
      %v4888 = vadd.f32 %v4566, %v4806
      %v4889 = vadd.f32 %v4567, %v4811
      %v4890 = vadd.f32 %v4568, %v4814
      %v4891 = vadd.f32 %v4569, %v4819
      %v4892 = vadd.f32 %v4570, %v4822
      %v4893 = vadd.f32 %v4571, %v4827
      %v4894 = vadd.f32 %v4572, %v4830
      %v4895 = vadd.f32 %v4573, %v4835
      %v4896 = vadd.f32 %v4574, %v4838
      %v4897 = vadd.f32 %v4575, %v4843
      %v4898 = vadd.f32 %v4576, %v4846
      %v4899 = vadd.f32 %v4577, %v4851
      %v4900 = vadd.f32 %v4578, %v4854
      %v4901 = vadd.f32 %v4579, %v4859
      %v4902 = vadd.f32 %v4580, %v4862
      %v4903 = vadd.f32 %v4581, %v4867
      %v4904 = vadd.f32 %v4582, %v4870
      %4905 = vst [vmem:[#allocation3] sm:$0xff] %v4873
      %4906 = vst [vmem:[#allocation3 + $0x8] sm:$0xff] %v4874
      %4907 = vst [vmem:[#allocation3 + $0x10] sm:$0xff] %v4875
      %4908 = vst [vmem:[#allocation3 + $0x18] sm:$0xff] %v4876
      %4909 = vst [vmem:[#allocation3 + $0x20] sm:$0xff] %v4877
      %4910 = vst [vmem:[#allocation3 + $0x28] sm:$0xff] %v4878
      %4911 = vst [vmem:[#allocation3 + $0x30] sm:$0xff] %v4879
      %4912 = vst [vmem:[#allocation3 + $0x38] sm:$0xff] %v4880
      %4913 = vst [vmem:[#allocation3 + $0x40] sm:$0xff] %v4881
      %4914 = vst [vmem:[#allocation3 + $0x48] sm:$0xff] %v4882
      %4915 = vst [vmem:[#allocation3 + $0x50] sm:$0xff] %v4883
      %4916 = vst [vmem:[#allocation3 + $0x58] sm:$0xff] %v4884
      %4917 = vst [vmem:[#allocation3 + $0x60] sm:$0xff] %v4885
      %4918 = vst [vmem:[#allocation3 + $0x68] sm:$0xff] %v4886
      %4919 = vst [vmem:[#allocation3 + $0x70] sm:$0xff] %v4887
      %4920 = vst [vmem:[#allocation3 + $0x78] sm:$0xff] %v4888
      %4921 = vst [vmem:[#allocation3 + $0x80] sm:$0xff] %v4889
      %4922 = vst [vmem:[#allocation3 + $0x88] sm:$0xff] %v4890
      %4923 = vst [vmem:[#allocation3 + $0x90] sm:$0xff] %v4891
      %4924 = vst [vmem:[#allocation3 + $0x98] sm:$0xff] %v4892
      %4925 = vst [vmem:[#allocation3 + $0xa0] sm:$0xff] %v4893
      %4926 = vst [vmem:[#allocation3 + $0xa8] sm:$0xff] %v4894
      %4927 = vst [vmem:[#allocation3 + $0xb0] sm:$0xff] %v4895
      %4928 = vst [vmem:[#allocation3 + $0xb8] sm:$0xff] %v4896
      %4929 = vst [vmem:[#allocation3 + $0xc0] sm:$0xff] %v4897
      %4930 = vst [vmem:[#allocation3 + $0xc8] sm:$0xff] %v4898
      %4931 = vst [vmem:[#allocation3 + $0xd0] sm:$0xff] %v4899
      %4932 = vst [vmem:[#allocation3 + $0xd8] sm:$0xff] %v4900
      %4933 = vst [vmem:[#allocation3 + $0xe0] sm:$0xff] %v4901
      %4934 = vst [vmem:[#allocation3 + $0xe8] sm:$0xff] %v4902
      %4935 = vst [vmem:[#allocation3 + $0xf0] sm:$0xff] %v4903
      %4936 = vst [vmem:[#allocation3 + $0xf8] sm:$0xff] %v4904
      %s4937 = scalar_lea.vmem [#allocation2], 24
      %v4938 = vld [vmem:[%s4937] sm:$0xf]
      %v4939 = vld [vmem:[%s4937 + $0x4] sm:$0xf]
      %v4940 = vld [vmem:[%s4937 + $0xc] sm:$0xf]
      %v4941 = vld [vmem:[%s4937 + $0x10] sm:$0xf]
      %v4942 = vld [vmem:[%s4937 + $0x18] sm:$0xf]
      %v4943 = vld [vmem:[%s4937 + $0x1c] sm:$0xf]
      %v4944 = vld [vmem:[%s4937 + $0x24] sm:$0xf]
      %v4945 = vld [vmem:[%s4937 + $0x28] sm:$0xf]
      %v4946 = vld [vmem:[%s4937 + $0x30] sm:$0xf]
      %v4947 = vld [vmem:[%s4937 + $0x34] sm:$0xf]
      %v4948 = vld [vmem:[%s4937 + $0x3c] sm:$0xf]
      %v4949 = vld [vmem:[%s4937 + $0x40] sm:$0xf]
      %v4950 = vld [vmem:[%s4937 + $0x48] sm:$0xf]
      %v4951 = vld [vmem:[%s4937 + $0x4c] sm:$0xf]
      %v4952 = vld [vmem:[%s4937 + $0x54] sm:$0xf]
      %v4953 = vld [vmem:[%s4937 + $0x58] sm:$0xf]
      %v4954 = vld [vmem:[%s4937 + $0x60] sm:$0xf]
      %v4955 = vld [vmem:[%s4937 + $0x64] sm:$0xf]
      %v4956 = vld [vmem:[%s4937 + $0x6c] sm:$0xf]
      %v4957 = vld [vmem:[%s4937 + $0x70] sm:$0xf]
      %v4958 = vld [vmem:[%s4937 + $0x78] sm:$0xf]
      %v4959 = vld [vmem:[%s4937 + $0x7c] sm:$0xf]
      %v4960 = vld [vmem:[%s4937 + $0x84] sm:$0xf]
      %v4961 = vld [vmem:[%s4937 + $0x88] sm:$0xf]
      %v4962 = vld [vmem:[%s4937 + $0x90] sm:$0xf]
      %v4963 = vld [vmem:[%s4937 + $0x94] sm:$0xf]
      %v4964 = vld [vmem:[%s4937 + $0x9c] sm:$0xf]
      %v4965 = vld [vmem:[%s4937 + $0xa0] sm:$0xf]
      %v4966 = vld [vmem:[%s4937 + $0xa8] sm:$0xf]
      %v4967 = vld [vmem:[%s4937 + $0xac] sm:$0xf]
      %v4968 = vld [vmem:[%s4937 + $0xb4] sm:$0xf]
      %v4969 = vld [vmem:[%s4937 + $0xb8] sm:$0xf]
      %v4970 = vld [vmem:[#allocation3] sm:$0xff]
      %v4971 = vld [vmem:[#allocation3 + $0x8] sm:$0xff]
      %v4972 = vld [vmem:[#allocation3 + $0x10] sm:$0xff]
      %v4973 = vld [vmem:[#allocation3 + $0x18] sm:$0xff]
      %v4974 = vld [vmem:[#allocation3 + $0x20] sm:$0xff]
      %v4975 = vld [vmem:[#allocation3 + $0x28] sm:$0xff]
      %v4976 = vld [vmem:[#allocation3 + $0x30] sm:$0xff]
      %v4977 = vld [vmem:[#allocation3 + $0x38] sm:$0xff]
      %v4978 = vld [vmem:[#allocation3 + $0x40] sm:$0xff]
      %v4979 = vld [vmem:[#allocation3 + $0x48] sm:$0xff]
      %v4980 = vld [vmem:[#allocation3 + $0x50] sm:$0xff]
      %v4981 = vld [vmem:[#allocation3 + $0x58] sm:$0xff]
      %v4982 = vld [vmem:[#allocation3 + $0x60] sm:$0xff]
      %v4983 = vld [vmem:[#allocation3 + $0x68] sm:$0xff]
      %v4984 = vld [vmem:[#allocation3 + $0x70] sm:$0xff]
      %v4985 = vld [vmem:[#allocation3 + $0x78] sm:$0xff]
      %v4986 = vld [vmem:[#allocation3 + $0x80] sm:$0xff]
      %v4987 = vld [vmem:[#allocation3 + $0x88] sm:$0xff]
      %v4988 = vld [vmem:[#allocation3 + $0x90] sm:$0xff]
      %v4989 = vld [vmem:[#allocation3 + $0x98] sm:$0xff]
      %v4990 = vld [vmem:[#allocation3 + $0xa0] sm:$0xff]
      %v4991 = vld [vmem:[#allocation3 + $0xa8] sm:$0xff]
      %v4992 = vld [vmem:[#allocation3 + $0xb0] sm:$0xff]
      %v4993 = vld [vmem:[#allocation3 + $0xb8] sm:$0xff]
      %v4994 = vld [vmem:[#allocation3 + $0xc0] sm:$0xff]
      %v4995 = vld [vmem:[#allocation3 + $0xc8] sm:$0xff]
      %v4996 = vld [vmem:[#allocation3 + $0xd0] sm:$0xff]
      %v4997 = vld [vmem:[#allocation3 + $0xd8] sm:$0xff]
      %v4998 = vld [vmem:[#allocation3 + $0xe0] sm:$0xff]
      %v4999 = vld [vmem:[#allocation3 + $0xe8] sm:$0xff]
      %v5000 = vld [vmem:[#allocation3 + $0xf0] sm:$0xff]
      %v5001 = vld [vmem:[#allocation3 + $0xf8] sm:$0xff]
      %s5002 = scalar_lea.vmem %s384, 384
      %v5003 = vld [vmem:[%s5002] sm:$0xf]
      %v5004 = vld [vmem:[%s5002 + $0x4] sm:$0xf]
      %v5005 = vld [vmem:[%s5002 + $0x8] sm:$0xf]
      %v5006 = vld [vmem:[%s5002 + $0xc] sm:$0xf]
      %v5007 = vld [vmem:[%s5002 + $0x10] sm:$0xf]
      %v5008 = vld [vmem:[%s5002 + $0x14] sm:$0xf]
      %v5009 = vld [vmem:[%s5002 + $0x18] sm:$0xf]
      %v5010 = vld [vmem:[%s5002 + $0x1c] sm:$0xf]
      %v5011 = vld [vmem:[%s5002 + $0x20] sm:$0xf]
      %v5012 = vld [vmem:[%s5002 + $0x24] sm:$0xf]
      %v5013 = vld [vmem:[%s5002 + $0x28] sm:$0xf]
      %v5014 = vld [vmem:[%s5002 + $0x2c] sm:$0xf]
      %v5015 = vld [vmem:[%s5002 + $0x30] sm:$0xf]
      %v5016 = vld [vmem:[%s5002 + $0x34] sm:$0xf]
      %v5017 = vld [vmem:[%s5002 + $0x38] sm:$0xf]
      %v5018 = vld [vmem:[%s5002 + $0x3c] sm:$0xf]
      %v5051 = vunpack.c.l.b16 %v4938
      %v5052 = vunpack.c.l.b16 %v4939
      %v5053 = vunpack.c.l.b16 %v4940
      %v5054 = vunpack.c.l.b16 %v4941
      %v5055 = vunpack.c.l.b16 %v4942
      %v5056 = vunpack.c.l.b16 %v4943
      %v5057 = vunpack.c.l.b16 %v4944
      %v5058 = vunpack.c.l.b16 %v4945
      %v5059 = vunpack.c.l.b16 %v4946
      %v5060 = vunpack.c.l.b16 %v4947
      %v5061 = vunpack.c.l.b16 %v4948
      %v5062 = vunpack.c.l.b16 %v4949
      %v5063 = vunpack.c.l.b16 %v4950
      %v5064 = vunpack.c.l.b16 %v4951
      %v5065 = vunpack.c.l.b16 %v4952
      %v5066 = vunpack.c.l.b16 %v4953
      %v5067 = vunpack.c.l.b16 %v4954
      %v5068 = vunpack.c.l.b16 %v4955
      %v5069 = vunpack.c.l.b16 %v4956
      %v5070 = vunpack.c.l.b16 %v4957
      %v5071 = vunpack.c.l.b16 %v4958
      %v5072 = vunpack.c.l.b16 %v4959
      %v5073 = vunpack.c.l.b16 %v4960
      %v5074 = vunpack.c.l.b16 %v4961
      %v5075 = vunpack.c.l.b16 %v4962
      %v5076 = vunpack.c.l.b16 %v4963
      %v5077 = vunpack.c.l.b16 %v4964
      %v5078 = vunpack.c.l.b16 %v4965
      %v5079 = vunpack.c.l.b16 %v4966
      %v5080 = vunpack.c.l.b16 %v4967
      %v5081 = vunpack.c.l.b16 %v4968
      %v5082 = vunpack.c.l.b16 %v4969
      %v5083 = vpack.c.b16 %v5052, %v5051
      %v5084 = vpack.c.b16 %v5054, %v5053
      %v5085 = vpack.c.b16 %v5056, %v5055
      %v5086 = vpack.c.b16 %v5058, %v5057
      %v5087 = vpack.c.b16 %v5060, %v5059
      %v5088 = vpack.c.b16 %v5062, %v5061
      %v5089 = vpack.c.b16 %v5064, %v5063
      %v5090 = vpack.c.b16 %v5066, %v5065
      %v5091 = vpack.c.b16 %v5068, %v5067
      %v5092 = vpack.c.b16 %v5070, %v5069
      %v5093 = vpack.c.b16 %v5072, %v5071
      %v5094 = vpack.c.b16 %v5074, %v5073
      %v5095 = vpack.c.b16 %v5076, %v5075
      %v5096 = vpack.c.b16 %v5078, %v5077
      %v5097 = vpack.c.b16 %v5080, %v5079
      %v5098 = vpack.c.b16 %v5082, %v5081
      %v5131 = vunpack.c.l.b16 %v5003
      %v5132 = vunpack.c.l.b16 %v5004
      %v5133 = vunpack.c.l.b16 %v5005
      %v5134 = vunpack.c.l.b16 %v5006
      %v5135 = vunpack.c.l.b16 %v5007
      %v5136 = vunpack.c.l.b16 %v5008
      %v5137 = vunpack.c.l.b16 %v5009
      %v5138 = vunpack.c.l.b16 %v5010
      %v5139 = vunpack.c.l.b16 %v5011
      %v5140 = vunpack.c.l.b16 %v5012
      %v5141 = vunpack.c.l.b16 %v5013
      %v5142 = vunpack.c.l.b16 %v5014
      %v5143 = vunpack.c.l.b16 %v5015
      %v5144 = vunpack.c.l.b16 %v5016
      %v5145 = vunpack.c.l.b16 %v5017
      %v5146 = vunpack.c.l.b16 %v5018
      %v5147 = vpack.c.b16 %v5132, %v5131
      %v5148 = vpack.c.b16 %v5134, %v5133
      %v5149 = vpack.c.b16 %v5136, %v5135
      %v5150 = vpack.c.b16 %v5138, %v5137
      %v5151 = vpack.c.b16 %v5140, %v5139
      %v5152 = vpack.c.b16 %v5142, %v5141
      %v5153 = vpack.c.b16 %v5144, %v5143
      %v5154 = vpack.c.b16 %v5146, %v5145
      %5163 = vmatprep.subr.bf16.mxu0 0
      %5164 = vmatpush1.bf16.msra.mxu0 %v5154
      %5165 = vmatprep.subr.bf16.mxu0 0
      %5166 = vmatpush1.bf16.msra.mxu0 %v5153
      %5167 = vmatprep.subr.bf16.mxu0 0
      %5168 = vmatpush1.bf16.msra.mxu0 %v5152
      %5169 = vmatprep.subr.bf16.mxu0 0
      %5170 = vmatpush1.bf16.msra.mxu0 %v5151
      %5171 = vmatprep.subr.bf16.mxu0 0
      %5172 = vmatpush1.bf16.msra.mxu0 %v5150
      %5173 = vmatprep.subr.bf16.mxu0 0
      %5174 = vmatpush1.bf16.msra.mxu0 %v5149
      %5175 = vmatprep.subr.bf16.mxu0 0
      %5176 = vmatpush1.bf16.msra.mxu0 %v5148
      %5177 = vmatprep.subr.bf16.mxu0 0
      %5178 = vmatpush1.bf16.msra.mxu0 %v5147
      %5179 = vmatprep.subr.bf16.mxu0 0
      %5180 = vmatpush2.bf16.msra.mxu0 0
      %5181 = vmatprep.subr.bf16.mxu0 0
      %5182 = vmatpush2.bf16.msra.mxu0 0
      %5183 = vmatprep.subr.bf16.mxu0 0
      %5184 = vmatpush2.bf16.msra.mxu0 0
      %5185 = vmatprep.subr.bf16.mxu0 0
      %5186 = vmatpush2.bf16.msra.mxu0 0
      %5187 = vmatprep.subr.bf16.mxu0 0
      %5188 = vmatpush2.bf16.msra.mxu0 0
      %5189 = vmatprep.subr.bf16.mxu0 0
      %5190 = vmatpush2.bf16.msra.mxu0 0
      %5191 = vmatprep.subr.bf16.mxu0 0
      %5192 = vmatpush2.bf16.msra.mxu0 0
      %5193 = vmatprep.subr.bf16.mxu0 0
      %5194 = vmatpush2.bf16.msra.mxu0 0
      %5195 = vmatprep.mubr.bf16.mxu0 0
      %5196 = vmatmul.mubr.bf16.gmra.mxu0 %v5083
      %v5197 = vpop.f32.mrf.mxu0
      %v5198 = vadd.f32 0.0, %v5197
      %v5199 = vpop.f32.mrf.mxu0
      %v5200 = vpop.f32.mrf.mxu0
      %v5201 = vadd.f32 0.0, %v5200
      %v5202 = vpop.f32.mrf.mxu0
      %5203 = vmatprep.mubr.bf16.mxu0 0
      %5204 = vmatmul.mubr.bf16.gmra.mxu0 %v5084
      %v5205 = vpop.f32.mrf.mxu0
      %v5206 = vadd.f32 0.0, %v5205
      %v5207 = vpop.f32.mrf.mxu0
      %v5208 = vpop.f32.mrf.mxu0
      %v5209 = vadd.f32 0.0, %v5208
      %v5210 = vpop.f32.mrf.mxu0
      %5211 = vmatprep.mubr.bf16.mxu0 0
      %5212 = vmatmul.mubr.bf16.gmra.mxu0 %v5085
      %v5213 = vpop.f32.mrf.mxu0
      %v5214 = vadd.f32 0.0, %v5213
      %v5215 = vpop.f32.mrf.mxu0
      %v5216 = vpop.f32.mrf.mxu0
      %v5217 = vadd.f32 0.0, %v5216
      %v5218 = vpop.f32.mrf.mxu0
      %5219 = vmatprep.mubr.bf16.mxu0 0
      %5220 = vmatmul.mubr.bf16.gmra.mxu0 %v5086
      %v5221 = vpop.f32.mrf.mxu0
      %v5222 = vadd.f32 0.0, %v5221
      %v5223 = vpop.f32.mrf.mxu0
      %v5224 = vpop.f32.mrf.mxu0
      %v5225 = vadd.f32 0.0, %v5224
      %v5226 = vpop.f32.mrf.mxu0
      %5227 = vmatprep.mubr.bf16.mxu0 0
      %5228 = vmatmul.mubr.bf16.gmra.mxu0 %v5087
      %v5229 = vpop.f32.mrf.mxu0
      %v5230 = vadd.f32 0.0, %v5229
      %v5231 = vpop.f32.mrf.mxu0
      %v5232 = vpop.f32.mrf.mxu0
      %v5233 = vadd.f32 0.0, %v5232
      %v5234 = vpop.f32.mrf.mxu0
      %5235 = vmatprep.mubr.bf16.mxu0 0
      %5236 = vmatmul.mubr.bf16.gmra.mxu0 %v5088
      %v5237 = vpop.f32.mrf.mxu0
      %v5238 = vadd.f32 0.0, %v5237
      %v5239 = vpop.f32.mrf.mxu0
      %v5240 = vpop.f32.mrf.mxu0
      %v5241 = vadd.f32 0.0, %v5240
      %v5242 = vpop.f32.mrf.mxu0
      %5243 = vmatprep.mubr.bf16.mxu0 0
      %5244 = vmatmul.mubr.bf16.gmra.mxu0 %v5089
      %v5245 = vpop.f32.mrf.mxu0
      %v5246 = vadd.f32 0.0, %v5245
      %v5247 = vpop.f32.mrf.mxu0
      %v5248 = vpop.f32.mrf.mxu0
      %v5249 = vadd.f32 0.0, %v5248
      %v5250 = vpop.f32.mrf.mxu0
      %5251 = vmatprep.mubr.bf16.mxu0 0
      %5252 = vmatmul.mubr.bf16.gmra.mxu0 %v5090
      %v5253 = vpop.f32.mrf.mxu0
      %v5254 = vadd.f32 0.0, %v5253
      %v5255 = vpop.f32.mrf.mxu0
      %v5256 = vpop.f32.mrf.mxu0
      %v5257 = vadd.f32 0.0, %v5256
      %v5258 = vpop.f32.mrf.mxu0
      %5259 = vmatprep.mubr.bf16.mxu0 0
      %5260 = vmatmul.mubr.bf16.gmra.mxu0 %v5091
      %v5261 = vpop.f32.mrf.mxu0
      %v5262 = vadd.f32 0.0, %v5261
      %v5263 = vpop.f32.mrf.mxu0
      %v5264 = vpop.f32.mrf.mxu0
      %v5265 = vadd.f32 0.0, %v5264
      %v5266 = vpop.f32.mrf.mxu0
      %5267 = vmatprep.mubr.bf16.mxu0 0
      %5268 = vmatmul.mubr.bf16.gmra.mxu0 %v5092
      %v5269 = vpop.f32.mrf.mxu0
      %v5270 = vadd.f32 0.0, %v5269
      %v5271 = vpop.f32.mrf.mxu0
      %v5272 = vpop.f32.mrf.mxu0
      %v5273 = vadd.f32 0.0, %v5272
      %v5274 = vpop.f32.mrf.mxu0
      %5275 = vmatprep.mubr.bf16.mxu0 0
      %5276 = vmatmul.mubr.bf16.gmra.mxu0 %v5093
      %v5277 = vpop.f32.mrf.mxu0
      %v5278 = vadd.f32 0.0, %v5277
      %v5279 = vpop.f32.mrf.mxu0
      %v5280 = vpop.f32.mrf.mxu0
      %v5281 = vadd.f32 0.0, %v5280
      %v5282 = vpop.f32.mrf.mxu0
      %5283 = vmatprep.mubr.bf16.mxu0 0
      %5284 = vmatmul.mubr.bf16.gmra.mxu0 %v5094
      %v5285 = vpop.f32.mrf.mxu0
      %v5286 = vadd.f32 0.0, %v5285
      %v5287 = vpop.f32.mrf.mxu0
      %v5288 = vpop.f32.mrf.mxu0
      %v5289 = vadd.f32 0.0, %v5288
      %v5290 = vpop.f32.mrf.mxu0
      %5291 = vmatprep.mubr.bf16.mxu0 0
      %5292 = vmatmul.mubr.bf16.gmra.mxu0 %v5095
      %v5293 = vpop.f32.mrf.mxu0
      %v5294 = vadd.f32 0.0, %v5293
      %v5295 = vpop.f32.mrf.mxu0
      %v5296 = vpop.f32.mrf.mxu0
      %v5297 = vadd.f32 0.0, %v5296
      %v5298 = vpop.f32.mrf.mxu0
      %5299 = vmatprep.mubr.bf16.mxu0 0
      %5300 = vmatmul.mubr.bf16.gmra.mxu0 %v5096
      %v5301 = vpop.f32.mrf.mxu0
      %v5302 = vadd.f32 0.0, %v5301
      %v5303 = vpop.f32.mrf.mxu0
      %v5304 = vpop.f32.mrf.mxu0
      %v5305 = vadd.f32 0.0, %v5304
      %v5306 = vpop.f32.mrf.mxu0
      %5307 = vmatprep.mubr.bf16.mxu0 0
      %5308 = vmatmul.mubr.bf16.gmra.mxu0 %v5097
      %v5309 = vpop.f32.mrf.mxu0
      %v5310 = vadd.f32 0.0, %v5309
      %v5311 = vpop.f32.mrf.mxu0
      %v5312 = vpop.f32.mrf.mxu0
      %v5313 = vadd.f32 0.0, %v5312
      %v5314 = vpop.f32.mrf.mxu0
      %5315 = vmatprep.mubr.bf16.mxu0 0
      %5316 = vmatmul.mubr.bf16.gmra.mxu0 %v5098
      %v5317 = vpop.f32.mrf.mxu0
      %v5318 = vadd.f32 0.0, %v5317
      %v5319 = vpop.f32.mrf.mxu0
      %v5320 = vpop.f32.mrf.mxu0
      %v5321 = vadd.f32 0.0, %v5320
      %v5322 = vpop.f32.mrf.mxu0
      %5323 = vdwg.mxu0
      %v5324 = vadd.f32 %v4970, %v5198
      %v5325 = vadd.f32 %v4971, %v5201
      %v5326 = vadd.f32 %v4972, %v5206
      %v5327 = vadd.f32 %v4973, %v5209
      %v5328 = vadd.f32 %v4974, %v5214
      %v5329 = vadd.f32 %v4975, %v5217
      %v5330 = vadd.f32 %v4976, %v5222
      %v5331 = vadd.f32 %v4977, %v5225
      %v5332 = vadd.f32 %v4978, %v5230
      %v5333 = vadd.f32 %v4979, %v5233
      %v5334 = vadd.f32 %v4980, %v5238
      %v5335 = vadd.f32 %v4981, %v5241
      %v5336 = vadd.f32 %v4982, %v5246
      %v5337 = vadd.f32 %v4983, %v5249
      %v5338 = vadd.f32 %v4984, %v5254
      %v5339 = vadd.f32 %v4985, %v5257
      %v5340 = vadd.f32 %v4986, %v5262
      %v5341 = vadd.f32 %v4987, %v5265
      %v5342 = vadd.f32 %v4988, %v5270
      %v5343 = vadd.f32 %v4989, %v5273
      %v5344 = vadd.f32 %v4990, %v5278
      %v5345 = vadd.f32 %v4991, %v5281
      %v5346 = vadd.f32 %v4992, %v5286
      %v5347 = vadd.f32 %v4993, %v5289
      %v5348 = vadd.f32 %v4994, %v5294
      %v5349 = vadd.f32 %v4995, %v5297
      %v5350 = vadd.f32 %v4996, %v5302
      %v5351 = vadd.f32 %v4997, %v5305
      %v5352 = vadd.f32 %v4998, %v5310
      %v5353 = vadd.f32 %v4999, %v5313
      %v5354 = vadd.f32 %v5000, %v5318
      %v5355 = vadd.f32 %v5001, %v5321
      %5356 = vst [vmem:[#allocation3] sm:$0xff] %v5324
      %5357 = vst [vmem:[#allocation3 + $0x8] sm:$0xff] %v5325
      %5358 = vst [vmem:[#allocation3 + $0x10] sm:$0xff] %v5326
      %5359 = vst [vmem:[#allocation3 + $0x18] sm:$0xff] %v5327
      %5360 = vst [vmem:[#allocation3 + $0x20] sm:$0xff] %v5328
      %5361 = vst [vmem:[#allocation3 + $0x28] sm:$0xff] %v5329
      %5362 = vst [vmem:[#allocation3 + $0x30] sm:$0xff] %v5330
      %5363 = vst [vmem:[#allocation3 + $0x38] sm:$0xff] %v5331
      %5364 = vst [vmem:[#allocation3 + $0x40] sm:$0xff] %v5332
      %5365 = vst [vmem:[#allocation3 + $0x48] sm:$0xff] %v5333
      %5366 = vst [vmem:[#allocation3 + $0x50] sm:$0xff] %v5334
      %5367 = vst [vmem:[#allocation3 + $0x58] sm:$0xff] %v5335
      %5368 = vst [vmem:[#allocation3 + $0x60] sm:$0xff] %v5336
      %5369 = vst [vmem:[#allocation3 + $0x68] sm:$0xff] %v5337
      %5370 = vst [vmem:[#allocation3 + $0x70] sm:$0xff] %v5338
      %5371 = vst [vmem:[#allocation3 + $0x78] sm:$0xff] %v5339
      %5372 = vst [vmem:[#allocation3 + $0x80] sm:$0xff] %v5340
      %5373 = vst [vmem:[#allocation3 + $0x88] sm:$0xff] %v5341
      %5374 = vst [vmem:[#allocation3 + $0x90] sm:$0xff] %v5342
      %5375 = vst [vmem:[#allocation3 + $0x98] sm:$0xff] %v5343
      %5376 = vst [vmem:[#allocation3 + $0xa0] sm:$0xff] %v5344
      %5377 = vst [vmem:[#allocation3 + $0xa8] sm:$0xff] %v5345
      %5378 = vst [vmem:[#allocation3 + $0xb0] sm:$0xff] %v5346
      %5379 = vst [vmem:[#allocation3 + $0xb8] sm:$0xff] %v5347
      %5380 = vst [vmem:[#allocation3 + $0xc0] sm:$0xff] %v5348
      %5381 = vst [vmem:[#allocation3 + $0xc8] sm:$0xff] %v5349
      %5382 = vst [vmem:[#allocation3 + $0xd0] sm:$0xff] %v5350
      %5383 = vst [vmem:[#allocation3 + $0xd8] sm:$0xff] %v5351
      %5384 = vst [vmem:[#allocation3 + $0xe0] sm:$0xff] %v5352
      %5385 = vst [vmem:[#allocation3 + $0xe8] sm:$0xff] %v5353
      %5386 = vst [vmem:[#allocation3 + $0xf0] sm:$0xff] %v5354
      %5387 = vst [vmem:[#allocation3 + $0xf8] sm:$0xff] %v5355
      %v5388 = vld [vmem:[%s4937] sm:$0xf]
      %v5389 = vld [vmem:[%s4937 + $0x4] sm:$0xf]
      %v5390 = vld [vmem:[%s4937 + $0x8] sm:$0x1]
      %v5391 = vld [vmem:[%s4937 + $0xc] sm:$0xf]
      %v5392 = vld [vmem:[%s4937 + $0x10] sm:$0xf]
      %v5393 = vld [vmem:[%s4937 + $0x14] sm:$0x1]
      %v5394 = vld [vmem:[%s4937 + $0x18] sm:$0xf]
      %v5395 = vld [vmem:[%s4937 + $0x1c] sm:$0xf]
      %v5396 = vld [vmem:[%s4937 + $0x20] sm:$0x1]
      %v5397 = vld [vmem:[%s4937 + $0x24] sm:$0xf]
      %v5398 = vld [vmem:[%s4937 + $0x28] sm:$0xf]
      %v5399 = vld [vmem:[%s4937 + $0x2c] sm:$0x1]
      %v5400 = vld [vmem:[%s4937 + $0x30] sm:$0xf]
      %v5401 = vld [vmem:[%s4937 + $0x34] sm:$0xf]
      %v5402 = vld [vmem:[%s4937 + $0x38] sm:$0x1]
      %v5403 = vld [vmem:[%s4937 + $0x3c] sm:$0xf]
      %v5404 = vld [vmem:[%s4937 + $0x40] sm:$0xf]
      %v5405 = vld [vmem:[%s4937 + $0x44] sm:$0x1]
      %v5406 = vld [vmem:[%s4937 + $0x48] sm:$0xf]
      %v5407 = vld [vmem:[%s4937 + $0x4c] sm:$0xf]
      %v5408 = vld [vmem:[%s4937 + $0x50] sm:$0x1]
      %v5409 = vld [vmem:[%s4937 + $0x54] sm:$0xf]
      %v5410 = vld [vmem:[%s4937 + $0x58] sm:$0xf]
      %v5411 = vld [vmem:[%s4937 + $0x5c] sm:$0x1]
      %v5412 = vld [vmem:[%s4937 + $0x60] sm:$0xf]
      %v5413 = vld [vmem:[%s4937 + $0x64] sm:$0xf]
      %v5414 = vld [vmem:[%s4937 + $0x68] sm:$0x1]
      %v5415 = vld [vmem:[%s4937 + $0x6c] sm:$0xf]
      %v5416 = vld [vmem:[%s4937 + $0x70] sm:$0xf]
      %v5417 = vld [vmem:[%s4937 + $0x74] sm:$0x1]
      %v5418 = vld [vmem:[%s4937 + $0x78] sm:$0xf]
      %v5419 = vld [vmem:[%s4937 + $0x7c] sm:$0xf]
      %v5420 = vld [vmem:[%s4937 + $0x80] sm:$0x1]
      %v5421 = vld [vmem:[%s4937 + $0x84] sm:$0xf]
      %v5422 = vld [vmem:[%s4937 + $0x88] sm:$0xf]
      %v5423 = vld [vmem:[%s4937 + $0x8c] sm:$0x1]
      %v5424 = vld [vmem:[%s4937 + $0x90] sm:$0xf]
      %v5425 = vld [vmem:[%s4937 + $0x94] sm:$0xf]
      %v5426 = vld [vmem:[%s4937 + $0x98] sm:$0x1]
      %v5427 = vld [vmem:[%s4937 + $0x9c] sm:$0xf]
      %v5428 = vld [vmem:[%s4937 + $0xa0] sm:$0xf]
      %v5429 = vld [vmem:[%s4937 + $0xa4] sm:$0x1]
      %v5430 = vld [vmem:[%s4937 + $0xa8] sm:$0xf]
      %v5431 = vld [vmem:[%s4937 + $0xac] sm:$0xf]
      %v5432 = vld [vmem:[%s4937 + $0xb0] sm:$0x1]
      %v5433 = vld [vmem:[%s4937 + $0xb4] sm:$0xf]
      %v5434 = vld [vmem:[%s4937 + $0xb8] sm:$0xf]
      %v5435 = vld [vmem:[%s4937 + $0xbc] sm:$0x1]
      %v5437 = vshrl.u32 %v5388, 16
      %v5439 = vrot.slane %v5437, 4
      %v5440 = vshll.u32 %v5388, 16
      %v5442 = vrot.slane %v5440, 5
      %v5443 = vor.u32 %v5439, %v5442
      %v5444 = vrot.slane %v5443, 4
      %v5446 = vshll.u32 %v5389, 16
      %v5448 = vrot.slane %v5446, 5
      %v5449 = vsel %vm1707, %v5444, %v5448
      %v5450 = vshrl.u32 %v5389, 16
      %v5452 = vrot.slane %v5450, 4
      %v5453 = vor.u32 %v5452, %v5448
      %v5454 = vrot.slane %v5453, 4
      %v5456 = vshll.u32 %v5390, 16
      %v5458 = vrot.slane %v5456, 5
      %v5459 = vsel %vm1707, %v5454, %v5458
      %v5461 = vshrl.u32 %v5391, 16
      %v5463 = vrot.slane %v5461, 4
      %v5464 = vshll.u32 %v5391, 16
      %v5466 = vrot.slane %v5464, 5
      %v5467 = vor.u32 %v5463, %v5466
      %v5468 = vrot.slane %v5467, 4
      %v5470 = vshll.u32 %v5392, 16
      %v5472 = vrot.slane %v5470, 5
      %v5473 = vsel %vm1707, %v5468, %v5472
      %v5474 = vshrl.u32 %v5392, 16
      %v5476 = vrot.slane %v5474, 4
      %v5477 = vor.u32 %v5476, %v5472
      %v5478 = vrot.slane %v5477, 4
      %v5480 = vshll.u32 %v5393, 16
      %v5482 = vrot.slane %v5480, 5
      %v5483 = vsel %vm1707, %v5478, %v5482
      %v5485 = vshrl.u32 %v5394, 16
      %v5487 = vrot.slane %v5485, 4
      %v5488 = vshll.u32 %v5394, 16
      %v5490 = vrot.slane %v5488, 5
      %v5491 = vor.u32 %v5487, %v5490
      %v5492 = vrot.slane %v5491, 4
      %v5494 = vshll.u32 %v5395, 16
      %v5496 = vrot.slane %v5494, 5
      %v5497 = vsel %vm1707, %v5492, %v5496
      %v5498 = vshrl.u32 %v5395, 16
      %v5500 = vrot.slane %v5498, 4
      %v5501 = vor.u32 %v5500, %v5496
      %v5502 = vrot.slane %v5501, 4
      %v5504 = vshll.u32 %v5396, 16
      %v5506 = vrot.slane %v5504, 5
      %v5507 = vsel %vm1707, %v5502, %v5506
      %v5509 = vshrl.u32 %v5397, 16
      %v5511 = vrot.slane %v5509, 4
      %v5512 = vshll.u32 %v5397, 16
      %v5514 = vrot.slane %v5512, 5
      %v5515 = vor.u32 %v5511, %v5514
      %v5516 = vrot.slane %v5515, 4
      %v5518 = vshll.u32 %v5398, 16
      %v5520 = vrot.slane %v5518, 5
      %v5521 = vsel %vm1707, %v5516, %v5520
      %v5522 = vshrl.u32 %v5398, 16
      %v5524 = vrot.slane %v5522, 4
      %v5525 = vor.u32 %v5524, %v5520
      %v5526 = vrot.slane %v5525, 4
      %v5528 = vshll.u32 %v5399, 16
      %v5530 = vrot.slane %v5528, 5
      %v5531 = vsel %vm1707, %v5526, %v5530
      %v5533 = vshrl.u32 %v5400, 16
      %v5535 = vrot.slane %v5533, 4
      %v5536 = vshll.u32 %v5400, 16
      %v5538 = vrot.slane %v5536, 5
      %v5539 = vor.u32 %v5535, %v5538
      %v5540 = vrot.slane %v5539, 4
      %v5542 = vshll.u32 %v5401, 16
      %v5544 = vrot.slane %v5542, 5
      %v5545 = vsel %vm1707, %v5540, %v5544
      %v5546 = vshrl.u32 %v5401, 16
      %v5548 = vrot.slane %v5546, 4
      %v5549 = vor.u32 %v5548, %v5544
      %v5550 = vrot.slane %v5549, 4
      %v5552 = vshll.u32 %v5402, 16
      %v5554 = vrot.slane %v5552, 5
      %v5555 = vsel %vm1707, %v5550, %v5554
      %v5557 = vshrl.u32 %v5403, 16
      %v5559 = vrot.slane %v5557, 4
      %v5560 = vshll.u32 %v5403, 16
      %v5562 = vrot.slane %v5560, 5
      %v5563 = vor.u32 %v5559, %v5562
      %v5564 = vrot.slane %v5563, 4
      %v5566 = vshll.u32 %v5404, 16
      %v5568 = vrot.slane %v5566, 5
      %v5569 = vsel %vm1707, %v5564, %v5568
      %v5570 = vshrl.u32 %v5404, 16
      %v5572 = vrot.slane %v5570, 4
      %v5573 = vor.u32 %v5572, %v5568
      %v5574 = vrot.slane %v5573, 4
      %v5576 = vshll.u32 %v5405, 16
      %v5578 = vrot.slane %v5576, 5
      %v5579 = vsel %vm1707, %v5574, %v5578
      %v5581 = vshrl.u32 %v5406, 16
      %v5583 = vrot.slane %v5581, 4
      %v5584 = vshll.u32 %v5406, 16
      %v5586 = vrot.slane %v5584, 5
      %v5587 = vor.u32 %v5583, %v5586
      %v5588 = vrot.slane %v5587, 4
      %v5590 = vshll.u32 %v5407, 16
      %v5592 = vrot.slane %v5590, 5
      %v5593 = vsel %vm1707, %v5588, %v5592
      %v5594 = vshrl.u32 %v5407, 16
      %v5596 = vrot.slane %v5594, 4
      %v5597 = vor.u32 %v5596, %v5592
      %v5598 = vrot.slane %v5597, 4
      %v5600 = vshll.u32 %v5408, 16
      %v5602 = vrot.slane %v5600, 5
      %v5603 = vsel %vm1707, %v5598, %v5602
      %v5605 = vshrl.u32 %v5409, 16
      %v5607 = vrot.slane %v5605, 4
      %v5608 = vshll.u32 %v5409, 16
      %v5610 = vrot.slane %v5608, 5
      %v5611 = vor.u32 %v5607, %v5610
      %v5612 = vrot.slane %v5611, 4
      %v5614 = vshll.u32 %v5410, 16
      %v5616 = vrot.slane %v5614, 5
      %v5617 = vsel %vm1707, %v5612, %v5616
      %v5618 = vshrl.u32 %v5410, 16
      %v5620 = vrot.slane %v5618, 4
      %v5621 = vor.u32 %v5620, %v5616
      %v5622 = vrot.slane %v5621, 4
      %v5624 = vshll.u32 %v5411, 16
      %v5626 = vrot.slane %v5624, 5
      %v5627 = vsel %vm1707, %v5622, %v5626
      %v5629 = vshrl.u32 %v5412, 16
      %v5631 = vrot.slane %v5629, 4
      %v5632 = vshll.u32 %v5412, 16
      %v5634 = vrot.slane %v5632, 5
      %v5635 = vor.u32 %v5631, %v5634
      %v5636 = vrot.slane %v5635, 4
      %v5638 = vshll.u32 %v5413, 16
      %v5640 = vrot.slane %v5638, 5
      %v5641 = vsel %vm1707, %v5636, %v5640
      %v5642 = vshrl.u32 %v5413, 16
      %v5644 = vrot.slane %v5642, 4
      %v5645 = vor.u32 %v5644, %v5640
      %v5646 = vrot.slane %v5645, 4
      %v5648 = vshll.u32 %v5414, 16
      %v5650 = vrot.slane %v5648, 5
      %v5651 = vsel %vm1707, %v5646, %v5650
      %v5653 = vshrl.u32 %v5415, 16
      %v5655 = vrot.slane %v5653, 4
      %v5656 = vshll.u32 %v5415, 16
      %v5658 = vrot.slane %v5656, 5
      %v5659 = vor.u32 %v5655, %v5658
      %v5660 = vrot.slane %v5659, 4
      %v5662 = vshll.u32 %v5416, 16
      %v5664 = vrot.slane %v5662, 5
      %v5665 = vsel %vm1707, %v5660, %v5664
      %v5666 = vshrl.u32 %v5416, 16
      %v5668 = vrot.slane %v5666, 4
      %v5669 = vor.u32 %v5668, %v5664
      %v5670 = vrot.slane %v5669, 4
      %v5672 = vshll.u32 %v5417, 16
      %v5674 = vrot.slane %v5672, 5
      %v5675 = vsel %vm1707, %v5670, %v5674
      %v5677 = vshrl.u32 %v5418, 16
      %v5679 = vrot.slane %v5677, 4
      %v5680 = vshll.u32 %v5418, 16
      %v5682 = vrot.slane %v5680, 5
      %v5683 = vor.u32 %v5679, %v5682
      %v5684 = vrot.slane %v5683, 4
      %v5686 = vshll.u32 %v5419, 16
      %v5688 = vrot.slane %v5686, 5
      %v5689 = vsel %vm1707, %v5684, %v5688
      %v5690 = vshrl.u32 %v5419, 16
      %v5692 = vrot.slane %v5690, 4
      %v5693 = vor.u32 %v5692, %v5688
      %v5694 = vrot.slane %v5693, 4
      %v5696 = vshll.u32 %v5420, 16
      %v5698 = vrot.slane %v5696, 5
      %v5699 = vsel %vm1707, %v5694, %v5698
      %v5701 = vshrl.u32 %v5421, 16
      %v5703 = vrot.slane %v5701, 4
      %v5704 = vshll.u32 %v5421, 16
      %v5706 = vrot.slane %v5704, 5
      %v5707 = vor.u32 %v5703, %v5706
      %v5708 = vrot.slane %v5707, 4
      %v5710 = vshll.u32 %v5422, 16
      %v5712 = vrot.slane %v5710, 5
      %v5713 = vsel %vm1707, %v5708, %v5712
      %v5714 = vshrl.u32 %v5422, 16
      %v5716 = vrot.slane %v5714, 4
      %v5717 = vor.u32 %v5716, %v5712
      %v5718 = vrot.slane %v5717, 4
      %v5720 = vshll.u32 %v5423, 16
      %v5722 = vrot.slane %v5720, 5
      %v5723 = vsel %vm1707, %v5718, %v5722
      %v5725 = vshrl.u32 %v5424, 16
      %v5727 = vrot.slane %v5725, 4
      %v5728 = vshll.u32 %v5424, 16
      %v5730 = vrot.slane %v5728, 5
      %v5731 = vor.u32 %v5727, %v5730
      %v5732 = vrot.slane %v5731, 4
      %v5734 = vshll.u32 %v5425, 16
      %v5736 = vrot.slane %v5734, 5
      %v5737 = vsel %vm1707, %v5732, %v5736
      %v5738 = vshrl.u32 %v5425, 16
      %v5740 = vrot.slane %v5738, 4
      %v5741 = vor.u32 %v5740, %v5736
      %v5742 = vrot.slane %v5741, 4
      %v5744 = vshll.u32 %v5426, 16
      %v5746 = vrot.slane %v5744, 5
      %v5747 = vsel %vm1707, %v5742, %v5746
      %v5749 = vshrl.u32 %v5427, 16
      %v5751 = vrot.slane %v5749, 4
      %v5752 = vshll.u32 %v5427, 16
      %v5754 = vrot.slane %v5752, 5
      %v5755 = vor.u32 %v5751, %v5754
      %v5756 = vrot.slane %v5755, 4
      %v5758 = vshll.u32 %v5428, 16
      %v5760 = vrot.slane %v5758, 5
      %v5761 = vsel %vm1707, %v5756, %v5760
      %v5762 = vshrl.u32 %v5428, 16
      %v5764 = vrot.slane %v5762, 4
      %v5765 = vor.u32 %v5764, %v5760
      %v5766 = vrot.slane %v5765, 4
      %v5768 = vshll.u32 %v5429, 16
      %v5770 = vrot.slane %v5768, 5
      %v5771 = vsel %vm1707, %v5766, %v5770
      %v5773 = vshrl.u32 %v5430, 16
      %v5775 = vrot.slane %v5773, 4
      %v5776 = vshll.u32 %v5430, 16
      %v5778 = vrot.slane %v5776, 5
      %v5779 = vor.u32 %v5775, %v5778
      %v5780 = vrot.slane %v5779, 4
      %v5782 = vshll.u32 %v5431, 16
      %v5784 = vrot.slane %v5782, 5
      %v5785 = vsel %vm1707, %v5780, %v5784
      %v5786 = vshrl.u32 %v5431, 16
      %v5788 = vrot.slane %v5786, 4
      %v5789 = vor.u32 %v5788, %v5784
      %v5790 = vrot.slane %v5789, 4
      %v5792 = vshll.u32 %v5432, 16
      %v5794 = vrot.slane %v5792, 5
      %v5795 = vsel %vm1707, %v5790, %v5794
      %v5797 = vshrl.u32 %v5433, 16
      %v5799 = vrot.slane %v5797, 4
      %v5800 = vshll.u32 %v5433, 16
      %v5802 = vrot.slane %v5800, 5
      %v5803 = vor.u32 %v5799, %v5802
      %v5804 = vrot.slane %v5803, 4
      %v5806 = vshll.u32 %v5434, 16
      %v5808 = vrot.slane %v5806, 5
      %v5809 = vsel %vm1707, %v5804, %v5808
      %v5810 = vshrl.u32 %v5434, 16
      %v5812 = vrot.slane %v5810, 4
      %v5813 = vor.u32 %v5812, %v5808
      %v5814 = vrot.slane %v5813, 4
      %v5816 = vshll.u32 %v5435, 16
      %v5818 = vrot.slane %v5816, 5
      %v5819 = vsel %vm1707, %v5814, %v5818
      %v5820 = vld [vmem:[#allocation3] sm:$0xff]
      %v5821 = vld [vmem:[#allocation3 + $0x8] sm:$0xff]
      %v5822 = vld [vmem:[#allocation3 + $0x10] sm:$0xff]
      %v5823 = vld [vmem:[#allocation3 + $0x18] sm:$0xff]
      %v5824 = vld [vmem:[#allocation3 + $0x20] sm:$0xff]
      %v5825 = vld [vmem:[#allocation3 + $0x28] sm:$0xff]
      %v5826 = vld [vmem:[#allocation3 + $0x30] sm:$0xff]
      %v5827 = vld [vmem:[#allocation3 + $0x38] sm:$0xff]
      %v5828 = vld [vmem:[#allocation3 + $0x40] sm:$0xff]
      %v5829 = vld [vmem:[#allocation3 + $0x48] sm:$0xff]
      %v5830 = vld [vmem:[#allocation3 + $0x50] sm:$0xff]
      %v5831 = vld [vmem:[#allocation3 + $0x58] sm:$0xff]
      %v5832 = vld [vmem:[#allocation3 + $0x60] sm:$0xff]
      %v5833 = vld [vmem:[#allocation3 + $0x68] sm:$0xff]
      %v5834 = vld [vmem:[#allocation3 + $0x70] sm:$0xff]
      %v5835 = vld [vmem:[#allocation3 + $0x78] sm:$0xff]
      %v5836 = vld [vmem:[#allocation3 + $0x80] sm:$0xff]
      %v5837 = vld [vmem:[#allocation3 + $0x88] sm:$0xff]
      %v5838 = vld [vmem:[#allocation3 + $0x90] sm:$0xff]
      %v5839 = vld [vmem:[#allocation3 + $0x98] sm:$0xff]
      %v5840 = vld [vmem:[#allocation3 + $0xa0] sm:$0xff]
      %v5841 = vld [vmem:[#allocation3 + $0xa8] sm:$0xff]
      %v5842 = vld [vmem:[#allocation3 + $0xb0] sm:$0xff]
      %v5843 = vld [vmem:[#allocation3 + $0xb8] sm:$0xff]
      %v5844 = vld [vmem:[#allocation3 + $0xc0] sm:$0xff]
      %v5845 = vld [vmem:[#allocation3 + $0xc8] sm:$0xff]
      %v5846 = vld [vmem:[#allocation3 + $0xd0] sm:$0xff]
      %v5847 = vld [vmem:[#allocation3 + $0xd8] sm:$0xff]
      %v5848 = vld [vmem:[#allocation3 + $0xe0] sm:$0xff]
      %v5849 = vld [vmem:[#allocation3 + $0xe8] sm:$0xff]
      %v5850 = vld [vmem:[#allocation3 + $0xf0] sm:$0xff]
      %v5851 = vld [vmem:[#allocation3 + $0xf8] sm:$0xff]
      %s5852 = scalar_lea.vmem %s384, 448
      %v5853 = vld [vmem:[%s5852] sm:$0xf]
      %v5854 = vld [vmem:[%s5852 + $0x4] sm:$0xf]
      %v5855 = vld [vmem:[%s5852 + $0x8] sm:$0xf]
      %v5856 = vld [vmem:[%s5852 + $0xc] sm:$0xf]
      %v5857 = vld [vmem:[%s5852 + $0x10] sm:$0xf]
      %v5858 = vld [vmem:[%s5852 + $0x14] sm:$0xf]
      %v5859 = vld [vmem:[%s5852 + $0x18] sm:$0xf]
      %v5860 = vld [vmem:[%s5852 + $0x1c] sm:$0xf]
      %v5861 = vld [vmem:[%s5852 + $0x20] sm:$0xf]
      %v5862 = vld [vmem:[%s5852 + $0x24] sm:$0xf]
      %v5863 = vld [vmem:[%s5852 + $0x28] sm:$0xf]
      %v5864 = vld [vmem:[%s5852 + $0x2c] sm:$0xf]
      %v5865 = vld [vmem:[%s5852 + $0x30] sm:$0xf]
      %v5866 = vld [vmem:[%s5852 + $0x34] sm:$0xf]
      %v5867 = vld [vmem:[%s5852 + $0x38] sm:$0xf]
      %v5868 = vld [vmem:[%s5852 + $0x3c] sm:$0xf]
      %v5869 = vunpack.c.l.b16 %v5449
      %v5870 = vunpack.c.l.b16 %v5459
      %v5871 = vunpack.c.l.b16 %v5473
      %v5872 = vunpack.c.l.b16 %v5483
      %v5873 = vunpack.c.l.b16 %v5497
      %v5874 = vunpack.c.l.b16 %v5507
      %v5875 = vunpack.c.l.b16 %v5521
      %v5876 = vunpack.c.l.b16 %v5531
      %v5877 = vunpack.c.l.b16 %v5545
      %v5878 = vunpack.c.l.b16 %v5555
      %v5879 = vunpack.c.l.b16 %v5569
      %v5880 = vunpack.c.l.b16 %v5579
      %v5881 = vunpack.c.l.b16 %v5593
      %v5882 = vunpack.c.l.b16 %v5603
      %v5883 = vunpack.c.l.b16 %v5617
      %v5884 = vunpack.c.l.b16 %v5627
      %v5885 = vunpack.c.l.b16 %v5641
      %v5886 = vunpack.c.l.b16 %v5651
      %v5887 = vunpack.c.l.b16 %v5665
      %v5888 = vunpack.c.l.b16 %v5675
      %v5889 = vunpack.c.l.b16 %v5689
      %v5890 = vunpack.c.l.b16 %v5699
      %v5891 = vunpack.c.l.b16 %v5713
      %v5892 = vunpack.c.l.b16 %v5723
      %v5893 = vunpack.c.l.b16 %v5737
      %v5894 = vunpack.c.l.b16 %v5747
      %v5895 = vunpack.c.l.b16 %v5761
      %v5896 = vunpack.c.l.b16 %v5771
      %v5897 = vunpack.c.l.b16 %v5785
      %v5898 = vunpack.c.l.b16 %v5795
      %v5899 = vunpack.c.l.b16 %v5809
      %v5900 = vunpack.c.l.b16 %v5819
      %v5901 = vpack.c.b16 %v5870, %v5869
      %v5902 = vpack.c.b16 %v5872, %v5871
      %v5903 = vpack.c.b16 %v5874, %v5873
      %v5904 = vpack.c.b16 %v5876, %v5875
      %v5905 = vpack.c.b16 %v5878, %v5877
      %v5906 = vpack.c.b16 %v5880, %v5879
      %v5907 = vpack.c.b16 %v5882, %v5881
      %v5908 = vpack.c.b16 %v5884, %v5883
      %v5909 = vpack.c.b16 %v5886, %v5885
      %v5910 = vpack.c.b16 %v5888, %v5887
      %v5911 = vpack.c.b16 %v5890, %v5889
      %v5912 = vpack.c.b16 %v5892, %v5891
      %v5913 = vpack.c.b16 %v5894, %v5893
      %v5914 = vpack.c.b16 %v5896, %v5895
      %v5915 = vpack.c.b16 %v5898, %v5897
      %v5916 = vpack.c.b16 %v5900, %v5899
      %v5949 = vunpack.c.l.b16 %v5853
      %v5950 = vunpack.c.l.b16 %v5854
      %v5951 = vunpack.c.l.b16 %v5855
      %v5952 = vunpack.c.l.b16 %v5856
      %v5953 = vunpack.c.l.b16 %v5857
      %v5954 = vunpack.c.l.b16 %v5858
      %v5955 = vunpack.c.l.b16 %v5859
      %v5956 = vunpack.c.l.b16 %v5860
      %v5957 = vunpack.c.l.b16 %v5861
      %v5958 = vunpack.c.l.b16 %v5862
      %v5959 = vunpack.c.l.b16 %v5863
      %v5960 = vunpack.c.l.b16 %v5864
      %v5961 = vunpack.c.l.b16 %v5865
      %v5962 = vunpack.c.l.b16 %v5866
      %v5963 = vunpack.c.l.b16 %v5867
      %v5964 = vunpack.c.l.b16 %v5868
      %v5965 = vpack.c.b16 %v5950, %v5949
      %v5966 = vpack.c.b16 %v5952, %v5951
      %v5967 = vpack.c.b16 %v5954, %v5953
      %v5968 = vpack.c.b16 %v5956, %v5955
      %v5969 = vpack.c.b16 %v5958, %v5957
      %v5970 = vpack.c.b16 %v5960, %v5959
      %v5971 = vpack.c.b16 %v5962, %v5961
      %v5972 = vpack.c.b16 %v5964, %v5963
      %5981 = vmatprep.subr.bf16.mxu0 0
      %5982 = vmatpush1.bf16.msra.mxu0 %v5972
      %5983 = vmatprep.subr.bf16.mxu0 0
      %5984 = vmatpush1.bf16.msra.mxu0 %v5971
      %5985 = vmatprep.subr.bf16.mxu0 0
      %5986 = vmatpush1.bf16.msra.mxu0 %v5970
      %5987 = vmatprep.subr.bf16.mxu0 0
      %5988 = vmatpush1.bf16.msra.mxu0 %v5969
      %5989 = vmatprep.subr.bf16.mxu0 0
      %5990 = vmatpush1.bf16.msra.mxu0 %v5968
      %5991 = vmatprep.subr.bf16.mxu0 0
      %5992 = vmatpush1.bf16.msra.mxu0 %v5967
      %5993 = vmatprep.subr.bf16.mxu0 0
      %5994 = vmatpush1.bf16.msra.mxu0 %v5966
      %5995 = vmatprep.subr.bf16.mxu0 0
      %5996 = vmatpush1.bf16.msra.mxu0 %v5965
      %5997 = vmatprep.subr.bf16.mxu0 0
      %5998 = vmatpush2.bf16.msra.mxu0 0
      %5999 = vmatprep.subr.bf16.mxu0 0
      %6000 = vmatpush2.bf16.msra.mxu0 0
      %6001 = vmatprep.subr.bf16.mxu0 0
      %6002 = vmatpush2.bf16.msra.mxu0 0
      %6003 = vmatprep.subr.bf16.mxu0 0
      %6004 = vmatpush2.bf16.msra.mxu0 0
      %6005 = vmatprep.subr.bf16.mxu0 0
      %6006 = vmatpush2.bf16.msra.mxu0 0
      %6007 = vmatprep.subr.bf16.mxu0 0
      %6008 = vmatpush2.bf16.msra.mxu0 0
      %6009 = vmatprep.subr.bf16.mxu0 0
      %6010 = vmatpush2.bf16.msra.mxu0 0
      %6011 = vmatprep.subr.bf16.mxu0 0
      %6012 = vmatpush2.bf16.msra.mxu0 0
      %6013 = vmatprep.mubr.bf16.mxu0 0
      %6014 = vmatmul.mubr.bf16.gmra.mxu0 %v5901
      %v6015 = vpop.f32.mrf.mxu0
      %v6016 = vadd.f32 0.0, %v6015
      %v6017 = vpop.f32.mrf.mxu0
      %v6018 = vpop.f32.mrf.mxu0
      %v6019 = vadd.f32 0.0, %v6018
      %v6020 = vpop.f32.mrf.mxu0
      %6021 = vmatprep.mubr.bf16.mxu0 0
      %6022 = vmatmul.mubr.bf16.gmra.mxu0 %v5902
      %v6023 = vpop.f32.mrf.mxu0
      %v6024 = vadd.f32 0.0, %v6023
      %v6025 = vpop.f32.mrf.mxu0
      %v6026 = vpop.f32.mrf.mxu0
      %v6027 = vadd.f32 0.0, %v6026
      %v6028 = vpop.f32.mrf.mxu0
      %6029 = vmatprep.mubr.bf16.mxu0 0
      %6030 = vmatmul.mubr.bf16.gmra.mxu0 %v5903
      %v6031 = vpop.f32.mrf.mxu0
      %v6032 = vadd.f32 0.0, %v6031
      %v6033 = vpop.f32.mrf.mxu0
      %v6034 = vpop.f32.mrf.mxu0
      %v6035 = vadd.f32 0.0, %v6034
      %v6036 = vpop.f32.mrf.mxu0
      %6037 = vmatprep.mubr.bf16.mxu0 0
      %6038 = vmatmul.mubr.bf16.gmra.mxu0 %v5904
      %v6039 = vpop.f32.mrf.mxu0
      %v6040 = vadd.f32 0.0, %v6039
      %v6041 = vpop.f32.mrf.mxu0
      %v6042 = vpop.f32.mrf.mxu0
      %v6043 = vadd.f32 0.0, %v6042
      %v6044 = vpop.f32.mrf.mxu0
      %6045 = vmatprep.mubr.bf16.mxu0 0
      %6046 = vmatmul.mubr.bf16.gmra.mxu0 %v5905
      %v6047 = vpop.f32.mrf.mxu0
      %v6048 = vadd.f32 0.0, %v6047
      %v6049 = vpop.f32.mrf.mxu0
      %v6050 = vpop.f32.mrf.mxu0
      %v6051 = vadd.f32 0.0, %v6050
      %v6052 = vpop.f32.mrf.mxu0
      %6053 = vmatprep.mubr.bf16.mxu0 0
      %6054 = vmatmul.mubr.bf16.gmra.mxu0 %v5906
      %v6055 = vpop.f32.mrf.mxu0
      %v6056 = vadd.f32 0.0, %v6055
      %v6057 = vpop.f32.mrf.mxu0
      %v6058 = vpop.f32.mrf.mxu0
      %v6059 = vadd.f32 0.0, %v6058
      %v6060 = vpop.f32.mrf.mxu0
      %6061 = vmatprep.mubr.bf16.mxu0 0
      %6062 = vmatmul.mubr.bf16.gmra.mxu0 %v5907
      %v6063 = vpop.f32.mrf.mxu0
      %v6064 = vadd.f32 0.0, %v6063
      %v6065 = vpop.f32.mrf.mxu0
      %v6066 = vpop.f32.mrf.mxu0
      %v6067 = vadd.f32 0.0, %v6066
      %v6068 = vpop.f32.mrf.mxu0
      %6069 = vmatprep.mubr.bf16.mxu0 0
      %6070 = vmatmul.mubr.bf16.gmra.mxu0 %v5908
      %v6071 = vpop.f32.mrf.mxu0
      %v6072 = vadd.f32 0.0, %v6071
      %v6073 = vpop.f32.mrf.mxu0
      %v6074 = vpop.f32.mrf.mxu0
      %v6075 = vadd.f32 0.0, %v6074
      %v6076 = vpop.f32.mrf.mxu0
      %6077 = vmatprep.mubr.bf16.mxu0 0
      %6078 = vmatmul.mubr.bf16.gmra.mxu0 %v5909
      %v6079 = vpop.f32.mrf.mxu0
      %v6080 = vadd.f32 0.0, %v6079
      %v6081 = vpop.f32.mrf.mxu0
      %v6082 = vpop.f32.mrf.mxu0
      %v6083 = vadd.f32 0.0, %v6082
      %v6084 = vpop.f32.mrf.mxu0
      %6085 = vmatprep.mubr.bf16.mxu0 0
      %6086 = vmatmul.mubr.bf16.gmra.mxu0 %v5910
      %v6087 = vpop.f32.mrf.mxu0
      %v6088 = vadd.f32 0.0, %v6087
      %v6089 = vpop.f32.mrf.mxu0
      %v6090 = vpop.f32.mrf.mxu0
      %v6091 = vadd.f32 0.0, %v6090
      %v6092 = vpop.f32.mrf.mxu0
      %6093 = vmatprep.mubr.bf16.mxu0 0
      %6094 = vmatmul.mubr.bf16.gmra.mxu0 %v5911
      %v6095 = vpop.f32.mrf.mxu0
      %v6096 = vadd.f32 0.0, %v6095
      %v6097 = vpop.f32.mrf.mxu0
      %v6098 = vpop.f32.mrf.mxu0
      %v6099 = vadd.f32 0.0, %v6098
      %v6100 = vpop.f32.mrf.mxu0
      %6101 = vmatprep.mubr.bf16.mxu0 0
      %6102 = vmatmul.mubr.bf16.gmra.mxu0 %v5912
      %v6103 = vpop.f32.mrf.mxu0
      %v6104 = vadd.f32 0.0, %v6103
      %v6105 = vpop.f32.mrf.mxu0
      %v6106 = vpop.f32.mrf.mxu0
      %v6107 = vadd.f32 0.0, %v6106
      %v6108 = vpop.f32.mrf.mxu0
      %6109 = vmatprep.mubr.bf16.mxu0 0
      %6110 = vmatmul.mubr.bf16.gmra.mxu0 %v5913
      %v6111 = vpop.f32.mrf.mxu0
      %v6112 = vadd.f32 0.0, %v6111
      %v6113 = vpop.f32.mrf.mxu0
      %v6114 = vpop.f32.mrf.mxu0
      %v6115 = vadd.f32 0.0, %v6114
      %v6116 = vpop.f32.mrf.mxu0
      %6117 = vmatprep.mubr.bf16.mxu0 0
      %6118 = vmatmul.mubr.bf16.gmra.mxu0 %v5914
      %v6119 = vpop.f32.mrf.mxu0
      %v6120 = vadd.f32 0.0, %v6119
      %v6121 = vpop.f32.mrf.mxu0
      %v6122 = vpop.f32.mrf.mxu0
      %v6123 = vadd.f32 0.0, %v6122
      %v6124 = vpop.f32.mrf.mxu0
      %6125 = vmatprep.mubr.bf16.mxu0 0
      %6126 = vmatmul.mubr.bf16.gmra.mxu0 %v5915
      %v6127 = vpop.f32.mrf.mxu0
      %v6128 = vadd.f32 0.0, %v6127
      %v6129 = vpop.f32.mrf.mxu0
      %v6130 = vpop.f32.mrf.mxu0
      %v6131 = vadd.f32 0.0, %v6130
      %v6132 = vpop.f32.mrf.mxu0
      %6133 = vmatprep.mubr.bf16.mxu0 0
      %6134 = vmatmul.mubr.bf16.gmra.mxu0 %v5916
      %v6135 = vpop.f32.mrf.mxu0
      %v6136 = vadd.f32 0.0, %v6135
      %v6137 = vpop.f32.mrf.mxu0
      %v6138 = vpop.f32.mrf.mxu0
      %v6139 = vadd.f32 0.0, %v6138
      %v6140 = vpop.f32.mrf.mxu0
      %6141 = vdwg.mxu0
      %v6142 = vadd.f32 %v5820, %v6016
      %v6143 = vadd.f32 %v5821, %v6019
      %v6144 = vadd.f32 %v5822, %v6024
      %v6145 = vadd.f32 %v5823, %v6027
      %v6146 = vadd.f32 %v5824, %v6032
      %v6147 = vadd.f32 %v5825, %v6035
      %v6148 = vadd.f32 %v5826, %v6040
      %v6149 = vadd.f32 %v5827, %v6043
      %v6150 = vadd.f32 %v5828, %v6048
      %v6151 = vadd.f32 %v5829, %v6051
      %v6152 = vadd.f32 %v5830, %v6056
      %v6153 = vadd.f32 %v5831, %v6059
      %v6154 = vadd.f32 %v5832, %v6064
      %v6155 = vadd.f32 %v5833, %v6067
      %v6156 = vadd.f32 %v5834, %v6072
      %v6157 = vadd.f32 %v5835, %v6075
      %v6158 = vadd.f32 %v5836, %v6080
      %v6159 = vadd.f32 %v5837, %v6083
      %v6160 = vadd.f32 %v5838, %v6088
      %v6161 = vadd.f32 %v5839, %v6091
      %v6162 = vadd.f32 %v5840, %v6096
      %v6163 = vadd.f32 %v5841, %v6099
      %v6164 = vadd.f32 %v5842, %v6104
      %v6165 = vadd.f32 %v5843, %v6107
      %v6166 = vadd.f32 %v5844, %v6112
      %v6167 = vadd.f32 %v5845, %v6115
      %v6168 = vadd.f32 %v5846, %v6120
      %v6169 = vadd.f32 %v5847, %v6123
      %v6170 = vadd.f32 %v5848, %v6128
      %v6171 = vadd.f32 %v5849, %v6131
      %v6172 = vadd.f32 %v5850, %v6136
      %v6173 = vadd.f32 %v5851, %v6139
      %6174 = vst [vmem:[#allocation3] sm:$0xff] %v6142
      %6175 = vst [vmem:[#allocation3 + $0x8] sm:$0xff] %v6143
      %6176 = vst [vmem:[#allocation3 + $0x10] sm:$0xff] %v6144
      %6177 = vst [vmem:[#allocation3 + $0x18] sm:$0xff] %v6145
      %6178 = vst [vmem:[#allocation3 + $0x20] sm:$0xff] %v6146
      %6179 = vst [vmem:[#allocation3 + $0x28] sm:$0xff] %v6147
      %6180 = vst [vmem:[#allocation3 + $0x30] sm:$0xff] %v6148
      %6181 = vst [vmem:[#allocation3 + $0x38] sm:$0xff] %v6149
      %6182 = vst [vmem:[#allocation3 + $0x40] sm:$0xff] %v6150
      %6183 = vst [vmem:[#allocation3 + $0x48] sm:$0xff] %v6151
      %6184 = vst [vmem:[#allocation3 + $0x50] sm:$0xff] %v6152
      %6185 = vst [vmem:[#allocation3 + $0x58] sm:$0xff] %v6153
      %6186 = vst [vmem:[#allocation3 + $0x60] sm:$0xff] %v6154
      %6187 = vst [vmem:[#allocation3 + $0x68] sm:$0xff] %v6155
      %6188 = vst [vmem:[#allocation3 + $0x70] sm:$0xff] %v6156
      %6189 = vst [vmem:[#allocation3 + $0x78] sm:$0xff] %v6157
      %6190 = vst [vmem:[#allocation3 + $0x80] sm:$0xff] %v6158
      %6191 = vst [vmem:[#allocation3 + $0x88] sm:$0xff] %v6159
      %6192 = vst [vmem:[#allocation3 + $0x90] sm:$0xff] %v6160
      %6193 = vst [vmem:[#allocation3 + $0x98] sm:$0xff] %v6161
      %6194 = vst [vmem:[#allocation3 + $0xa0] sm:$0xff] %v6162
      %6195 = vst [vmem:[#allocation3 + $0xa8] sm:$0xff] %v6163
      %6196 = vst [vmem:[#allocation3 + $0xb0] sm:$0xff] %v6164
      %6197 = vst [vmem:[#allocation3 + $0xb8] sm:$0xff] %v6165
      %6198 = vst [vmem:[#allocation3 + $0xc0] sm:$0xff] %v6166
      %6199 = vst [vmem:[#allocation3 + $0xc8] sm:$0xff] %v6167
      %6200 = vst [vmem:[#allocation3 + $0xd0] sm:$0xff] %v6168
      %6201 = vst [vmem:[#allocation3 + $0xd8] sm:$0xff] %v6169
      %6202 = vst [vmem:[#allocation3 + $0xe0] sm:$0xff] %v6170
      %6203 = vst [vmem:[#allocation3 + $0xe8] sm:$0xff] %v6171
      %6204 = vst [vmem:[#allocation3 + $0xf0] sm:$0xff] %v6172
      %6205 = vst [vmem:[#allocation3 + $0xf8] sm:$0xff] %v6173
      %v6206 = vld [vmem:[%s4937] sm:$0xe]
      %v6207 = vld [vmem:[%s4937 + $0x4] sm:$0xf]
      %v6208 = vld [vmem:[%s4937 + $0x8] sm:$0x1]
      %v6209 = vld [vmem:[%s4937 + $0xc] sm:$0xe]
      %v6210 = vld [vmem:[%s4937 + $0x10] sm:$0xf]
      %v6211 = vld [vmem:[%s4937 + $0x14] sm:$0x1]
      %v6212 = vld [vmem:[%s4937 + $0x18] sm:$0xe]
      %v6213 = vld [vmem:[%s4937 + $0x1c] sm:$0xf]
      %v6214 = vld [vmem:[%s4937 + $0x20] sm:$0x1]
      %v6215 = vld [vmem:[%s4937 + $0x24] sm:$0xe]
      %v6216 = vld [vmem:[%s4937 + $0x28] sm:$0xf]
      %v6217 = vld [vmem:[%s4937 + $0x2c] sm:$0x1]
      %v6218 = vld [vmem:[%s4937 + $0x30] sm:$0xe]
      %v6219 = vld [vmem:[%s4937 + $0x34] sm:$0xf]
      %v6220 = vld [vmem:[%s4937 + $0x38] sm:$0x1]
      %v6221 = vld [vmem:[%s4937 + $0x3c] sm:$0xe]
      %v6222 = vld [vmem:[%s4937 + $0x40] sm:$0xf]
      %v6223 = vld [vmem:[%s4937 + $0x44] sm:$0x1]
      %v6224 = vld [vmem:[%s4937 + $0x48] sm:$0xe]
      %v6225 = vld [vmem:[%s4937 + $0x4c] sm:$0xf]
      %v6226 = vld [vmem:[%s4937 + $0x50] sm:$0x1]
      %v6227 = vld [vmem:[%s4937 + $0x54] sm:$0xe]
      %v6228 = vld [vmem:[%s4937 + $0x58] sm:$0xf]
      %v6229 = vld [vmem:[%s4937 + $0x5c] sm:$0x1]
      %v6230 = vld [vmem:[%s4937 + $0x60] sm:$0xe]
      %v6231 = vld [vmem:[%s4937 + $0x64] sm:$0xf]
      %v6232 = vld [vmem:[%s4937 + $0x68] sm:$0x1]
      %v6233 = vld [vmem:[%s4937 + $0x6c] sm:$0xe]
      %v6234 = vld [vmem:[%s4937 + $0x70] sm:$0xf]
      %v6235 = vld [vmem:[%s4937 + $0x74] sm:$0x1]
      %v6236 = vld [vmem:[%s4937 + $0x78] sm:$0xe]
      %v6237 = vld [vmem:[%s4937 + $0x7c] sm:$0xf]
      %v6238 = vld [vmem:[%s4937 + $0x80] sm:$0x1]
      %v6239 = vld [vmem:[%s4937 + $0x84] sm:$0xe]
      %v6240 = vld [vmem:[%s4937 + $0x88] sm:$0xf]
      %v6241 = vld [vmem:[%s4937 + $0x8c] sm:$0x1]
      %v6242 = vld [vmem:[%s4937 + $0x90] sm:$0xe]
      %v6243 = vld [vmem:[%s4937 + $0x94] sm:$0xf]
      %v6244 = vld [vmem:[%s4937 + $0x98] sm:$0x1]
      %v6245 = vld [vmem:[%s4937 + $0x9c] sm:$0xe]
      %v6246 = vld [vmem:[%s4937 + $0xa0] sm:$0xf]
      %v6247 = vld [vmem:[%s4937 + $0xa4] sm:$0x1]
      %v6248 = vld [vmem:[%s4937 + $0xa8] sm:$0xe]
      %v6249 = vld [vmem:[%s4937 + $0xac] sm:$0xf]
      %v6250 = vld [vmem:[%s4937 + $0xb0] sm:$0x1]
      %v6251 = vld [vmem:[%s4937 + $0xb4] sm:$0xe]
      %v6252 = vld [vmem:[%s4937 + $0xb8] sm:$0xf]
      %v6253 = vld [vmem:[%s4937 + $0xbc] sm:$0x1]
      %v6302 = vrot.slane %v6206, 5
      %v6303 = vrot.slane %v6302, 4
      %v6304 = vrot.slane %v6207, 5
      %v6305 = vsel %vm2576, %v6303, %v6304
      %v6306 = vrot.slane %v6304, 4
      %v6307 = vrot.slane %v6208, 5
      %v6308 = vsel %vm2576, %v6306, %v6307
      %v6309 = vrot.slane %v6209, 5
      %v6310 = vrot.slane %v6309, 4
      %v6311 = vrot.slane %v6210, 5
      %v6312 = vsel %vm2576, %v6310, %v6311
      %v6313 = vrot.slane %v6311, 4
      %v6314 = vrot.slane %v6211, 5
      %v6315 = vsel %vm2576, %v6313, %v6314
      %v6316 = vrot.slane %v6212, 5
      %v6317 = vrot.slane %v6316, 4
      %v6318 = vrot.slane %v6213, 5
      %v6319 = vsel %vm2576, %v6317, %v6318
      %v6320 = vrot.slane %v6318, 4
      %v6321 = vrot.slane %v6214, 5
      %v6322 = vsel %vm2576, %v6320, %v6321
      %v6323 = vrot.slane %v6215, 5
      %v6324 = vrot.slane %v6323, 4
      %v6325 = vrot.slane %v6216, 5
      %v6326 = vsel %vm2576, %v6324, %v6325
      %v6327 = vrot.slane %v6325, 4
      %v6328 = vrot.slane %v6217, 5
      %v6329 = vsel %vm2576, %v6327, %v6328
      %v6330 = vrot.slane %v6218, 5
      %v6331 = vrot.slane %v6330, 4
      %v6332 = vrot.slane %v6219, 5
      %v6333 = vsel %vm2576, %v6331, %v6332
      %v6334 = vrot.slane %v6332, 4
      %v6335 = vrot.slane %v6220, 5
      %v6336 = vsel %vm2576, %v6334, %v6335
      %v6337 = vrot.slane %v6221, 5
      %v6338 = vrot.slane %v6337, 4
      %v6339 = vrot.slane %v6222, 5
      %v6340 = vsel %vm2576, %v6338, %v6339
      %v6341 = vrot.slane %v6339, 4
      %v6342 = vrot.slane %v6223, 5
      %v6343 = vsel %vm2576, %v6341, %v6342
      %v6344 = vrot.slane %v6224, 5
      %v6345 = vrot.slane %v6344, 4
      %v6346 = vrot.slane %v6225, 5
      %v6347 = vsel %vm2576, %v6345, %v6346
      %v6348 = vrot.slane %v6346, 4
      %v6349 = vrot.slane %v6226, 5
      %v6350 = vsel %vm2576, %v6348, %v6349
      %v6351 = vrot.slane %v6227, 5
      %v6352 = vrot.slane %v6351, 4
      %v6353 = vrot.slane %v6228, 5
      %v6354 = vsel %vm2576, %v6352, %v6353
      %v6355 = vrot.slane %v6353, 4
      %v6356 = vrot.slane %v6229, 5
      %v6357 = vsel %vm2576, %v6355, %v6356
      %v6358 = vrot.slane %v6230, 5
      %v6359 = vrot.slane %v6358, 4
      %v6360 = vrot.slane %v6231, 5
      %v6361 = vsel %vm2576, %v6359, %v6360
      %v6362 = vrot.slane %v6360, 4
      %v6363 = vrot.slane %v6232, 5
      %v6364 = vsel %vm2576, %v6362, %v6363
      %v6365 = vrot.slane %v6233, 5
      %v6366 = vrot.slane %v6365, 4
      %v6367 = vrot.slane %v6234, 5
      %v6368 = vsel %vm2576, %v6366, %v6367
      %v6369 = vrot.slane %v6367, 4
      %v6370 = vrot.slane %v6235, 5
      %v6371 = vsel %vm2576, %v6369, %v6370
      %v6372 = vrot.slane %v6236, 5
      %v6373 = vrot.slane %v6372, 4
      %v6374 = vrot.slane %v6237, 5
      %v6375 = vsel %vm2576, %v6373, %v6374
      %v6376 = vrot.slane %v6374, 4
      %v6377 = vrot.slane %v6238, 5
      %v6378 = vsel %vm2576, %v6376, %v6377
      %v6379 = vrot.slane %v6239, 5
      %v6380 = vrot.slane %v6379, 4
      %v6381 = vrot.slane %v6240, 5
      %v6382 = vsel %vm2576, %v6380, %v6381
      %v6383 = vrot.slane %v6381, 4
      %v6384 = vrot.slane %v6241, 5
      %v6385 = vsel %vm2576, %v6383, %v6384
      %v6386 = vrot.slane %v6242, 5
      %v6387 = vrot.slane %v6386, 4
      %v6388 = vrot.slane %v6243, 5
      %v6389 = vsel %vm2576, %v6387, %v6388
      %v6390 = vrot.slane %v6388, 4
      %v6391 = vrot.slane %v6244, 5
      %v6392 = vsel %vm2576, %v6390, %v6391
      %v6393 = vrot.slane %v6245, 5
      %v6394 = vrot.slane %v6393, 4
      %v6395 = vrot.slane %v6246, 5
      %v6396 = vsel %vm2576, %v6394, %v6395
      %v6397 = vrot.slane %v6395, 4
      %v6398 = vrot.slane %v6247, 5
      %v6399 = vsel %vm2576, %v6397, %v6398
      %v6400 = vrot.slane %v6248, 5
      %v6401 = vrot.slane %v6400, 4
      %v6402 = vrot.slane %v6249, 5
      %v6403 = vsel %vm2576, %v6401, %v6402
      %v6404 = vrot.slane %v6402, 4
      %v6405 = vrot.slane %v6250, 5
      %v6406 = vsel %vm2576, %v6404, %v6405
      %v6407 = vrot.slane %v6251, 5
      %v6408 = vrot.slane %v6407, 4
      %v6409 = vrot.slane %v6252, 5
      %v6410 = vsel %vm2576, %v6408, %v6409
      %v6411 = vrot.slane %v6409, 4
      %v6412 = vrot.slane %v6253, 5
      %v6413 = vsel %vm2576, %v6411, %v6412
      %v6414 = vld [vmem:[#allocation3] sm:$0xff]
      %v6415 = vld [vmem:[#allocation3 + $0x8] sm:$0xff]
      %v6416 = vld [vmem:[#allocation3 + $0x10] sm:$0xff]
      %v6417 = vld [vmem:[#allocation3 + $0x18] sm:$0xff]
      %v6418 = vld [vmem:[#allocation3 + $0x20] sm:$0xff]
      %v6419 = vld [vmem:[#allocation3 + $0x28] sm:$0xff]
      %v6420 = vld [vmem:[#allocation3 + $0x30] sm:$0xff]
      %v6421 = vld [vmem:[#allocation3 + $0x38] sm:$0xff]
      %v6422 = vld [vmem:[#allocation3 + $0x40] sm:$0xff]
      %v6423 = vld [vmem:[#allocation3 + $0x48] sm:$0xff]
      %v6424 = vld [vmem:[#allocation3 + $0x50] sm:$0xff]
      %v6425 = vld [vmem:[#allocation3 + $0x58] sm:$0xff]
      %v6426 = vld [vmem:[#allocation3 + $0x60] sm:$0xff]
      %v6427 = vld [vmem:[#allocation3 + $0x68] sm:$0xff]
      %v6428 = vld [vmem:[#allocation3 + $0x70] sm:$0xff]
      %v6429 = vld [vmem:[#allocation3 + $0x78] sm:$0xff]
      %v6430 = vld [vmem:[#allocation3 + $0x80] sm:$0xff]
      %v6431 = vld [vmem:[#allocation3 + $0x88] sm:$0xff]
      %v6432 = vld [vmem:[#allocation3 + $0x90] sm:$0xff]
      %v6433 = vld [vmem:[#allocation3 + $0x98] sm:$0xff]
      %v6434 = vld [vmem:[#allocation3 + $0xa0] sm:$0xff]
      %v6435 = vld [vmem:[#allocation3 + $0xa8] sm:$0xff]
      %v6436 = vld [vmem:[#allocation3 + $0xb0] sm:$0xff]
      %v6437 = vld [vmem:[#allocation3 + $0xb8] sm:$0xff]
      %v6438 = vld [vmem:[#allocation3 + $0xc0] sm:$0xff]
      %v6439 = vld [vmem:[#allocation3 + $0xc8] sm:$0xff]
      %v6440 = vld [vmem:[#allocation3 + $0xd0] sm:$0xff]
      %v6441 = vld [vmem:[#allocation3 + $0xd8] sm:$0xff]
      %v6442 = vld [vmem:[#allocation3 + $0xe0] sm:$0xff]
      %v6443 = vld [vmem:[#allocation3 + $0xe8] sm:$0xff]
      %v6444 = vld [vmem:[#allocation3 + $0xf0] sm:$0xff]
      %v6445 = vld [vmem:[#allocation3 + $0xf8] sm:$0xff]
      %s6446 = scalar_lea.vmem %s384, 512
      %v6447 = vld [vmem:[%s6446] sm:$0xf]
      %v6448 = vld [vmem:[%s6446 + $0x4] sm:$0xf]
      %v6449 = vld [vmem:[%s6446 + $0x8] sm:$0xf]
      %v6450 = vld [vmem:[%s6446 + $0xc] sm:$0xf]
      %v6451 = vld [vmem:[%s6446 + $0x10] sm:$0xf]
      %v6452 = vld [vmem:[%s6446 + $0x14] sm:$0xf]
      %v6453 = vld [vmem:[%s6446 + $0x18] sm:$0xf]
      %v6454 = vld [vmem:[%s6446 + $0x1c] sm:$0xf]
      %v6455 = vld [vmem:[%s6446 + $0x20] sm:$0xf]
      %v6456 = vld [vmem:[%s6446 + $0x24] sm:$0xf]
      %v6457 = vld [vmem:[%s6446 + $0x28] sm:$0xf]
      %v6458 = vld [vmem:[%s6446 + $0x2c] sm:$0xf]
      %v6459 = vld [vmem:[%s6446 + $0x30] sm:$0xf]
      %v6460 = vld [vmem:[%s6446 + $0x34] sm:$0xf]
      %v6461 = vld [vmem:[%s6446 + $0x38] sm:$0xf]
      %v6462 = vld [vmem:[%s6446 + $0x3c] sm:$0xf]
      %v6463 = vunpack.c.l.b16 %v6305
      %v6464 = vunpack.c.l.b16 %v6308
      %v6465 = vunpack.c.l.b16 %v6312
      %v6466 = vunpack.c.l.b16 %v6315
      %v6467 = vunpack.c.l.b16 %v6319
      %v6468 = vunpack.c.l.b16 %v6322
      %v6469 = vunpack.c.l.b16 %v6326
      %v6470 = vunpack.c.l.b16 %v6329
      %v6471 = vunpack.c.l.b16 %v6333
      %v6472 = vunpack.c.l.b16 %v6336
      %v6473 = vunpack.c.l.b16 %v6340
      %v6474 = vunpack.c.l.b16 %v6343
      %v6475 = vunpack.c.l.b16 %v6347
      %v6476 = vunpack.c.l.b16 %v6350
      %v6477 = vunpack.c.l.b16 %v6354
      %v6478 = vunpack.c.l.b16 %v6357
      %v6479 = vunpack.c.l.b16 %v6361
      %v6480 = vunpack.c.l.b16 %v6364
      %v6481 = vunpack.c.l.b16 %v6368
      %v6482 = vunpack.c.l.b16 %v6371
      %v6483 = vunpack.c.l.b16 %v6375
      %v6484 = vunpack.c.l.b16 %v6378
      %v6485 = vunpack.c.l.b16 %v6382
      %v6486 = vunpack.c.l.b16 %v6385
      %v6487 = vunpack.c.l.b16 %v6389
      %v6488 = vunpack.c.l.b16 %v6392
      %v6489 = vunpack.c.l.b16 %v6396
      %v6490 = vunpack.c.l.b16 %v6399
      %v6491 = vunpack.c.l.b16 %v6403
      %v6492 = vunpack.c.l.b16 %v6406
      %v6493 = vunpack.c.l.b16 %v6410
      %v6494 = vunpack.c.l.b16 %v6413
      %v6495 = vpack.c.b16 %v6464, %v6463
      %v6496 = vpack.c.b16 %v6466, %v6465
      %v6497 = vpack.c.b16 %v6468, %v6467
      %v6498 = vpack.c.b16 %v6470, %v6469
      %v6499 = vpack.c.b16 %v6472, %v6471
      %v6500 = vpack.c.b16 %v6474, %v6473
      %v6501 = vpack.c.b16 %v6476, %v6475
      %v6502 = vpack.c.b16 %v6478, %v6477
      %v6503 = vpack.c.b16 %v6480, %v6479
      %v6504 = vpack.c.b16 %v6482, %v6481
      %v6505 = vpack.c.b16 %v6484, %v6483
      %v6506 = vpack.c.b16 %v6486, %v6485
      %v6507 = vpack.c.b16 %v6488, %v6487
      %v6508 = vpack.c.b16 %v6490, %v6489
      %v6509 = vpack.c.b16 %v6492, %v6491
      %v6510 = vpack.c.b16 %v6494, %v6493
      %v6543 = vunpack.c.l.b16 %v6447
      %v6544 = vunpack.c.l.b16 %v6448
      %v6545 = vunpack.c.l.b16 %v6449
      %v6546 = vunpack.c.l.b16 %v6450
      %v6547 = vunpack.c.l.b16 %v6451
      %v6548 = vunpack.c.l.b16 %v6452
      %v6549 = vunpack.c.l.b16 %v6453
      %v6550 = vunpack.c.l.b16 %v6454
      %v6551 = vunpack.c.l.b16 %v6455
      %v6552 = vunpack.c.l.b16 %v6456
      %v6553 = vunpack.c.l.b16 %v6457
      %v6554 = vunpack.c.l.b16 %v6458
      %v6555 = vunpack.c.l.b16 %v6459
      %v6556 = vunpack.c.l.b16 %v6460
      %v6557 = vunpack.c.l.b16 %v6461
      %v6558 = vunpack.c.l.b16 %v6462
      %v6559 = vpack.c.b16 %v6544, %v6543
      %v6560 = vpack.c.b16 %v6546, %v6545
      %v6561 = vpack.c.b16 %v6548, %v6547
      %v6562 = vpack.c.b16 %v6550, %v6549
      %v6563 = vpack.c.b16 %v6552, %v6551
      %v6564 = vpack.c.b16 %v6554, %v6553
      %v6565 = vpack.c.b16 %v6556, %v6555
      %v6566 = vpack.c.b16 %v6558, %v6557
      %6575 = vmatprep.subr.bf16.mxu0 0
      %6576 = vmatpush1.bf16.msra.mxu0 %v6566
      %6577 = vmatprep.subr.bf16.mxu0 0
      %6578 = vmatpush1.bf16.msra.mxu0 %v6565
      %6579 = vmatprep.subr.bf16.mxu0 0
      %6580 = vmatpush1.bf16.msra.mxu0 %v6564
      %6581 = vmatprep.subr.bf16.mxu0 0
      %6582 = vmatpush1.bf16.msra.mxu0 %v6563
      %6583 = vmatprep.subr.bf16.mxu0 0
      %6584 = vmatpush1.bf16.msra.mxu0 %v6562
      %6585 = vmatprep.subr.bf16.mxu0 0
      %6586 = vmatpush1.bf16.msra.mxu0 %v6561
      %6587 = vmatprep.subr.bf16.mxu0 0
      %6588 = vmatpush1.bf16.msra.mxu0 %v6560
      %6589 = vmatprep.subr.bf16.mxu0 0
      %6590 = vmatpush1.bf16.msra.mxu0 %v6559
      %6591 = vmatprep.subr.bf16.mxu0 0
      %6592 = vmatpush2.bf16.msra.mxu0 0
      %6593 = vmatprep.subr.bf16.mxu0 0
      %6594 = vmatpush2.bf16.msra.mxu0 0
      %6595 = vmatprep.subr.bf16.mxu0 0
      %6596 = vmatpush2.bf16.msra.mxu0 0
      %6597 = vmatprep.subr.bf16.mxu0 0
      %6598 = vmatpush2.bf16.msra.mxu0 0
      %6599 = vmatprep.subr.bf16.mxu0 0
      %6600 = vmatpush2.bf16.msra.mxu0 0
      %6601 = vmatprep.subr.bf16.mxu0 0
      %6602 = vmatpush2.bf16.msra.mxu0 0
      %6603 = vmatprep.subr.bf16.mxu0 0
      %6604 = vmatpush2.bf16.msra.mxu0 0
      %6605 = vmatprep.subr.bf16.mxu0 0
      %6606 = vmatpush2.bf16.msra.mxu0 0
      %6607 = vmatprep.mubr.bf16.mxu0 0
      %6608 = vmatmul.mubr.bf16.gmra.mxu0 %v6495
      %v6609 = vpop.f32.mrf.mxu0
      %v6610 = vadd.f32 0.0, %v6609
      %v6611 = vpop.f32.mrf.mxu0
      %v6612 = vpop.f32.mrf.mxu0
      %v6613 = vadd.f32 0.0, %v6612
      %v6614 = vpop.f32.mrf.mxu0
      %6615 = vmatprep.mubr.bf16.mxu0 0
      %6616 = vmatmul.mubr.bf16.gmra.mxu0 %v6496
      %v6617 = vpop.f32.mrf.mxu0
      %v6618 = vadd.f32 0.0, %v6617
      %v6619 = vpop.f32.mrf.mxu0
      %v6620 = vpop.f32.mrf.mxu0
      %v6621 = vadd.f32 0.0, %v6620
      %v6622 = vpop.f32.mrf.mxu0
      %6623 = vmatprep.mubr.bf16.mxu0 0
      %6624 = vmatmul.mubr.bf16.gmra.mxu0 %v6497
      %v6625 = vpop.f32.mrf.mxu0
      %v6626 = vadd.f32 0.0, %v6625
      %v6627 = vpop.f32.mrf.mxu0
      %v6628 = vpop.f32.mrf.mxu0
      %v6629 = vadd.f32 0.0, %v6628
      %v6630 = vpop.f32.mrf.mxu0
      %6631 = vmatprep.mubr.bf16.mxu0 0
      %6632 = vmatmul.mubr.bf16.gmra.mxu0 %v6498
      %v6633 = vpop.f32.mrf.mxu0
      %v6634 = vadd.f32 0.0, %v6633
      %v6635 = vpop.f32.mrf.mxu0
      %v6636 = vpop.f32.mrf.mxu0
      %v6637 = vadd.f32 0.0, %v6636
      %v6638 = vpop.f32.mrf.mxu0
      %6639 = vmatprep.mubr.bf16.mxu0 0
      %6640 = vmatmul.mubr.bf16.gmra.mxu0 %v6499
      %v6641 = vpop.f32.mrf.mxu0
      %v6642 = vadd.f32 0.0, %v6641
      %v6643 = vpop.f32.mrf.mxu0
      %v6644 = vpop.f32.mrf.mxu0
      %v6645 = vadd.f32 0.0, %v6644
      %v6646 = vpop.f32.mrf.mxu0
      %6647 = vmatprep.mubr.bf16.mxu0 0
      %6648 = vmatmul.mubr.bf16.gmra.mxu0 %v6500
      %v6649 = vpop.f32.mrf.mxu0
      %v6650 = vadd.f32 0.0, %v6649
      %v6651 = vpop.f32.mrf.mxu0
      %v6652 = vpop.f32.mrf.mxu0
      %v6653 = vadd.f32 0.0, %v6652
      %v6654 = vpop.f32.mrf.mxu0
      %6655 = vmatprep.mubr.bf16.mxu0 0
      %6656 = vmatmul.mubr.bf16.gmra.mxu0 %v6501
      %v6657 = vpop.f32.mrf.mxu0
      %v6658 = vadd.f32 0.0, %v6657
      %v6659 = vpop.f32.mrf.mxu0
      %v6660 = vpop.f32.mrf.mxu0
      %v6661 = vadd.f32 0.0, %v6660
      %v6662 = vpop.f32.mrf.mxu0
      %6663 = vmatprep.mubr.bf16.mxu0 0
      %6664 = vmatmul.mubr.bf16.gmra.mxu0 %v6502
      %v6665 = vpop.f32.mrf.mxu0
      %v6666 = vadd.f32 0.0, %v6665
      %v6667 = vpop.f32.mrf.mxu0
      %v6668 = vpop.f32.mrf.mxu0
      %v6669 = vadd.f32 0.0, %v6668
      %v6670 = vpop.f32.mrf.mxu0
      %6671 = vmatprep.mubr.bf16.mxu0 0
      %6672 = vmatmul.mubr.bf16.gmra.mxu0 %v6503
      %v6673 = vpop.f32.mrf.mxu0
      %v6674 = vadd.f32 0.0, %v6673
      %v6675 = vpop.f32.mrf.mxu0
      %v6676 = vpop.f32.mrf.mxu0
      %v6677 = vadd.f32 0.0, %v6676
      %v6678 = vpop.f32.mrf.mxu0
      %6679 = vmatprep.mubr.bf16.mxu0 0
      %6680 = vmatmul.mubr.bf16.gmra.mxu0 %v6504
      %v6681 = vpop.f32.mrf.mxu0
      %v6682 = vadd.f32 0.0, %v6681
      %v6683 = vpop.f32.mrf.mxu0
      %v6684 = vpop.f32.mrf.mxu0
      %v6685 = vadd.f32 0.0, %v6684
      %v6686 = vpop.f32.mrf.mxu0
      %6687 = vmatprep.mubr.bf16.mxu0 0
      %6688 = vmatmul.mubr.bf16.gmra.mxu0 %v6505
      %v6689 = vpop.f32.mrf.mxu0
      %v6690 = vadd.f32 0.0, %v6689
      %v6691 = vpop.f32.mrf.mxu0
      %v6692 = vpop.f32.mrf.mxu0
      %v6693 = vadd.f32 0.0, %v6692
      %v6694 = vpop.f32.mrf.mxu0
      %6695 = vmatprep.mubr.bf16.mxu0 0
      %6696 = vmatmul.mubr.bf16.gmra.mxu0 %v6506
      %v6697 = vpop.f32.mrf.mxu0
      %v6698 = vadd.f32 0.0, %v6697
      %v6699 = vpop.f32.mrf.mxu0
      %v6700 = vpop.f32.mrf.mxu0
      %v6701 = vadd.f32 0.0, %v6700
      %v6702 = vpop.f32.mrf.mxu0
      %6703 = vmatprep.mubr.bf16.mxu0 0
      %6704 = vmatmul.mubr.bf16.gmra.mxu0 %v6507
      %v6705 = vpop.f32.mrf.mxu0
      %v6706 = vadd.f32 0.0, %v6705
      %v6707 = vpop.f32.mrf.mxu0
      %v6708 = vpop.f32.mrf.mxu0
      %v6709 = vadd.f32 0.0, %v6708
      %v6710 = vpop.f32.mrf.mxu0
      %6711 = vmatprep.mubr.bf16.mxu0 0
      %6712 = vmatmul.mubr.bf16.gmra.mxu0 %v6508
      %v6713 = vpop.f32.mrf.mxu0
      %v6714 = vadd.f32 0.0, %v6713
      %v6715 = vpop.f32.mrf.mxu0
      %v6716 = vpop.f32.mrf.mxu0
      %v6717 = vadd.f32 0.0, %v6716
      %v6718 = vpop.f32.mrf.mxu0
      %6719 = vmatprep.mubr.bf16.mxu0 0
      %6720 = vmatmul.mubr.bf16.gmra.mxu0 %v6509
      %v6721 = vpop.f32.mrf.mxu0
      %v6722 = vadd.f32 0.0, %v6721
      %v6723 = vpop.f32.mrf.mxu0
      %v6724 = vpop.f32.mrf.mxu0
      %v6725 = vadd.f32 0.0, %v6724
      %v6726 = vpop.f32.mrf.mxu0
      %6727 = vmatprep.mubr.bf16.mxu0 0
      %6728 = vmatmul.mubr.bf16.gmra.mxu0 %v6510
      %v6729 = vpop.f32.mrf.mxu0
      %v6730 = vadd.f32 0.0, %v6729
      %v6731 = vpop.f32.mrf.mxu0
      %v6732 = vpop.f32.mrf.mxu0
      %v6733 = vadd.f32 0.0, %v6732
      %v6734 = vpop.f32.mrf.mxu0
      %6735 = vdwg.mxu0
      %v6736 = vadd.f32 %v6414, %v6610
      %v6737 = vadd.f32 %v6415, %v6613
      %v6738 = vadd.f32 %v6416, %v6618
      %v6739 = vadd.f32 %v6417, %v6621
      %v6740 = vadd.f32 %v6418, %v6626
      %v6741 = vadd.f32 %v6419, %v6629
      %v6742 = vadd.f32 %v6420, %v6634
      %v6743 = vadd.f32 %v6421, %v6637
      %v6744 = vadd.f32 %v6422, %v6642
      %v6745 = vadd.f32 %v6423, %v6645
      %v6746 = vadd.f32 %v6424, %v6650
      %v6747 = vadd.f32 %v6425, %v6653
      %v6748 = vadd.f32 %v6426, %v6658
      %v6749 = vadd.f32 %v6427, %v6661
      %v6750 = vadd.f32 %v6428, %v6666
      %v6751 = vadd.f32 %v6429, %v6669
      %v6752 = vadd.f32 %v6430, %v6674
      %v6753 = vadd.f32 %v6431, %v6677
      %v6754 = vadd.f32 %v6432, %v6682
      %v6755 = vadd.f32 %v6433, %v6685
      %v6756 = vadd.f32 %v6434, %v6690
      %v6757 = vadd.f32 %v6435, %v6693
      %v6758 = vadd.f32 %v6436, %v6698
      %v6759 = vadd.f32 %v6437, %v6701
      %v6760 = vadd.f32 %v6438, %v6706
      %v6761 = vadd.f32 %v6439, %v6709
      %v6762 = vadd.f32 %v6440, %v6714
      %v6763 = vadd.f32 %v6441, %v6717
      %v6764 = vadd.f32 %v6442, %v6722
      %v6765 = vadd.f32 %v6443, %v6725
      %v6766 = vadd.f32 %v6444, %v6730
      %v6767 = vadd.f32 %v6445, %v6733
      %6768 = vst [vmem:[#allocation3] sm:$0xff] %v6736
      %6769 = vst [vmem:[#allocation3 + $0x8] sm:$0xff] %v6737
      %6770 = vst [vmem:[#allocation3 + $0x10] sm:$0xff] %v6738
      %6771 = vst [vmem:[#allocation3 + $0x18] sm:$0xff] %v6739
      %6772 = vst [vmem:[#allocation3 + $0x20] sm:$0xff] %v6740
      %6773 = vst [vmem:[#allocation3 + $0x28] sm:$0xff] %v6741
      %6774 = vst [vmem:[#allocation3 + $0x30] sm:$0xff] %v6742
      %6775 = vst [vmem:[#allocation3 + $0x38] sm:$0xff] %v6743
      %6776 = vst [vmem:[#allocation3 + $0x40] sm:$0xff] %v6744
      %6777 = vst [vmem:[#allocation3 + $0x48] sm:$0xff] %v6745
      %6778 = vst [vmem:[#allocation3 + $0x50] sm:$0xff] %v6746
      %6779 = vst [vmem:[#allocation3 + $0x58] sm:$0xff] %v6747
      %6780 = vst [vmem:[#allocation3 + $0x60] sm:$0xff] %v6748
      %6781 = vst [vmem:[#allocation3 + $0x68] sm:$0xff] %v6749
      %6782 = vst [vmem:[#allocation3 + $0x70] sm:$0xff] %v6750
      %6783 = vst [vmem:[#allocation3 + $0x78] sm:$0xff] %v6751
      %6784 = vst [vmem:[#allocation3 + $0x80] sm:$0xff] %v6752
      %6785 = vst [vmem:[#allocation3 + $0x88] sm:$0xff] %v6753
      %6786 = vst [vmem:[#allocation3 + $0x90] sm:$0xff] %v6754
      %6787 = vst [vmem:[#allocation3 + $0x98] sm:$0xff] %v6755
      %6788 = vst [vmem:[#allocation3 + $0xa0] sm:$0xff] %v6756
      %6789 = vst [vmem:[#allocation3 + $0xa8] sm:$0xff] %v6757
      %6790 = vst [vmem:[#allocation3 + $0xb0] sm:$0xff] %v6758
      %6791 = vst [vmem:[#allocation3 + $0xb8] sm:$0xff] %v6759
      %6792 = vst [vmem:[#allocation3 + $0xc0] sm:$0xff] %v6760
      %6793 = vst [vmem:[#allocation3 + $0xc8] sm:$0xff] %v6761
      %6794 = vst [vmem:[#allocation3 + $0xd0] sm:$0xff] %v6762
      %6795 = vst [vmem:[#allocation3 + $0xd8] sm:$0xff] %v6763
      %6796 = vst [vmem:[#allocation3 + $0xe0] sm:$0xff] %v6764
      %6797 = vst [vmem:[#allocation3 + $0xe8] sm:$0xff] %v6765
      %6798 = vst [vmem:[#allocation3 + $0xf0] sm:$0xff] %v6766
      %6799 = vst [vmem:[#allocation3 + $0xf8] sm:$0xff] %v6767
      // Predicated region
      $region41: #{bottleneck_forward.5} parent=35 // pred_check
        %p6800 = pneg %p407
      $region42: #{bottleneck_forward.5} parent=35 // pred_check_branch
        %6802 = sbr.rel (%p6800) target = $region44
      $region43: #{bottleneck_forward.5} parent=35 // pred_region
        %v6803 = vld [vmem:[#allocation3] sm:$0xff]
        %v6804 = vld [vmem:[#allocation3 + $0x8] sm:$0xff]
        %v6805 = vld [vmem:[#allocation3 + $0x10] sm:$0xff]
        %v6806 = vld [vmem:[#allocation3 + $0x18] sm:$0xff]
        %v6807 = vld [vmem:[#allocation3 + $0x20] sm:$0xff]
        %v6808 = vld [vmem:[#allocation3 + $0x28] sm:$0xff]
        %v6809 = vld [vmem:[#allocation3 + $0x30] sm:$0xff]
        %v6810 = vld [vmem:[#allocation3 + $0x38] sm:$0xff]
        %v6811 = vld [vmem:[#allocation3 + $0x40] sm:$0xff]
        %v6812 = vld [vmem:[#allocation3 + $0x48] sm:$0xff]
        %v6813 = vld [vmem:[#allocation3 + $0x50] sm:$0xff]
        %v6814 = vld [vmem:[#allocation3 + $0x58] sm:$0xff]
        %v6815 = vld [vmem:[#allocation3 + $0x60] sm:$0xff]
        %v6816 = vld [vmem:[#allocation3 + $0x68] sm:$0xff]
        %v6817 = vld [vmem:[#allocation3 + $0x70] sm:$0xff]
        %v6818 = vld [vmem:[#allocation3 + $0x78] sm:$0xff]
        %v6819 = vld [vmem:[#allocation3 + $0x80] sm:$0xff]
        %v6820 = vld [vmem:[#allocation3 + $0x88] sm:$0xff]
        %v6821 = vld [vmem:[#allocation3 + $0x90] sm:$0xff]
        %v6822 = vld [vmem:[#allocation3 + $0x98] sm:$0xff]
        %v6823 = vld [vmem:[#allocation3 + $0xa0] sm:$0xff]
        %v6824 = vld [vmem:[#allocation3 + $0xa8] sm:$0xff]
        %v6825 = vld [vmem:[#allocation3 + $0xb0] sm:$0xff]
        %v6826 = vld [vmem:[#allocation3 + $0xb8] sm:$0xff]
        %v6827 = vld [vmem:[#allocation3 + $0xc0] sm:$0xff]
        %v6828 = vld [vmem:[#allocation3 + $0xc8] sm:$0xff]
        %v6829 = vld [vmem:[#allocation3 + $0xd0] sm:$0xff]
        %v6830 = vld [vmem:[#allocation3 + $0xd8] sm:$0xff]
        %v6831 = vld [vmem:[#allocation3 + $0xe0] sm:$0xff]
        %v6832 = vld [vmem:[#allocation3 + $0xe8] sm:$0xff]
        %v6833 = vld [vmem:[#allocation3 + $0xf0] sm:$0xff]
        %v6834 = vld [vmem:[#allocation3 + $0xf8] sm:$0xff]
        %v6835 = vpack.c.bf16 %v6804, %v6803
        %v6836 = vpack.c.bf16 %v6806, %v6805
        %v6837 = vpack.c.bf16 %v6808, %v6807
        %v6838 = vpack.c.bf16 %v6810, %v6809
        %v6839 = vpack.c.bf16 %v6812, %v6811
        %v6840 = vpack.c.bf16 %v6814, %v6813
        %v6841 = vpack.c.bf16 %v6816, %v6815
        %v6842 = vpack.c.bf16 %v6818, %v6817
        %v6843 = vpack.c.bf16 %v6820, %v6819
        %v6844 = vpack.c.bf16 %v6822, %v6821
        %v6845 = vpack.c.bf16 %v6824, %v6823
        %v6846 = vpack.c.bf16 %v6826, %v6825
        %v6847 = vpack.c.bf16 %v6828, %v6827
        %v6848 = vpack.c.bf16 %v6830, %v6829
        %v6849 = vpack.c.bf16 %v6832, %v6831
        %v6850 = vpack.c.bf16 %v6834, %v6833
        %v6867 = vunpack.c.l.b16 %v6835
        %v6868 = vunpack.c.h.b16 %v6835
        %v6869 = vunpack.c.l.b16 %v6836
        %v6870 = vunpack.c.h.b16 %v6836
        %v6871 = vunpack.c.l.b16 %v6837
        %v6872 = vunpack.c.h.b16 %v6837
        %v6873 = vunpack.c.l.b16 %v6838
        %v6874 = vunpack.c.h.b16 %v6838
        %v6875 = vunpack.c.l.b16 %v6839
        %v6876 = vunpack.c.h.b16 %v6839
        %v6877 = vunpack.c.l.b16 %v6840
        %v6878 = vunpack.c.h.b16 %v6840
        %v6879 = vunpack.c.l.b16 %v6841
        %v6880 = vunpack.c.h.b16 %v6841
        %v6881 = vunpack.c.l.b16 %v6842
        %v6882 = vunpack.c.h.b16 %v6842
        %v6883 = vunpack.c.l.b16 %v6843
        %v6884 = vunpack.c.h.b16 %v6843
        %v6885 = vunpack.c.l.b16 %v6844
        %v6886 = vunpack.c.h.b16 %v6844
        %v6887 = vunpack.c.l.b16 %v6845
        %v6888 = vunpack.c.h.b16 %v6845
        %v6889 = vunpack.c.l.b16 %v6846
        %v6890 = vunpack.c.h.b16 %v6846
        %v6891 = vunpack.c.l.b16 %v6847
        %v6892 = vunpack.c.h.b16 %v6847
        %v6893 = vunpack.c.l.b16 %v6848
        %v6894 = vunpack.c.h.b16 %v6848
        %v6895 = vunpack.c.l.b16 %v6849
        %v6896 = vunpack.c.h.b16 %v6849
        %v6897 = vunpack.c.l.b16 %v6850
        %v6898 = vunpack.c.h.b16 %v6850
        %v6899 = vpack.c.b16 %v6867, %v6867
        %v6900 = vpack.c.b16 %v6868, %v6868
        %v6901 = vpack.c.b16 %v6869, %v6869
        %v6902 = vpack.c.b16 %v6870, %v6870
        %v6903 = vpack.c.b16 %v6871, %v6871
        %v6904 = vpack.c.b16 %v6872, %v6872
        %v6905 = vpack.c.b16 %v6873, %v6873
        %v6906 = vpack.c.b16 %v6874, %v6874
        %v6907 = vpack.c.b16 %v6875, %v6875
        %v6908 = vpack.c.b16 %v6876, %v6876
        %v6909 = vpack.c.b16 %v6877, %v6877
        %v6910 = vpack.c.b16 %v6878, %v6878
        %v6911 = vpack.c.b16 %v6879, %v6879
        %v6912 = vpack.c.b16 %v6880, %v6880
        %v6913 = vpack.c.b16 %v6881, %v6881
        %v6914 = vpack.c.b16 %v6882, %v6882
        %v6915 = vpack.c.b16 %v6883, %v6883
        %v6916 = vpack.c.b16 %v6884, %v6884
        %v6917 = vpack.c.b16 %v6885, %v6885
        %v6918 = vpack.c.b16 %v6886, %v6886
        %v6919 = vpack.c.b16 %v6887, %v6887
        %v6920 = vpack.c.b16 %v6888, %v6888
        %v6921 = vpack.c.b16 %v6889, %v6889
        %v6922 = vpack.c.b16 %v6890, %v6890
        %v6923 = vpack.c.b16 %v6891, %v6891
        %v6924 = vpack.c.b16 %v6892, %v6892
        %v6925 = vpack.c.b16 %v6893, %v6893
        %v6926 = vpack.c.b16 %v6894, %v6894
        %v6927 = vpack.c.b16 %v6895, %v6895
        %v6928 = vpack.c.b16 %v6896, %v6896
        %v6929 = vpack.c.b16 %v6897, %v6897
        %v6930 = vpack.c.b16 %v6898, %v6898
        %6963 = vst [vmem:[%s393] sm:$0xf] %v6899
        %6964 = vst [vmem:[%s393 + $0x4] sm:$0xf] %v6900
        %6965 = vst [vmem:[%s393 + $0x8] sm:$0xf] %v6901
        %6966 = vst [vmem:[%s393 + $0xc] sm:$0xf] %v6902
        %6967 = vst [vmem:[%s393 + $0x10] sm:$0xf] %v6903
        %6968 = vst [vmem:[%s393 + $0x14] sm:$0xf] %v6904
        %6969 = vst [vmem:[%s393 + $0x18] sm:$0xf] %v6905
        %6970 = vst [vmem:[%s393 + $0x1c] sm:$0xf] %v6906
        %6971 = vst [vmem:[%s393 + $0x20] sm:$0xf] %v6907
        %6972 = vst [vmem:[%s393 + $0x24] sm:$0xf] %v6908
        %6973 = vst [vmem:[%s393 + $0x28] sm:$0xf] %v6909
        %6974 = vst [vmem:[%s393 + $0x2c] sm:$0xf] %v6910
        %6975 = vst [vmem:[%s393 + $0x30] sm:$0xf] %v6911
        %6976 = vst [vmem:[%s393 + $0x34] sm:$0xf] %v6912
        %6977 = vst [vmem:[%s393 + $0x38] sm:$0xf] %v6913
        %6978 = vst [vmem:[%s393 + $0x3c] sm:$0xf] %v6914
        %6979 = vst [vmem:[%s393 + $0x40] sm:$0xf] %v6915
        %6980 = vst [vmem:[%s393 + $0x44] sm:$0xf] %v6916
        %6981 = vst [vmem:[%s393 + $0x48] sm:$0xf] %v6917
        %6982 = vst [vmem:[%s393 + $0x4c] sm:$0xf] %v6918
        %6983 = vst [vmem:[%s393 + $0x50] sm:$0xf] %v6919
        %6984 = vst [vmem:[%s393 + $0x54] sm:$0xf] %v6920
        %6985 = vst [vmem:[%s393 + $0x58] sm:$0xf] %v6921
        %6986 = vst [vmem:[%s393 + $0x5c] sm:$0xf] %v6922
        %6987 = vst [vmem:[%s393 + $0x60] sm:$0xf] %v6923
        %6988 = vst [vmem:[%s393 + $0x64] sm:$0xf] %v6924
        %6989 = vst [vmem:[%s393 + $0x68] sm:$0xf] %v6925
        %6990 = vst [vmem:[%s393 + $0x6c] sm:$0xf] %v6926
        %6991 = vst [vmem:[%s393 + $0x70] sm:$0xf] %v6927
        %6992 = vst [vmem:[%s393 + $0x74] sm:$0xf] %v6928
        %6993 = vst [vmem:[%s393 + $0x78] sm:$0xf] %v6929
        %6994 = vst [vmem:[%s393 + $0x7c] sm:$0xf] %v6930
        %v6995 = vadd.f32 %v6803, %v6804
        %v6996 = vadd.f32 %v6995, %v6805
        %v6997 = vadd.f32 %v6996, %v6806
        %v6998 = vadd.f32 %v6997, %v6807
        %v6999 = vadd.f32 %v6998, %v6808
        %v7000 = vadd.f32 %v6999, %v6809
        %v7001 = vadd.f32 %v7000, %v6810
        %v7002 = vadd.f32 %v7001, %v6811
        %v7003 = vadd.f32 %v7002, %v6812
        %v7004 = vadd.f32 %v7003, %v6813
        %v7005 = vadd.f32 %v7004, %v6814
        %v7006 = vadd.f32 %v7005, %v6815
        %v7007 = vadd.f32 %v7006, %v6816
        %v7008 = vadd.f32 %v7007, %v6817
        %v7009 = vadd.f32 %v7008, %v6818
        %v7010 = vadd.f32 %v7009, %v6819
        %v7011 = vadd.f32 %v7010, %v6820
        %v7012 = vadd.f32 %v7011, %v6821
        %v7013 = vadd.f32 %v7012, %v6822
        %v7014 = vadd.f32 %v7013, %v6823
        %v7015 = vadd.f32 %v7014, %v6824
        %v7016 = vadd.f32 %v7015, %v6825
        %v7017 = vadd.f32 %v7016, %v6826
        %v7018 = vadd.f32 %v7017, %v6827
        %v7019 = vadd.f32 %v7018, %v6828
        %v7020 = vadd.f32 %v7019, %v6829
        %v7021 = vadd.f32 %v7020, %v6830
        %v7022 = vadd.f32 %v7021, %v6831
        %v7023 = vadd.f32 %v7022, %v6832
        %v7024 = vadd.f32 %v7023, %v6833
        %v7025 = vadd.f32 %v7024, %v6834
        %v7026 = vrot.slane %v7025, 4
        %v7027 = vadd.f32 %v7025, %v7026
        %v7028 = vrot.slane %v7027, 2
        %v7029 = vadd.f32 %v7027, %v7028
        %v7030 = vrot.slane %v7029, 1
        %v7031 = vadd.f32 %v7029, %v7030
        %7032 = vst [vmem:[%s399] sm:$0x1] %v7031
        %v7033 = vmul.f32 %v6803, %v6803
        %v7034 = vmul.f32 %v6804, %v6804
        %v7035 = vmul.f32 %v6805, %v6805
        %v7036 = vmul.f32 %v6806, %v6806
        %v7037 = vmul.f32 %v6807, %v6807
        %v7038 = vmul.f32 %v6808, %v6808
        %v7039 = vmul.f32 %v6809, %v6809
        %v7040 = vmul.f32 %v6810, %v6810
        %v7041 = vmul.f32 %v6811, %v6811
        %v7042 = vmul.f32 %v6812, %v6812
        %v7043 = vmul.f32 %v6813, %v6813
        %v7044 = vmul.f32 %v6814, %v6814
        %v7045 = vmul.f32 %v6815, %v6815
        %v7046 = vmul.f32 %v6816, %v6816
        %v7047 = vmul.f32 %v6817, %v6817
        %v7048 = vmul.f32 %v6818, %v6818
        %v7049 = vmul.f32 %v6819, %v6819
        %v7050 = vmul.f32 %v6820, %v6820
        %v7051 = vmul.f32 %v6821, %v6821
        %v7052 = vmul.f32 %v6822, %v6822
        %v7053 = vmul.f32 %v6823, %v6823
        %v7054 = vmul.f32 %v6824, %v6824
        %v7055 = vmul.f32 %v6825, %v6825
        %v7056 = vmul.f32 %v6826, %v6826
        %v7057 = vmul.f32 %v6827, %v6827
        %v7058 = vmul.f32 %v6828, %v6828
        %v7059 = vmul.f32 %v6829, %v6829
        %v7060 = vmul.f32 %v6830, %v6830
        %v7061 = vmul.f32 %v6831, %v6831
        %v7062 = vmul.f32 %v6832, %v6832
        %v7063 = vmul.f32 %v6833, %v6833
        %v7064 = vmul.f32 %v6834, %v6834
        %v7065 = vadd.f32 %v7033, %v7034
        %v7066 = vadd.f32 %v7065, %v7035
        %v7067 = vadd.f32 %v7066, %v7036
        %v7068 = vadd.f32 %v7067, %v7037
        %v7069 = vadd.f32 %v7068, %v7038
        %v7070 = vadd.f32 %v7069, %v7039
        %v7071 = vadd.f32 %v7070, %v7040
        %v7072 = vadd.f32 %v7071, %v7041
        %v7073 = vadd.f32 %v7072, %v7042
        %v7074 = vadd.f32 %v7073, %v7043
        %v7075 = vadd.f32 %v7074, %v7044
        %v7076 = vadd.f32 %v7075, %v7045
        %v7077 = vadd.f32 %v7076, %v7046
        %v7078 = vadd.f32 %v7077, %v7047
        %v7079 = vadd.f32 %v7078, %v7048
        %v7080 = vadd.f32 %v7079, %v7049
        %v7081 = vadd.f32 %v7080, %v7050
        %v7082 = vadd.f32 %v7081, %v7051
        %v7083 = vadd.f32 %v7082, %v7052
        %v7084 = vadd.f32 %v7083, %v7053
        %v7085 = vadd.f32 %v7084, %v7054
        %v7086 = vadd.f32 %v7085, %v7055
        %v7087 = vadd.f32 %v7086, %v7056
        %v7088 = vadd.f32 %v7087, %v7057
        %v7089 = vadd.f32 %v7088, %v7058
        %v7090 = vadd.f32 %v7089, %v7059
        %v7091 = vadd.f32 %v7090, %v7060
        %v7092 = vadd.f32 %v7091, %v7061
        %v7093 = vadd.f32 %v7092, %v7062
        %v7094 = vadd.f32 %v7093, %v7063
        %v7095 = vadd.f32 %v7094, %v7064
        %v7096 = vrot.slane %v7095, 4
        %v7097 = vadd.f32 %v7095, %v7096
        %v7098 = vrot.slane %v7097, 2
        %v7099 = vadd.f32 %v7097, %v7098
        %v7100 = vrot.slane %v7099, 1
        %v7101 = vadd.f32 %v7099, %v7100
        %7102 = vst [vmem:[%s405] sm:$0x1] %v7101
      $region44: #{bottleneck_forward.5} parent=35 // pred_fallthru
        _
      %p7103 = scmp.lt.s32.totalorder %s23, 1
      %s7104 = scalar_select %p7103, %s23, 1
      %p7105 = scmp.lt.s32.totalorder %s24, 0
      %s7106 = scalar_select %p7105, %s24, 0
      %s7107 = smul.addr %s7104, 32
      %s7108 = sadd.s32 %s7106, %s7107
      %s7109 = smul.addr %s7108, 4
      %s7110 = scalar_lea.vmem %s4, %s7109
      %p7111 = scmp.lt.s32.totalorder %s23, 1
      %s7112 = scalar_select %p7111, %s23, 1
      %p7113 = scmp.lt.s32.totalorder %s24, 0
      %s7114 = scalar_select %p7113, %s24, 0
      %s7115 = sadd.s32 %s7114, %s7112
      %s7116 = scalar_lea.vmem %s5, %s7115
      %p7117 = scmp.lt.s32.totalorder %s23, 1
      %s7118 = scalar_select %p7117, %s23, 1
      %p7119 = scmp.lt.s32.totalorder %s24, 0
      %s7120 = scalar_select %p7119, %s24, 0
      %s7121 = sadd.s32 %s7120, %s7118
      %s7122 = scalar_lea.vmem %s6, %s7121
      // Predicated region
      $region45: #{bottleneck_forward.5} parent=35 // pred_check
        %p7123 = pneg %p169
      $region46: #{bottleneck_forward.5} parent=35 // pred_check_branch
        %7125 = sbr.rel (%p7123) target = $region48
      $region47: #{bottleneck_forward.5} parent=35 // pred_region
        _
      $region48: #{bottleneck_forward.5} parent=35 // pred_fallthru
        _
      // Predicated region
      $region49: #{bottleneck_forward.5} parent=35 // pred_check
        %p7126 = pneg %p197
      $region50: #{bottleneck_forward.5} parent=35 // pred_check_branch
        %7128 = sbr.rel (%p7126) target = $region52
      $region51: #{bottleneck_forward.5} parent=35 // pred_region
        _
      $region52: #{bottleneck_forward.5} parent=35 // pred_fallthru
        _
      // Predicated region
      $region53: #{bottleneck_forward.5} parent=35 // pred_check
        %p7129 = pneg %p225
      $region54: #{bottleneck_forward.5} parent=35 // pred_check_branch
        %7131 = sbr.rel (%p7129) target = $region56
      $region55: #{bottleneck_forward.5} parent=35 // pred_region
        _
      $region56: #{bottleneck_forward.5} parent=35 // pred_fallthru
        _
    $region36: #{bottleneck_forward.5} parent=5 // pred_fallthru
      _
    %p7132 = scmp.le.s32.totalorder 2, %s13
    // Predicated region
    $region57: #{bottleneck_forward.5} parent=5 // pred_check
      %p7133 = pneg %p7132
    $region58: #{bottleneck_forward.5} parent=5 // pred_check_branch
      %7135 = sbr.rel (%p7133) target = $region60
    $region59: #{bottleneck_forward.5} parent=5 // pred_region
      %s7136 = ssub.s32 %s13, 2
      // Predicated region
      $region61: #{bottleneck_forward.5} parent=59 // pred_check
        %p7137 = pneg %p175
      $region62: #{bottleneck_forward.5} parent=59 // pred_check_branch
        %7139 = sbr.rel (%p7137) target = $region64
      $region63: #{bottleneck_forward.5} parent=59 // pred_region
        %p7140 = scmp.lt.s32.totalorder %s26, 1
        %s7141 = scalar_select %p7140, %s26, 1
        %p7142 = scmp.lt.s32.totalorder %s27, 0
        %s7143 = scalar_select %p7142, %s27, 0
        %s7144 = smul.addr %s7141, 32
        %s7145 = sadd.s32 %s7143, %s7144
        %s7146 = smul.addr %s7145, 4
        %s7147 = scalar_lea.vmem %s4, %s7146
      $region64: #{bottleneck_forward.5} parent=59 // pred_fallthru
        _
      // Predicated region
      $region65: #{bottleneck_forward.5} parent=59 // pred_check
        %p7148 = pneg %p203
      $region66: #{bottleneck_forward.5} parent=59 // pred_check_branch
        %7150 = sbr.rel (%p7148) target = $region68
      $region67: #{bottleneck_forward.5} parent=59 // pred_region
        %p7151 = scmp.lt.s32.totalorder %s26, 1
        %s7152 = scalar_select %p7151, %s26, 1
        %p7153 = scmp.lt.s32.totalorder %s27, 0
        %s7154 = scalar_select %p7153, %s27, 0
        %s7155 = sadd.s32 %s7154, %s7152
        %s7156 = scalar_lea.vmem %s5, %s7155
      $region68: #{bottleneck_forward.5} parent=59 // pred_fallthru
        _
      // Predicated region
      $region69: #{bottleneck_forward.5} parent=59 // pred_check
        %p7157 = pneg %p231
      $region70: #{bottleneck_forward.5} parent=59 // pred_check_branch
        %7159 = sbr.rel (%p7157) target = $region72
      $region71: #{bottleneck_forward.5} parent=59 // pred_region
        %p7160 = scmp.lt.s32.totalorder %s26, 1
        %s7161 = scalar_select %p7160, %s26, 1
        %p7162 = scmp.lt.s32.totalorder %s27, 0
        %s7163 = scalar_select %p7162, %s27, 0
        %s7164 = sadd.s32 %s7163, %s7161
        %s7165 = scalar_lea.vmem %s6, %s7164
      $region72: #{bottleneck_forward.5} parent=59 // pred_fallthru
        _
    $region60: #{bottleneck_forward.5} parent=5 // pred_fallthru
      _
  $region6: #{bottleneck_forward.5} parent=0 // loop_footer
    %s17 = sadd.s32 1, %s13
  $region7: #{bottleneck_forward.5} parent=0 // loop_footer_branch
    %12 = sbr.rel target = $region3
  $region8: #{bottleneck_forward.5} parent=0 // loop_exit
    _

</llo_original>
